<compile_context>
chip_gen: v7x
topology: tpu7x:2x2x1
jax: 0.10.0
libtpu: 0.0.40
codegen_flags: <defaults>
</compile_context>

<pallas_src>
import functools

import jax
import jax.numpy as jnp
from jax import lax
from jax.experimental import pallas as pl
from jax.experimental.pallas import tpu as pltpu

_EPS = 1e-12          # F.normalize default eps
_EPS2 = _EPS * _EPS   # clamp on the squared norm == clamp_min(eps) on the norm
_INV_SQRT2 = 0.7071067811865476


def _gelu_erf(x):
    # torch.nn.GELU() default (approximate="none").  Kept exact for parity;
    # the tanh approximation would move this onto the EUP slot (a v5e win) but
    # changes numerics.
    return 0.5 * x * (1.0 + lax.erf(x * _INV_SQRT2))


def custom_attn_kernel(rescale_ref,            # SMEM (1, 1)     f32
                       x_ref,                  # VMEM [bt*n, D]  bf16
                       wqkv_ref,               # VMEM [D, 3D]    bf16 (to_q|to_k|to_v)
                       wpv_ref,                # VMEM [nc, n]    bf16 (proj_v.weight)
                       w1_ref,                 # VMEM [D, D]     bf16 (pos_emb[0])
                       wout_ref,               # VMEM [2D, D]    bf16 (proj | pos_emb[2])
                       bproj_ref,              # VMEM [1, D]     f32  (proj.bias)
                       out_ref,                # VMEM [bt*nc, D]
                       *, bt, n):
    f32, bf16 = jnp.float32, jnp.bfloat16
    dim = wqkv_ref.shape[0]
    rescale = rescale_ref[0, 0]

    # Fused Q/K/V projection for the whole batch block: one bf16 MXU matmul
    # with f32 accumulation.
    qkv = jnp.dot(x_ref[...], wqkv_ref[...], preferred_element_type=f32)  # [bt*n, 3D]

    vh_tiles = []   # per-instance normalized proj_v(v), bf16  [nc, D]
    xo_tiles = []   # per-instance attention output, bf16      [nc, D]

    # Per-instance attention.  bt is a small static constant, so this static
    # Python loop is fully unrolled at trace time (equivalent to
    # lax.fori_loop(..., unroll=True)) and lets us gather the per-instance
    # tiles for the batched tail matmuls below.
    for b in range(bt):
        r0 = b * n

        # Fused q/k column sum-of-squares: one sublane reduction over the
        # lane-aligned [n, 2D] slice instead of two over [n, D].
        qk = qkv[r0:r0 + n, 0:2 * dim]
        ss = jnp.sum(qk * qk, axis=0, keepdims=True)               # [1, 2D]
        inv = lax.rsqrt(jnp.maximum(ss, _EPS2))                    # EUP rsqrt
        # F.normalize(q.T / k.T, dim=-1) scales each *column* of q/k; the
        # scalar rescale is folded into q's factor (no separate [D,D] pass).
        qh = (qk[:, 0:dim] * (inv[:, 0:dim] * rescale)).astype(bf16)      # [n, D]
        kh = (qk[:, dim:2 * dim] * inv[:, dim:2 * dim]).astype(bf16)      # [n, D]

        # proj_v(v.T).transpose(0,1) == Wpv @ v -> [nc, D]; then row-normalize.
        v = qkv[r0:r0 + n, 2 * dim:3 * dim]
        vp = jnp.dot(wpv_ref[...], v.astype(bf16), preferred_element_type=f32)
        inv_v = lax.rsqrt(jnp.maximum(
            jnp.sum(vp * vp, axis=-1, keepdims=True), _EPS2))
        vh_b = (vp * inv_v).astype(bf16)                                   # [nc, D]

        # attn = normalize(k.T) @ normalize(q.T).T : contract over the n axis
        # (dim 0 of both operands -> transposed-LHS MXU feed; verified no
        # materialized transpose on the lowering used here).
        attn = lax.dot_general(kh, qh, (((0,), (0,)), ((), ())),
                               preferred_element_type=f32)                 # [D, D]

        # softmax(dim=-1).  No max-subtraction: |attn| <= |rescale| because the
        # rows/cols are unit vectors; only a learned rescale > ~80 could
        # overflow exp.  Reciprocal of the row sum goes to the EUP slot.
        e = jnp.exp(attn)
        p = e * pl.reciprocal(jnp.sum(e, axis=-1, keepdims=True), approx=True)
        # The 1/rowsum stays on `e` (not folded into vh): vh also feeds
        # pos_emb, so folding would need a second [nc,D] bf16 copy plus a
        # [D,1]->[1,D] relayout and nets zero VPU work.

        xo_tiles.append(
            jnp.dot(vh_b, p.astype(bf16),
                    preferred_element_type=f32).astype(bf16))              # [nc, D]
        vh_tiles.append(vh_b)

    vh_all = vh_tiles[0] if bt == 1 else jnp.concatenate(vh_tiles, axis=0)  # [bt*nc, D]
    xo_all = xo_tiles[0] if bt == 1 else jnp.concatenate(xo_tiles, axis=0)  # [bt*nc, D]

    # pos_emb first Linear + exact GELU, batched over the whole block.
    h = jnp.dot(vh_all, w1_ref[...], preferred_element_type=f32)
    h = _gelu_erf(h)

    # proj and pos_emb's second Linear fused into ONE matmul:
    #   [xo | h] @ [Wproj_t ; W2_t]  ==  proj(xo) - bias + pos_emb_2(h)
    cat = jnp.concatenate([xo_all, h.astype(bf16)], axis=-1)               # [bt*nc, 2D]
    out = jnp.dot(cat, wout_ref[...], preferred_element_type=f32) + bproj_ref[...]
    out_ref[...] = out.astype(out_ref.dtype)


def _pick_block_batch(batch, max_block=8):
    """Batch instances per grid step.

    Prefer an even grid length (keeps both v7x TensorCores busy under
    dimension_semantics=("parallel",)); among those, take the largest block
    <= max_block.  Otherwise fall back to the largest divisor (v5e/v6e: fewer
    sequential grid steps).  For B == 1 the kernel runs on a single core;
    splitting over num_class would be the v7x lever in that case.
    """
    for bt in range(min(batch, max_block), 0, -1):
        if batch % bt == 0 and (batch // bt) % 2 == 0:
            return bt
    for bt in range(min(batch, max_block), 0, -1):
        if batch % bt == 0:
            return bt
    return 1


def custom_attn(x, params, *, block_batch=None, out_dtype=None):
    """x: [n, dim] or [B, n, dim].  Returns [num_class, dim] or [B, num_class, dim]."""
    squeeze = x.ndim == 2
    if squeeze:
        x = x[None]
    B, n, dim = x.shape
    num_class = params["wpv"].shape[0]
    out_dtype = x.dtype if out_dtype is None else out_dtype  # pass bf16 if downstream allows
    bf16 = jnp.bfloat16

    assert dim % 128 == 0 and n % 8 == 0 and num_class % 8 == 0, (
        "kernel assumes lane-aligned dim and sublane-aligned n / num_class")

    bt = _pick_block_batch(B) if block_batch is None else block_batch
    assert B % bt == 0, (B, bt)

    # Static weight prep outside the kernel: fuse Q|K|V and proj|pos_emb[2],
    # cast all MXU operands to bf16 (halves DMA bytes & VMEM residency; f32
    # accumulation happens in-kernel).
    wqkv = jnp.concatenate([params["wq_t"], params["wk_t"], params["wv_t"]],
                           axis=1).astype(bf16)                    # [D, 3D]
    wout = jnp.concatenate([params["wproj_t"], params["w2_t"]],
                           axis=0).astype(bf16)                    # [2D, D]
    wpv = params["wpv"].astype(bf16)                               # [nc, n]
    w1 = params["w1_t"].astype(bf16)                               # [D, D]
    bproj = params["bproj"].astype(jnp.float32)                    # [1, D]
    rescale = params["rescale"].astype(jnp.float32)                # [1, 1]
    x2 = x.reshape(B * n, dim).astype(bf16)                        # [B*n, D]

    # Weights use a constant index_map -> fetched once per core and resident
    # across the sequential grid.  At dim=256 double-buffered weight residency
    # is ~1.7 MiB (+ ~5 MiB compiler scratch), well inside the 32 MiB budget;
    # for dim >~1024 on v7x (64 MiB physical VMEM) switch these specs to
    # pipeline_mode=pl.Buffered(1) to drop the unused second buffer.
    const = lambda shape: pl.BlockSpec(shape, lambda i: (0, 0))

    out = pl.pallas_call(
        functools.partial(custom_attn_kernel, bt=bt, n=n),
        out_shape=jax.ShapeDtypeStruct((B * num_class, dim), out_dtype),
        grid=(B // bt,),
        in_specs=[
            pl.BlockSpec((1, 1), lambda i: (0, 0),
                         memory_space=pltpu.MemorySpace.SMEM),     # rescale
            pl.BlockSpec((bt * n, dim), lambda i: (i, 0)),         # x (bt instances)
            const((dim, 3 * dim)),                                 # wqkv
            const((num_class, n)),                                 # wpv
            const((dim, dim)),                                     # w1  (pos_emb[0])
            const((2 * dim, dim)),                                 # wout (proj|pos_emb[2])
            const((1, dim)),                                       # bproj
        ],
        out_specs=pl.BlockSpec((bt * num_class, dim), lambda i: (i, 0)),
        compiler_params=pltpu.CompilerParams(
            dimension_semantics=("parallel",),
            vmem_limit_bytes=32 * 1024 * 1024),
    )(rescale, x2, wqkv, wpv, w1, wout, bproj)

    out = out.reshape(B, num_class, dim)
    return out[0] if squeeze else out


def init_params(key, dim, n, num_class):
    """Deterministic synthetic params mirroring nn.Linear shapes.
    PyTorch Linear weight is [out, in]; we store the transpose [in, out]
    (except proj_v, kept as [num_class, n])."""
    ks = jax.random.split(key, 8)
    u = lambda k, shape, fan_in: jax.random.uniform(
        k, shape, jnp.float32, -1.0 / jnp.sqrt(fan_in), 1.0 / jnp.sqrt(fan_in))
    return {
        "wq_t":    u(ks[0], (dim, dim), dim),        # to_q.weight.T
        "wk_t":    u(ks[1], (dim, dim), dim),        # to_k.weight.T
        "wv_t":    u(ks[2], (dim, dim), dim),        # to_v.weight.T
        "wpv":     u(ks[3], (num_class, n), n),      # proj_v.weight [out, in]
        "rescale": jnp.ones((1, 1), jnp.float32),    # nn.Parameter(ones(1,1))
        "wproj_t": u(ks[4], (dim, dim), dim),        # proj.weight.T
        "bproj":   u(ks[5], (1, dim), dim),          # proj.bias
        "w1_t":    u(ks[6], (dim, dim), dim),        # pos_emb[0].weight.T
        "w2_t":    u(ks[7], (dim, dim), dim),        # pos_emb[2].weight.T
    }


def reference(x, p):
    """Plain-JAX (f32) mirror of the PyTorch forward, for correctness check."""
    q = x @ p["wq_t"]
    k = x @ p["wk_t"]
    v = x @ p["wv_t"]
    qT, kT, vT = q.T, k.T, v.T
    v2 = (vT @ p["wpv"].T).T                       # proj_v(v.T).transpose(0,1)

    def norm(a):
        nrm = jnp.sqrt(jnp.sum(a * a, axis=-1, keepdims=True))
        return a / jnp.maximum(nrm, _EPS)

    qn, kn, vn = norm(qT), norm(kT), norm(v2)
    attn = (kn @ qn.T) * p["rescale"][0, 0]
    attn = jax.nn.softmax(attn, axis=-1)
    xo = vn @ attn
    out_c = xo @ p["wproj_t"] + p["bproj"]
    h = vn @ p["w1_t"]
    h = 0.5 * h * (1.0 + lax.erf(h / jnp.sqrt(2.0)))
    return out_c + h @ p["w2_t"]


if __name__ == "__main__":
    # The module hard-codes proj_v = nn.Linear(256, num_class), so n == 256.
    # B=4 exercises batch-blocking (bt=2) with an even, 2-step parallel grid.
    B, N, DIM, NUM_CLASS = 4, 256, 256, 128

    key = jax.random.PRNGKey(0)
    kx, kp = jax.random.split(key)
    x_in = jax.random.normal(kx, (B, N, DIM), jnp.float32)
    params = init_params(kp, DIM, N, NUM_CLASS)

    attn_fn = jax.jit(custom_attn)
    out = jax.block_until_ready(attn_fn(x_in, params))
    assert out.shape == (B, NUM_CLASS, DIM), out.shape
    assert bool(jnp.all(jnp.isfinite(out)))

    ref = jax.vmap(lambda xb: reference(xb, params))(x_in)
    max_err = float(jnp.max(jnp.abs(out - ref)))
    assert max_err < 2e-2, f"max abs error vs reference: {max_err}"

    # Single-instance (module-exact) path: [n, dim] -> [num_class, dim].
    out_single = jax.block_until_ready(custom_attn(x_in[0], params))
    assert out_single.shape == (NUM_CLASS, DIM)
    assert float(jnp.max(jnp.abs(out_single - ref[0]))) < 2e-2

    print("KERNEL_OK")
</pallas_src>

<mosaic_0001>
module attributes {stable_mosaic.version = 11 : i64} {
  func.func @custom_attn_kernel(%arg0: i32, %arg1: memref<1x1xf32, #tpu.memory_space<smem>>, %arg2: memref<512x256xbf16, #tpu.memory_space<vmem>>, %arg3: memref<256x768xbf16, #tpu.memory_space<vmem>>, %arg4: memref<128x256xbf16, #tpu.memory_space<vmem>>, %arg5: memref<256x256xbf16, #tpu.memory_space<vmem>>, %arg6: memref<512x256xbf16, #tpu.memory_space<vmem>>, %arg7: memref<1x256xf32, #tpu.memory_space<vmem>>, %arg8: memref<256x256xf32, #tpu.memory_space<vmem>>) attributes {dimension_semantics = [#tpu.dimension_semantics<parallel>], iteration_bounds = array<i64: 2>, scalar_prefetch = 0 : i64, scratch_operands = 0 : i64, tpu.core_type = #tpu.core_type<tc>, window_params = [{transform_indices = @transform_0, window_bounds = array<i64: 1, 1>}, {transform_indices = @transform_1, window_bounds = array<i64: 512, 256>}, {pipeline_mode = #tpu.pipeline_mode<synchronous>, transform_indices = @transform_2, window_bounds = array<i64: 256, 768>}, {pipeline_mode = #tpu.pipeline_mode<synchronous>, transform_indices = @transform_3, window_bounds = array<i64: 128, 256>}, {pipeline_mode = #tpu.pipeline_mode<synchronous>, transform_indices = @transform_4, window_bounds = array<i64: 256, 256>}, {pipeline_mode = #tpu.pipeline_mode<synchronous>, transform_indices = @transform_5, window_bounds = array<i64: 512, 256>}, {pipeline_mode = #tpu.pipeline_mode<synchronous>, transform_indices = @transform_6, window_bounds = array<i64: 1, 256>}, {transform_indices = @transform_7, window_bounds = array<i64: 256, 256>}]} {
    %c0 = arith.constant 0 : index
    %c0_0 = arith.constant 0 : index
    %0 = memref.load %arg1[%c0, %c0_0] : memref<1x1xf32, #tpu.memory_space<smem>>
    %c0_1 = arith.constant 0 : index
    %c0_2 = arith.constant 0 : index
    %1 = vector.load %arg2[%c0_1, %c0_2] : memref<512x256xbf16, #tpu.memory_space<vmem>>, vector<512x256xbf16>
    %c0_3 = arith.constant 0 : index
    %c0_4 = arith.constant 0 : index
    %2 = vector.load %arg3[%c0_3, %c0_4] : memref<256x768xbf16, #tpu.memory_space<vmem>>, vector<256x768xbf16>
    %cst = arith.constant dense<0.000000e+00> : vector<512x768xf32>
    %3 = tpu.matmul %1, %2, %cst {dimension_numbers = #tpu.dot_dimension_numbers<[1], [0], [0], [1], [0, 0, 1, 1], [], []>} : vector<512x256xbf16>, vector<256x768xbf16>, vector<512x768xf32> -> vector<512x768xf32>
    %4 = vector.extract_strided_slice %3 {offsets = [0, 0], sizes = [256, 512], strides = [1, 1]} : vector<512x768xf32> to vector<256x512xf32>
    %5 = arith.mulf %4, %4 : vector<256x512xf32>
    %cst_5 = arith.constant dense<0.000000e+00> : vector<512xf32>
    %6 = vector.multi_reduction <add>, %5, %cst_5 [0] : vector<256x512xf32> to vector<512xf32>
    %7 = vector.shape_cast %6 : vector<512xf32> to vector<1x512xf32>
    %cst_6 = arith.constant 1.000000e-24 : f32
    %8 = vector.broadcast %cst_6 : f32 to vector<1x512xf32>
    %9 = arith.maximumf %7, %8 : vector<1x512xf32>
    %10 = math.rsqrt %9 : vector<1x512xf32>
    %11 = vector.extract_strided_slice %4 {offsets = [0, 0], sizes = [256, 256], strides = [1, 1]} : vector<256x512xf32> to vector<256x256xf32>
    %12 = vector.extract_strided_slice %10 {offsets = [0, 0], sizes = [1, 256], strides = [1, 1]} : vector<1x512xf32> to vector<1x256xf32>
    %13 = vector.broadcast %0 : f32 to vector<1x256xf32>
    %14 = arith.mulf %12, %13 : vector<1x256xf32>
    %15 = vector.broadcast %14 : vector<1x256xf32> to vector<256x256xf32>
    %16 = arith.mulf %11, %15 : vector<256x256xf32>
    %17 = arith.truncf %16 : vector<256x256xf32> to vector<256x256xbf16>
    %18 = vector.extract_strided_slice %4 {offsets = [0, 256], sizes = [256, 256], strides = [1, 1]} : vector<256x512xf32> to vector<256x256xf32>
    %19 = vector.extract_strided_slice %10 {offsets = [0, 256], sizes = [1, 256], strides = [1, 1]} : vector<1x512xf32> to vector<1x256xf32>
    %20 = vector.broadcast %19 : vector<1x256xf32> to vector<256x256xf32>
    %21 = arith.mulf %18, %20 : vector<256x256xf32>
    %22 = arith.truncf %21 : vector<256x256xf32> to vector<256x256xbf16>
    %23 = vector.extract_strided_slice %3 {offsets = [0, 512], sizes = [256, 256], strides = [1, 1]} : vector<512x768xf32> to vector<256x256xf32>
    %c0_7 = arith.constant 0 : index
    %c0_8 = arith.constant 0 : index
    %24 = vector.load %arg4[%c0_7, %c0_8] : memref<128x256xbf16, #tpu.memory_space<vmem>>, vector<128x256xbf16>
    %25 = arith.truncf %23 : vector<256x256xf32> to vector<256x256xbf16>
    %cst_9 = arith.constant dense<0.000000e+00> : vector<128x256xf32>
    %26 = tpu.matmul %24, %25, %cst_9 {dimension_numbers = #tpu.dot_dimension_numbers<[1], [0], [0], [1], [0, 0, 1, 1], [], []>} : vector<128x256xbf16>, vector<256x256xbf16>, vector<128x256xf32> -> vector<128x256xf32>
    %27 = arith.mulf %26, %26 : vector<128x256xf32>
    %cst_10 = arith.constant dense<0.000000e+00> : vector<128xf32>
    %28 = vector.multi_reduction <add>, %27, %cst_10 [1] : vector<128x256xf32> to vector<128xf32>
    %29 = vector.shape_cast %28 : vector<128xf32> to vector<128x1xf32>
    %cst_11 = arith.constant 1.000000e-24 : f32
    %30 = vector.broadcast %cst_11 : f32 to vector<128x1xf32>
    %31 = arith.maximumf %29, %30 : vector<128x1xf32>
    %32 = math.rsqrt %31 : vector<128x1xf32>
    %33 = vector.broadcast %32 : vector<128x1xf32> to vector<128x256xf32>
    %34 = arith.mulf %26, %33 : vector<128x256xf32>
    %35 = arith.truncf %34 : vector<128x256xf32> to vector<128x256xbf16>
    %cst_12 = arith.constant dense<0.000000e+00> : vector<256x256xf32>
    %36 = tpu.matmul %22, %17, %cst_12 {dimension_numbers = #tpu.dot_dimension_numbers<[0], [0], [1], [1], [0, 1, 1, 1], [], []>} : vector<256x256xbf16>, vector<256x256xbf16>, vector<256x256xf32> -> vector<256x256xf32>
    %37 = math.exp %36 : vector<256x256xf32>
    %cst_13 = arith.constant dense<0.000000e+00> : vector<256xf32>
    %38 = vector.multi_reduction <add>, %37, %cst_13 [1] : vector<256x256xf32> to vector<256xf32>
    %39 = vector.shape_cast %38 : vector<256xf32> to vector<256x1xf32>
    %40 = tpu.reciprocal %39 {approx = true} : vector<256x1xf32> -> vector<256x1xf32>
    %41 = vector.broadcast %40 : vector<256x1xf32> to vector<256x256xf32>
    %42 = arith.mulf %37, %41 : vector<256x256xf32>
    %43 = arith.truncf %42 : vector<256x256xf32> to vector<256x256xbf16>
    %cst_14 = arith.constant dense<0.000000e+00> : vector<128x256xf32>
    %44 = tpu.matmul %35, %43, %cst_14 {dimension_numbers = #tpu.dot_dimension_numbers<[1], [0], [0], [1], [0, 0, 1, 1], [], []>} : vector<128x256xbf16>, vector<256x256xbf16>, vector<128x256xf32> -> vector<128x256xf32>
    %45 = arith.truncf %44 : vector<128x256xf32> to vector<128x256xbf16>
    %46 = vector.extract_strided_slice %3 {offsets = [256, 0], sizes = [256, 512], strides = [1, 1]} : vector<512x768xf32> to vector<256x512xf32>
    %47 = arith.mulf %46, %46 : vector<256x512xf32>
    %cst_15 = arith.constant dense<0.000000e+00> : vector<512xf32>
    %48 = vector.multi_reduction <add>, %47, %cst_15 [0] : vector<256x512xf32> to vector<512xf32>
    %49 = vector.shape_cast %48 : vector<512xf32> to vector<1x512xf32>
    %cst_16 = arith.constant 1.000000e-24 : f32
    %50 = vector.broadcast %cst_16 : f32 to vector<1x512xf32>
    %51 = arith.maximumf %49, %50 : vector<1x512xf32>
    %52 = math.rsqrt %51 : vector<1x512xf32>
    %53 = vector.extract_strided_slice %46 {offsets = [0, 0], sizes = [256, 256], strides = [1, 1]} : vector<256x512xf32> to vector<256x256xf32>
    %54 = vector.extract_strided_slice %52 {offsets = [0, 0], sizes = [1, 256], strides = [1, 1]} : vector<1x512xf32> to vector<1x256xf32>
    %55 = vector.broadcast %0 : f32 to vector<1x256xf32>
    %56 = arith.mulf %54, %55 : vector<1x256xf32>
    %57 = vector.broadcast %56 : vector<1x256xf32> to vector<256x256xf32>
    %58 = arith.mulf %53, %57 : vector<256x256xf32>
    %59 = arith.truncf %58 : vector<256x256xf32> to vector<256x256xbf16>
    %60 = vector.extract_strided_slice %46 {offsets = [0, 256], sizes = [256, 256], strides = [1, 1]} : vector<256x512xf32> to vector<256x256xf32>
    %61 = vector.extract_strided_slice %52 {offsets = [0, 256], sizes = [1, 256], strides = [1, 1]} : vector<1x512xf32> to vector<1x256xf32>
    %62 = vector.broadcast %61 : vector<1x256xf32> to vector<256x256xf32>
    %63 = arith.mulf %60, %62 : vector<256x256xf32>
    %64 = arith.truncf %63 : vector<256x256xf32> to vector<256x256xbf16>
    %65 = vector.extract_strided_slice %3 {offsets = [256, 512], sizes = [256, 256], strides = [1, 1]} : vector<512x768xf32> to vector<256x256xf32>
    %c0_17 = arith.constant 0 : index
    %c0_18 = arith.constant 0 : index
    %66 = vector.load %arg4[%c0_17, %c0_18] : memref<128x256xbf16, #tpu.memory_space<vmem>>, vector<128x256xbf16>
    %67 = arith.truncf %65 : vector<256x256xf32> to vector<256x256xbf16>
    %cst_19 = arith.constant dense<0.000000e+00> : vector<128x256xf32>
    %68 = tpu.matmul %66, %67, %cst_19 {dimension_numbers = #tpu.dot_dimension_numbers<[1], [0], [0], [1], [0, 0, 1, 1], [], []>} : vector<128x256xbf16>, vector<256x256xbf16>, vector<128x256xf32> -> vector<128x256xf32>
    %69 = arith.mulf %68, %68 : vector<128x256xf32>
    %cst_20 = arith.constant dense<0.000000e+00> : vector<128xf32>
    %70 = vector.multi_reduction <add>, %69, %cst_20 [1] : vector<128x256xf32> to vector<128xf32>
    %71 = vector.shape_cast %70 : vector<128xf32> to vector<128x1xf32>
    %cst_21 = arith.constant 1.000000e-24 : f32
    %72 = vector.broadcast %cst_21 : f32 to vector<128x1xf32>
    %73 = arith.maximumf %71, %72 : vector<128x1xf32>
    %74 = math.rsqrt %73 : vector<128x1xf32>
    %75 = vector.broadcast %74 : vector<128x1xf32> to vector<128x256xf32>
    %76 = arith.mulf %68, %75 : vector<128x256xf32>
    %77 = arith.truncf %76 : vector<128x256xf32> to vector<128x256xbf16>
    %cst_22 = arith.constant dense<0.000000e+00> : vector<256x256xf32>
    %78 = tpu.matmul %64, %59, %cst_22 {dimension_numbers = #tpu.dot_dimension_numbers<[0], [0], [1], [1], [0, 1, 1, 1], [], []>} : vector<256x256xbf16>, vector<256x256xbf16>, vector<256x256xf32> -> vector<256x256xf32>
    %79 = math.exp %78 : vector<256x256xf32>
    %cst_23 = arith.constant dense<0.000000e+00> : vector<256xf32>
    %80 = vector.multi_reduction <add>, %79, %cst_23 [1] : vector<256x256xf32> to vector<256xf32>
    %81 = vector.shape_cast %80 : vector<256xf32> to vector<256x1xf32>
    %82 = tpu.reciprocal %81 {approx = true} : vector<256x1xf32> -> vector<256x1xf32>
    %83 = vector.broadcast %82 : vector<256x1xf32> to vector<256x256xf32>
    %84 = arith.mulf %79, %83 : vector<256x256xf32>
    %85 = arith.truncf %84 : vector<256x256xf32> to vector<256x256xbf16>
    %cst_24 = arith.constant dense<0.000000e+00> : vector<128x256xf32>
    %86 = tpu.matmul %77, %85, %cst_24 {dimension_numbers = #tpu.dot_dimension_numbers<[1], [0], [0], [1], [0, 0, 1, 1], [], []>} : vector<128x256xbf16>, vector<256x256xbf16>, vector<128x256xf32> -> vector<128x256xf32>
    %87 = arith.truncf %86 : vector<128x256xf32> to vector<128x256xbf16>
    %88 = tpu.concatenate %35, %77 in 0 : vector<128x256xbf16>, vector<128x256xbf16> -> vector<256x256xbf16>
    %89 = tpu.concatenate %45, %87 in 0 : vector<128x256xbf16>, vector<128x256xbf16> -> vector<256x256xbf16>
    %c0_25 = arith.constant 0 : index
    %c0_26 = arith.constant 0 : index
    %90 = vector.load %arg5[%c0_25, %c0_26] : memref<256x256xbf16, #tpu.memory_space<vmem>>, vector<256x256xbf16>
    %cst_27 = arith.constant dense<0.000000e+00> : vector<256x256xf32>
    %91 = tpu.matmul %88, %90, %cst_27 {dimension_numbers = #tpu.dot_dimension_numbers<[1], [0], [0], [1], [0, 0, 1, 1], [], []>} : vector<256x256xbf16>, vector<256x256xbf16>, vector<256x256xf32> -> vector<256x256xf32>
    %cst_28 = arith.constant 5.000000e-01 : f32
    %92 = vector.broadcast %cst_28 : f32 to vector<256x256xf32>
    %93 = arith.mulf %92, %91 : vector<256x256xf32>
    %cst_29 = arith.constant 0.707106769 : f32
    %94 = vector.broadcast %cst_29 : f32 to vector<256x256xf32>
    %95 = arith.mulf %91, %94 : vector<256x256xf32>
    %96 = math.erf %95 : vector<256x256xf32>
    %cst_30 = arith.constant 1.000000e+00 : f32
    %97 = vector.broadcast %cst_30 : f32 to vector<256x256xf32>
    %98 = arith.addf %97, %96 : vector<256x256xf32>
    %99 = arith.mulf %93, %98 : vector<256x256xf32>
    %100 = arith.truncf %99 : vector<256x256xf32> to vector<256x256xbf16>
    %101 = tpu.concatenate %89, %100 in 1 : vector<256x256xbf16>, vector<256x256xbf16> -> vector<256x512xbf16>
    %c0_31 = arith.constant 0 : index
    %c0_32 = arith.constant 0 : index
    %102 = vector.load %arg6[%c0_31, %c0_32] : memref<512x256xbf16, #tpu.memory_space<vmem>>, vector<512x256xbf16>
    %cst_33 = arith.constant dense<0.000000e+00> : vector<256x256xf32>
    %103 = tpu.matmul %101, %102, %cst_33 {dimension_numbers = #tpu.dot_dimension_numbers<[1], [0], [0], [1], [0, 0, 1, 1], [], []>} : vector<256x512xbf16>, vector<512x256xbf16>, vector<256x256xf32> -> vector<256x256xf32>
    %c0_34 = arith.constant 0 : index
    %c0_35 = arith.constant 0 : index
    %104 = vector.load %arg7[%c0_34, %c0_35] : memref<1x256xf32, #tpu.memory_space<vmem>>, vector<1x256xf32>
    %105 = vector.broadcast %104 : vector<1x256xf32> to vector<256x256xf32>
    %106 = arith.addf %103, %105 : vector<256x256xf32>
    %c0_36 = arith.constant 0 : index
    %c0_37 = arith.constant 0 : index
    %107 = vector.load %arg8[%c0_36, %c0_37] : memref<256x256xf32, #tpu.memory_space<vmem>>, vector<256x256xf32>
    tpu.vector_store %arg8[%c0_36, %c0_37], %106 {strides = array<i32>} : memref<256x256xf32, #tpu.memory_space<vmem>>, vector<256x256xf32>,
    return
  }
  func.func @transform_0(%arg0: i32) -> (i32, i32) {
    %c0_i32 = arith.constant 0 : i32
    %c0_i32_0 = arith.constant 0 : i32
    %c0_i32_1 = arith.constant 0 : i32
    return %c0_i32, %c0_i32_0 : i32, i32
  }
  func.func @transform_1(%arg0: i32) -> (i32, i32) {
    %c0_i32 = arith.constant 0 : i32
    %c0_i32_0 = arith.constant 0 : i32
    return %arg0, %c0_i32 : i32, i32
  }
  func.func @transform_2(%arg0: i32) -> (i32, i32) {
    %c0_i32 = arith.constant 0 : i32
    %c0_i32_0 = arith.constant 0 : i32
    %c0_i32_1 = arith.constant 0 : i32
    return %c0_i32, %c0_i32_0 : i32, i32
  }
  func.func @transform_3(%arg0: i32) -> (i32, i32) {
    %c0_i32 = arith.constant 0 : i32
    %c0_i32_0 = arith.constant 0 : i32
    %c0_i32_1 = arith.constant 0 : i32
    return %c0_i32, %c0_i32_0 : i32, i32
  }
  func.func @transform_4(%arg0: i32) -> (i32, i32) {
    %c0_i32 = arith.constant 0 : i32
    %c0_i32_0 = arith.constant 0 : i32
    %c0_i32_1 = arith.constant 0 : i32
    return %c0_i32, %c0_i32_0 : i32, i32
  }
  func.func @transform_5(%arg0: i32) -> (i32, i32) {
    %c0_i32 = arith.constant 0 : i32
    %c0_i32_0 = arith.constant 0 : i32
    %c0_i32_1 = arith.constant 0 : i32
    return %c0_i32, %c0_i32_0 : i32, i32
  }
  func.func @transform_6(%arg0: i32) -> (i32, i32) {
    %c0_i32 = arith.constant 0 : i32
    %c0_i32_0 = arith.constant 0 : i32
    %c0_i32_1 = arith.constant 0 : i32
    return %c0_i32, %c0_i32_0 : i32, i32
  }
  func.func @transform_7(%arg0: i32) -> (i32, i32) {
    %c0_i32 = arith.constant 0 : i32
    %c0_i32_0 = arith.constant 0 : i32
    return %arg0, %c0_i32 : i32, i32
  }
}

</mosaic_0001>

<llo_original>
// kernel: custom_attn.1
$region0: #{custom_attn.1}
  #allocation0 [shape = 'u32[]', space=smem, size = 0x4, offset = 0x4, fixed_abs, tag = 'smem constant byte address 0x4 - core index']
  #allocation1 [shape = 'u32[144,128]{1,0:T(1,128)}', space=vmem, size = 0x12000, scoped, tag = 'internal scratch']
  #allocation2 [shape = 'f32[1,1]{1,0:T(1,128)S(6)}', space=smem, size = 0x200, scoped, tag = 'scoped memory for custom_attn.1']
  %s0 = inlined_call_operand.<no memory space> [shape: f32[1,1], index: 0, kind: input, shape index: {}]
  %s1 = inlined_call_operand.vmem [shape: bf16[1024,256], index: 1, kind: input, shape index: {}]
  %s2 = inlined_call_operand.vmem [shape: bf16[256,768], index: 2, kind: input, shape index: {}]
  %s3 = inlined_call_operand.vmem [shape: bf16[128,256], index: 3, kind: input, shape index: {}]
  %s4 = inlined_call_operand.vmem [shape: bf16[256,256], index: 4, kind: input, shape index: {}]
  %s5 = inlined_call_operand.vmem [shape: bf16[512,256], index: 5, kind: input, shape index: {}]
  %s6 = inlined_call_operand.vmem [shape: f32[1,256], index: 6, kind: input, shape index: {}]
  %s7 = inlined_call_operand.hbm [shape: f32[512,256], index: 7, kind: output, shape index: {}]
  %s8 = sld [smem:[#allocation0]]
  $region61: #{custom_attn.1} parent=0
    _
  %s10 = ssub.s32 1, %s8
  %s11 = scalar_select 0, %s10, %s8
  %12 = sst [smem:[#allocation2]] %s0
  $region1: #{custom_attn.1} parent=0
    #allocation3 [shape = 'u8[524288]{0}', space=vmem, size = 0x80000, scoped, tag = 'output window, operand 0']
    #allocation4 [shape = 's32[2]{0}', space=sflag, size = 0x8, scoped, tag = 'scoped memory for custom_attn.1']
    %13 = vsyncpa [#allocation4], 0
    %s14 = scalar_lea.sflag [#allocation4], 1
    %15 = vsyncpa %s14, 0
    loop: start=0, step=1, limit=4
    $region2: #{custom_attn.1} parent=1 // loop_pre_header
      _
    $region3: #{custom_attn.1} parent=1 // loop_header
      %s17 = sphi 0, %s21
      %p18 = scmp.ge.s32.totalorder %s17, 4
      %s25 = sphi 0, %s25
      %s27 = sphi 0, %s25
      %s28 = sphi 0, %s27
      %s42 = sphi 0, %s28
      %s48 = sphi 0, %s50
      %s51 = sphi 0, %s48
      %s52 = sphi 0, %s51
      %s68 = sphi 0, %s52
      %s72 = sphi 0, %s72
      %s74 = sphi 0, %s72
      %s75 = sphi 0, %s74
      %s89 = sphi 0, %s75
      %s93 = sphi 0, %s93
      %s95 = sphi 0, %s93
      %s96 = sphi 0, %s95
      %s110 = sphi 0, %s96
      %s114 = sphi 0, %s114
      %s116 = sphi 0, %s114
      %s117 = sphi 0, %s116
      %s131 = sphi 0, %s117
      %s135 = sphi 0, %s135
      %s137 = sphi 0, %s135
      %s138 = sphi 0, %s137
      %s152 = sphi 0, %s138
      %s156 = sphi 0, %s156
      %s158 = sphi 0, %s156
      %s159 = sphi 0, %s158
      %s173 = sphi 0, %s159
      %s179 = sphi 0, %s181
      %s182 = sphi 0, %s179
      %s183 = sphi 0, %s182
      %s199 = sphi 0, %s183
    $region4: #{custom_attn.1} parent=1 // loop_header_branch
      %20 = sbr.rel (%p18) target = $region8
    $region5: #{custom_attn.1} parent=1 // loop_body
      %s22 = ssub.s32 %s17, 1
      %s23 = ssub.s32 %s17, 2
      %s24 = sadd.s32 %s17, 1
      %s26 = sadd.s32 %s25, 1
      %p29 = scmp.eq.s32.totalorder %s17, 1
      %p30 = scmp.ne.s32.totalorder %s25, %s27
      %p31 = scmp.eq.s32.totalorder %s17, 0
      %p32 = por %p30, %p31
      %p33 = scmp.ne.s32.totalorder %s25, %s27
      %p34 = scmp.eq.s32.totalorder %s22, 1
      %p35 = por %p33, %p34
      %p36 = scmp.ne.s32.totalorder %s27, %s28
      %p37 = scmp.eq.s32.totalorder %s22, 0
      %p38 = por %p36, %p37
      %p39 = scmp.ne.s32.totalorder %s27, %s28
      %p40 = scmp.eq.s32.totalorder %s23, 1
      %p41 = por %p39, %p40
      %p43 = scmp.ne.s32.totalorder %s28, %s42
      %p44 = scmp.eq.s32.totalorder %s23, 0
      %p45 = por %p43, %p44
      %s46 = ssub.s32 %s17, %s24
      %p47 = scmp.eq.s32.totalorder %s46, 0
      %s49 = sadd.s32 %s48, 1
      %s50 = scalar_select %p47, %s48, %s49
      %p53 = pneg %p47
      %p54 = scmp.eq.s32.totalorder %s17, 1
      %p55 = por %p53, %p54
      %p56 = scmp.ne.s32.totalorder %s48, %s51
      %p57 = scmp.eq.s32.totalorder %s17, 0
      %p58 = por %p56, %p57
      %p59 = scmp.ne.s32.totalorder %s48, %s51
      %p60 = scmp.eq.s32.totalorder %s22, 1
      %p61 = por %p59, %p60
      %p62 = scmp.ne.s32.totalorder %s51, %s52
      %p63 = scmp.eq.s32.totalorder %s22, 0
      %p64 = por %p62, %p63
      %p65 = scmp.ne.s32.totalorder %s51, %s52
      %p66 = scmp.eq.s32.totalorder %s23, 1
      %p67 = por %p65, %p66
      %p69 = scmp.ne.s32.totalorder %s52, %s68
      %p70 = scmp.eq.s32.totalorder %s23, 0
      %p71 = por %p69, %p70
      %s73 = sadd.s32 %s72, 1
      %p76 = scmp.eq.s32.totalorder %s17, 1
      %p77 = scmp.ne.s32.totalorder %s72, %s74
      %p78 = scmp.eq.s32.totalorder %s17, 0
      %p79 = por %p77, %p78
      %p80 = scmp.ne.s32.totalorder %s72, %s74
      %p81 = scmp.eq.s32.totalorder %s22, 1
      %p82 = por %p80, %p81
      %p83 = scmp.ne.s32.totalorder %s74, %s75
      %p84 = scmp.eq.s32.totalorder %s22, 0
      %p85 = por %p83, %p84
      %p86 = scmp.ne.s32.totalorder %s74, %s75
      %p87 = scmp.eq.s32.totalorder %s23, 1
      %p88 = por %p86, %p87
      %p90 = scmp.ne.s32.totalorder %s75, %s89
      %p91 = scmp.eq.s32.totalorder %s23, 0
      %p92 = por %p90, %p91
      %s94 = sadd.s32 %s93, 1
      %p97 = scmp.eq.s32.totalorder %s17, 1
      %p98 = scmp.ne.s32.totalorder %s93, %s95
      %p99 = scmp.eq.s32.totalorder %s17, 0
      %p100 = por %p98, %p99
      %p101 = scmp.ne.s32.totalorder %s93, %s95
      %p102 = scmp.eq.s32.totalorder %s22, 1
      %p103 = por %p101, %p102
      %p104 = scmp.ne.s32.totalorder %s95, %s96
      %p105 = scmp.eq.s32.totalorder %s22, 0
      %p106 = por %p104, %p105
      %p107 = scmp.ne.s32.totalorder %s95, %s96
      %p108 = scmp.eq.s32.totalorder %s23, 1
      %p109 = por %p107, %p108
      %p111 = scmp.ne.s32.totalorder %s96, %s110
      %p112 = scmp.eq.s32.totalorder %s23, 0
      %p113 = por %p111, %p112
      %s115 = sadd.s32 %s114, 1
      %p118 = scmp.eq.s32.totalorder %s17, 1
      %p119 = scmp.ne.s32.totalorder %s114, %s116
      %p120 = scmp.eq.s32.totalorder %s17, 0
      %p121 = por %p119, %p120
      %p122 = scmp.ne.s32.totalorder %s114, %s116
      %p123 = scmp.eq.s32.totalorder %s22, 1
      %p124 = por %p122, %p123
      %p125 = scmp.ne.s32.totalorder %s116, %s117
      %p126 = scmp.eq.s32.totalorder %s22, 0
      %p127 = por %p125, %p126
      %p128 = scmp.ne.s32.totalorder %s116, %s117
      %p129 = scmp.eq.s32.totalorder %s23, 1
      %p130 = por %p128, %p129
      %p132 = scmp.ne.s32.totalorder %s117, %s131
      %p133 = scmp.eq.s32.totalorder %s23, 0
      %p134 = por %p132, %p133
      %s136 = sadd.s32 %s135, 1
      %p139 = scmp.eq.s32.totalorder %s17, 1
      %p140 = scmp.ne.s32.totalorder %s135, %s137
      %p141 = scmp.eq.s32.totalorder %s17, 0
      %p142 = por %p140, %p141
      %p143 = scmp.ne.s32.totalorder %s135, %s137
      %p144 = scmp.eq.s32.totalorder %s22, 1
      %p145 = por %p143, %p144
      %p146 = scmp.ne.s32.totalorder %s137, %s138
      %p147 = scmp.eq.s32.totalorder %s22, 0
      %p148 = por %p146, %p147
      %p149 = scmp.ne.s32.totalorder %s137, %s138
      %p150 = scmp.eq.s32.totalorder %s23, 1
      %p151 = por %p149, %p150
      %p153 = scmp.ne.s32.totalorder %s138, %s152
      %p154 = scmp.eq.s32.totalorder %s23, 0
      %p155 = por %p153, %p154
      %s157 = sadd.s32 %s156, 1
      %p160 = scmp.eq.s32.totalorder %s17, 1
      %p161 = scmp.ne.s32.totalorder %s156, %s158
      %p162 = scmp.eq.s32.totalorder %s17, 0
      %p163 = por %p161, %p162
      %p164 = scmp.ne.s32.totalorder %s156, %s158
      %p165 = scmp.eq.s32.totalorder %s22, 1
      %p166 = por %p164, %p165
      %p167 = scmp.ne.s32.totalorder %s158, %s159
      %p168 = scmp.eq.s32.totalorder %s22, 0
      %p169 = por %p167, %p168
      %p170 = scmp.ne.s32.totalorder %s158, %s159
      %p171 = scmp.eq.s32.totalorder %s23, 1
      %p172 = por %p170, %p171
      %p174 = scmp.ne.s32.totalorder %s159, %s173
      %p175 = scmp.eq.s32.totalorder %s23, 0
      %p176 = por %p174, %p175
      %s177 = ssub.s32 %s17, %s24
      %p178 = scmp.eq.s32.totalorder %s177, 0
      %s180 = sadd.s32 %s179, 1
      %s181 = scalar_select %p178, %s179, %s180
      %p184 = pneg %p178
      %p185 = scmp.eq.s32.totalorder %s17, 1
      %p186 = por %p184, %p185
      %p187 = scmp.ne.s32.totalorder %s179, %s182
      %p188 = scmp.eq.s32.totalorder %s17, 0
      %p189 = por %p187, %p188
      %p190 = scmp.ne.s32.totalorder %s179, %s182
      %p191 = scmp.eq.s32.totalorder %s22, 1
      %p192 = por %p190, %p191
      %p193 = scmp.ne.s32.totalorder %s182, %s183
      %p194 = scmp.eq.s32.totalorder %s22, 0
      %p195 = por %p193, %p194
      %p196 = scmp.ne.s32.totalorder %s182, %s183
      %p197 = scmp.eq.s32.totalorder %s23, 1
      %p198 = por %p196, %p197
      %p200 = scmp.ne.s32.totalorder %s183, %s199
      %p201 = scmp.eq.s32.totalorder %s23, 0
      %p202 = por %p200, %p201
      %p203 = scmp.le.s32.totalorder 1, %s17
      %p204 = scmp.lt.s32.totalorder %s17, 3
      %p205 = pnand %p203, %p204
      %p206 = pneg %p205
      // Predicated region
      $region9: #{custom_attn.1} parent=5 // pred_check
        _
      $region10: #{custom_attn.1} parent=5 // pred_check_branch
        %208 = sbr.rel (%p205) target = $region12
      $region11: #{custom_attn.1} parent=5 // pred_region
        %s209 = ssub.s32 %s17, 1
        // Predicated region
        $region13: #{custom_attn.1} parent=11 // pred_check
          %p210 = pneg %p38
        $region14: #{custom_attn.1} parent=11 // pred_check_branch
          %212 = sbr.rel (%p210) target = $region16
        $region15: #{custom_attn.1} parent=11 // pred_region
          _
        $region16: #{custom_attn.1} parent=11 // pred_fallthru
          _
        // Predicated region
        $region17: #{custom_attn.1} parent=11 // pred_check
          %p213 = pneg %p85
        $region18: #{custom_attn.1} parent=11 // pred_check_branch
          %215 = sbr.rel (%p213) target = $region20
        $region19: #{custom_attn.1} parent=11 // pred_region
          _
        $region20: #{custom_attn.1} parent=11 // pred_fallthru
          _
        // Predicated region
        $region21: #{custom_attn.1} parent=11 // pred_check
          %p216 = pneg %p106
        $region22: #{custom_attn.1} parent=11 // pred_check_branch
          %218 = sbr.rel (%p216) target = $region24
        $region23: #{custom_attn.1} parent=11 // pred_region
          _
        $region24: #{custom_attn.1} parent=11 // pred_fallthru
          _
        // Predicated region
        $region25: #{custom_attn.1} parent=11 // pred_check
          %p219 = pneg %p127
        $region26: #{custom_attn.1} parent=11 // pred_check_branch
          %221 = sbr.rel (%p219) target = $region28
        $region27: #{custom_attn.1} parent=11 // pred_region
          _
        $region28: #{custom_attn.1} parent=11 // pred_fallthru
          _
        // Predicated region
        $region29: #{custom_attn.1} parent=11 // pred_check
          %p222 = pneg %p148
        $region30: #{custom_attn.1} parent=11 // pred_check_branch
          %224 = sbr.rel (%p222) target = $region32
        $region31: #{custom_attn.1} parent=11 // pred_region
          _
        $region32: #{custom_attn.1} parent=11 // pred_fallthru
          _
        // Predicated region
        $region33: #{custom_attn.1} parent=11 // pred_check
          %p225 = pneg %p169
        $region34: #{custom_attn.1} parent=11 // pred_check_branch
          %227 = sbr.rel (%p225) target = $region36
        $region35: #{custom_attn.1} parent=11 // pred_region
          _
        $region36: #{custom_attn.1} parent=11 // pred_fallthru
          _
      $region12: #{custom_attn.1} parent=5 // pred_fallthru
        _
      %p228 = scmp.lt.s32.totalorder %s17, 2
      // Predicated region
      $region37: #{custom_attn.1} parent=5 // pred_check
        %p229 = pneg %p228
      $region38: #{custom_attn.1} parent=5 // pred_check_branch
        %231 = sbr.rel (%p229) target = $region40
      $region39: #{custom_attn.1} parent=5 // pred_region
        // Predicated region
        $region41: #{custom_attn.1} parent=39 // pred_check
          %p232 = pneg %p58
        $region42: #{custom_attn.1} parent=39 // pred_check_branch
          %234 = sbr.rel (%p232) target = $region44
        $region43: #{custom_attn.1} parent=39 // pred_region
          %s235 = smul.u32 64, %s17
          %p236 = scmp.lt.s32.totalorder %s235, 127
          %s237 = scalar_select %p236, %s235, 127
          %s238 = smul.addr %s237, 2
          %s239 = smul.addr %s238, 4
          %s240 = scalar_lea.vmem %s1, %s239
          %s241 = smul.u32 64, %s17
        $region44: #{custom_attn.1} parent=39 // pred_fallthru
          _
      $region40: #{custom_attn.1} parent=5 // pred_fallthru
        _
      %p242 = scmp.le.s32.totalorder 1, %s17
      %p243 = scmp.lt.s32.totalorder %s17, 3
      %p244 = pnand %p242, %p243
      %p245 = pneg %p244
      // Predicated region
      $region45: #{custom_attn.1} parent=5 // pred_check
        _
      $region46: #{custom_attn.1} parent=5 // pred_check_branch
        %247 = sbr.rel (%p244) target = $region48
      $region47: #{custom_attn.1} parent=5 // pred_region
        %s248 = ssub.s32 %s17, 1
        %p249 = pneg %p38
        %p250 = pneg %p35
        %s251 = smul.u32 64, %s22
        %p252 = scmp.lt.s32.totalorder %s251, 127
        %s253 = scalar_select %p252, %s251, 127
        %s254 = smul.addr %s253, 2
        %s255 = smul.addr %s254, 4
        %s256 = scalar_lea.vmem %s1, %s255
        %p257 = pneg %p64
        %p258 = pneg %p61
        %p259 = pneg %p85
        %p260 = pneg %p82
        %p261 = pneg %p106
        %p262 = pneg %p103
        %p263 = pneg %p127
        %p264 = pneg %p124
        %p265 = pneg %p148
        %p266 = pneg %p145
        %p267 = pneg %p169
        %p268 = pneg %p166
        %p269 = pneg %p195
        %p270 = pneg %p192
        %s271 = sand.u32 %s182, 1
        %s272 = scalar_lea.sflag [#allocation4], %s271
        %s273 = sand.u32 %s182, 1
        %s274 = smul.addr %s273, 512
        %s275 = scalar_lea.vmem [#allocation3], %s274
        %s276 = smul.u32 64, %s22
        %p277 = scmp.lt.s32.totalorder %s276, 127
        %s278 = scalar_select %p277, %s276, 127
        %s279 = smul.addr %s278, 2
        %s280 = smul.addr %s279, 4
        %s281 = scalar_lea.vmem %s1, %s280
        %s282 = smul.u32 64, %s22
        %s283 = smul.u32 32, %s22
        %s284 = sld [smem:[#allocation2]]
        %v285 = vld [vmem:[%s281] sm:$0xff]
        %v286 = vld [vmem:[%s281 + $0x8] sm:$0xff]
        %v287 = vld [vmem:[%s281 + $0x10] sm:$0xff]
        %v288 = vld [vmem:[%s281 + $0x18] sm:$0xff]
        %v289 = vld [vmem:[%s281 + $0x20] sm:$0xff]
        %v290 = vld [vmem:[%s281 + $0x28] sm:$0xff]
        %v291 = vld [vmem:[%s281 + $0x30] sm:$0xff]
        %v292 = vld [vmem:[%s281 + $0x38] sm:$0xff]
        %v293 = vld [vmem:[%s281 + $0x40] sm:$0xff]
        %v294 = vld [vmem:[%s281 + $0x48] sm:$0xff]
        %v295 = vld [vmem:[%s281 + $0x50] sm:$0xff]
        %v296 = vld [vmem:[%s281 + $0x58] sm:$0xff]
        %v297 = vld [vmem:[%s281 + $0x60] sm:$0xff]
        %v298 = vld [vmem:[%s281 + $0x68] sm:$0xff]
        %v299 = vld [vmem:[%s281 + $0x70] sm:$0xff]
        %v300 = vld [vmem:[%s281 + $0x78] sm:$0xff]
        %v301 = vld [vmem:[%s281 + $0x80] sm:$0xff]
        %v302 = vld [vmem:[%s281 + $0x88] sm:$0xff]
        %v303 = vld [vmem:[%s281 + $0x90] sm:$0xff]
        %v304 = vld [vmem:[%s281 + $0x98] sm:$0xff]
        %v305 = vld [vmem:[%s281 + $0xa0] sm:$0xff]
        %v306 = vld [vmem:[%s281 + $0xa8] sm:$0xff]
        %v307 = vld [vmem:[%s281 + $0xb0] sm:$0xff]
        %v308 = vld [vmem:[%s281 + $0xb8] sm:$0xff]
        %v309 = vld [vmem:[%s281 + $0xc0] sm:$0xff]
        %v310 = vld [vmem:[%s281 + $0xc8] sm:$0xff]
        %v311 = vld [vmem:[%s281 + $0xd0] sm:$0xff]
        %v312 = vld [vmem:[%s281 + $0xd8] sm:$0xff]
        %v313 = vld [vmem:[%s281 + $0xe0] sm:$0xff]
        %v314 = vld [vmem:[%s281 + $0xe8] sm:$0xff]
        %v315 = vld [vmem:[%s281 + $0xf0] sm:$0xff]
        %v316 = vld [vmem:[%s281 + $0xf8] sm:$0xff]
        %v317 = vld [vmem:[%s281 + $0x100] sm:$0xff]
        %v318 = vld [vmem:[%s281 + $0x108] sm:$0xff]
        %v319 = vld [vmem:[%s281 + $0x110] sm:$0xff]
        %v320 = vld [vmem:[%s281 + $0x118] sm:$0xff]
        %v321 = vld [vmem:[%s281 + $0x120] sm:$0xff]
        %v322 = vld [vmem:[%s281 + $0x128] sm:$0xff]
        %v323 = vld [vmem:[%s281 + $0x130] sm:$0xff]
        %v324 = vld [vmem:[%s281 + $0x138] sm:$0xff]
        %v325 = vld [vmem:[%s281 + $0x140] sm:$0xff]
        %v326 = vld [vmem:[%s281 + $0x148] sm:$0xff]
        %v327 = vld [vmem:[%s281 + $0x150] sm:$0xff]
        %v328 = vld [vmem:[%s281 + $0x158] sm:$0xff]
        %v329 = vld [vmem:[%s281 + $0x160] sm:$0xff]
        %v330 = vld [vmem:[%s281 + $0x168] sm:$0xff]
        %v331 = vld [vmem:[%s281 + $0x170] sm:$0xff]
        %v332 = vld [vmem:[%s281 + $0x178] sm:$0xff]
        %v333 = vld [vmem:[%s281 + $0x180] sm:$0xff]
        %v334 = vld [vmem:[%s281 + $0x188] sm:$0xff]
        %v335 = vld [vmem:[%s281 + $0x190] sm:$0xff]
        %v336 = vld [vmem:[%s281 + $0x198] sm:$0xff]
        %v337 = vld [vmem:[%s281 + $0x1a0] sm:$0xff]
        %v338 = vld [vmem:[%s281 + $0x1a8] sm:$0xff]
        %v339 = vld [vmem:[%s281 + $0x1b0] sm:$0xff]
        %v340 = vld [vmem:[%s281 + $0x1b8] sm:$0xff]
        %v341 = vld [vmem:[%s281 + $0x1c0] sm:$0xff]
        %v342 = vld [vmem:[%s281 + $0x1c8] sm:$0xff]
        %v343 = vld [vmem:[%s281 + $0x1d0] sm:$0xff]
        %v344 = vld [vmem:[%s281 + $0x1d8] sm:$0xff]
        %v345 = vld [vmem:[%s281 + $0x1e0] sm:$0xff]
        %v346 = vld [vmem:[%s281 + $0x1e8] sm:$0xff]
        %v347 = vld [vmem:[%s281 + $0x1f0] sm:$0xff]
        %v348 = vld [vmem:[%s281 + $0x1f8] sm:$0xff]
        %v349 = vld [vmem:[%s2] sm:$0xff]
        %v350 = vld [vmem:[%s2 + $0x8] sm:$0xff]
        %v351 = vld [vmem:[%s2 + $0x10] sm:$0xff]
        %v352 = vld [vmem:[%s2 + $0x18] sm:$0xff]
        %v353 = vld [vmem:[%s2 + $0x20] sm:$0xff]
        %v354 = vld [vmem:[%s2 + $0x28] sm:$0xff]
        %v355 = vld [vmem:[%s2 + $0x30] sm:$0xff]
        %v356 = vld [vmem:[%s2 + $0x38] sm:$0xff]
        %v357 = vld [vmem:[%s2 + $0x40] sm:$0xff]
        %v358 = vld [vmem:[%s2 + $0x48] sm:$0xff]
        %v359 = vld [vmem:[%s2 + $0x50] sm:$0xff]
        %v360 = vld [vmem:[%s2 + $0x58] sm:$0xff]
        %v361 = vld [vmem:[%s2 + $0x60] sm:$0xff]
        %v362 = vld [vmem:[%s2 + $0x68] sm:$0xff]
        %v363 = vld [vmem:[%s2 + $0x70] sm:$0xff]
        %v364 = vld [vmem:[%s2 + $0x78] sm:$0xff]
        %v365 = vld [vmem:[%s2 + $0x80] sm:$0xff]
        %v366 = vld [vmem:[%s2 + $0x88] sm:$0xff]
        %v367 = vld [vmem:[%s2 + $0x90] sm:$0xff]
        %v368 = vld [vmem:[%s2 + $0x98] sm:$0xff]
        %v369 = vld [vmem:[%s2 + $0xa0] sm:$0xff]
        %v370 = vld [vmem:[%s2 + $0xa8] sm:$0xff]
        %v371 = vld [vmem:[%s2 + $0xb0] sm:$0xff]
        %v372 = vld [vmem:[%s2 + $0xb8] sm:$0xff]
        %v373 = vld [vmem:[%s2 + $0xc0] sm:$0xff]
        %v374 = vld [vmem:[%s2 + $0xc8] sm:$0xff]
        %v375 = vld [vmem:[%s2 + $0xd0] sm:$0xff]
        %v376 = vld [vmem:[%s2 + $0xd8] sm:$0xff]
        %v377 = vld [vmem:[%s2 + $0xe0] sm:$0xff]
        %v378 = vld [vmem:[%s2 + $0xe8] sm:$0xff]
        %v379 = vld [vmem:[%s2 + $0xf0] sm:$0xff]
        %v380 = vld [vmem:[%s2 + $0xf8] sm:$0xff]
        %v381 = vld [vmem:[%s2 + $0x100] sm:$0xff]
        %v382 = vld [vmem:[%s2 + $0x108] sm:$0xff]
        %v383 = vld [vmem:[%s2 + $0x110] sm:$0xff]
        %v384 = vld [vmem:[%s2 + $0x118] sm:$0xff]
        %v385 = vld [vmem:[%s2 + $0x120] sm:$0xff]
        %v386 = vld [vmem:[%s2 + $0x128] sm:$0xff]
        %v387 = vld [vmem:[%s2 + $0x130] sm:$0xff]
        %v388 = vld [vmem:[%s2 + $0x138] sm:$0xff]
        %v389 = vld [vmem:[%s2 + $0x140] sm:$0xff]
        %v390 = vld [vmem:[%s2 + $0x148] sm:$0xff]
        %v391 = vld [vmem:[%s2 + $0x150] sm:$0xff]
        %v392 = vld [vmem:[%s2 + $0x158] sm:$0xff]
        %v393 = vld [vmem:[%s2 + $0x160] sm:$0xff]
        %v394 = vld [vmem:[%s2 + $0x168] sm:$0xff]
        %v395 = vld [vmem:[%s2 + $0x170] sm:$0xff]
        %v396 = vld [vmem:[%s2 + $0x178] sm:$0xff]
        %v397 = vld [vmem:[%s2 + $0x180] sm:$0xff]
        %v398 = vld [vmem:[%s2 + $0x188] sm:$0xff]
        %v399 = vld [vmem:[%s2 + $0x190] sm:$0xff]
        %v400 = vld [vmem:[%s2 + $0x198] sm:$0xff]
        %v401 = vld [vmem:[%s2 + $0x1a0] sm:$0xff]
        %v402 = vld [vmem:[%s2 + $0x1a8] sm:$0xff]
        %v403 = vld [vmem:[%s2 + $0x1b0] sm:$0xff]
        %v404 = vld [vmem:[%s2 + $0x1b8] sm:$0xff]
        %v405 = vld [vmem:[%s2 + $0x1c0] sm:$0xff]
        %v406 = vld [vmem:[%s2 + $0x1c8] sm:$0xff]
        %v407 = vld [vmem:[%s2 + $0x1d0] sm:$0xff]
        %v408 = vld [vmem:[%s2 + $0x1d8] sm:$0xff]
        %v409 = vld [vmem:[%s2 + $0x1e0] sm:$0xff]
        %v410 = vld [vmem:[%s2 + $0x1e8] sm:$0xff]
        %v411 = vld [vmem:[%s2 + $0x1f0] sm:$0xff]
        %v412 = vld [vmem:[%s2 + $0x1f8] sm:$0xff]
        %v413 = vld [vmem:[%s2 + $0x200] sm:$0xff]
        %v414 = vld [vmem:[%s2 + $0x208] sm:$0xff]
        %v415 = vld [vmem:[%s2 + $0x210] sm:$0xff]
        %v416 = vld [vmem:[%s2 + $0x218] sm:$0xff]
        %v417 = vld [vmem:[%s2 + $0x220] sm:$0xff]
        %v418 = vld [vmem:[%s2 + $0x228] sm:$0xff]
        %v419 = vld [vmem:[%s2 + $0x230] sm:$0xff]
        %v420 = vld [vmem:[%s2 + $0x238] sm:$0xff]
        %v421 = vld [vmem:[%s2 + $0x240] sm:$0xff]
        %v422 = vld [vmem:[%s2 + $0x248] sm:$0xff]
        %v423 = vld [vmem:[%s2 + $0x250] sm:$0xff]
        %v424 = vld [vmem:[%s2 + $0x258] sm:$0xff]
        %v425 = vld [vmem:[%s2 + $0x260] sm:$0xff]
        %v426 = vld [vmem:[%s2 + $0x268] sm:$0xff]
        %v427 = vld [vmem:[%s2 + $0x270] sm:$0xff]
        %v428 = vld [vmem:[%s2 + $0x278] sm:$0xff]
        %v429 = vld [vmem:[%s2 + $0x280] sm:$0xff]
        %v430 = vld [vmem:[%s2 + $0x288] sm:$0xff]
        %v431 = vld [vmem:[%s2 + $0x290] sm:$0xff]
        %v432 = vld [vmem:[%s2 + $0x298] sm:$0xff]
        %v433 = vld [vmem:[%s2 + $0x2a0] sm:$0xff]
        %v434 = vld [vmem:[%s2 + $0x2a8] sm:$0xff]
        %v435 = vld [vmem:[%s2 + $0x2b0] sm:$0xff]
        %v436 = vld [vmem:[%s2 + $0x2b8] sm:$0xff]
        %v437 = vld [vmem:[%s2 + $0x2c0] sm:$0xff]
        %v438 = vld [vmem:[%s2 + $0x2c8] sm:$0xff]
        %v439 = vld [vmem:[%s2 + $0x2d0] sm:$0xff]
        %v440 = vld [vmem:[%s2 + $0x2d8] sm:$0xff]
        %v441 = vld [vmem:[%s2 + $0x2e0] sm:$0xff]
        %v442 = vld [vmem:[%s2 + $0x2e8] sm:$0xff]
        %v443 = vld [vmem:[%s2 + $0x2f0] sm:$0xff]
        %v444 = vld [vmem:[%s2 + $0x2f8] sm:$0xff]
        %v509 = vunpack.c.l.b16 %v285
        %v510 = vunpack.c.h.b16 %v285
        %v511 = vunpack.c.l.b16 %v286
        %v512 = vunpack.c.h.b16 %v286
        %v513 = vunpack.c.l.b16 %v287
        %v514 = vunpack.c.h.b16 %v287
        %v515 = vunpack.c.l.b16 %v288
        %v516 = vunpack.c.h.b16 %v288
        %v517 = vunpack.c.l.b16 %v289
        %v518 = vunpack.c.h.b16 %v289
        %v519 = vunpack.c.l.b16 %v290
        %v520 = vunpack.c.h.b16 %v290
        %v521 = vunpack.c.l.b16 %v291
        %v522 = vunpack.c.h.b16 %v291
        %v523 = vunpack.c.l.b16 %v292
        %v524 = vunpack.c.h.b16 %v292
        %v525 = vunpack.c.l.b16 %v293
        %v526 = vunpack.c.h.b16 %v293
        %v527 = vunpack.c.l.b16 %v294
        %v528 = vunpack.c.h.b16 %v294
        %v529 = vunpack.c.l.b16 %v295
        %v530 = vunpack.c.h.b16 %v295
        %v531 = vunpack.c.l.b16 %v296
        %v532 = vunpack.c.h.b16 %v296
        %v533 = vunpack.c.l.b16 %v297
        %v534 = vunpack.c.h.b16 %v297
        %v535 = vunpack.c.l.b16 %v298
        %v536 = vunpack.c.h.b16 %v298
        %v537 = vunpack.c.l.b16 %v299
        %v538 = vunpack.c.h.b16 %v299
        %v539 = vunpack.c.l.b16 %v300
        %v540 = vunpack.c.h.b16 %v300
        %v541 = vunpack.c.l.b16 %v301
        %v542 = vunpack.c.h.b16 %v301
        %v543 = vunpack.c.l.b16 %v302
        %v544 = vunpack.c.h.b16 %v302
        %v545 = vunpack.c.l.b16 %v303
        %v546 = vunpack.c.h.b16 %v303
        %v547 = vunpack.c.l.b16 %v304
        %v548 = vunpack.c.h.b16 %v304
        %v549 = vunpack.c.l.b16 %v305
        %v550 = vunpack.c.h.b16 %v305
        %v551 = vunpack.c.l.b16 %v306
        %v552 = vunpack.c.h.b16 %v306
        %v553 = vunpack.c.l.b16 %v307
        %v554 = vunpack.c.h.b16 %v307
        %v555 = vunpack.c.l.b16 %v308
        %v556 = vunpack.c.h.b16 %v308
        %v557 = vunpack.c.l.b16 %v309
        %v558 = vunpack.c.h.b16 %v309
        %v559 = vunpack.c.l.b16 %v310
        %v560 = vunpack.c.h.b16 %v310
        %v561 = vunpack.c.l.b16 %v311
        %v562 = vunpack.c.h.b16 %v311
        %v563 = vunpack.c.l.b16 %v312
        %v564 = vunpack.c.h.b16 %v312
        %v565 = vunpack.c.l.b16 %v313
        %v566 = vunpack.c.h.b16 %v313
        %v567 = vunpack.c.l.b16 %v314
        %v568 = vunpack.c.h.b16 %v314
        %v569 = vunpack.c.l.b16 %v315
        %v570 = vunpack.c.h.b16 %v315
        %v571 = vunpack.c.l.b16 %v316
        %v572 = vunpack.c.h.b16 %v316
        %v573 = vunpack.c.l.b16 %v317
        %v574 = vunpack.c.h.b16 %v317
        %v575 = vunpack.c.l.b16 %v318
        %v576 = vunpack.c.h.b16 %v318
        %v577 = vunpack.c.l.b16 %v319
        %v578 = vunpack.c.h.b16 %v319
        %v579 = vunpack.c.l.b16 %v320
        %v580 = vunpack.c.h.b16 %v320
        %v581 = vunpack.c.l.b16 %v321
        %v582 = vunpack.c.h.b16 %v321
        %v583 = vunpack.c.l.b16 %v322
        %v584 = vunpack.c.h.b16 %v322
        %v585 = vunpack.c.l.b16 %v323
        %v586 = vunpack.c.h.b16 %v323
        %v587 = vunpack.c.l.b16 %v324
        %v588 = vunpack.c.h.b16 %v324
        %v589 = vunpack.c.l.b16 %v325
        %v590 = vunpack.c.h.b16 %v325
        %v591 = vunpack.c.l.b16 %v326
        %v592 = vunpack.c.h.b16 %v326
        %v593 = vunpack.c.l.b16 %v327
        %v594 = vunpack.c.h.b16 %v327
        %v595 = vunpack.c.l.b16 %v328
        %v596 = vunpack.c.h.b16 %v328
        %v597 = vunpack.c.l.b16 %v329
        %v598 = vunpack.c.h.b16 %v329
        %v599 = vunpack.c.l.b16 %v330
        %v600 = vunpack.c.h.b16 %v330
        %v601 = vunpack.c.l.b16 %v331
        %v602 = vunpack.c.h.b16 %v331
        %v603 = vunpack.c.l.b16 %v332
        %v604 = vunpack.c.h.b16 %v332
        %v605 = vunpack.c.l.b16 %v333
        %v606 = vunpack.c.h.b16 %v333
        %v607 = vunpack.c.l.b16 %v334
        %v608 = vunpack.c.h.b16 %v334
        %v609 = vunpack.c.l.b16 %v335
        %v610 = vunpack.c.h.b16 %v335
        %v611 = vunpack.c.l.b16 %v336
        %v612 = vunpack.c.h.b16 %v336
        %v613 = vunpack.c.l.b16 %v337
        %v614 = vunpack.c.h.b16 %v337
        %v615 = vunpack.c.l.b16 %v338
        %v616 = vunpack.c.h.b16 %v338
        %v617 = vunpack.c.l.b16 %v339
        %v618 = vunpack.c.h.b16 %v339
        %v619 = vunpack.c.l.b16 %v340
        %v620 = vunpack.c.h.b16 %v340
        %v621 = vunpack.c.l.b16 %v341
        %v622 = vunpack.c.h.b16 %v341
        %v623 = vunpack.c.l.b16 %v342
        %v624 = vunpack.c.h.b16 %v342
        %v625 = vunpack.c.l.b16 %v343
        %v626 = vunpack.c.h.b16 %v343
        %v627 = vunpack.c.l.b16 %v344
        %v628 = vunpack.c.h.b16 %v344
        %v629 = vunpack.c.l.b16 %v345
        %v630 = vunpack.c.h.b16 %v345
        %v631 = vunpack.c.l.b16 %v346
        %v632 = vunpack.c.h.b16 %v346
        %v633 = vunpack.c.l.b16 %v347
        %v634 = vunpack.c.h.b16 %v347
        %v635 = vunpack.c.l.b16 %v348
        %v636 = vunpack.c.h.b16 %v348
        %v637 = vpack.c.b16 %v511, %v509
        %v638 = vpack.c.b16 %v512, %v510
        %v639 = vpack.c.b16 %v515, %v513
        %v640 = vpack.c.b16 %v516, %v514
        %v641 = vpack.c.b16 %v519, %v517
        %v642 = vpack.c.b16 %v520, %v518
        %v643 = vpack.c.b16 %v523, %v521
        %v644 = vpack.c.b16 %v524, %v522
        %v645 = vpack.c.b16 %v527, %v525
        %v646 = vpack.c.b16 %v528, %v526
        %v647 = vpack.c.b16 %v531, %v529
        %v648 = vpack.c.b16 %v532, %v530
        %v649 = vpack.c.b16 %v535, %v533
        %v650 = vpack.c.b16 %v536, %v534
        %v651 = vpack.c.b16 %v539, %v537
        %v652 = vpack.c.b16 %v540, %v538
        %v653 = vpack.c.b16 %v543, %v541
        %v654 = vpack.c.b16 %v544, %v542
        %v655 = vpack.c.b16 %v547, %v545
        %v656 = vpack.c.b16 %v548, %v546
        %v657 = vpack.c.b16 %v551, %v549
        %v658 = vpack.c.b16 %v552, %v550
        %v659 = vpack.c.b16 %v555, %v553
        %v660 = vpack.c.b16 %v556, %v554
        %v661 = vpack.c.b16 %v559, %v557
        %v662 = vpack.c.b16 %v560, %v558
        %v663 = vpack.c.b16 %v563, %v561
        %v664 = vpack.c.b16 %v564, %v562
        %v665 = vpack.c.b16 %v567, %v565
        %v666 = vpack.c.b16 %v568, %v566
        %v667 = vpack.c.b16 %v571, %v569
        %v668 = vpack.c.b16 %v572, %v570
        %v669 = vpack.c.b16 %v575, %v573
        %v670 = vpack.c.b16 %v576, %v574
        %v671 = vpack.c.b16 %v579, %v577
        %v672 = vpack.c.b16 %v580, %v578
        %v673 = vpack.c.b16 %v583, %v581
        %v674 = vpack.c.b16 %v584, %v582
        %v675 = vpack.c.b16 %v587, %v585
        %v676 = vpack.c.b16 %v588, %v586
        %v677 = vpack.c.b16 %v591, %v589
        %v678 = vpack.c.b16 %v592, %v590
        %v679 = vpack.c.b16 %v595, %v593
        %v680 = vpack.c.b16 %v596, %v594
        %v681 = vpack.c.b16 %v599, %v597
        %v682 = vpack.c.b16 %v600, %v598
        %v683 = vpack.c.b16 %v603, %v601
        %v684 = vpack.c.b16 %v604, %v602
        %v685 = vpack.c.b16 %v607, %v605
        %v686 = vpack.c.b16 %v608, %v606
        %v687 = vpack.c.b16 %v611, %v609
        %v688 = vpack.c.b16 %v612, %v610
        %v689 = vpack.c.b16 %v615, %v613
        %v690 = vpack.c.b16 %v616, %v614
        %v691 = vpack.c.b16 %v619, %v617
        %v692 = vpack.c.b16 %v620, %v618
        %v693 = vpack.c.b16 %v623, %v621
        %v694 = vpack.c.b16 %v624, %v622
        %v695 = vpack.c.b16 %v627, %v625
        %v696 = vpack.c.b16 %v628, %v626
        %v697 = vpack.c.b16 %v631, %v629
        %v698 = vpack.c.b16 %v632, %v630
        %v699 = vpack.c.b16 %v635, %v633
        %v700 = vpack.c.b16 %v636, %v634
        %v861 = vunpack.c.l.b16 %v349
        %v862 = vunpack.c.h.b16 %v349
        %v863 = vunpack.c.l.b16 %v350
        %v864 = vunpack.c.h.b16 %v350
        %v865 = vunpack.c.l.b16 %v351
        %v866 = vunpack.c.h.b16 %v351
        %v867 = vunpack.c.l.b16 %v352
        %v868 = vunpack.c.h.b16 %v352
        %v869 = vunpack.c.l.b16 %v353
        %v870 = vunpack.c.h.b16 %v353
        %v871 = vunpack.c.l.b16 %v354
        %v872 = vunpack.c.h.b16 %v354
        %v873 = vunpack.c.l.b16 %v355
        %v874 = vunpack.c.h.b16 %v355
        %v875 = vunpack.c.l.b16 %v356
        %v876 = vunpack.c.h.b16 %v356
        %v877 = vunpack.c.l.b16 %v357
        %v878 = vunpack.c.h.b16 %v357
        %v879 = vunpack.c.l.b16 %v358
        %v880 = vunpack.c.h.b16 %v358
        %v881 = vunpack.c.l.b16 %v359
        %v882 = vunpack.c.h.b16 %v359
        %v883 = vunpack.c.l.b16 %v360
        %v884 = vunpack.c.h.b16 %v360
        %v885 = vunpack.c.l.b16 %v361
        %v886 = vunpack.c.h.b16 %v361
        %v887 = vunpack.c.l.b16 %v362
        %v888 = vunpack.c.h.b16 %v362
        %v889 = vunpack.c.l.b16 %v363
        %v890 = vunpack.c.h.b16 %v363
        %v891 = vunpack.c.l.b16 %v364
        %v892 = vunpack.c.h.b16 %v364
        %v893 = vunpack.c.l.b16 %v365
        %v894 = vunpack.c.h.b16 %v365
        %v895 = vunpack.c.l.b16 %v366
        %v896 = vunpack.c.h.b16 %v366
        %v897 = vunpack.c.l.b16 %v367
        %v898 = vunpack.c.h.b16 %v367
        %v899 = vunpack.c.l.b16 %v368
        %v900 = vunpack.c.h.b16 %v368
        %v901 = vunpack.c.l.b16 %v369
        %v902 = vunpack.c.h.b16 %v369
        %v903 = vunpack.c.l.b16 %v370
        %v904 = vunpack.c.h.b16 %v370
        %v905 = vunpack.c.l.b16 %v371
        %v906 = vunpack.c.h.b16 %v371
        %v907 = vunpack.c.l.b16 %v372
        %v908 = vunpack.c.h.b16 %v372
        %v909 = vunpack.c.l.b16 %v373
        %v910 = vunpack.c.h.b16 %v373
        %v911 = vunpack.c.l.b16 %v374
        %v912 = vunpack.c.h.b16 %v374
        %v913 = vunpack.c.l.b16 %v375
        %v914 = vunpack.c.h.b16 %v375
        %v915 = vunpack.c.l.b16 %v376
        %v916 = vunpack.c.h.b16 %v376
        %v917 = vunpack.c.l.b16 %v377
        %v918 = vunpack.c.h.b16 %v377
        %v919 = vunpack.c.l.b16 %v378
        %v920 = vunpack.c.h.b16 %v378
        %v921 = vunpack.c.l.b16 %v379
        %v922 = vunpack.c.h.b16 %v379
        %v923 = vunpack.c.l.b16 %v380
        %v924 = vunpack.c.h.b16 %v380
        %v925 = vunpack.c.l.b16 %v381
        %v926 = vunpack.c.h.b16 %v381
        %v927 = vunpack.c.l.b16 %v382
        %v928 = vunpack.c.h.b16 %v382
        %v929 = vunpack.c.l.b16 %v383
        %v930 = vunpack.c.h.b16 %v383
        %v931 = vunpack.c.l.b16 %v384
        %v932 = vunpack.c.h.b16 %v384
        %v933 = vunpack.c.l.b16 %v385
        %v934 = vunpack.c.h.b16 %v385
        %v935 = vunpack.c.l.b16 %v386
        %v936 = vunpack.c.h.b16 %v386
        %v937 = vunpack.c.l.b16 %v387
        %v938 = vunpack.c.h.b16 %v387
        %v939 = vunpack.c.l.b16 %v388
        %v940 = vunpack.c.h.b16 %v388
        %v941 = vunpack.c.l.b16 %v389
        %v942 = vunpack.c.h.b16 %v389
        %v943 = vunpack.c.l.b16 %v390
        %v944 = vunpack.c.h.b16 %v390
        %v945 = vunpack.c.l.b16 %v391
        %v946 = vunpack.c.h.b16 %v391
        %v947 = vunpack.c.l.b16 %v392
        %v948 = vunpack.c.h.b16 %v392
        %v949 = vunpack.c.l.b16 %v393
        %v950 = vunpack.c.h.b16 %v393
        %v951 = vunpack.c.l.b16 %v394
        %v952 = vunpack.c.h.b16 %v394
        %v953 = vunpack.c.l.b16 %v395
        %v954 = vunpack.c.h.b16 %v395
        %v955 = vunpack.c.l.b16 %v396
        %v956 = vunpack.c.h.b16 %v396
        %v957 = vunpack.c.l.b16 %v397
        %v958 = vunpack.c.h.b16 %v397
        %v959 = vunpack.c.l.b16 %v398
        %v960 = vunpack.c.h.b16 %v398
        %v961 = vunpack.c.l.b16 %v399
        %v962 = vunpack.c.h.b16 %v399
        %v963 = vunpack.c.l.b16 %v400
        %v964 = vunpack.c.h.b16 %v400
        %v965 = vunpack.c.l.b16 %v401
        %v966 = vunpack.c.h.b16 %v401
        %v967 = vunpack.c.l.b16 %v402
        %v968 = vunpack.c.h.b16 %v402
        %v969 = vunpack.c.l.b16 %v403
        %v970 = vunpack.c.h.b16 %v403
        %v971 = vunpack.c.l.b16 %v404
        %v972 = vunpack.c.h.b16 %v404
        %v973 = vunpack.c.l.b16 %v405
        %v974 = vunpack.c.h.b16 %v405
        %v975 = vunpack.c.l.b16 %v406
        %v976 = vunpack.c.h.b16 %v406
        %v977 = vunpack.c.l.b16 %v407
        %v978 = vunpack.c.h.b16 %v407
        %v979 = vunpack.c.l.b16 %v408
        %v980 = vunpack.c.h.b16 %v408
        %v981 = vunpack.c.l.b16 %v409
        %v982 = vunpack.c.h.b16 %v409
        %v983 = vunpack.c.l.b16 %v410
        %v984 = vunpack.c.h.b16 %v410
        %v985 = vunpack.c.l.b16 %v411
        %v986 = vunpack.c.h.b16 %v411
        %v987 = vunpack.c.l.b16 %v412
        %v988 = vunpack.c.h.b16 %v412
        %v989 = vunpack.c.l.b16 %v413
        %v990 = vunpack.c.h.b16 %v413
        %v991 = vunpack.c.l.b16 %v414
        %v992 = vunpack.c.h.b16 %v414
        %v993 = vunpack.c.l.b16 %v415
        %v994 = vunpack.c.h.b16 %v415
        %v995 = vunpack.c.l.b16 %v416
        %v996 = vunpack.c.h.b16 %v416
        %v997 = vunpack.c.l.b16 %v417
        %v998 = vunpack.c.h.b16 %v417
        %v999 = vunpack.c.l.b16 %v418
        %v1000 = vunpack.c.h.b16 %v418
        %v1001 = vunpack.c.l.b16 %v419
        %v1002 = vunpack.c.h.b16 %v419
        %v1003 = vunpack.c.l.b16 %v420
        %v1004 = vunpack.c.h.b16 %v420
        %v1005 = vunpack.c.l.b16 %v421
        %v1006 = vunpack.c.h.b16 %v421
        %v1007 = vunpack.c.l.b16 %v422
        %v1008 = vunpack.c.h.b16 %v422
        %v1009 = vunpack.c.l.b16 %v423
        %v1010 = vunpack.c.h.b16 %v423
        %v1011 = vunpack.c.l.b16 %v424
        %v1012 = vunpack.c.h.b16 %v424
        %v1013 = vunpack.c.l.b16 %v425
        %v1014 = vunpack.c.h.b16 %v425
        %v1015 = vunpack.c.l.b16 %v426
        %v1016 = vunpack.c.h.b16 %v426
        %v1017 = vunpack.c.l.b16 %v427
        %v1018 = vunpack.c.h.b16 %v427
        %v1019 = vunpack.c.l.b16 %v428
        %v1020 = vunpack.c.h.b16 %v428
        %v1021 = vunpack.c.l.b16 %v429
        %v1022 = vunpack.c.h.b16 %v429
        %v1023 = vunpack.c.l.b16 %v430
        %v1024 = vunpack.c.h.b16 %v430
        %v1025 = vunpack.c.l.b16 %v431
        %v1026 = vunpack.c.h.b16 %v431
        %v1027 = vunpack.c.l.b16 %v432
        %v1028 = vunpack.c.h.b16 %v432
        %v1029 = vunpack.c.l.b16 %v433
        %v1030 = vunpack.c.h.b16 %v433
        %v1031 = vunpack.c.l.b16 %v434
        %v1032 = vunpack.c.h.b16 %v434
        %v1033 = vunpack.c.l.b16 %v435
        %v1034 = vunpack.c.h.b16 %v435
        %v1035 = vunpack.c.l.b16 %v436
        %v1036 = vunpack.c.h.b16 %v436
        %v1037 = vunpack.c.l.b16 %v437
        %v1038 = vunpack.c.h.b16 %v437
        %v1039 = vunpack.c.l.b16 %v438
        %v1040 = vunpack.c.h.b16 %v438
        %v1041 = vunpack.c.l.b16 %v439
        %v1042 = vunpack.c.h.b16 %v439
        %v1043 = vunpack.c.l.b16 %v440
        %v1044 = vunpack.c.h.b16 %v440
        %v1045 = vunpack.c.l.b16 %v441
        %v1046 = vunpack.c.h.b16 %v441
        %v1047 = vunpack.c.l.b16 %v442
        %v1048 = vunpack.c.h.b16 %v442
        %v1049 = vunpack.c.l.b16 %v443
        %v1050 = vunpack.c.h.b16 %v443
        %v1051 = vunpack.c.l.b16 %v444
        %v1052 = vunpack.c.h.b16 %v444
        %v1053 = vpack.c.b16 %v867, %v861
        %v1054 = vpack.c.b16 %v868, %v862
        %v1055 = vpack.c.b16 %v869, %v863
        %v1056 = vpack.c.b16 %v870, %v864
        %v1057 = vpack.c.b16 %v871, %v865
        %v1058 = vpack.c.b16 %v872, %v866
        %v1059 = vpack.c.b16 %v879, %v873
        %v1060 = vpack.c.b16 %v880, %v874
        %v1061 = vpack.c.b16 %v881, %v875
        %v1062 = vpack.c.b16 %v882, %v876
        %v1063 = vpack.c.b16 %v883, %v877
        %v1064 = vpack.c.b16 %v884, %v878
        %v1065 = vpack.c.b16 %v891, %v885
        %v1066 = vpack.c.b16 %v892, %v886
        %v1067 = vpack.c.b16 %v893, %v887
        %v1068 = vpack.c.b16 %v894, %v888
        %v1069 = vpack.c.b16 %v895, %v889
        %v1070 = vpack.c.b16 %v896, %v890
        %v1071 = vpack.c.b16 %v903, %v897
        %v1072 = vpack.c.b16 %v904, %v898
        %v1073 = vpack.c.b16 %v905, %v899
        %v1074 = vpack.c.b16 %v906, %v900
        %v1075 = vpack.c.b16 %v907, %v901
        %v1076 = vpack.c.b16 %v908, %v902
        %v1077 = vpack.c.b16 %v915, %v909
        %v1078 = vpack.c.b16 %v916, %v910
        %v1079 = vpack.c.b16 %v917, %v911
        %v1080 = vpack.c.b16 %v918, %v912
        %v1081 = vpack.c.b16 %v919, %v913
        %v1082 = vpack.c.b16 %v920, %v914
        %v1083 = vpack.c.b16 %v927, %v921
        %v1084 = vpack.c.b16 %v928, %v922
        %v1085 = vpack.c.b16 %v929, %v923
        %v1086 = vpack.c.b16 %v930, %v924
        %v1087 = vpack.c.b16 %v931, %v925
        %v1088 = vpack.c.b16 %v932, %v926
        %v1089 = vpack.c.b16 %v939, %v933
        %v1090 = vpack.c.b16 %v940, %v934
        %v1091 = vpack.c.b16 %v941, %v935
        %v1092 = vpack.c.b16 %v942, %v936
        %v1093 = vpack.c.b16 %v943, %v937
        %v1094 = vpack.c.b16 %v944, %v938
        %v1095 = vpack.c.b16 %v951, %v945
        %v1096 = vpack.c.b16 %v952, %v946
        %v1097 = vpack.c.b16 %v953, %v947
        %v1098 = vpack.c.b16 %v954, %v948
        %v1099 = vpack.c.b16 %v955, %v949
        %v1100 = vpack.c.b16 %v956, %v950
        %v1101 = vpack.c.b16 %v963, %v957
        %v1102 = vpack.c.b16 %v964, %v958
        %v1103 = vpack.c.b16 %v965, %v959
        %v1104 = vpack.c.b16 %v966, %v960
        %v1105 = vpack.c.b16 %v967, %v961
        %v1106 = vpack.c.b16 %v968, %v962
        %v1107 = vpack.c.b16 %v975, %v969
        %v1108 = vpack.c.b16 %v976, %v970
        %v1109 = vpack.c.b16 %v977, %v971
        %v1110 = vpack.c.b16 %v978, %v972
        %v1111 = vpack.c.b16 %v979, %v973
        %v1112 = vpack.c.b16 %v980, %v974
        %v1113 = vpack.c.b16 %v987, %v981
        %v1114 = vpack.c.b16 %v988, %v982
        %v1115 = vpack.c.b16 %v989, %v983
        %v1116 = vpack.c.b16 %v990, %v984
        %v1117 = vpack.c.b16 %v991, %v985
        %v1118 = vpack.c.b16 %v992, %v986
        %v1119 = vpack.c.b16 %v999, %v993
        %v1120 = vpack.c.b16 %v1000, %v994
        %v1121 = vpack.c.b16 %v1001, %v995
        %v1122 = vpack.c.b16 %v1002, %v996
        %v1123 = vpack.c.b16 %v1003, %v997
        %v1124 = vpack.c.b16 %v1004, %v998
        %v1125 = vpack.c.b16 %v1011, %v1005
        %v1126 = vpack.c.b16 %v1012, %v1006
        %v1127 = vpack.c.b16 %v1013, %v1007
        %v1128 = vpack.c.b16 %v1014, %v1008
        %v1129 = vpack.c.b16 %v1015, %v1009
        %v1130 = vpack.c.b16 %v1016, %v1010
        %v1131 = vpack.c.b16 %v1023, %v1017
        %v1132 = vpack.c.b16 %v1024, %v1018
        %v1133 = vpack.c.b16 %v1025, %v1019
        %v1134 = vpack.c.b16 %v1026, %v1020
        %v1135 = vpack.c.b16 %v1027, %v1021
        %v1136 = vpack.c.b16 %v1028, %v1022
        %v1137 = vpack.c.b16 %v1035, %v1029
        %v1138 = vpack.c.b16 %v1036, %v1030
        %v1139 = vpack.c.b16 %v1037, %v1031
        %v1140 = vpack.c.b16 %v1038, %v1032
        %v1141 = vpack.c.b16 %v1039, %v1033
        %v1142 = vpack.c.b16 %v1040, %v1034
        %v1143 = vpack.c.b16 %v1047, %v1041
        %v1144 = vpack.c.b16 %v1048, %v1042
        %v1145 = vpack.c.b16 %v1049, %v1043
        %v1146 = vpack.c.b16 %v1050, %v1044
        %v1147 = vpack.c.b16 %v1051, %v1045
        %v1148 = vpack.c.b16 %v1052, %v1046
        %1245 = vmatprep.subr.bf16.mxu0 %v1054
        %1246 = vmatpush1.bf16.msra.mxu0 %v1053
        %1247 = vmatprep.subr.bf16.mxu0 %v1060
        %1248 = vmatpush1.bf16.msra.mxu0 %v1059
        %1249 = vmatprep.subr.bf16.mxu0 %v1066
        %1250 = vmatpush1.bf16.msra.mxu0 %v1065
        %1251 = vmatprep.subr.bf16.mxu0 %v1072
        %1252 = vmatpush1.bf16.msra.mxu0 %v1071
        %1253 = vmatprep.subr.bf16.mxu0 %v1078
        %1254 = vmatpush1.bf16.msra.mxu0 %v1077
        %1255 = vmatprep.subr.bf16.mxu0 %v1084
        %1256 = vmatpush1.bf16.msra.mxu0 %v1083
        %1257 = vmatprep.subr.bf16.mxu0 %v1090
        %1258 = vmatpush1.bf16.msra.mxu0 %v1089
        %1259 = vmatprep.subr.bf16.mxu0 %v1096
        %1260 = vmatpush1.bf16.msra.mxu0 %v1095
        %1261 = vmatprep.subr.bf16.mxu0 %v1102
        %1262 = vmatpush1.bf16.msra.mxu0 %v1101
        %1263 = vmatprep.subr.bf16.mxu0 %v1108
        %1264 = vmatpush1.bf16.msra.mxu0 %v1107
        %1265 = vmatprep.subr.bf16.mxu0 %v1114
        %1266 = vmatpush1.bf16.msra.mxu0 %v1113
        %1267 = vmatprep.subr.bf16.mxu0 %v1120
        %1268 = vmatpush1.bf16.msra.mxu0 %v1119
        %1269 = vmatprep.subr.bf16.mxu0 %v1126
        %1270 = vmatpush1.bf16.msra.mxu0 %v1125
        %1271 = vmatprep.subr.bf16.mxu0 %v1132
        %1272 = vmatpush1.bf16.msra.mxu0 %v1131
        %1273 = vmatprep.subr.bf16.mxu0 %v1138
        %1274 = vmatpush1.bf16.msra.mxu0 %v1137
        %1275 = vmatprep.subr.bf16.mxu0 %v1144
        %1276 = vmatpush1.bf16.msra.mxu0 %v1143
        %1277 = vmatprep.mubr.bf16.mxu0 %v638
        %1278 = vmatmul.mubr.bf16.gmra.mrb[0].mxu0 %v637
        %v1279 = vpop.f32.mrb[0].mxu0
        %v1280 = vadd.f32 0.0, %v1279
        %v1281 = vpop.f32.mrb[0].mxu0
        %v1282 = vadd.f32 0.0, %v1281
        %v1283 = vpop.f32.mrb[0].mxu0
        %v1284 = vadd.f32 0.0, %v1283
        %v1285 = vpop.f32.mrb[0].mxu0
        %v1286 = vadd.f32 0.0, %v1285
        %1287 = vmatprep.mubr.bf16.mxu0 %v640
        %1288 = vmatmul.mubr.bf16.gmra.mrb[0].mxu0 %v639
        %v1289 = vpop.f32.mrb[0].mxu0
        %v1290 = vadd.f32 0.0, %v1289
        %v1291 = vpop.f32.mrb[0].mxu0
        %v1292 = vadd.f32 0.0, %v1291
        %v1293 = vpop.f32.mrb[0].mxu0
        %v1294 = vadd.f32 0.0, %v1293
        %v1295 = vpop.f32.mrb[0].mxu0
        %v1296 = vadd.f32 0.0, %v1295
        %1297 = vmatprep.mubr.bf16.mxu0 %v642
        %1298 = vmatmul.mubr.bf16.gmra.mrb[0].mxu0 %v641
        %v1299 = vpop.f32.mrb[0].mxu0
        %v1300 = vadd.f32 0.0, %v1299
        %v1301 = vpop.f32.mrb[0].mxu0
        %v1302 = vadd.f32 0.0, %v1301
        %v1303 = vpop.f32.mrb[0].mxu0
        %v1304 = vadd.f32 0.0, %v1303
        %v1305 = vpop.f32.mrb[0].mxu0
        %v1306 = vadd.f32 0.0, %v1305
        %1307 = vmatprep.mubr.bf16.mxu0 %v644
        %1308 = vmatmul.mubr.bf16.gmra.mrb[0].mxu0 %v643
        %v1309 = vpop.f32.mrb[0].mxu0
        %v1310 = vadd.f32 0.0, %v1309
        %v1311 = vpop.f32.mrb[0].mxu0
        %v1312 = vadd.f32 0.0, %v1311
        %v1313 = vpop.f32.mrb[0].mxu0
        %v1314 = vadd.f32 0.0, %v1313
        %v1315 = vpop.f32.mrb[0].mxu0
        %v1316 = vadd.f32 0.0, %v1315
        %1317 = vmatprep.mubr.bf16.mxu0 %v646
        %1318 = vmatmul.mubr.bf16.gmra.mrb[0].mxu0 %v645
        %v1319 = vpop.f32.mrb[0].mxu0
        %v1320 = vadd.f32 0.0, %v1319
        %v1321 = vpop.f32.mrb[0].mxu0
        %v1322 = vadd.f32 0.0, %v1321
        %v1323 = vpop.f32.mrb[0].mxu0
        %v1324 = vadd.f32 0.0, %v1323
        %v1325 = vpop.f32.mrb[0].mxu0
        %v1326 = vadd.f32 0.0, %v1325
        %1327 = vmatprep.mubr.bf16.mxu0 %v648
        %1328 = vmatmul.mubr.bf16.gmra.mrb[0].mxu0 %v647
        %v1329 = vpop.f32.mrb[0].mxu0
        %v1330 = vadd.f32 0.0, %v1329
        %v1331 = vpop.f32.mrb[0].mxu0
        %v1332 = vadd.f32 0.0, %v1331
        %v1333 = vpop.f32.mrb[0].mxu0
        %v1334 = vadd.f32 0.0, %v1333
        %v1335 = vpop.f32.mrb[0].mxu0
        %v1336 = vadd.f32 0.0, %v1335
        %1337 = vmatprep.mubr.bf16.mxu0 %v650
        %1338 = vmatmul.mubr.bf16.gmra.mrb[0].mxu0 %v649
        %v1339 = vpop.f32.mrb[0].mxu0
        %v1340 = vadd.f32 0.0, %v1339
        %v1341 = vpop.f32.mrb[0].mxu0
        %v1342 = vadd.f32 0.0, %v1341
        %v1343 = vpop.f32.mrb[0].mxu0
        %v1344 = vadd.f32 0.0, %v1343
        %v1345 = vpop.f32.mrb[0].mxu0
        %v1346 = vadd.f32 0.0, %v1345
        %1347 = vmatprep.mubr.bf16.mxu0 %v652
        %1348 = vmatmul.mubr.bf16.gmra.mrb[0].mxu0 %v651
        %v1349 = vpop.f32.mrb[0].mxu0
        %v1350 = vadd.f32 0.0, %v1349
        %v1351 = vpop.f32.mrb[0].mxu0
        %v1352 = vadd.f32 0.0, %v1351
        %v1353 = vpop.f32.mrb[0].mxu0
        %v1354 = vadd.f32 0.0, %v1353
        %v1355 = vpop.f32.mrb[0].mxu0
        %v1356 = vadd.f32 0.0, %v1355
        %1357 = vmatprep.mubr.bf16.mxu0 %v654
        %1358 = vmatmul.mubr.bf16.gmra.mrb[0].mxu0 %v653
        %v1359 = vpop.f32.mrb[0].mxu0
        %v1360 = vadd.f32 0.0, %v1359
        %v1361 = vpop.f32.mrb[0].mxu0
        %v1362 = vadd.f32 0.0, %v1361
        %v1363 = vpop.f32.mrb[0].mxu0
        %v1364 = vadd.f32 0.0, %v1363
        %v1365 = vpop.f32.mrb[0].mxu0
        %v1366 = vadd.f32 0.0, %v1365
        %1367 = vmatprep.mubr.bf16.mxu0 %v656
        %1368 = vmatmul.mubr.bf16.gmra.mrb[0].mxu0 %v655
        %v1369 = vpop.f32.mrb[0].mxu0
        %v1370 = vadd.f32 0.0, %v1369
        %v1371 = vpop.f32.mrb[0].mxu0
        %v1372 = vadd.f32 0.0, %v1371
        %v1373 = vpop.f32.mrb[0].mxu0
        %v1374 = vadd.f32 0.0, %v1373
        %v1375 = vpop.f32.mrb[0].mxu0
        %v1376 = vadd.f32 0.0, %v1375
        %1377 = vmatprep.mubr.bf16.mxu0 %v658
        %1378 = vmatmul.mubr.bf16.gmra.mrb[0].mxu0 %v657
        %v1379 = vpop.f32.mrb[0].mxu0
        %v1380 = vadd.f32 0.0, %v1379
        %v1381 = vpop.f32.mrb[0].mxu0
        %v1382 = vadd.f32 0.0, %v1381
        %v1383 = vpop.f32.mrb[0].mxu0
        %v1384 = vadd.f32 0.0, %v1383
        %v1385 = vpop.f32.mrb[0].mxu0
        %v1386 = vadd.f32 0.0, %v1385
        %1387 = vmatprep.mubr.bf16.mxu0 %v660
        %1388 = vmatmul.mubr.bf16.gmra.mrb[0].mxu0 %v659
        %v1389 = vpop.f32.mrb[0].mxu0
        %v1390 = vadd.f32 0.0, %v1389
        %v1391 = vpop.f32.mrb[0].mxu0
        %v1392 = vadd.f32 0.0, %v1391
        %v1393 = vpop.f32.mrb[0].mxu0
        %v1394 = vadd.f32 0.0, %v1393
        %v1395 = vpop.f32.mrb[0].mxu0
        %v1396 = vadd.f32 0.0, %v1395
        %1397 = vmatprep.mubr.bf16.mxu0 %v662
        %1398 = vmatmul.mubr.bf16.gmra.mrb[0].mxu0 %v661
        %v1399 = vpop.f32.mrb[0].mxu0
        %v1400 = vadd.f32 0.0, %v1399
        %v1401 = vpop.f32.mrb[0].mxu0
        %v1402 = vadd.f32 0.0, %v1401
        %v1403 = vpop.f32.mrb[0].mxu0
        %v1404 = vadd.f32 0.0, %v1403
        %v1405 = vpop.f32.mrb[0].mxu0
        %v1406 = vadd.f32 0.0, %v1405
        %1407 = vmatprep.mubr.bf16.mxu0 %v664
        %1408 = vmatmul.mubr.bf16.gmra.mrb[0].mxu0 %v663
        %v1409 = vpop.f32.mrb[0].mxu0
        %v1410 = vadd.f32 0.0, %v1409
        %v1411 = vpop.f32.mrb[0].mxu0
        %v1412 = vadd.f32 0.0, %v1411
        %v1413 = vpop.f32.mrb[0].mxu0
        %v1414 = vadd.f32 0.0, %v1413
        %v1415 = vpop.f32.mrb[0].mxu0
        %v1416 = vadd.f32 0.0, %v1415
        %1417 = vmatprep.mubr.bf16.mxu0 %v666
        %1418 = vmatmul.mubr.bf16.gmra.mrb[0].mxu0 %v665
        %v1419 = vpop.f32.mrb[0].mxu0
        %v1420 = vadd.f32 0.0, %v1419
        %v1421 = vpop.f32.mrb[0].mxu0
        %v1422 = vadd.f32 0.0, %v1421
        %v1423 = vpop.f32.mrb[0].mxu0
        %v1424 = vadd.f32 0.0, %v1423
        %v1425 = vpop.f32.mrb[0].mxu0
        %v1426 = vadd.f32 0.0, %v1425
        %1427 = vmatprep.mubr.bf16.mxu0 %v668
        %1428 = vmatmul.mubr.bf16.gmra.mrb[0].mxu0 %v667
        %v1429 = vpop.f32.mrb[0].mxu0
        %v1430 = vadd.f32 0.0, %v1429
        %v1431 = vpop.f32.mrb[0].mxu0
        %v1432 = vadd.f32 0.0, %v1431
        %v1433 = vpop.f32.mrb[0].mxu0
        %v1434 = vadd.f32 0.0, %v1433
        %v1435 = vpop.f32.mrb[0].mxu0
        %v1436 = vadd.f32 0.0, %v1435
        %1437 = vmatprep.mubr.bf16.mxu0 %v670
        %1438 = vmatmul.mubr.bf16.gmra.mrb[0].mxu0 %v669
        %v1439 = vpop.f32.mrb[0].mxu0
        %v1440 = vadd.f32 0.0, %v1439
        %v1441 = vpop.f32.mrb[0].mxu0
        %v1442 = vadd.f32 0.0, %v1441
        %v1443 = vpop.f32.mrb[0].mxu0
        %v1444 = vadd.f32 0.0, %v1443
        %v1445 = vpop.f32.mrb[0].mxu0
        %v1446 = vadd.f32 0.0, %v1445
        %1447 = vmatprep.mubr.bf16.mxu0 %v672
        %1448 = vmatmul.mubr.bf16.gmra.mrb[0].mxu0 %v671
        %v1449 = vpop.f32.mrb[0].mxu0
        %v1450 = vadd.f32 0.0, %v1449
        %v1451 = vpop.f32.mrb[0].mxu0
        %v1452 = vadd.f32 0.0, %v1451
        %v1453 = vpop.f32.mrb[0].mxu0
        %v1454 = vadd.f32 0.0, %v1453
        %v1455 = vpop.f32.mrb[0].mxu0
        %v1456 = vadd.f32 0.0, %v1455
        %1457 = vmatprep.mubr.bf16.mxu0 %v674
        %1458 = vmatmul.mubr.bf16.gmra.mrb[0].mxu0 %v673
        %v1459 = vpop.f32.mrb[0].mxu0
        %v1460 = vadd.f32 0.0, %v1459
        %v1461 = vpop.f32.mrb[0].mxu0
        %v1462 = vadd.f32 0.0, %v1461
        %v1463 = vpop.f32.mrb[0].mxu0
        %v1464 = vadd.f32 0.0, %v1463
        %v1465 = vpop.f32.mrb[0].mxu0
        %v1466 = vadd.f32 0.0, %v1465
        %1467 = vmatprep.mubr.bf16.mxu0 %v676
        %1468 = vmatmul.mubr.bf16.gmra.mrb[0].mxu0 %v675
        %v1469 = vpop.f32.mrb[0].mxu0
        %v1470 = vadd.f32 0.0, %v1469
        %v1471 = vpop.f32.mrb[0].mxu0
        %v1472 = vadd.f32 0.0, %v1471
        %v1473 = vpop.f32.mrb[0].mxu0
        %v1474 = vadd.f32 0.0, %v1473
        %v1475 = vpop.f32.mrb[0].mxu0
        %v1476 = vadd.f32 0.0, %v1475
        %1477 = vmatprep.mubr.bf16.mxu0 %v678
        %1478 = vmatmul.mubr.bf16.gmra.mrb[0].mxu0 %v677
        %v1479 = vpop.f32.mrb[0].mxu0
        %v1480 = vadd.f32 0.0, %v1479
        %v1481 = vpop.f32.mrb[0].mxu0
        %v1482 = vadd.f32 0.0, %v1481
        %v1483 = vpop.f32.mrb[0].mxu0
        %v1484 = vadd.f32 0.0, %v1483
        %v1485 = vpop.f32.mrb[0].mxu0
        %v1486 = vadd.f32 0.0, %v1485
        %1487 = vmatprep.mubr.bf16.mxu0 %v680
        %1488 = vmatmul.mubr.bf16.gmra.mrb[0].mxu0 %v679
        %v1489 = vpop.f32.mrb[0].mxu0
        %v1490 = vadd.f32 0.0, %v1489
        %v1491 = vpop.f32.mrb[0].mxu0
        %v1492 = vadd.f32 0.0, %v1491
        %v1493 = vpop.f32.mrb[0].mxu0
        %v1494 = vadd.f32 0.0, %v1493
        %v1495 = vpop.f32.mrb[0].mxu0
        %v1496 = vadd.f32 0.0, %v1495
        %1497 = vmatprep.mubr.bf16.mxu0 %v682
        %1498 = vmatmul.mubr.bf16.gmra.mrb[0].mxu0 %v681
        %v1499 = vpop.f32.mrb[0].mxu0
        %v1500 = vadd.f32 0.0, %v1499
        %v1501 = vpop.f32.mrb[0].mxu0
        %v1502 = vadd.f32 0.0, %v1501
        %v1503 = vpop.f32.mrb[0].mxu0
        %v1504 = vadd.f32 0.0, %v1503
        %v1505 = vpop.f32.mrb[0].mxu0
        %v1506 = vadd.f32 0.0, %v1505
        %1507 = vmatprep.mubr.bf16.mxu0 %v684
        %1508 = vmatmul.mubr.bf16.gmra.mrb[0].mxu0 %v683
        %v1509 = vpop.f32.mrb[0].mxu0
        %v1510 = vadd.f32 0.0, %v1509
        %v1511 = vpop.f32.mrb[0].mxu0
        %v1512 = vadd.f32 0.0, %v1511
        %v1513 = vpop.f32.mrb[0].mxu0
        %v1514 = vadd.f32 0.0, %v1513
        %v1515 = vpop.f32.mrb[0].mxu0
        %v1516 = vadd.f32 0.0, %v1515
        %1517 = vmatprep.mubr.bf16.mxu0 %v686
        %1518 = vmatmul.mubr.bf16.gmra.mrb[0].mxu0 %v685
        %v1519 = vpop.f32.mrb[0].mxu0
        %v1520 = vadd.f32 0.0, %v1519
        %v1521 = vpop.f32.mrb[0].mxu0
        %v1522 = vadd.f32 0.0, %v1521
        %v1523 = vpop.f32.mrb[0].mxu0
        %v1524 = vadd.f32 0.0, %v1523
        %v1525 = vpop.f32.mrb[0].mxu0
        %v1526 = vadd.f32 0.0, %v1525
        %1527 = vmatprep.mubr.bf16.mxu0 %v688
        %1528 = vmatmul.mubr.bf16.gmra.mrb[0].mxu0 %v687
        %v1529 = vpop.f32.mrb[0].mxu0
        %v1530 = vadd.f32 0.0, %v1529
        %v1531 = vpop.f32.mrb[0].mxu0
        %v1532 = vadd.f32 0.0, %v1531
        %v1533 = vpop.f32.mrb[0].mxu0
        %v1534 = vadd.f32 0.0, %v1533
        %v1535 = vpop.f32.mrb[0].mxu0
        %v1536 = vadd.f32 0.0, %v1535
        %1537 = vmatprep.mubr.bf16.mxu0 %v690
        %1538 = vmatmul.mubr.bf16.gmra.mrb[0].mxu0 %v689
        %v1539 = vpop.f32.mrb[0].mxu0
        %v1540 = vadd.f32 0.0, %v1539
        %v1541 = vpop.f32.mrb[0].mxu0
        %v1542 = vadd.f32 0.0, %v1541
        %v1543 = vpop.f32.mrb[0].mxu0
        %v1544 = vadd.f32 0.0, %v1543
        %v1545 = vpop.f32.mrb[0].mxu0
        %v1546 = vadd.f32 0.0, %v1545
        %1547 = vmatprep.mubr.bf16.mxu0 %v692
        %1548 = vmatmul.mubr.bf16.gmra.mrb[0].mxu0 %v691
        %v1549 = vpop.f32.mrb[0].mxu0
        %v1550 = vadd.f32 0.0, %v1549
        %v1551 = vpop.f32.mrb[0].mxu0
        %v1552 = vadd.f32 0.0, %v1551
        %v1553 = vpop.f32.mrb[0].mxu0
        %v1554 = vadd.f32 0.0, %v1553
        %v1555 = vpop.f32.mrb[0].mxu0
        %v1556 = vadd.f32 0.0, %v1555
        %1557 = vmatprep.mubr.bf16.mxu0 %v694
        %1558 = vmatmul.mubr.bf16.gmra.mrb[0].mxu0 %v693
        %v1559 = vpop.f32.mrb[0].mxu0
        %v1560 = vadd.f32 0.0, %v1559
        %v1561 = vpop.f32.mrb[0].mxu0
        %v1562 = vadd.f32 0.0, %v1561
        %v1563 = vpop.f32.mrb[0].mxu0
        %v1564 = vadd.f32 0.0, %v1563
        %v1565 = vpop.f32.mrb[0].mxu0
        %v1566 = vadd.f32 0.0, %v1565
        %1567 = vmatprep.mubr.bf16.mxu0 %v696
        %1568 = vmatmul.mubr.bf16.gmra.mrb[0].mxu0 %v695
        %v1569 = vpop.f32.mrb[0].mxu0
        %v1570 = vadd.f32 0.0, %v1569
        %v1571 = vpop.f32.mrb[0].mxu0
        %v1572 = vadd.f32 0.0, %v1571
        %v1573 = vpop.f32.mrb[0].mxu0
        %v1574 = vadd.f32 0.0, %v1573
        %v1575 = vpop.f32.mrb[0].mxu0
        %v1576 = vadd.f32 0.0, %v1575
        %1577 = vmatprep.mubr.bf16.mxu0 %v698
        %1578 = vmatmul.mubr.bf16.gmra.mrb[0].mxu0 %v697
        %v1579 = vpop.f32.mrb[0].mxu0
        %v1580 = vadd.f32 0.0, %v1579
        %v1581 = vpop.f32.mrb[0].mxu0
        %v1582 = vadd.f32 0.0, %v1581
        %v1583 = vpop.f32.mrb[0].mxu0
        %v1584 = vadd.f32 0.0, %v1583
        %v1585 = vpop.f32.mrb[0].mxu0
        %v1586 = vadd.f32 0.0, %v1585
        %1587 = vmatprep.mubr.bf16.mxu0 %v700
        %1588 = vmatmul.mubr.bf16.gmra.mrb[0].mxu0 %v699
        %v1589 = vpop.f32.mrb[0].mxu0
        %v1590 = vadd.f32 0.0, %v1589
        %v1591 = vpop.f32.mrb[0].mxu0
        %v1592 = vadd.f32 0.0, %v1591
        %v1593 = vpop.f32.mrb[0].mxu0
        %v1594 = vadd.f32 0.0, %v1593
        %v1595 = vpop.f32.mrb[0].mxu0
        %v1596 = vadd.f32 0.0, %v1595
        %1597 = vdwg.mxu0
        %1598 = vmatprep.subr.bf16.mxu0 %v1056
        %1599 = vmatpush1.bf16.msra.mxu0 %v1055
        %1600 = vmatprep.subr.bf16.mxu0 %v1062
        %1601 = vmatpush1.bf16.msra.mxu0 %v1061
        %1602 = vmatprep.subr.bf16.mxu0 %v1068
        %1603 = vmatpush1.bf16.msra.mxu0 %v1067
        %1604 = vmatprep.subr.bf16.mxu0 %v1074
        %1605 = vmatpush1.bf16.msra.mxu0 %v1073
        %1606 = vmatprep.subr.bf16.mxu0 %v1080
        %1607 = vmatpush1.bf16.msra.mxu0 %v1079
        %1608 = vmatprep.subr.bf16.mxu0 %v1086
        %1609 = vmatpush1.bf16.msra.mxu0 %v1085
        %1610 = vmatprep.subr.bf16.mxu0 %v1092
        %1611 = vmatpush1.bf16.msra.mxu0 %v1091
        %1612 = vmatprep.subr.bf16.mxu0 %v1098
        %1613 = vmatpush1.bf16.msra.mxu0 %v1097
        %1614 = vmatprep.subr.bf16.mxu0 %v1104
        %1615 = vmatpush1.bf16.msra.mxu0 %v1103
        %1616 = vmatprep.subr.bf16.mxu0 %v1110
        %1617 = vmatpush1.bf16.msra.mxu0 %v1109
        %1618 = vmatprep.subr.bf16.mxu0 %v1116
        %1619 = vmatpush1.bf16.msra.mxu0 %v1115
        %1620 = vmatprep.subr.bf16.mxu0 %v1122
        %1621 = vmatpush1.bf16.msra.mxu0 %v1121
        %1622 = vmatprep.subr.bf16.mxu0 %v1128
        %1623 = vmatpush1.bf16.msra.mxu0 %v1127
        %1624 = vmatprep.subr.bf16.mxu0 %v1134
        %1625 = vmatpush1.bf16.msra.mxu0 %v1133
        %1626 = vmatprep.subr.bf16.mxu0 %v1140
        %1627 = vmatpush1.bf16.msra.mxu0 %v1139
        %1628 = vmatprep.subr.bf16.mxu0 %v1146
        %1629 = vmatpush1.bf16.msra.mxu0 %v1145
        %1630 = vmatprep.mubr.bf16.mxu0 %v638
        %1631 = vmatmul.mubr.bf16.gmra.mrb[0].mxu0 %v637
        %v1632 = vpop.f32.mrb[0].mxu0
        %v1633 = vadd.f32 0.0, %v1632
        %v1634 = vpop.f32.mrb[0].mxu0
        %v1635 = vadd.f32 0.0, %v1634
        %v1636 = vpop.f32.mrb[0].mxu0
        %v1637 = vadd.f32 0.0, %v1636
        %v1638 = vpop.f32.mrb[0].mxu0
        %v1639 = vadd.f32 0.0, %v1638
        %1640 = vmatprep.mubr.bf16.mxu0 %v640
        %1641 = vmatmul.mubr.bf16.gmra.mrb[0].mxu0 %v639
        %v1642 = vpop.f32.mrb[0].mxu0
        %v1643 = vadd.f32 0.0, %v1642
        %v1644 = vpop.f32.mrb[0].mxu0
        %v1645 = vadd.f32 0.0, %v1644
        %v1646 = vpop.f32.mrb[0].mxu0
        %v1647 = vadd.f32 0.0, %v1646
        %v1648 = vpop.f32.mrb[0].mxu0
        %v1649 = vadd.f32 0.0, %v1648
        %1650 = vmatprep.mubr.bf16.mxu0 %v642
        %1651 = vmatmul.mubr.bf16.gmra.mrb[0].mxu0 %v641
        %v1652 = vpop.f32.mrb[0].mxu0
        %v1653 = vadd.f32 0.0, %v1652
        %v1654 = vpop.f32.mrb[0].mxu0
        %v1655 = vadd.f32 0.0, %v1654
        %v1656 = vpop.f32.mrb[0].mxu0
        %v1657 = vadd.f32 0.0, %v1656
        %v1658 = vpop.f32.mrb[0].mxu0
        %v1659 = vadd.f32 0.0, %v1658
        %1660 = vmatprep.mubr.bf16.mxu0 %v644
        %1661 = vmatmul.mubr.bf16.gmra.mrb[0].mxu0 %v643
        %v1662 = vpop.f32.mrb[0].mxu0
        %v1663 = vadd.f32 0.0, %v1662
        %v1664 = vpop.f32.mrb[0].mxu0
        %v1665 = vadd.f32 0.0, %v1664
        %v1666 = vpop.f32.mrb[0].mxu0
        %v1667 = vadd.f32 0.0, %v1666
        %v1668 = vpop.f32.mrb[0].mxu0
        %v1669 = vadd.f32 0.0, %v1668
        %1670 = vmatprep.mubr.bf16.mxu0 %v646
        %1671 = vmatmul.mubr.bf16.gmra.mrb[0].mxu0 %v645
        %v1672 = vpop.f32.mrb[0].mxu0
        %v1673 = vadd.f32 0.0, %v1672
        %v1674 = vpop.f32.mrb[0].mxu0
        %v1675 = vadd.f32 0.0, %v1674
        %v1676 = vpop.f32.mrb[0].mxu0
        %v1677 = vadd.f32 0.0, %v1676
        %v1678 = vpop.f32.mrb[0].mxu0
        %v1679 = vadd.f32 0.0, %v1678
        %1680 = vmatprep.mubr.bf16.mxu0 %v648
        %1681 = vmatmul.mubr.bf16.gmra.mrb[0].mxu0 %v647
        %v1682 = vpop.f32.mrb[0].mxu0
        %v1683 = vadd.f32 0.0, %v1682
        %v1684 = vpop.f32.mrb[0].mxu0
        %v1685 = vadd.f32 0.0, %v1684
        %v1686 = vpop.f32.mrb[0].mxu0
        %v1687 = vadd.f32 0.0, %v1686
        %v1688 = vpop.f32.mrb[0].mxu0
        %v1689 = vadd.f32 0.0, %v1688
        %1690 = vmatprep.mubr.bf16.mxu0 %v650
        %1691 = vmatmul.mubr.bf16.gmra.mrb[0].mxu0 %v649
        %v1692 = vpop.f32.mrb[0].mxu0
        %v1693 = vadd.f32 0.0, %v1692
        %v1694 = vpop.f32.mrb[0].mxu0
        %v1695 = vadd.f32 0.0, %v1694
        %v1696 = vpop.f32.mrb[0].mxu0
        %v1697 = vadd.f32 0.0, %v1696
        %v1698 = vpop.f32.mrb[0].mxu0
        %v1699 = vadd.f32 0.0, %v1698
        %1700 = vmatprep.mubr.bf16.mxu0 %v652
        %1701 = vmatmul.mubr.bf16.gmra.mrb[0].mxu0 %v651
        %v1702 = vpop.f32.mrb[0].mxu0
        %v1703 = vadd.f32 0.0, %v1702
        %v1704 = vpop.f32.mrb[0].mxu0
        %v1705 = vadd.f32 0.0, %v1704
        %v1706 = vpop.f32.mrb[0].mxu0
        %v1707 = vadd.f32 0.0, %v1706
        %v1708 = vpop.f32.mrb[0].mxu0
        %v1709 = vadd.f32 0.0, %v1708
        %1710 = vmatprep.mubr.bf16.mxu0 %v654
        %1711 = vmatmul.mubr.bf16.gmra.mrb[0].mxu0 %v653
        %v1712 = vpop.f32.mrb[0].mxu0
        %v1713 = vadd.f32 0.0, %v1712
        %v1714 = vpop.f32.mrb[0].mxu0
        %v1715 = vadd.f32 0.0, %v1714
        %v1716 = vpop.f32.mrb[0].mxu0
        %v1717 = vadd.f32 0.0, %v1716
        %v1718 = vpop.f32.mrb[0].mxu0
        %v1719 = vadd.f32 0.0, %v1718
        %1720 = vmatprep.mubr.bf16.mxu0 %v656
        %1721 = vmatmul.mubr.bf16.gmra.mrb[0].mxu0 %v655
        %v1722 = vpop.f32.mrb[0].mxu0
        %v1723 = vadd.f32 0.0, %v1722
        %v1724 = vpop.f32.mrb[0].mxu0
        %v1725 = vadd.f32 0.0, %v1724
        %v1726 = vpop.f32.mrb[0].mxu0
        %v1727 = vadd.f32 0.0, %v1726
        %v1728 = vpop.f32.mrb[0].mxu0
        %v1729 = vadd.f32 0.0, %v1728
        %1730 = vmatprep.mubr.bf16.mxu0 %v658
        %1731 = vmatmul.mubr.bf16.gmra.mrb[0].mxu0 %v657
        %v1732 = vpop.f32.mrb[0].mxu0
        %v1733 = vadd.f32 0.0, %v1732
        %v1734 = vpop.f32.mrb[0].mxu0
        %v1735 = vadd.f32 0.0, %v1734
        %v1736 = vpop.f32.mrb[0].mxu0
        %v1737 = vadd.f32 0.0, %v1736
        %v1738 = vpop.f32.mrb[0].mxu0
        %v1739 = vadd.f32 0.0, %v1738
        %1740 = vmatprep.mubr.bf16.mxu0 %v660
        %1741 = vmatmul.mubr.bf16.gmra.mrb[0].mxu0 %v659
        %v1742 = vpop.f32.mrb[0].mxu0
        %v1743 = vadd.f32 0.0, %v1742
        %v1744 = vpop.f32.mrb[0].mxu0
        %v1745 = vadd.f32 0.0, %v1744
        %v1746 = vpop.f32.mrb[0].mxu0
        %v1747 = vadd.f32 0.0, %v1746
        %v1748 = vpop.f32.mrb[0].mxu0
        %v1749 = vadd.f32 0.0, %v1748
        %1750 = vmatprep.mubr.bf16.mxu0 %v662
        %1751 = vmatmul.mubr.bf16.gmra.mrb[0].mxu0 %v661
        %v1752 = vpop.f32.mrb[0].mxu0
        %v1753 = vadd.f32 0.0, %v1752
        %v1754 = vpop.f32.mrb[0].mxu0
        %v1755 = vadd.f32 0.0, %v1754
        %v1756 = vpop.f32.mrb[0].mxu0
        %v1757 = vadd.f32 0.0, %v1756
        %v1758 = vpop.f32.mrb[0].mxu0
        %v1759 = vadd.f32 0.0, %v1758
        %1760 = vmatprep.mubr.bf16.mxu0 %v664
        %1761 = vmatmul.mubr.bf16.gmra.mrb[0].mxu0 %v663
        %v1762 = vpop.f32.mrb[0].mxu0
        %v1763 = vadd.f32 0.0, %v1762
        %v1764 = vpop.f32.mrb[0].mxu0
        %v1765 = vadd.f32 0.0, %v1764
        %v1766 = vpop.f32.mrb[0].mxu0
        %v1767 = vadd.f32 0.0, %v1766
        %v1768 = vpop.f32.mrb[0].mxu0
        %v1769 = vadd.f32 0.0, %v1768
        %1770 = vmatprep.mubr.bf16.mxu0 %v666
        %1771 = vmatmul.mubr.bf16.gmra.mrb[0].mxu0 %v665
        %v1772 = vpop.f32.mrb[0].mxu0
        %v1773 = vadd.f32 0.0, %v1772
        %v1774 = vpop.f32.mrb[0].mxu0
        %v1775 = vadd.f32 0.0, %v1774
        %v1776 = vpop.f32.mrb[0].mxu0
        %v1777 = vadd.f32 0.0, %v1776
        %v1778 = vpop.f32.mrb[0].mxu0
        %v1779 = vadd.f32 0.0, %v1778
        %1780 = vmatprep.mubr.bf16.mxu0 %v668
        %1781 = vmatmul.mubr.bf16.gmra.mrb[0].mxu0 %v667
        %v1782 = vpop.f32.mrb[0].mxu0
        %v1783 = vadd.f32 0.0, %v1782
        %v1784 = vpop.f32.mrb[0].mxu0
        %v1785 = vadd.f32 0.0, %v1784
        %v1786 = vpop.f32.mrb[0].mxu0
        %v1787 = vadd.f32 0.0, %v1786
        %v1788 = vpop.f32.mrb[0].mxu0
        %v1789 = vadd.f32 0.0, %v1788
        %1790 = vmatprep.mubr.bf16.mxu0 %v670
        %1791 = vmatmul.mubr.bf16.gmra.mrb[0].mxu0 %v669
        %v1792 = vpop.f32.mrb[0].mxu0
        %v1793 = vadd.f32 0.0, %v1792
        %v1794 = vpop.f32.mrb[0].mxu0
        %v1795 = vadd.f32 0.0, %v1794
        %v1796 = vpop.f32.mrb[0].mxu0
        %v1797 = vadd.f32 0.0, %v1796
        %v1798 = vpop.f32.mrb[0].mxu0
        %v1799 = vadd.f32 0.0, %v1798
        %1800 = vmatprep.mubr.bf16.mxu0 %v672
        %1801 = vmatmul.mubr.bf16.gmra.mrb[0].mxu0 %v671
        %v1802 = vpop.f32.mrb[0].mxu0
        %v1803 = vadd.f32 0.0, %v1802
        %v1804 = vpop.f32.mrb[0].mxu0
        %v1805 = vadd.f32 0.0, %v1804
        %v1806 = vpop.f32.mrb[0].mxu0
        %v1807 = vadd.f32 0.0, %v1806
        %v1808 = vpop.f32.mrb[0].mxu0
        %v1809 = vadd.f32 0.0, %v1808
        %1810 = vmatprep.mubr.bf16.mxu0 %v674
        %1811 = vmatmul.mubr.bf16.gmra.mrb[0].mxu0 %v673
        %v1812 = vpop.f32.mrb[0].mxu0
        %v1813 = vadd.f32 0.0, %v1812
        %v1814 = vpop.f32.mrb[0].mxu0
        %v1815 = vadd.f32 0.0, %v1814
        %v1816 = vpop.f32.mrb[0].mxu0
        %v1817 = vadd.f32 0.0, %v1816
        %v1818 = vpop.f32.mrb[0].mxu0
        %v1819 = vadd.f32 0.0, %v1818
        %1820 = vmatprep.mubr.bf16.mxu0 %v676
        %1821 = vmatmul.mubr.bf16.gmra.mrb[0].mxu0 %v675
        %v1822 = vpop.f32.mrb[0].mxu0
        %v1823 = vadd.f32 0.0, %v1822
        %v1824 = vpop.f32.mrb[0].mxu0
        %v1825 = vadd.f32 0.0, %v1824
        %v1826 = vpop.f32.mrb[0].mxu0
        %v1827 = vadd.f32 0.0, %v1826
        %v1828 = vpop.f32.mrb[0].mxu0
        %v1829 = vadd.f32 0.0, %v1828
        %1830 = vmatprep.mubr.bf16.mxu0 %v678
        %1831 = vmatmul.mubr.bf16.gmra.mrb[0].mxu0 %v677
        %v1832 = vpop.f32.mrb[0].mxu0
        %v1833 = vadd.f32 0.0, %v1832
        %v1834 = vpop.f32.mrb[0].mxu0
        %v1835 = vadd.f32 0.0, %v1834
        %v1836 = vpop.f32.mrb[0].mxu0
        %v1837 = vadd.f32 0.0, %v1836
        %v1838 = vpop.f32.mrb[0].mxu0
        %v1839 = vadd.f32 0.0, %v1838
        %1840 = vmatprep.mubr.bf16.mxu0 %v680
        %1841 = vmatmul.mubr.bf16.gmra.mrb[0].mxu0 %v679
        %v1842 = vpop.f32.mrb[0].mxu0
        %v1843 = vadd.f32 0.0, %v1842
        %v1844 = vpop.f32.mrb[0].mxu0
        %v1845 = vadd.f32 0.0, %v1844
        %v1846 = vpop.f32.mrb[0].mxu0
        %v1847 = vadd.f32 0.0, %v1846
        %v1848 = vpop.f32.mrb[0].mxu0
        %v1849 = vadd.f32 0.0, %v1848
        %1850 = vmatprep.mubr.bf16.mxu0 %v682
        %1851 = vmatmul.mubr.bf16.gmra.mrb[0].mxu0 %v681
        %v1852 = vpop.f32.mrb[0].mxu0
        %v1853 = vadd.f32 0.0, %v1852
        %v1854 = vpop.f32.mrb[0].mxu0
        %v1855 = vadd.f32 0.0, %v1854
        %v1856 = vpop.f32.mrb[0].mxu0
        %v1857 = vadd.f32 0.0, %v1856
        %v1858 = vpop.f32.mrb[0].mxu0
        %v1859 = vadd.f32 0.0, %v1858
        %1860 = vmatprep.mubr.bf16.mxu0 %v684
        %1861 = vmatmul.mubr.bf16.gmra.mrb[0].mxu0 %v683
        %v1862 = vpop.f32.mrb[0].mxu0
        %v1863 = vadd.f32 0.0, %v1862
        %v1864 = vpop.f32.mrb[0].mxu0
        %v1865 = vadd.f32 0.0, %v1864
        %v1866 = vpop.f32.mrb[0].mxu0
        %v1867 = vadd.f32 0.0, %v1866
        %v1868 = vpop.f32.mrb[0].mxu0
        %v1869 = vadd.f32 0.0, %v1868
        %1870 = vmatprep.mubr.bf16.mxu0 %v686
        %1871 = vmatmul.mubr.bf16.gmra.mrb[0].mxu0 %v685
        %v1872 = vpop.f32.mrb[0].mxu0
        %v1873 = vadd.f32 0.0, %v1872
        %v1874 = vpop.f32.mrb[0].mxu0
        %v1875 = vadd.f32 0.0, %v1874
        %v1876 = vpop.f32.mrb[0].mxu0
        %v1877 = vadd.f32 0.0, %v1876
        %v1878 = vpop.f32.mrb[0].mxu0
        %v1879 = vadd.f32 0.0, %v1878
        %1880 = vmatprep.mubr.bf16.mxu0 %v688
        %1881 = vmatmul.mubr.bf16.gmra.mrb[0].mxu0 %v687
        %v1882 = vpop.f32.mrb[0].mxu0
        %v1883 = vadd.f32 0.0, %v1882
        %v1884 = vpop.f32.mrb[0].mxu0
        %v1885 = vadd.f32 0.0, %v1884
        %v1886 = vpop.f32.mrb[0].mxu0
        %v1887 = vadd.f32 0.0, %v1886
        %v1888 = vpop.f32.mrb[0].mxu0
        %v1889 = vadd.f32 0.0, %v1888
        %1890 = vmatprep.mubr.bf16.mxu0 %v690
        %1891 = vmatmul.mubr.bf16.gmra.mrb[0].mxu0 %v689
        %v1892 = vpop.f32.mrb[0].mxu0
        %v1893 = vadd.f32 0.0, %v1892
        %v1894 = vpop.f32.mrb[0].mxu0
        %v1895 = vadd.f32 0.0, %v1894
        %v1896 = vpop.f32.mrb[0].mxu0
        %v1897 = vadd.f32 0.0, %v1896
        %v1898 = vpop.f32.mrb[0].mxu0
        %v1899 = vadd.f32 0.0, %v1898
        %1900 = vmatprep.mubr.bf16.mxu0 %v692
        %1901 = vmatmul.mubr.bf16.gmra.mrb[0].mxu0 %v691
        %v1902 = vpop.f32.mrb[0].mxu0
        %v1903 = vadd.f32 0.0, %v1902
        %v1904 = vpop.f32.mrb[0].mxu0
        %v1905 = vadd.f32 0.0, %v1904
        %v1906 = vpop.f32.mrb[0].mxu0
        %v1907 = vadd.f32 0.0, %v1906
        %v1908 = vpop.f32.mrb[0].mxu0
        %v1909 = vadd.f32 0.0, %v1908
        %1910 = vmatprep.mubr.bf16.mxu0 %v694
        %1911 = vmatmul.mubr.bf16.gmra.mrb[0].mxu0 %v693
        %v1912 = vpop.f32.mrb[0].mxu0
        %v1913 = vadd.f32 0.0, %v1912
        %v1914 = vpop.f32.mrb[0].mxu0
        %v1915 = vadd.f32 0.0, %v1914
        %v1916 = vpop.f32.mrb[0].mxu0
        %v1917 = vadd.f32 0.0, %v1916
        %v1918 = vpop.f32.mrb[0].mxu0
        %v1919 = vadd.f32 0.0, %v1918
        %1920 = vmatprep.mubr.bf16.mxu0 %v696
        %1921 = vmatmul.mubr.bf16.gmra.mrb[0].mxu0 %v695
        %v1922 = vpop.f32.mrb[0].mxu0
        %v1923 = vadd.f32 0.0, %v1922
        %v1924 = vpop.f32.mrb[0].mxu0
        %v1925 = vadd.f32 0.0, %v1924
        %v1926 = vpop.f32.mrb[0].mxu0
        %v1927 = vadd.f32 0.0, %v1926
        %v1928 = vpop.f32.mrb[0].mxu0
        %v1929 = vadd.f32 0.0, %v1928
        %1930 = vmatprep.mubr.bf16.mxu0 %v698
        %1931 = vmatmul.mubr.bf16.gmra.mrb[0].mxu0 %v697
        %v1932 = vpop.f32.mrb[0].mxu0
        %v1933 = vadd.f32 0.0, %v1932
        %v1934 = vpop.f32.mrb[0].mxu0
        %v1935 = vadd.f32 0.0, %v1934
        %v1936 = vpop.f32.mrb[0].mxu0
        %v1937 = vadd.f32 0.0, %v1936
        %v1938 = vpop.f32.mrb[0].mxu0
        %v1939 = vadd.f32 0.0, %v1938
        %1940 = vmatprep.mubr.bf16.mxu0 %v700
        %1941 = vmatmul.mubr.bf16.gmra.mrb[0].mxu0 %v699
        %v1942 = vpop.f32.mrb[0].mxu0
        %v1943 = vadd.f32 0.0, %v1942
        %v1944 = vpop.f32.mrb[0].mxu0
        %v1945 = vadd.f32 0.0, %v1944
        %v1946 = vpop.f32.mrb[0].mxu0
        %v1947 = vadd.f32 0.0, %v1946
        %v1948 = vpop.f32.mrb[0].mxu0
        %v1949 = vadd.f32 0.0, %v1948
        %1950 = vdwg.mxu0
        %1951 = vmatprep.subr.bf16.mxu0 %v1058
        %1952 = vmatpush1.bf16.msra.mxu0 %v1057
        %1953 = vmatprep.subr.bf16.mxu0 %v1064
        %1954 = vmatpush1.bf16.msra.mxu0 %v1063
        %1955 = vmatprep.subr.bf16.mxu0 %v1070
        %1956 = vmatpush1.bf16.msra.mxu0 %v1069
        %1957 = vmatprep.subr.bf16.mxu0 %v1076
        %1958 = vmatpush1.bf16.msra.mxu0 %v1075
        %1959 = vmatprep.subr.bf16.mxu0 %v1082
        %1960 = vmatpush1.bf16.msra.mxu0 %v1081
        %1961 = vmatprep.subr.bf16.mxu0 %v1088
        %1962 = vmatpush1.bf16.msra.mxu0 %v1087
        %1963 = vmatprep.subr.bf16.mxu0 %v1094
        %1964 = vmatpush1.bf16.msra.mxu0 %v1093
        %1965 = vmatprep.subr.bf16.mxu0 %v1100
        %1966 = vmatpush1.bf16.msra.mxu0 %v1099
        %1967 = vmatprep.subr.bf16.mxu0 %v1106
        %1968 = vmatpush1.bf16.msra.mxu0 %v1105
        %1969 = vmatprep.subr.bf16.mxu0 %v1112
        %1970 = vmatpush1.bf16.msra.mxu0 %v1111
        %1971 = vmatprep.subr.bf16.mxu0 %v1118
        %1972 = vmatpush1.bf16.msra.mxu0 %v1117
        %1973 = vmatprep.subr.bf16.mxu0 %v1124
        %1974 = vmatpush1.bf16.msra.mxu0 %v1123
        %1975 = vmatprep.subr.bf16.mxu0 %v1130
        %1976 = vmatpush1.bf16.msra.mxu0 %v1129
        %1977 = vmatprep.subr.bf16.mxu0 %v1136
        %1978 = vmatpush1.bf16.msra.mxu0 %v1135
        %1979 = vmatprep.subr.bf16.mxu0 %v1142
        %1980 = vmatpush1.bf16.msra.mxu0 %v1141
        %1981 = vmatprep.subr.bf16.mxu0 %v1148
        %1982 = vmatpush1.bf16.msra.mxu0 %v1147
        %1983 = vmatprep.mubr.bf16.mxu0 %v638
        %1984 = vmatmul.mubr.bf16.gmra.mrb[0].mxu0 %v637
        %v1985 = vpop.f32.mrb[0].mxu0
        %v1986 = vadd.f32 0.0, %v1985
        %v1987 = vpop.f32.mrb[0].mxu0
        %v1988 = vadd.f32 0.0, %v1987
        %v1989 = vpop.f32.mrb[0].mxu0
        %v1990 = vadd.f32 0.0, %v1989
        %v1991 = vpop.f32.mrb[0].mxu0
        %v1992 = vadd.f32 0.0, %v1991
        %1993 = vmatprep.mubr.bf16.mxu0 %v640
        %1994 = vmatmul.mubr.bf16.gmra.mrb[0].mxu0 %v639
        %v1995 = vpop.f32.mrb[0].mxu0
        %v1996 = vadd.f32 0.0, %v1995
        %v1997 = vpop.f32.mrb[0].mxu0
        %v1998 = vadd.f32 0.0, %v1997
        %v1999 = vpop.f32.mrb[0].mxu0
        %v2000 = vadd.f32 0.0, %v1999
        %v2001 = vpop.f32.mrb[0].mxu0
        %v2002 = vadd.f32 0.0, %v2001
        %2003 = vmatprep.mubr.bf16.mxu0 %v642
        %2004 = vmatmul.mubr.bf16.gmra.mrb[0].mxu0 %v641
        %v2005 = vpop.f32.mrb[0].mxu0
        %v2006 = vadd.f32 0.0, %v2005
        %v2007 = vpop.f32.mrb[0].mxu0
        %v2008 = vadd.f32 0.0, %v2007
        %v2009 = vpop.f32.mrb[0].mxu0
        %v2010 = vadd.f32 0.0, %v2009
        %v2011 = vpop.f32.mrb[0].mxu0
        %v2012 = vadd.f32 0.0, %v2011
        %2013 = vmatprep.mubr.bf16.mxu0 %v644
        %2014 = vmatmul.mubr.bf16.gmra.mrb[0].mxu0 %v643
        %v2015 = vpop.f32.mrb[0].mxu0
        %v2016 = vadd.f32 0.0, %v2015
        %v2017 = vpop.f32.mrb[0].mxu0
        %v2018 = vadd.f32 0.0, %v2017
        %v2019 = vpop.f32.mrb[0].mxu0
        %v2020 = vadd.f32 0.0, %v2019
        %v2021 = vpop.f32.mrb[0].mxu0
        %v2022 = vadd.f32 0.0, %v2021
        %2023 = vmatprep.mubr.bf16.mxu0 %v646
        %2024 = vmatmul.mubr.bf16.gmra.mrb[0].mxu0 %v645
        %v2025 = vpop.f32.mrb[0].mxu0
        %v2026 = vadd.f32 0.0, %v2025
        %v2027 = vpop.f32.mrb[0].mxu0
        %v2028 = vadd.f32 0.0, %v2027
        %v2029 = vpop.f32.mrb[0].mxu0
        %v2030 = vadd.f32 0.0, %v2029
        %v2031 = vpop.f32.mrb[0].mxu0
        %v2032 = vadd.f32 0.0, %v2031
        %2033 = vmatprep.mubr.bf16.mxu0 %v648
        %2034 = vmatmul.mubr.bf16.gmra.mrb[0].mxu0 %v647
        %v2035 = vpop.f32.mrb[0].mxu0
        %v2036 = vadd.f32 0.0, %v2035
        %v2037 = vpop.f32.mrb[0].mxu0
        %v2038 = vadd.f32 0.0, %v2037
        %v2039 = vpop.f32.mrb[0].mxu0
        %v2040 = vadd.f32 0.0, %v2039
        %v2041 = vpop.f32.mrb[0].mxu0
        %v2042 = vadd.f32 0.0, %v2041
        %2043 = vmatprep.mubr.bf16.mxu0 %v650
        %2044 = vmatmul.mubr.bf16.gmra.mrb[0].mxu0 %v649
        %v2045 = vpop.f32.mrb[0].mxu0
        %v2046 = vadd.f32 0.0, %v2045
        %v2047 = vpop.f32.mrb[0].mxu0
        %v2048 = vadd.f32 0.0, %v2047
        %v2049 = vpop.f32.mrb[0].mxu0
        %v2050 = vadd.f32 0.0, %v2049
        %v2051 = vpop.f32.mrb[0].mxu0
        %v2052 = vadd.f32 0.0, %v2051
        %2053 = vmatprep.mubr.bf16.mxu0 %v652
        %2054 = vmatmul.mubr.bf16.gmra.mrb[0].mxu0 %v651
        %v2055 = vpop.f32.mrb[0].mxu0
        %v2056 = vadd.f32 0.0, %v2055
        %v2057 = vpop.f32.mrb[0].mxu0
        %v2058 = vadd.f32 0.0, %v2057
        %v2059 = vpop.f32.mrb[0].mxu0
        %v2060 = vadd.f32 0.0, %v2059
        %v2061 = vpop.f32.mrb[0].mxu0
        %v2062 = vadd.f32 0.0, %v2061
        %2063 = vmatprep.mubr.bf16.mxu0 %v654
        %2064 = vmatmul.mubr.bf16.gmra.mrb[0].mxu0 %v653
        %v2065 = vpop.f32.mrb[0].mxu0
        %v2066 = vadd.f32 0.0, %v2065
        %v2067 = vpop.f32.mrb[0].mxu0
        %v2068 = vadd.f32 0.0, %v2067
        %v2069 = vpop.f32.mrb[0].mxu0
        %v2070 = vadd.f32 0.0, %v2069
        %v2071 = vpop.f32.mrb[0].mxu0
        %v2072 = vadd.f32 0.0, %v2071
        %2073 = vmatprep.mubr.bf16.mxu0 %v656
        %2074 = vmatmul.mubr.bf16.gmra.mrb[0].mxu0 %v655
        %v2075 = vpop.f32.mrb[0].mxu0
        %v2076 = vadd.f32 0.0, %v2075
        %v2077 = vpop.f32.mrb[0].mxu0
        %v2078 = vadd.f32 0.0, %v2077
        %v2079 = vpop.f32.mrb[0].mxu0
        %v2080 = vadd.f32 0.0, %v2079
        %v2081 = vpop.f32.mrb[0].mxu0
        %v2082 = vadd.f32 0.0, %v2081
        %2083 = vmatprep.mubr.bf16.mxu0 %v658
        %2084 = vmatmul.mubr.bf16.gmra.mrb[0].mxu0 %v657
        %v2085 = vpop.f32.mrb[0].mxu0
        %v2086 = vadd.f32 0.0, %v2085
        %v2087 = vpop.f32.mrb[0].mxu0
        %v2088 = vadd.f32 0.0, %v2087
        %v2089 = vpop.f32.mrb[0].mxu0
        %v2090 = vadd.f32 0.0, %v2089
        %v2091 = vpop.f32.mrb[0].mxu0
        %v2092 = vadd.f32 0.0, %v2091
        %2093 = vmatprep.mubr.bf16.mxu0 %v660
        %2094 = vmatmul.mubr.bf16.gmra.mrb[0].mxu0 %v659
        %v2095 = vpop.f32.mrb[0].mxu0
        %v2096 = vadd.f32 0.0, %v2095
        %v2097 = vpop.f32.mrb[0].mxu0
        %v2098 = vadd.f32 0.0, %v2097
        %v2099 = vpop.f32.mrb[0].mxu0
        %v2100 = vadd.f32 0.0, %v2099
        %v2101 = vpop.f32.mrb[0].mxu0
        %v2102 = vadd.f32 0.0, %v2101
        %2103 = vmatprep.mubr.bf16.mxu0 %v662
        %2104 = vmatmul.mubr.bf16.gmra.mrb[0].mxu0 %v661
        %v2105 = vpop.f32.mrb[0].mxu0
        %v2106 = vadd.f32 0.0, %v2105
        %v2107 = vpop.f32.mrb[0].mxu0
        %v2108 = vadd.f32 0.0, %v2107
        %v2109 = vpop.f32.mrb[0].mxu0
        %v2110 = vadd.f32 0.0, %v2109
        %v2111 = vpop.f32.mrb[0].mxu0
        %v2112 = vadd.f32 0.0, %v2111
        %2113 = vmatprep.mubr.bf16.mxu0 %v664
        %2114 = vmatmul.mubr.bf16.gmra.mrb[0].mxu0 %v663
        %v2115 = vpop.f32.mrb[0].mxu0
        %v2116 = vadd.f32 0.0, %v2115
        %v2117 = vpop.f32.mrb[0].mxu0
        %v2118 = vadd.f32 0.0, %v2117
        %v2119 = vpop.f32.mrb[0].mxu0
        %v2120 = vadd.f32 0.0, %v2119
        %v2121 = vpop.f32.mrb[0].mxu0
        %v2122 = vadd.f32 0.0, %v2121
        %2123 = vmatprep.mubr.bf16.mxu0 %v666
        %2124 = vmatmul.mubr.bf16.gmra.mrb[0].mxu0 %v665
        %v2125 = vpop.f32.mrb[0].mxu0
        %v2126 = vadd.f32 0.0, %v2125
        %v2127 = vpop.f32.mrb[0].mxu0
        %v2128 = vadd.f32 0.0, %v2127
        %v2129 = vpop.f32.mrb[0].mxu0
        %v2130 = vadd.f32 0.0, %v2129
        %v2131 = vpop.f32.mrb[0].mxu0
        %v2132 = vadd.f32 0.0, %v2131
        %2133 = vmatprep.mubr.bf16.mxu0 %v668
        %2134 = vmatmul.mubr.bf16.gmra.mrb[0].mxu0 %v667
        %v2135 = vpop.f32.mrb[0].mxu0
        %v2136 = vadd.f32 0.0, %v2135
        %v2137 = vpop.f32.mrb[0].mxu0
        %v2138 = vadd.f32 0.0, %v2137
        %v2139 = vpop.f32.mrb[0].mxu0
        %v2140 = vadd.f32 0.0, %v2139
        %v2141 = vpop.f32.mrb[0].mxu0
        %v2142 = vadd.f32 0.0, %v2141
        %2143 = vmatprep.mubr.bf16.mxu0 %v670
        %2144 = vmatmul.mubr.bf16.gmra.mrb[0].mxu0 %v669
        %v2145 = vpop.f32.mrb[0].mxu0
        %v2146 = vadd.f32 0.0, %v2145
        %v2147 = vpop.f32.mrb[0].mxu0
        %v2148 = vadd.f32 0.0, %v2147
        %v2149 = vpop.f32.mrb[0].mxu0
        %v2150 = vadd.f32 0.0, %v2149
        %v2151 = vpop.f32.mrb[0].mxu0
        %v2152 = vadd.f32 0.0, %v2151
        %2153 = vmatprep.mubr.bf16.mxu0 %v672
        %2154 = vmatmul.mubr.bf16.gmra.mrb[0].mxu0 %v671
        %v2155 = vpop.f32.mrb[0].mxu0
        %v2156 = vadd.f32 0.0, %v2155
        %v2157 = vpop.f32.mrb[0].mxu0
        %v2158 = vadd.f32 0.0, %v2157
        %v2159 = vpop.f32.mrb[0].mxu0
        %v2160 = vadd.f32 0.0, %v2159
        %v2161 = vpop.f32.mrb[0].mxu0
        %v2162 = vadd.f32 0.0, %v2161
        %2163 = vmatprep.mubr.bf16.mxu0 %v674
        %2164 = vmatmul.mubr.bf16.gmra.mrb[0].mxu0 %v673
        %v2165 = vpop.f32.mrb[0].mxu0
        %v2166 = vadd.f32 0.0, %v2165
        %v2167 = vpop.f32.mrb[0].mxu0
        %v2168 = vadd.f32 0.0, %v2167
        %v2169 = vpop.f32.mrb[0].mxu0
        %v2170 = vadd.f32 0.0, %v2169
        %v2171 = vpop.f32.mrb[0].mxu0
        %v2172 = vadd.f32 0.0, %v2171
        %2173 = vmatprep.mubr.bf16.mxu0 %v676
        %2174 = vmatmul.mubr.bf16.gmra.mrb[0].mxu0 %v675
        %v2175 = vpop.f32.mrb[0].mxu0
        %v2176 = vadd.f32 0.0, %v2175
        %v2177 = vpop.f32.mrb[0].mxu0
        %v2178 = vadd.f32 0.0, %v2177
        %v2179 = vpop.f32.mrb[0].mxu0
        %v2180 = vadd.f32 0.0, %v2179
        %v2181 = vpop.f32.mrb[0].mxu0
        %v2182 = vadd.f32 0.0, %v2181
        %2183 = vmatprep.mubr.bf16.mxu0 %v678
        %2184 = vmatmul.mubr.bf16.gmra.mrb[0].mxu0 %v677
        %v2185 = vpop.f32.mrb[0].mxu0
        %v2186 = vadd.f32 0.0, %v2185
        %v2187 = vpop.f32.mrb[0].mxu0
        %v2188 = vadd.f32 0.0, %v2187
        %v2189 = vpop.f32.mrb[0].mxu0
        %v2190 = vadd.f32 0.0, %v2189
        %v2191 = vpop.f32.mrb[0].mxu0
        %v2192 = vadd.f32 0.0, %v2191
        %2193 = vmatprep.mubr.bf16.mxu0 %v680
        %2194 = vmatmul.mubr.bf16.gmra.mrb[0].mxu0 %v679
        %v2195 = vpop.f32.mrb[0].mxu0
        %v2196 = vadd.f32 0.0, %v2195
        %v2197 = vpop.f32.mrb[0].mxu0
        %v2198 = vadd.f32 0.0, %v2197
        %v2199 = vpop.f32.mrb[0].mxu0
        %v2200 = vadd.f32 0.0, %v2199
        %v2201 = vpop.f32.mrb[0].mxu0
        %v2202 = vadd.f32 0.0, %v2201
        %2203 = vmatprep.mubr.bf16.mxu0 %v682
        %2204 = vmatmul.mubr.bf16.gmra.mrb[0].mxu0 %v681
        %v2205 = vpop.f32.mrb[0].mxu0
        %v2206 = vadd.f32 0.0, %v2205
        %v2207 = vpop.f32.mrb[0].mxu0
        %v2208 = vadd.f32 0.0, %v2207
        %v2209 = vpop.f32.mrb[0].mxu0
        %v2210 = vadd.f32 0.0, %v2209
        %v2211 = vpop.f32.mrb[0].mxu0
        %v2212 = vadd.f32 0.0, %v2211
        %2213 = vmatprep.mubr.bf16.mxu0 %v684
        %2214 = vmatmul.mubr.bf16.gmra.mrb[0].mxu0 %v683
        %v2215 = vpop.f32.mrb[0].mxu0
        %v2216 = vadd.f32 0.0, %v2215
        %v2217 = vpop.f32.mrb[0].mxu0
        %v2218 = vadd.f32 0.0, %v2217
        %v2219 = vpop.f32.mrb[0].mxu0
        %v2220 = vadd.f32 0.0, %v2219
        %v2221 = vpop.f32.mrb[0].mxu0
        %v2222 = vadd.f32 0.0, %v2221
        %2223 = vmatprep.mubr.bf16.mxu0 %v686
        %2224 = vmatmul.mubr.bf16.gmra.mrb[0].mxu0 %v685
        %v2225 = vpop.f32.mrb[0].mxu0
        %v2226 = vadd.f32 0.0, %v2225
        %v2227 = vpop.f32.mrb[0].mxu0
        %v2228 = vadd.f32 0.0, %v2227
        %v2229 = vpop.f32.mrb[0].mxu0
        %v2230 = vadd.f32 0.0, %v2229
        %v2231 = vpop.f32.mrb[0].mxu0
        %v2232 = vadd.f32 0.0, %v2231
        %2233 = vmatprep.mubr.bf16.mxu0 %v688
        %2234 = vmatmul.mubr.bf16.gmra.mrb[0].mxu0 %v687
        %v2235 = vpop.f32.mrb[0].mxu0
        %v2236 = vadd.f32 0.0, %v2235
        %v2237 = vpop.f32.mrb[0].mxu0
        %v2238 = vadd.f32 0.0, %v2237
        %v2239 = vpop.f32.mrb[0].mxu0
        %v2240 = vadd.f32 0.0, %v2239
        %v2241 = vpop.f32.mrb[0].mxu0
        %v2242 = vadd.f32 0.0, %v2241
        %2243 = vmatprep.mubr.bf16.mxu0 %v690
        %2244 = vmatmul.mubr.bf16.gmra.mrb[0].mxu0 %v689
        %v2245 = vpop.f32.mrb[0].mxu0
        %v2246 = vadd.f32 0.0, %v2245
        %v2247 = vpop.f32.mrb[0].mxu0
        %v2248 = vadd.f32 0.0, %v2247
        %v2249 = vpop.f32.mrb[0].mxu0
        %v2250 = vadd.f32 0.0, %v2249
        %v2251 = vpop.f32.mrb[0].mxu0
        %v2252 = vadd.f32 0.0, %v2251
        %2253 = vmatprep.mubr.bf16.mxu0 %v692
        %2254 = vmatmul.mubr.bf16.gmra.mrb[0].mxu0 %v691
        %v2255 = vpop.f32.mrb[0].mxu0
        %v2256 = vadd.f32 0.0, %v2255
        %v2257 = vpop.f32.mrb[0].mxu0
        %v2258 = vadd.f32 0.0, %v2257
        %v2259 = vpop.f32.mrb[0].mxu0
        %v2260 = vadd.f32 0.0, %v2259
        %v2261 = vpop.f32.mrb[0].mxu0
        %v2262 = vadd.f32 0.0, %v2261
        %2263 = vmatprep.mubr.bf16.mxu0 %v694
        %2264 = vmatmul.mubr.bf16.gmra.mrb[0].mxu0 %v693
        %v2265 = vpop.f32.mrb[0].mxu0
        %v2266 = vadd.f32 0.0, %v2265
        %v2267 = vpop.f32.mrb[0].mxu0
        %v2268 = vadd.f32 0.0, %v2267
        %v2269 = vpop.f32.mrb[0].mxu0
        %v2270 = vadd.f32 0.0, %v2269
        %v2271 = vpop.f32.mrb[0].mxu0
        %v2272 = vadd.f32 0.0, %v2271
        %2273 = vmatprep.mubr.bf16.mxu0 %v696
        %2274 = vmatmul.mubr.bf16.gmra.mrb[0].mxu0 %v695
        %v2275 = vpop.f32.mrb[0].mxu0
        %v2276 = vadd.f32 0.0, %v2275
        %v2277 = vpop.f32.mrb[0].mxu0
        %v2278 = vadd.f32 0.0, %v2277
        %v2279 = vpop.f32.mrb[0].mxu0
        %v2280 = vadd.f32 0.0, %v2279
        %v2281 = vpop.f32.mrb[0].mxu0
        %v2282 = vadd.f32 0.0, %v2281
        %2283 = vmatprep.mubr.bf16.mxu0 %v698
        %2284 = vmatmul.mubr.bf16.gmra.mrb[0].mxu0 %v697
        %v2285 = vpop.f32.mrb[0].mxu0
        %v2286 = vadd.f32 0.0, %v2285
        %v2287 = vpop.f32.mrb[0].mxu0
        %v2288 = vadd.f32 0.0, %v2287
        %v2289 = vpop.f32.mrb[0].mxu0
        %v2290 = vadd.f32 0.0, %v2289
        %v2291 = vpop.f32.mrb[0].mxu0
        %v2292 = vadd.f32 0.0, %v2291
        %2293 = vmatprep.mubr.bf16.mxu0 %v700
        %2294 = vmatmul.mubr.bf16.gmra.mrb[0].mxu0 %v699
        %v2295 = vpop.f32.mrb[0].mxu0
        %v2296 = vadd.f32 0.0, %v2295
        %v2297 = vpop.f32.mrb[0].mxu0
        %v2298 = vadd.f32 0.0, %v2297
        %v2299 = vpop.f32.mrb[0].mxu0
        %v2300 = vadd.f32 0.0, %v2299
        %v2301 = vpop.f32.mrb[0].mxu0
        %v2302 = vadd.f32 0.0, %v2301
        %2303 = vdwg.mxu0
        %v2304 = vmul.f32 %v1280, %v1280
        %v2305 = vmul.f32 %v1282, %v1282
        %v2306 = vmul.f32 %v1633, %v1633
        %v2307 = vmul.f32 %v1635, %v1635
        %v2308 = vmul.f32 %v1284, %v1284
        %v2309 = vmul.f32 %v1286, %v1286
        %v2310 = vmul.f32 %v1637, %v1637
        %v2311 = vmul.f32 %v1639, %v1639
        %v2312 = vmul.f32 %v1290, %v1290
        %v2313 = vmul.f32 %v1292, %v1292
        %v2314 = vmul.f32 %v1643, %v1643
        %v2315 = vmul.f32 %v1645, %v1645
        %v2316 = vmul.f32 %v1294, %v1294
        %v2317 = vmul.f32 %v1296, %v1296
        %v2318 = vmul.f32 %v1647, %v1647
        %v2319 = vmul.f32 %v1649, %v1649
        %v2320 = vmul.f32 %v1300, %v1300
        %v2321 = vmul.f32 %v1302, %v1302
        %v2322 = vmul.f32 %v1653, %v1653
        %v2323 = vmul.f32 %v1655, %v1655
        %v2324 = vmul.f32 %v1304, %v1304
        %v2325 = vmul.f32 %v1306, %v1306
        %v2326 = vmul.f32 %v1657, %v1657
        %v2327 = vmul.f32 %v1659, %v1659
        %v2328 = vmul.f32 %v1310, %v1310
        %v2329 = vmul.f32 %v1312, %v1312
        %v2330 = vmul.f32 %v1663, %v1663
        %v2331 = vmul.f32 %v1665, %v1665
        %v2332 = vmul.f32 %v1314, %v1314
        %v2333 = vmul.f32 %v1316, %v1316
        %v2334 = vmul.f32 %v1667, %v1667
        %v2335 = vmul.f32 %v1669, %v1669
        %v2336 = vmul.f32 %v1320, %v1320
        %v2337 = vmul.f32 %v1322, %v1322
        %v2338 = vmul.f32 %v1673, %v1673
        %v2339 = vmul.f32 %v1675, %v1675
        %v2340 = vmul.f32 %v1324, %v1324
        %v2341 = vmul.f32 %v1326, %v1326
        %v2342 = vmul.f32 %v1677, %v1677
        %v2343 = vmul.f32 %v1679, %v1679
        %v2344 = vmul.f32 %v1330, %v1330
        %v2345 = vmul.f32 %v1332, %v1332
        %v2346 = vmul.f32 %v1683, %v1683
        %v2347 = vmul.f32 %v1685, %v1685
        %v2348 = vmul.f32 %v1334, %v1334
        %v2349 = vmul.f32 %v1336, %v1336
        %v2350 = vmul.f32 %v1687, %v1687
        %v2351 = vmul.f32 %v1689, %v1689
        %v2352 = vmul.f32 %v1340, %v1340
        %v2353 = vmul.f32 %v1342, %v1342
        %v2354 = vmul.f32 %v1693, %v1693
        %v2355 = vmul.f32 %v1695, %v1695
        %v2356 = vmul.f32 %v1344, %v1344
        %v2357 = vmul.f32 %v1346, %v1346
        %v2358 = vmul.f32 %v1697, %v1697
        %v2359 = vmul.f32 %v1699, %v1699
        %v2360 = vmul.f32 %v1350, %v1350
        %v2361 = vmul.f32 %v1352, %v1352
        %v2362 = vmul.f32 %v1703, %v1703
        %v2363 = vmul.f32 %v1705, %v1705
        %v2364 = vmul.f32 %v1354, %v1354
        %v2365 = vmul.f32 %v1356, %v1356
        %v2366 = vmul.f32 %v1707, %v1707
        %v2367 = vmul.f32 %v1709, %v1709
        %v2368 = vmul.f32 %v1360, %v1360
        %v2369 = vmul.f32 %v1362, %v1362
        %v2370 = vmul.f32 %v1713, %v1713
        %v2371 = vmul.f32 %v1715, %v1715
        %v2372 = vmul.f32 %v1364, %v1364
        %v2373 = vmul.f32 %v1366, %v1366
        %v2374 = vmul.f32 %v1717, %v1717
        %v2375 = vmul.f32 %v1719, %v1719
        %v2376 = vmul.f32 %v1370, %v1370
        %v2377 = vmul.f32 %v1372, %v1372
        %v2378 = vmul.f32 %v1723, %v1723
        %v2379 = vmul.f32 %v1725, %v1725
        %v2380 = vmul.f32 %v1374, %v1374
        %v2381 = vmul.f32 %v1376, %v1376
        %v2382 = vmul.f32 %v1727, %v1727
        %v2383 = vmul.f32 %v1729, %v1729
        %v2384 = vmul.f32 %v1380, %v1380
        %v2385 = vmul.f32 %v1382, %v1382
        %v2386 = vmul.f32 %v1733, %v1733
        %v2387 = vmul.f32 %v1735, %v1735
        %v2388 = vmul.f32 %v1384, %v1384
        %v2389 = vmul.f32 %v1386, %v1386
        %v2390 = vmul.f32 %v1737, %v1737
        %v2391 = vmul.f32 %v1739, %v1739
        %v2392 = vmul.f32 %v1390, %v1390
        %v2393 = vmul.f32 %v1392, %v1392
        %v2394 = vmul.f32 %v1743, %v1743
        %v2395 = vmul.f32 %v1745, %v1745
        %v2396 = vmul.f32 %v1394, %v1394
        %v2397 = vmul.f32 %v1396, %v1396
        %v2398 = vmul.f32 %v1747, %v1747
        %v2399 = vmul.f32 %v1749, %v1749
        %v2400 = vmul.f32 %v1400, %v1400
        %v2401 = vmul.f32 %v1402, %v1402
        %v2402 = vmul.f32 %v1753, %v1753
        %v2403 = vmul.f32 %v1755, %v1755
        %v2404 = vmul.f32 %v1404, %v1404
        %v2405 = vmul.f32 %v1406, %v1406
        %v2406 = vmul.f32 %v1757, %v1757
        %v2407 = vmul.f32 %v1759, %v1759
        %v2408 = vmul.f32 %v1410, %v1410
        %v2409 = vmul.f32 %v1412, %v1412
        %v2410 = vmul.f32 %v1763, %v1763
        %v2411 = vmul.f32 %v1765, %v1765
        %v2412 = vmul.f32 %v1414, %v1414
        %v2413 = vmul.f32 %v1416, %v1416
        %v2414 = vmul.f32 %v1767, %v1767
        %v2415 = vmul.f32 %v1769, %v1769
        %v2416 = vmul.f32 %v1420, %v1420
        %v2417 = vmul.f32 %v1422, %v1422
        %v2418 = vmul.f32 %v1773, %v1773
        %v2419 = vmul.f32 %v1775, %v1775
        %v2420 = vmul.f32 %v1424, %v1424
        %v2421 = vmul.f32 %v1426, %v1426
        %v2422 = vmul.f32 %v1777, %v1777
        %v2423 = vmul.f32 %v1779, %v1779
        %v2424 = vmul.f32 %v1430, %v1430
        %v2425 = vmul.f32 %v1432, %v1432
        %v2426 = vmul.f32 %v1783, %v1783
        %v2427 = vmul.f32 %v1785, %v1785
        %v2428 = vmul.f32 %v1434, %v1434
        %v2429 = vmul.f32 %v1436, %v1436
        %v2430 = vmul.f32 %v1787, %v1787
        %v2431 = vmul.f32 %v1789, %v1789
        %v2432 = vadd.f32 %v2304, %v2308
        %v2433 = vadd.f32 %v2432, %v2312
        %v2434 = vadd.f32 %v2433, %v2316
        %v2435 = vadd.f32 %v2434, %v2320
        %v2436 = vadd.f32 %v2435, %v2324
        %v2437 = vadd.f32 %v2436, %v2328
        %v2438 = vadd.f32 %v2437, %v2332
        %v2439 = vadd.f32 %v2438, %v2336
        %v2440 = vadd.f32 %v2439, %v2340
        %v2441 = vadd.f32 %v2440, %v2344
        %v2442 = vadd.f32 %v2441, %v2348
        %v2443 = vadd.f32 %v2442, %v2352
        %v2444 = vadd.f32 %v2443, %v2356
        %v2445 = vadd.f32 %v2444, %v2360
        %v2446 = vadd.f32 %v2445, %v2364
        %v2447 = vadd.f32 %v2446, %v2368
        %v2448 = vadd.f32 %v2447, %v2372
        %v2449 = vadd.f32 %v2448, %v2376
        %v2450 = vadd.f32 %v2449, %v2380
        %v2451 = vadd.f32 %v2450, %v2384
        %v2452 = vadd.f32 %v2451, %v2388
        %v2453 = vadd.f32 %v2452, %v2392
        %v2454 = vadd.f32 %v2453, %v2396
        %v2455 = vadd.f32 %v2454, %v2400
        %v2456 = vadd.f32 %v2455, %v2404
        %v2457 = vadd.f32 %v2456, %v2408
        %v2458 = vadd.f32 %v2457, %v2412
        %v2459 = vadd.f32 %v2458, %v2416
        %v2460 = vadd.f32 %v2459, %v2420
        %v2461 = vadd.f32 %v2460, %v2424
        %v2462 = vadd.f32 %v2461, %v2428
        %v2463 = vrot.slane %v2462, 4
        %v2464 = vadd.f32 %v2462, %v2463
        %v2465 = vrot.slane %v2464, 2
        %v2466 = vadd.f32 %v2464, %v2465
        %v2467 = vrot.slane %v2466, 1
        %v2468 = vadd.f32 %v2466, %v2467
        %v2469 = vadd.f32 %v2305, %v2309
        %v2470 = vadd.f32 %v2469, %v2313
        %v2471 = vadd.f32 %v2470, %v2317
        %v2472 = vadd.f32 %v2471, %v2321
        %v2473 = vadd.f32 %v2472, %v2325
        %v2474 = vadd.f32 %v2473, %v2329
        %v2475 = vadd.f32 %v2474, %v2333
        %v2476 = vadd.f32 %v2475, %v2337
        %v2477 = vadd.f32 %v2476, %v2341
        %v2478 = vadd.f32 %v2477, %v2345
        %v2479 = vadd.f32 %v2478, %v2349
        %v2480 = vadd.f32 %v2479, %v2353
        %v2481 = vadd.f32 %v2480, %v2357
        %v2482 = vadd.f32 %v2481, %v2361
        %v2483 = vadd.f32 %v2482, %v2365
        %v2484 = vadd.f32 %v2483, %v2369
        %v2485 = vadd.f32 %v2484, %v2373
        %v2486 = vadd.f32 %v2485, %v2377
        %v2487 = vadd.f32 %v2486, %v2381
        %v2488 = vadd.f32 %v2487, %v2385
        %v2489 = vadd.f32 %v2488, %v2389
        %v2490 = vadd.f32 %v2489, %v2393
        %v2491 = vadd.f32 %v2490, %v2397
        %v2492 = vadd.f32 %v2491, %v2401
        %v2493 = vadd.f32 %v2492, %v2405
        %v2494 = vadd.f32 %v2493, %v2409
        %v2495 = vadd.f32 %v2494, %v2413
        %v2496 = vadd.f32 %v2495, %v2417
        %v2497 = vadd.f32 %v2496, %v2421
        %v2498 = vadd.f32 %v2497, %v2425
        %v2499 = vadd.f32 %v2498, %v2429
        %v2500 = vrot.slane %v2499, 4
        %v2501 = vadd.f32 %v2499, %v2500
        %v2502 = vrot.slane %v2501, 2
        %v2503 = vadd.f32 %v2501, %v2502
        %v2504 = vrot.slane %v2503, 1
        %v2505 = vadd.f32 %v2503, %v2504
        %v2506 = vadd.f32 %v2306, %v2310
        %v2507 = vadd.f32 %v2506, %v2314
        %v2508 = vadd.f32 %v2507, %v2318
        %v2509 = vadd.f32 %v2508, %v2322
        %v2510 = vadd.f32 %v2509, %v2326
        %v2511 = vadd.f32 %v2510, %v2330
        %v2512 = vadd.f32 %v2511, %v2334
        %v2513 = vadd.f32 %v2512, %v2338
        %v2514 = vadd.f32 %v2513, %v2342
        %v2515 = vadd.f32 %v2514, %v2346
        %v2516 = vadd.f32 %v2515, %v2350
        %v2517 = vadd.f32 %v2516, %v2354
        %v2518 = vadd.f32 %v2517, %v2358
        %v2519 = vadd.f32 %v2518, %v2362
        %v2520 = vadd.f32 %v2519, %v2366
        %v2521 = vadd.f32 %v2520, %v2370
        %v2522 = vadd.f32 %v2521, %v2374
        %v2523 = vadd.f32 %v2522, %v2378
        %v2524 = vadd.f32 %v2523, %v2382
        %v2525 = vadd.f32 %v2524, %v2386
        %v2526 = vadd.f32 %v2525, %v2390
        %v2527 = vadd.f32 %v2526, %v2394
        %v2528 = vadd.f32 %v2527, %v2398
        %v2529 = vadd.f32 %v2528, %v2402
        %v2530 = vadd.f32 %v2529, %v2406
        %v2531 = vadd.f32 %v2530, %v2410
        %v2532 = vadd.f32 %v2531, %v2414
        %v2533 = vadd.f32 %v2532, %v2418
        %v2534 = vadd.f32 %v2533, %v2422
        %v2535 = vadd.f32 %v2534, %v2426
        %v2536 = vadd.f32 %v2535, %v2430
        %v2537 = vrot.slane %v2536, 4
        %v2538 = vadd.f32 %v2536, %v2537
        %v2539 = vrot.slane %v2538, 2
        %v2540 = vadd.f32 %v2538, %v2539
        %v2541 = vrot.slane %v2540, 1
        %v2542 = vadd.f32 %v2540, %v2541
        %v2543 = vadd.f32 %v2307, %v2311
        %v2544 = vadd.f32 %v2543, %v2315
        %v2545 = vadd.f32 %v2544, %v2319
        %v2546 = vadd.f32 %v2545, %v2323
        %v2547 = vadd.f32 %v2546, %v2327
        %v2548 = vadd.f32 %v2547, %v2331
        %v2549 = vadd.f32 %v2548, %v2335
        %v2550 = vadd.f32 %v2549, %v2339
        %v2551 = vadd.f32 %v2550, %v2343
        %v2552 = vadd.f32 %v2551, %v2347
        %v2553 = vadd.f32 %v2552, %v2351
        %v2554 = vadd.f32 %v2553, %v2355
        %v2555 = vadd.f32 %v2554, %v2359
        %v2556 = vadd.f32 %v2555, %v2363
        %v2557 = vadd.f32 %v2556, %v2367
        %v2558 = vadd.f32 %v2557, %v2371
        %v2559 = vadd.f32 %v2558, %v2375
        %v2560 = vadd.f32 %v2559, %v2379
        %v2561 = vadd.f32 %v2560, %v2383
        %v2562 = vadd.f32 %v2561, %v2387
        %v2563 = vadd.f32 %v2562, %v2391
        %v2564 = vadd.f32 %v2563, %v2395
        %v2565 = vadd.f32 %v2564, %v2399
        %v2566 = vadd.f32 %v2565, %v2403
        %v2567 = vadd.f32 %v2566, %v2407
        %v2568 = vadd.f32 %v2567, %v2411
        %v2569 = vadd.f32 %v2568, %v2415
        %v2570 = vadd.f32 %v2569, %v2419
        %v2571 = vadd.f32 %v2570, %v2423
        %v2572 = vadd.f32 %v2571, %v2427
        %v2573 = vadd.f32 %v2572, %v2431
        %v2574 = vrot.slane %v2573, 4
        %v2575 = vadd.f32 %v2573, %v2574
        %v2576 = vrot.slane %v2575, 2
        %v2577 = vadd.f32 %v2575, %v2576
        %v2578 = vrot.slane %v2577, 1
        %v2579 = vadd.f32 %v2577, %v2578
        %v2580 = vmax.f32 %v2468, 1e-24
        %v2581 = vmax.f32 %v2505, 1e-24
        %v2582 = vmax.f32 %v2542, 1e-24
        %v2583 = vmax.f32 %v2579, 1e-24
        %v2584 = vrsqrt.pop %v2580
        %v2585 = vrsqrt.pop %v2581
        %v2586 = vrsqrt.pop %v2582
        %v2587 = vrsqrt.pop %v2583
        %v2588 = vstv %s284
        %v2589 = vmul.f32 %v2584, %v2588
        %v2590 = vmul.f32 %v2585, %v2588
        %v2591 = vmul.f32 %v1280, %v2589
        %v2592 = vmul.f32 %v1282, %v2590
        %v2593 = vmul.f32 %v1284, %v2589
        %v2594 = vmul.f32 %v1286, %v2590
        %v2595 = vmul.f32 %v1290, %v2589
        %v2596 = vmul.f32 %v1292, %v2590
        %v2597 = vmul.f32 %v1294, %v2589
        %v2598 = vmul.f32 %v1296, %v2590
        %v2599 = vmul.f32 %v1300, %v2589
        %v2600 = vmul.f32 %v1302, %v2590
        %v2601 = vmul.f32 %v1304, %v2589
        %v2602 = vmul.f32 %v1306, %v2590
        %v2603 = vmul.f32 %v1310, %v2589
        %v2604 = vmul.f32 %v1312, %v2590
        %v2605 = vmul.f32 %v1314, %v2589
        %v2606 = vmul.f32 %v1316, %v2590
        %v2607 = vmul.f32 %v1320, %v2589
        %v2608 = vmul.f32 %v1322, %v2590
        %v2609 = vmul.f32 %v1324, %v2589
        %v2610 = vmul.f32 %v1326, %v2590
        %v2611 = vmul.f32 %v1330, %v2589
        %v2612 = vmul.f32 %v1332, %v2590
        %v2613 = vmul.f32 %v1334, %v2589
        %v2614 = vmul.f32 %v1336, %v2590
        %v2615 = vmul.f32 %v1340, %v2589
        %v2616 = vmul.f32 %v1342, %v2590
        %v2617 = vmul.f32 %v1344, %v2589
        %v2618 = vmul.f32 %v1346, %v2590
        %v2619 = vmul.f32 %v1350, %v2589
        %v2620 = vmul.f32 %v1352, %v2590
        %v2621 = vmul.f32 %v1354, %v2589
        %v2622 = vmul.f32 %v1356, %v2590
        %v2623 = vmul.f32 %v1360, %v2589
        %v2624 = vmul.f32 %v1362, %v2590
        %v2625 = vmul.f32 %v1364, %v2589
        %v2626 = vmul.f32 %v1366, %v2590
        %v2627 = vmul.f32 %v1370, %v2589
        %v2628 = vmul.f32 %v1372, %v2590
        %v2629 = vmul.f32 %v1374, %v2589
        %v2630 = vmul.f32 %v1376, %v2590
        %v2631 = vmul.f32 %v1380, %v2589
        %v2632 = vmul.f32 %v1382, %v2590
        %v2633 = vmul.f32 %v1384, %v2589
        %v2634 = vmul.f32 %v1386, %v2590
        %v2635 = vmul.f32 %v1390, %v2589
        %v2636 = vmul.f32 %v1392, %v2590
        %v2637 = vmul.f32 %v1394, %v2589
        %v2638 = vmul.f32 %v1396, %v2590
        %v2639 = vmul.f32 %v1400, %v2589
        %v2640 = vmul.f32 %v1402, %v2590
        %v2641 = vmul.f32 %v1404, %v2589
        %v2642 = vmul.f32 %v1406, %v2590
        %v2643 = vmul.f32 %v1410, %v2589
        %v2644 = vmul.f32 %v1412, %v2590
        %v2645 = vmul.f32 %v1414, %v2589
        %v2646 = vmul.f32 %v1416, %v2590
        %v2647 = vmul.f32 %v1420, %v2589
        %v2648 = vmul.f32 %v1422, %v2590
        %v2649 = vmul.f32 %v1424, %v2589
        %v2650 = vmul.f32 %v1426, %v2590
        %v2651 = vmul.f32 %v1430, %v2589
        %v2652 = vmul.f32 %v1432, %v2590
        %v2653 = vmul.f32 %v1434, %v2589
        %v2654 = vmul.f32 %v1436, %v2590
        %v2655 = vpack.c.bf16 %v2593, %v2591
        %v2656 = vpack.c.bf16 %v2594, %v2592
        %v2657 = vpack.c.bf16 %v2597, %v2595
        %v2658 = vpack.c.bf16 %v2598, %v2596
        %v2659 = vpack.c.bf16 %v2601, %v2599
        %v2660 = vpack.c.bf16 %v2602, %v2600
        %v2661 = vpack.c.bf16 %v2605, %v2603
        %v2662 = vpack.c.bf16 %v2606, %v2604
        %v2663 = vpack.c.bf16 %v2609, %v2607
        %v2664 = vpack.c.bf16 %v2610, %v2608
        %v2665 = vpack.c.bf16 %v2613, %v2611
        %v2666 = vpack.c.bf16 %v2614, %v2612
        %v2667 = vpack.c.bf16 %v2617, %v2615
        %v2668 = vpack.c.bf16 %v2618, %v2616
        %v2669 = vpack.c.bf16 %v2621, %v2619
        %v2670 = vpack.c.bf16 %v2622, %v2620
        %v2671 = vpack.c.bf16 %v2625, %v2623
        %v2672 = vpack.c.bf16 %v2626, %v2624
        %v2673 = vpack.c.bf16 %v2629, %v2627
        %v2674 = vpack.c.bf16 %v2630, %v2628
        %v2675 = vpack.c.bf16 %v2633, %v2631
        %v2676 = vpack.c.bf16 %v2634, %v2632
        %v2677 = vpack.c.bf16 %v2637, %v2635
        %v2678 = vpack.c.bf16 %v2638, %v2636
        %v2679 = vpack.c.bf16 %v2641, %v2639
        %v2680 = vpack.c.bf16 %v2642, %v2640
        %v2681 = vpack.c.bf16 %v2645, %v2643
        %v2682 = vpack.c.bf16 %v2646, %v2644
        %v2683 = vpack.c.bf16 %v2649, %v2647
        %v2684 = vpack.c.bf16 %v2650, %v2648
        %v2685 = vpack.c.bf16 %v2653, %v2651
        %v2686 = vpack.c.bf16 %v2654, %v2652
        %v2687 = vmul.f32 %v1633, %v2586
        %v2688 = vmul.f32 %v1635, %v2587
        %v2689 = vmul.f32 %v1637, %v2586
        %v2690 = vmul.f32 %v1639, %v2587
        %v2691 = vmul.f32 %v1643, %v2586
        %v2692 = vmul.f32 %v1645, %v2587
        %v2693 = vmul.f32 %v1647, %v2586
        %v2694 = vmul.f32 %v1649, %v2587
        %v2695 = vmul.f32 %v1653, %v2586
        %v2696 = vmul.f32 %v1655, %v2587
        %v2697 = vmul.f32 %v1657, %v2586
        %v2698 = vmul.f32 %v1659, %v2587
        %v2699 = vmul.f32 %v1663, %v2586
        %v2700 = vmul.f32 %v1665, %v2587
        %v2701 = vmul.f32 %v1667, %v2586
        %v2702 = vmul.f32 %v1669, %v2587
        %v2703 = vmul.f32 %v1673, %v2586
        %v2704 = vmul.f32 %v1675, %v2587
        %v2705 = vmul.f32 %v1677, %v2586
        %v2706 = vmul.f32 %v1679, %v2587
        %v2707 = vmul.f32 %v1683, %v2586
        %v2708 = vmul.f32 %v1685, %v2587
        %v2709 = vmul.f32 %v1687, %v2586
        %v2710 = vmul.f32 %v1689, %v2587
        %v2711 = vmul.f32 %v1693, %v2586
        %v2712 = vmul.f32 %v1695, %v2587
        %v2713 = vmul.f32 %v1697, %v2586
        %v2714 = vmul.f32 %v1699, %v2587
        %v2715 = vmul.f32 %v1703, %v2586
        %v2716 = vmul.f32 %v1705, %v2587
        %v2717 = vmul.f32 %v1707, %v2586
        %v2718 = vmul.f32 %v1709, %v2587
        %v2719 = vmul.f32 %v1713, %v2586
        %v2720 = vmul.f32 %v1715, %v2587
        %v2721 = vmul.f32 %v1717, %v2586
        %v2722 = vmul.f32 %v1719, %v2587
        %v2723 = vmul.f32 %v1723, %v2586
        %v2724 = vmul.f32 %v1725, %v2587
        %v2725 = vmul.f32 %v1727, %v2586
        %v2726 = vmul.f32 %v1729, %v2587
        %v2727 = vmul.f32 %v1733, %v2586
        %v2728 = vmul.f32 %v1735, %v2587
        %v2729 = vmul.f32 %v1737, %v2586
        %v2730 = vmul.f32 %v1739, %v2587
        %v2731 = vmul.f32 %v1743, %v2586
        %v2732 = vmul.f32 %v1745, %v2587
        %v2733 = vmul.f32 %v1747, %v2586
        %v2734 = vmul.f32 %v1749, %v2587
        %v2735 = vmul.f32 %v1753, %v2586
        %v2736 = vmul.f32 %v1755, %v2587
        %v2737 = vmul.f32 %v1757, %v2586
        %v2738 = vmul.f32 %v1759, %v2587
        %v2739 = vmul.f32 %v1763, %v2586
        %v2740 = vmul.f32 %v1765, %v2587
        %v2741 = vmul.f32 %v1767, %v2586
        %v2742 = vmul.f32 %v1769, %v2587
        %v2743 = vmul.f32 %v1773, %v2586
        %v2744 = vmul.f32 %v1775, %v2587
        %v2745 = vmul.f32 %v1777, %v2586
        %v2746 = vmul.f32 %v1779, %v2587
        %v2747 = vmul.f32 %v1783, %v2586
        %v2748 = vmul.f32 %v1785, %v2587
        %v2749 = vmul.f32 %v1787, %v2586
        %v2750 = vmul.f32 %v1789, %v2587
        %v2751 = vpack.c.bf16 %v2689, %v2687
        %v2752 = vpack.c.bf16 %v2690, %v2688
        %v2753 = vpack.c.bf16 %v2693, %v2691
        %v2754 = vpack.c.bf16 %v2694, %v2692
        %v2755 = vpack.c.bf16 %v2697, %v2695
        %v2756 = vpack.c.bf16 %v2698, %v2696
        %v2757 = vpack.c.bf16 %v2701, %v2699
        %v2758 = vpack.c.bf16 %v2702, %v2700
        %v2759 = vpack.c.bf16 %v2705, %v2703
        %v2760 = vpack.c.bf16 %v2706, %v2704
        %v2761 = vpack.c.bf16 %v2709, %v2707
        %v2762 = vpack.c.bf16 %v2710, %v2708
        %v2763 = vpack.c.bf16 %v2713, %v2711
        %v2764 = vpack.c.bf16 %v2714, %v2712
        %v2765 = vpack.c.bf16 %v2717, %v2715
        %v2766 = vpack.c.bf16 %v2718, %v2716
        %v2767 = vpack.c.bf16 %v2721, %v2719
        %v2768 = vpack.c.bf16 %v2722, %v2720
        %v2769 = vpack.c.bf16 %v2725, %v2723
        %v2770 = vpack.c.bf16 %v2726, %v2724
        %v2771 = vpack.c.bf16 %v2729, %v2727
        %v2772 = vpack.c.bf16 %v2730, %v2728
        %v2773 = vpack.c.bf16 %v2733, %v2731
        %v2774 = vpack.c.bf16 %v2734, %v2732
        %v2775 = vpack.c.bf16 %v2737, %v2735
        %v2776 = vpack.c.bf16 %v2738, %v2736
        %v2777 = vpack.c.bf16 %v2741, %v2739
        %v2778 = vpack.c.bf16 %v2742, %v2740
        %v2779 = vpack.c.bf16 %v2745, %v2743
        %v2780 = vpack.c.bf16 %v2746, %v2744
        %v2781 = vpack.c.bf16 %v2749, %v2747
        %v2782 = vpack.c.bf16 %v2750, %v2748
        %v2783 = vld [vmem:[%s3] sm:$0xff]
        %v2784 = vld [vmem:[%s3 + $0x8] sm:$0xff]
        %v2785 = vld [vmem:[%s3 + $0x10] sm:$0xff]
        %v2786 = vld [vmem:[%s3 + $0x18] sm:$0xff]
        %v2787 = vld [vmem:[%s3 + $0x20] sm:$0xff]
        %v2788 = vld [vmem:[%s3 + $0x28] sm:$0xff]
        %v2789 = vld [vmem:[%s3 + $0x30] sm:$0xff]
        %v2790 = vld [vmem:[%s3 + $0x38] sm:$0xff]
        %v2791 = vld [vmem:[%s3 + $0x40] sm:$0xff]
        %v2792 = vld [vmem:[%s3 + $0x48] sm:$0xff]
        %v2793 = vld [vmem:[%s3 + $0x50] sm:$0xff]
        %v2794 = vld [vmem:[%s3 + $0x58] sm:$0xff]
        %v2795 = vld [vmem:[%s3 + $0x60] sm:$0xff]
        %v2796 = vld [vmem:[%s3 + $0x68] sm:$0xff]
        %v2797 = vld [vmem:[%s3 + $0x70] sm:$0xff]
        %v2798 = vld [vmem:[%s3 + $0x78] sm:$0xff]
        %v2799 = vpack.c.bf16 %v1990, %v1986
        %v2800 = vpack.c.bf16 %v1992, %v1988
        %v2801 = vpack.c.bf16 %v2000, %v1996
        %v2802 = vpack.c.bf16 %v2002, %v1998
        %v2803 = vpack.c.bf16 %v2010, %v2006
        %v2804 = vpack.c.bf16 %v2012, %v2008
        %v2805 = vpack.c.bf16 %v2020, %v2016
        %v2806 = vpack.c.bf16 %v2022, %v2018
        %v2807 = vpack.c.bf16 %v2030, %v2026
        %v2808 = vpack.c.bf16 %v2032, %v2028
        %v2809 = vpack.c.bf16 %v2040, %v2036
        %v2810 = vpack.c.bf16 %v2042, %v2038
        %v2811 = vpack.c.bf16 %v2050, %v2046
        %v2812 = vpack.c.bf16 %v2052, %v2048
        %v2813 = vpack.c.bf16 %v2060, %v2056
        %v2814 = vpack.c.bf16 %v2062, %v2058
        %v2815 = vpack.c.bf16 %v2070, %v2066
        %v2816 = vpack.c.bf16 %v2072, %v2068
        %v2817 = vpack.c.bf16 %v2080, %v2076
        %v2818 = vpack.c.bf16 %v2082, %v2078
        %v2819 = vpack.c.bf16 %v2090, %v2086
        %v2820 = vpack.c.bf16 %v2092, %v2088
        %v2821 = vpack.c.bf16 %v2100, %v2096
        %v2822 = vpack.c.bf16 %v2102, %v2098
        %v2823 = vpack.c.bf16 %v2110, %v2106
        %v2824 = vpack.c.bf16 %v2112, %v2108
        %v2825 = vpack.c.bf16 %v2120, %v2116
        %v2826 = vpack.c.bf16 %v2122, %v2118
        %v2827 = vpack.c.bf16 %v2130, %v2126
        %v2828 = vpack.c.bf16 %v2132, %v2128
        %v2829 = vpack.c.bf16 %v2140, %v2136
        %v2830 = vpack.c.bf16 %v2142, %v2138
        %v2847 = vunpack.c.l.b16 %v2783
        %v2848 = vunpack.c.h.b16 %v2783
        %v2849 = vunpack.c.l.b16 %v2784
        %v2850 = vunpack.c.h.b16 %v2784
        %v2851 = vunpack.c.l.b16 %v2785
        %v2852 = vunpack.c.h.b16 %v2785
        %v2853 = vunpack.c.l.b16 %v2786
        %v2854 = vunpack.c.h.b16 %v2786
        %v2855 = vunpack.c.l.b16 %v2787
        %v2856 = vunpack.c.h.b16 %v2787
        %v2857 = vunpack.c.l.b16 %v2788
        %v2858 = vunpack.c.h.b16 %v2788
        %v2859 = vunpack.c.l.b16 %v2789
        %v2860 = vunpack.c.h.b16 %v2789
        %v2861 = vunpack.c.l.b16 %v2790
        %v2862 = vunpack.c.h.b16 %v2790
        %v2863 = vunpack.c.l.b16 %v2791
        %v2864 = vunpack.c.h.b16 %v2791
        %v2865 = vunpack.c.l.b16 %v2792
        %v2866 = vunpack.c.h.b16 %v2792
        %v2867 = vunpack.c.l.b16 %v2793
        %v2868 = vunpack.c.h.b16 %v2793
        %v2869 = vunpack.c.l.b16 %v2794
        %v2870 = vunpack.c.h.b16 %v2794
        %v2871 = vunpack.c.l.b16 %v2795
        %v2872 = vunpack.c.h.b16 %v2795
        %v2873 = vunpack.c.l.b16 %v2796
        %v2874 = vunpack.c.h.b16 %v2796
        %v2875 = vunpack.c.l.b16 %v2797
        %v2876 = vunpack.c.h.b16 %v2797
        %v2877 = vunpack.c.l.b16 %v2798
        %v2878 = vunpack.c.h.b16 %v2798
        %v2879 = vpack.c.b16 %v2849, %v2847
        %v2880 = vpack.c.b16 %v2850, %v2848
        %v2881 = vpack.c.b16 %v2853, %v2851
        %v2882 = vpack.c.b16 %v2854, %v2852
        %v2883 = vpack.c.b16 %v2857, %v2855
        %v2884 = vpack.c.b16 %v2858, %v2856
        %v2885 = vpack.c.b16 %v2861, %v2859
        %v2886 = vpack.c.b16 %v2862, %v2860
        %v2887 = vpack.c.b16 %v2865, %v2863
        %v2888 = vpack.c.b16 %v2866, %v2864
        %v2889 = vpack.c.b16 %v2869, %v2867
        %v2890 = vpack.c.b16 %v2870, %v2868
        %v2891 = vpack.c.b16 %v2873, %v2871
        %v2892 = vpack.c.b16 %v2874, %v2872
        %v2893 = vpack.c.b16 %v2877, %v2875
        %v2894 = vpack.c.b16 %v2878, %v2876
        %2911 = vmatprep.subr.bf16.mxu0 %v2800
        %2912 = vmatpush1.bf16.msra.mxu0 %v2799
        %2913 = vmatprep.subr.bf16.mxu0 %v2802
        %2914 = vmatpush1.bf16.msra.mxu0 %v2801
        %2915 = vmatprep.subr.bf16.mxu0 %v2804
        %2916 = vmatpush1.bf16.msra.mxu0 %v2803
        %2917 = vmatprep.subr.bf16.mxu0 %v2806
        %2918 = vmatpush1.bf16.msra.mxu0 %v2805
        %2919 = vmatprep.subr.bf16.mxu0 %v2808
        %2920 = vmatpush1.bf16.msra.mxu0 %v2807
        %2921 = vmatprep.subr.bf16.mxu0 %v2810
        %2922 = vmatpush1.bf16.msra.mxu0 %v2809
        %2923 = vmatprep.subr.bf16.mxu0 %v2812
        %2924 = vmatpush1.bf16.msra.mxu0 %v2811
        %2925 = vmatprep.subr.bf16.mxu0 %v2814
        %2926 = vmatpush1.bf16.msra.mxu0 %v2813
        %2927 = vmatprep.subr.bf16.mxu0 %v2816
        %2928 = vmatpush1.bf16.msra.mxu0 %v2815
        %2929 = vmatprep.subr.bf16.mxu0 %v2818
        %2930 = vmatpush1.bf16.msra.mxu0 %v2817
        %2931 = vmatprep.subr.bf16.mxu0 %v2820
        %2932 = vmatpush1.bf16.msra.mxu0 %v2819
        %2933 = vmatprep.subr.bf16.mxu0 %v2822
        %2934 = vmatpush1.bf16.msra.mxu0 %v2821
        %2935 = vmatprep.subr.bf16.mxu0 %v2824
        %2936 = vmatpush1.bf16.msra.mxu0 %v2823
        %2937 = vmatprep.subr.bf16.mxu0 %v2826
        %2938 = vmatpush1.bf16.msra.mxu0 %v2825
        %2939 = vmatprep.subr.bf16.mxu0 %v2828
        %2940 = vmatpush1.bf16.msra.mxu0 %v2827
        %2941 = vmatprep.subr.bf16.mxu0 %v2830
        %2942 = vmatpush1.bf16.msra.mxu0 %v2829
        %2943 = vmatprep.mubr.bf16.mxu0 %v2880
        %2944 = vmatmul.mubr.bf16.gmra.mrb[0].mxu0 %v2879
        %v2945 = vpop.f32.mrb[0].mxu0
        %v2946 = vadd.f32 0.0, %v2945
        %v2947 = vpop.f32.mrb[0].mxu0
        %v2948 = vadd.f32 0.0, %v2947
        %v2949 = vpop.f32.mrb[0].mxu0
        %v2950 = vadd.f32 0.0, %v2949
        %v2951 = vpop.f32.mrb[0].mxu0
        %v2952 = vadd.f32 0.0, %v2951
        %2953 = vmatprep.mubr.bf16.mxu0 %v2882
        %2954 = vmatmul.mubr.bf16.gmra.mrb[0].mxu0 %v2881
        %v2955 = vpop.f32.mrb[0].mxu0
        %v2956 = vadd.f32 0.0, %v2955
        %v2957 = vpop.f32.mrb[0].mxu0
        %v2958 = vadd.f32 0.0, %v2957
        %v2959 = vpop.f32.mrb[0].mxu0
        %v2960 = vadd.f32 0.0, %v2959
        %v2961 = vpop.f32.mrb[0].mxu0
        %v2962 = vadd.f32 0.0, %v2961
        %2963 = vmatprep.mubr.bf16.mxu0 %v2884
        %2964 = vmatmul.mubr.bf16.gmra.mrb[0].mxu0 %v2883
        %v2965 = vpop.f32.mrb[0].mxu0
        %v2966 = vadd.f32 0.0, %v2965
        %v2967 = vpop.f32.mrb[0].mxu0
        %v2968 = vadd.f32 0.0, %v2967
        %v2969 = vpop.f32.mrb[0].mxu0
        %v2970 = vadd.f32 0.0, %v2969
        %v2971 = vpop.f32.mrb[0].mxu0
        %v2972 = vadd.f32 0.0, %v2971
        %2973 = vmatprep.mubr.bf16.mxu0 %v2886
        %2974 = vmatmul.mubr.bf16.gmra.mrb[0].mxu0 %v2885
        %v2975 = vpop.f32.mrb[0].mxu0
        %v2976 = vadd.f32 0.0, %v2975
        %v2977 = vpop.f32.mrb[0].mxu0
        %v2978 = vadd.f32 0.0, %v2977
        %v2979 = vpop.f32.mrb[0].mxu0
        %v2980 = vadd.f32 0.0, %v2979
        %v2981 = vpop.f32.mrb[0].mxu0
        %v2982 = vadd.f32 0.0, %v2981
        %2983 = vmatprep.mubr.bf16.mxu0 %v2888
        %2984 = vmatmul.mubr.bf16.gmra.mrb[0].mxu0 %v2887
        %v2985 = vpop.f32.mrb[0].mxu0
        %v2986 = vadd.f32 0.0, %v2985
        %v2987 = vpop.f32.mrb[0].mxu0
        %v2988 = vadd.f32 0.0, %v2987
        %v2989 = vpop.f32.mrb[0].mxu0
        %v2990 = vadd.f32 0.0, %v2989
        %v2991 = vpop.f32.mrb[0].mxu0
        %v2992 = vadd.f32 0.0, %v2991
        %2993 = vmatprep.mubr.bf16.mxu0 %v2890
        %2994 = vmatmul.mubr.bf16.gmra.mrb[0].mxu0 %v2889
        %v2995 = vpop.f32.mrb[0].mxu0
        %v2996 = vadd.f32 0.0, %v2995
        %v2997 = vpop.f32.mrb[0].mxu0
        %v2998 = vadd.f32 0.0, %v2997
        %v2999 = vpop.f32.mrb[0].mxu0
        %v3000 = vadd.f32 0.0, %v2999
        %v3001 = vpop.f32.mrb[0].mxu0
        %v3002 = vadd.f32 0.0, %v3001
        %3003 = vmatprep.mubr.bf16.mxu0 %v2892
        %3004 = vmatmul.mubr.bf16.gmra.mrb[0].mxu0 %v2891
        %v3005 = vpop.f32.mrb[0].mxu0
        %v3006 = vadd.f32 0.0, %v3005
        %v3007 = vpop.f32.mrb[0].mxu0
        %v3008 = vadd.f32 0.0, %v3007
        %v3009 = vpop.f32.mrb[0].mxu0
        %v3010 = vadd.f32 0.0, %v3009
        %v3011 = vpop.f32.mrb[0].mxu0
        %v3012 = vadd.f32 0.0, %v3011
        %3013 = vmatprep.mubr.bf16.mxu0 %v2894
        %3014 = vmatmul.mubr.bf16.gmra.mrb[0].mxu0 %v2893
        %v3015 = vpop.f32.mrb[0].mxu0
        %v3016 = vadd.f32 0.0, %v3015
        %v3017 = vpop.f32.mrb[0].mxu0
        %v3018 = vadd.f32 0.0, %v3017
        %v3019 = vpop.f32.mrb[0].mxu0
        %v3020 = vadd.f32 0.0, %v3019
        %v3021 = vpop.f32.mrb[0].mxu0
        %v3022 = vadd.f32 0.0, %v3021
        %3023 = vdwg.mxu0
        %v3024 = vmul.f32 %v2946, %v2946
        %v3025 = vmul.f32 %v2948, %v2948
        %v3026 = vmul.f32 %v2950, %v2950
        %v3027 = vmul.f32 %v2952, %v2952
        %v3028 = vmul.f32 %v2956, %v2956
        %v3029 = vmul.f32 %v2958, %v2958
        %v3030 = vmul.f32 %v2960, %v2960
        %v3031 = vmul.f32 %v2962, %v2962
        %v3032 = vmul.f32 %v2966, %v2966
        %v3033 = vmul.f32 %v2968, %v2968
        %v3034 = vmul.f32 %v2970, %v2970
        %v3035 = vmul.f32 %v2972, %v2972
        %v3036 = vmul.f32 %v2976, %v2976
        %v3037 = vmul.f32 %v2978, %v2978
        %v3038 = vmul.f32 %v2980, %v2980
        %v3039 = vmul.f32 %v2982, %v2982
        %v3040 = vmul.f32 %v2986, %v2986
        %v3041 = vmul.f32 %v2988, %v2988
        %v3042 = vmul.f32 %v2990, %v2990
        %v3043 = vmul.f32 %v2992, %v2992
        %v3044 = vmul.f32 %v2996, %v2996
        %v3045 = vmul.f32 %v2998, %v2998
        %v3046 = vmul.f32 %v3000, %v3000
        %v3047 = vmul.f32 %v3002, %v3002
        %v3048 = vmul.f32 %v3006, %v3006
        %v3049 = vmul.f32 %v3008, %v3008
        %v3050 = vmul.f32 %v3010, %v3010
        %v3051 = vmul.f32 %v3012, %v3012
        %v3052 = vmul.f32 %v3016, %v3016
        %v3053 = vmul.f32 %v3018, %v3018
        %v3054 = vmul.f32 %v3020, %v3020
        %v3055 = vmul.f32 %v3022, %v3022
        %v3056 = vadd.f32 %v3024, %v3025
        %3057 = vadd.xlane.f32.xlu0 %v3056
        %v3058 = vpop.xlane.xlu0 %3057
        %v3059 = vadd.f32 %v3026, %v3027
        %3060 = vadd.xlane.f32.xlu0 %v3059
        %v3061 = vpop.xlane.xlu0 %3060
        %v3062 = vadd.f32 %v3028, %v3029
        %3063 = vadd.xlane.f32.xlu0 %v3062
        %v3064 = vpop.xlane.xlu0 %3063
        %v3065 = vadd.f32 %v3030, %v3031
        %3066 = vadd.xlane.f32.xlu0 %v3065
        %v3067 = vpop.xlane.xlu0 %3066
        %v3068 = vadd.f32 %v3032, %v3033
        %3069 = vadd.xlane.f32.xlu0 %v3068
        %v3070 = vpop.xlane.xlu0 %3069
        %v3071 = vadd.f32 %v3034, %v3035
        %3072 = vadd.xlane.f32.xlu0 %v3071
        %v3073 = vpop.xlane.xlu0 %3072
        %v3074 = vadd.f32 %v3036, %v3037
        %3075 = vadd.xlane.f32.xlu0 %v3074
        %v3076 = vpop.xlane.xlu0 %3075
        %v3077 = vadd.f32 %v3038, %v3039
        %3078 = vadd.xlane.f32.xlu0 %v3077
        %v3079 = vpop.xlane.xlu0 %3078
        %v3080 = vadd.f32 %v3040, %v3041
        %3081 = vadd.xlane.f32.xlu0 %v3080
        %v3082 = vpop.xlane.xlu0 %3081
        %v3083 = vadd.f32 %v3042, %v3043
        %3084 = vadd.xlane.f32.xlu0 %v3083
        %v3085 = vpop.xlane.xlu0 %3084
        %v3086 = vadd.f32 %v3044, %v3045
        %3087 = vadd.xlane.f32.xlu0 %v3086
        %v3088 = vpop.xlane.xlu0 %3087
        %v3089 = vadd.f32 %v3046, %v3047
        %3090 = vadd.xlane.f32.xlu0 %v3089
        %v3091 = vpop.xlane.xlu0 %3090
        %v3092 = vadd.f32 %v3048, %v3049
        %3093 = vadd.xlane.f32.xlu0 %v3092
        %v3094 = vpop.xlane.xlu0 %3093
        %v3095 = vadd.f32 %v3050, %v3051
        %3096 = vadd.xlane.f32.xlu0 %v3095
        %v3097 = vpop.xlane.xlu0 %3096
        %v3098 = vadd.f32 %v3052, %v3053
        %3099 = vadd.xlane.f32.xlu0 %v3098
        %v3100 = vpop.xlane.xlu0 %3099
        %v3101 = vadd.f32 %v3054, %v3055
        %3102 = vadd.xlane.f32.xlu0 %v3101
        %v3103 = vpop.xlane.xlu0 %3102
        %v3104 = vmax.f32 %v3058, 1e-24
        %v3105 = vmax.f32 %v3061, 1e-24
        %v3106 = vmax.f32 %v3064, 1e-24
        %v3107 = vmax.f32 %v3067, 1e-24
        %v3108 = vmax.f32 %v3070, 1e-24
        %v3109 = vmax.f32 %v3073, 1e-24
        %v3110 = vmax.f32 %v3076, 1e-24
        %v3111 = vmax.f32 %v3079, 1e-24
        %v3112 = vmax.f32 %v3082, 1e-24
        %v3113 = vmax.f32 %v3085, 1e-24
        %v3114 = vmax.f32 %v3088, 1e-24
        %v3115 = vmax.f32 %v3091, 1e-24
        %v3116 = vmax.f32 %v3094, 1e-24
        %v3117 = vmax.f32 %v3097, 1e-24
        %v3118 = vmax.f32 %v3100, 1e-24
        %v3119 = vmax.f32 %v3103, 1e-24
        %v3120 = vrsqrt.pop %v3104
        %v3121 = vrsqrt.pop %v3105
        %v3122 = vrsqrt.pop %v3106
        %v3123 = vrsqrt.pop %v3107
        %v3124 = vrsqrt.pop %v3108
        %v3125 = vrsqrt.pop %v3109
        %v3126 = vrsqrt.pop %v3110
        %v3127 = vrsqrt.pop %v3111
        %v3128 = vrsqrt.pop %v3112
        %v3129 = vrsqrt.pop %v3113
        %v3130 = vrsqrt.pop %v3114
        %v3131 = vrsqrt.pop %v3115
        %v3132 = vrsqrt.pop %v3116
        %v3133 = vrsqrt.pop %v3117
        %v3134 = vrsqrt.pop %v3118
        %v3135 = vrsqrt.pop %v3119
        %v3136 = vmul.f32 %v2946, %v3120
        %v3137 = vmul.f32 %v2948, %v3120
        %v3138 = vmul.f32 %v2950, %v3121
        %v3139 = vmul.f32 %v2952, %v3121
        %v3140 = vmul.f32 %v2956, %v3122
        %v3141 = vmul.f32 %v2958, %v3122
        %v3142 = vmul.f32 %v2960, %v3123
        %v3143 = vmul.f32 %v2962, %v3123
        %v3144 = vmul.f32 %v2966, %v3124
        %v3145 = vmul.f32 %v2968, %v3124
        %v3146 = vmul.f32 %v2970, %v3125
        %v3147 = vmul.f32 %v2972, %v3125
        %v3148 = vmul.f32 %v2976, %v3126
        %v3149 = vmul.f32 %v2978, %v3126
        %v3150 = vmul.f32 %v2980, %v3127
        %v3151 = vmul.f32 %v2982, %v3127
        %v3152 = vmul.f32 %v2986, %v3128
        %v3153 = vmul.f32 %v2988, %v3128
        %v3154 = vmul.f32 %v2990, %v3129
        %v3155 = vmul.f32 %v2992, %v3129
        %v3156 = vmul.f32 %v2996, %v3130
        %v3157 = vmul.f32 %v2998, %v3130
        %v3158 = vmul.f32 %v3000, %v3131
        %v3159 = vmul.f32 %v3002, %v3131
        %v3160 = vmul.f32 %v3006, %v3132
        %v3161 = vmul.f32 %v3008, %v3132
        %v3162 = vmul.f32 %v3010, %v3133
        %v3163 = vmul.f32 %v3012, %v3133
        %v3164 = vmul.f32 %v3016, %v3134
        %v3165 = vmul.f32 %v3018, %v3134
        %v3166 = vmul.f32 %v3020, %v3135
        %v3167 = vmul.f32 %v3022, %v3135
        %v3168 = vpack.c.bf16 %v3138, %v3136
        %v3169 = vpack.c.bf16 %v3139, %v3137
        %v3170 = vpack.c.bf16 %v3142, %v3140
        %v3171 = vpack.c.bf16 %v3143, %v3141
        %v3172 = vpack.c.bf16 %v3146, %v3144
        %v3173 = vpack.c.bf16 %v3147, %v3145
        %v3174 = vpack.c.bf16 %v3150, %v3148
        %v3175 = vpack.c.bf16 %v3151, %v3149
        %v3176 = vpack.c.bf16 %v3154, %v3152
        %v3177 = vpack.c.bf16 %v3155, %v3153
        %v3178 = vpack.c.bf16 %v3158, %v3156
        %v3179 = vpack.c.bf16 %v3159, %v3157
        %v3180 = vpack.c.bf16 %v3162, %v3160
        %v3181 = vpack.c.bf16 %v3163, %v3161
        %v3182 = vpack.c.bf16 %v3166, %v3164
        %v3183 = vpack.c.bf16 %v3167, %v3165
        %3184 = vxpose.xlu0.c.b16.start [1/8] %v2751, 128
        %3185 = vxpose.xlu0.c.b16.cont [2/8] %v2753, 128
        %3186 = vxpose.xlu0.c.b16.cont [3/8] %v2755, 128
        %3187 = vxpose.xlu0.c.b16.cont [4/8] %v2757, 128
        %3188 = vxpose.xlu0.c.b16.cont [5/8] %v2759, 128
        %3189 = vxpose.xlu0.c.b16.cont [6/8] %v2761, 128
        %3190 = vxpose.xlu0.c.b16.cont [7/8] %v2763, 128
        %3191 = vxpose.xlu0.c.b16.end [8/8] %v2765, 128
        %v3192 = vpop.trf.xlu0
        %v3193 = vpop.trf.xlu0
        %v3194 = vpop.trf.xlu0
        %v3195 = vpop.trf.xlu0
        %v3196 = vpop.trf.xlu0
        %v3197 = vpop.trf.xlu0
        %v3198 = vpop.trf.xlu0
        %v3199 = vpop.trf.xlu0
        %3200 = vxpose.xlu0.c.b16.start [1/8] %v2752, 128
        %3201 = vxpose.xlu0.c.b16.cont [2/8] %v2754, 128
        %3202 = vxpose.xlu0.c.b16.cont [3/8] %v2756, 128
        %3203 = vxpose.xlu0.c.b16.cont [4/8] %v2758, 128
        %3204 = vxpose.xlu0.c.b16.cont [5/8] %v2760, 128
        %3205 = vxpose.xlu0.c.b16.cont [6/8] %v2762, 128
        %3206 = vxpose.xlu0.c.b16.cont [7/8] %v2764, 128
        %3207 = vxpose.xlu0.c.b16.end [8/8] %v2766, 128
        %v3208 = vpop.trf.xlu0
        %v3209 = vpop.trf.xlu0
        %v3210 = vpop.trf.xlu0
        %v3211 = vpop.trf.xlu0
        %v3212 = vpop.trf.xlu0
        %v3213 = vpop.trf.xlu0
        %v3214 = vpop.trf.xlu0
        %v3215 = vpop.trf.xlu0
        %3216 = vxpose.xlu0.c.b16.start [1/8] %v2767, 128
        %3217 = vxpose.xlu0.c.b16.cont [2/8] %v2769, 128
        %3218 = vxpose.xlu0.c.b16.cont [3/8] %v2771, 128
        %3219 = vxpose.xlu0.c.b16.cont [4/8] %v2773, 128
        %3220 = vxpose.xlu0.c.b16.cont [5/8] %v2775, 128
        %3221 = vxpose.xlu0.c.b16.cont [6/8] %v2777, 128
        %3222 = vxpose.xlu0.c.b16.cont [7/8] %v2779, 128
        %3223 = vxpose.xlu0.c.b16.end [8/8] %v2781, 128
        %v3224 = vpop.trf.xlu0
        %v3225 = vpop.trf.xlu0
        %v3226 = vpop.trf.xlu0
        %v3227 = vpop.trf.xlu0
        %v3228 = vpop.trf.xlu0
        %v3229 = vpop.trf.xlu0
        %v3230 = vpop.trf.xlu0
        %v3231 = vpop.trf.xlu0
        %3232 = vxpose.xlu0.c.b16.start [1/8] %v2768, 128
        %3233 = vxpose.xlu0.c.b16.cont [2/8] %v2770, 128
        %3234 = vxpose.xlu0.c.b16.cont [3/8] %v2772, 128
        %3235 = vxpose.xlu0.c.b16.cont [4/8] %v2774, 128
        %3236 = vxpose.xlu0.c.b16.cont [5/8] %v2776, 128
        %3237 = vxpose.xlu0.c.b16.cont [6/8] %v2778, 128
        %3238 = vxpose.xlu0.c.b16.cont [7/8] %v2780, 128
        %3239 = vxpose.xlu0.c.b16.end [8/8] %v2782, 128
        %v3240 = vpop.trf.xlu0
        %v3241 = vpop.trf.xlu0
        %v3242 = vpop.trf.xlu0
        %v3243 = vpop.trf.xlu0
        %v3244 = vpop.trf.xlu0
        %v3245 = vpop.trf.xlu0
        %v3246 = vpop.trf.xlu0
        %v3247 = vpop.trf.xlu0
        %3248 = vmatprep.subr.bf16.mxu0 %v2656
        %3249 = vmatpush1.bf16.msra.mxu0 %v2655
        %3250 = vmatprep.subr.bf16.mxu0 %v2658
        %3251 = vmatpush1.bf16.msra.mxu0 %v2657
        %3252 = vmatprep.subr.bf16.mxu0 %v2660
        %3253 = vmatpush1.bf16.msra.mxu0 %v2659
        %3254 = vmatprep.subr.bf16.mxu0 %v2662
        %3255 = vmatpush1.bf16.msra.mxu0 %v2661
        %3256 = vmatprep.subr.bf16.mxu0 %v2664
        %3257 = vmatpush1.bf16.msra.mxu0 %v2663
        %3258 = vmatprep.subr.bf16.mxu0 %v2666
        %3259 = vmatpush1.bf16.msra.mxu0 %v2665
        %3260 = vmatprep.subr.bf16.mxu0 %v2668
        %3261 = vmatpush1.bf16.msra.mxu0 %v2667
        %3262 = vmatprep.subr.bf16.mxu0 %v2670
        %3263 = vmatpush1.bf16.msra.mxu0 %v2669
        %3264 = vmatprep.subr.bf16.mxu0 %v2672
        %3265 = vmatpush1.bf16.msra.mxu0 %v2671
        %3266 = vmatprep.subr.bf16.mxu0 %v2674
        %3267 = vmatpush1.bf16.msra.mxu0 %v2673
        %3268 = vmatprep.subr.bf16.mxu0 %v2676
        %3269 = vmatpush1.bf16.msra.mxu0 %v2675
        %3270 = vmatprep.subr.bf16.mxu0 %v2678
        %3271 = vmatpush1.bf16.msra.mxu0 %v2677
        %3272 = vmatprep.subr.bf16.mxu0 %v2680
        %3273 = vmatpush1.bf16.msra.mxu0 %v2679
        %3274 = vmatprep.subr.bf16.mxu0 %v2682
        %3275 = vmatpush1.bf16.msra.mxu0 %v2681
        %3276 = vmatprep.subr.bf16.mxu0 %v2684
        %3277 = vmatpush1.bf16.msra.mxu0 %v2683
        %3278 = vmatprep.subr.bf16.mxu0 %v2686
        %3279 = vmatpush1.bf16.msra.mxu0 %v2685
        %3280 = vmatprep.mubr.bf16.mxu0 %v3224
        %3281 = vmatmul.mubr.bf16.gmra.mrb[0].mxu0 %v3192
        %v3282 = vpop.f32.mrb[0].mxu0
        %v3283 = vadd.f32 0.0, %v3282
        %v3284 = vpop.f32.mrb[0].mxu0
        %v3285 = vadd.f32 0.0, %v3284
        %v3286 = vpop.f32.mrb[0].mxu0
        %v3287 = vadd.f32 0.0, %v3286
        %v3288 = vpop.f32.mrb[0].mxu0
        %v3289 = vadd.f32 0.0, %v3288
        %3290 = vmatprep.mubr.bf16.mxu0 %v3225
        %3291 = vmatmul.mubr.bf16.gmra.mrb[0].mxu0 %v3193
        %v3292 = vpop.f32.mrb[0].mxu0
        %v3293 = vadd.f32 0.0, %v3292
        %v3294 = vpop.f32.mrb[0].mxu0
        %v3295 = vadd.f32 0.0, %v3294
        %v3296 = vpop.f32.mrb[0].mxu0
        %v3297 = vadd.f32 0.0, %v3296
        %v3298 = vpop.f32.mrb[0].mxu0
        %v3299 = vadd.f32 0.0, %v3298
        %3300 = vmatprep.mubr.bf16.mxu0 %v3226
        %3301 = vmatmul.mubr.bf16.gmra.mrb[0].mxu0 %v3194
        %v3302 = vpop.f32.mrb[0].mxu0
        %v3303 = vadd.f32 0.0, %v3302
        %v3304 = vpop.f32.mrb[0].mxu0
        %v3305 = vadd.f32 0.0, %v3304
        %v3306 = vpop.f32.mrb[0].mxu0
        %v3307 = vadd.f32 0.0, %v3306
        %v3308 = vpop.f32.mrb[0].mxu0
        %v3309 = vadd.f32 0.0, %v3308
        %3310 = vmatprep.mubr.bf16.mxu0 %v3227
        %3311 = vmatmul.mubr.bf16.gmra.mrb[0].mxu0 %v3195
        %v3312 = vpop.f32.mrb[0].mxu0
        %v3313 = vadd.f32 0.0, %v3312
        %v3314 = vpop.f32.mrb[0].mxu0
        %v3315 = vadd.f32 0.0, %v3314
        %v3316 = vpop.f32.mrb[0].mxu0
        %v3317 = vadd.f32 0.0, %v3316
        %v3318 = vpop.f32.mrb[0].mxu0
        %v3319 = vadd.f32 0.0, %v3318
        %3320 = vmatprep.mubr.bf16.mxu0 %v3228
        %3321 = vmatmul.mubr.bf16.gmra.mrb[0].mxu0 %v3196
        %v3322 = vpop.f32.mrb[0].mxu0
        %v3323 = vadd.f32 0.0, %v3322
        %v3324 = vpop.f32.mrb[0].mxu0
        %v3325 = vadd.f32 0.0, %v3324
        %v3326 = vpop.f32.mrb[0].mxu0
        %v3327 = vadd.f32 0.0, %v3326
        %v3328 = vpop.f32.mrb[0].mxu0
        %v3329 = vadd.f32 0.0, %v3328
        %3330 = vmatprep.mubr.bf16.mxu0 %v3229
        %3331 = vmatmul.mubr.bf16.gmra.mrb[0].mxu0 %v3197
        %v3332 = vpop.f32.mrb[0].mxu0
        %v3333 = vadd.f32 0.0, %v3332
        %v3334 = vpop.f32.mrb[0].mxu0
        %v3335 = vadd.f32 0.0, %v3334
        %v3336 = vpop.f32.mrb[0].mxu0
        %v3337 = vadd.f32 0.0, %v3336
        %v3338 = vpop.f32.mrb[0].mxu0
        %v3339 = vadd.f32 0.0, %v3338
        %3340 = vmatprep.mubr.bf16.mxu0 %v3230
        %3341 = vmatmul.mubr.bf16.gmra.mrb[0].mxu0 %v3198
        %v3342 = vpop.f32.mrb[0].mxu0
        %v3343 = vadd.f32 0.0, %v3342
        %v3344 = vpop.f32.mrb[0].mxu0
        %v3345 = vadd.f32 0.0, %v3344
        %v3346 = vpop.f32.mrb[0].mxu0
        %v3347 = vadd.f32 0.0, %v3346
        %v3348 = vpop.f32.mrb[0].mxu0
        %v3349 = vadd.f32 0.0, %v3348
        %3350 = vmatprep.mubr.bf16.mxu0 %v3231
        %3351 = vmatmul.mubr.bf16.gmra.mrb[0].mxu0 %v3199
        %v3352 = vpop.f32.mrb[0].mxu0
        %v3353 = vadd.f32 0.0, %v3352
        %v3354 = vpop.f32.mrb[0].mxu0
        %v3355 = vadd.f32 0.0, %v3354
        %v3356 = vpop.f32.mrb[0].mxu0
        %v3357 = vadd.f32 0.0, %v3356
        %v3358 = vpop.f32.mrb[0].mxu0
        %v3359 = vadd.f32 0.0, %v3358
        %3360 = vmatprep.mubr.bf16.mxu0 %v3240
        %3361 = vmatmul.mubr.bf16.gmra.mrb[0].mxu0 %v3208
        %v3362 = vpop.f32.mrb[0].mxu0
        %v3363 = vadd.f32 0.0, %v3362
        %v3364 = vpop.f32.mrb[0].mxu0
        %v3365 = vadd.f32 0.0, %v3364
        %v3366 = vpop.f32.mrb[0].mxu0
        %v3367 = vadd.f32 0.0, %v3366
        %v3368 = vpop.f32.mrb[0].mxu0
        %v3369 = vadd.f32 0.0, %v3368
        %3370 = vmatprep.mubr.bf16.mxu0 %v3241
        %3371 = vmatmul.mubr.bf16.gmra.mrb[0].mxu0 %v3209
        %v3372 = vpop.f32.mrb[0].mxu0
        %v3373 = vadd.f32 0.0, %v3372
        %v3374 = vpop.f32.mrb[0].mxu0
        %v3375 = vadd.f32 0.0, %v3374
        %v3376 = vpop.f32.mrb[0].mxu0
        %v3377 = vadd.f32 0.0, %v3376
        %v3378 = vpop.f32.mrb[0].mxu0
        %v3379 = vadd.f32 0.0, %v3378
        %3380 = vmatprep.mubr.bf16.mxu0 %v3242
        %3381 = vmatmul.mubr.bf16.gmra.mrb[0].mxu0 %v3210
        %v3382 = vpop.f32.mrb[0].mxu0
        %v3383 = vadd.f32 0.0, %v3382
        %v3384 = vpop.f32.mrb[0].mxu0
        %v3385 = vadd.f32 0.0, %v3384
        %v3386 = vpop.f32.mrb[0].mxu0
        %v3387 = vadd.f32 0.0, %v3386
        %v3388 = vpop.f32.mrb[0].mxu0
        %v3389 = vadd.f32 0.0, %v3388
        %3390 = vmatprep.mubr.bf16.mxu0 %v3243
        %3391 = vmatmul.mubr.bf16.gmra.mrb[0].mxu0 %v3211
        %v3392 = vpop.f32.mrb[0].mxu0
        %v3393 = vadd.f32 0.0, %v3392
        %v3394 = vpop.f32.mrb[0].mxu0
        %v3395 = vadd.f32 0.0, %v3394
        %v3396 = vpop.f32.mrb[0].mxu0
        %v3397 = vadd.f32 0.0, %v3396
        %v3398 = vpop.f32.mrb[0].mxu0
        %v3399 = vadd.f32 0.0, %v3398
        %3400 = vmatprep.mubr.bf16.mxu0 %v3244
        %3401 = vmatmul.mubr.bf16.gmra.mrb[0].mxu0 %v3212
        %v3402 = vpop.f32.mrb[0].mxu0
        %v3403 = vadd.f32 0.0, %v3402
        %v3404 = vpop.f32.mrb[0].mxu0
        %v3405 = vadd.f32 0.0, %v3404
        %v3406 = vpop.f32.mrb[0].mxu0
        %v3407 = vadd.f32 0.0, %v3406
        %v3408 = vpop.f32.mrb[0].mxu0
        %v3409 = vadd.f32 0.0, %v3408
        %3410 = vmatprep.mubr.bf16.mxu0 %v3245
        %3411 = vmatmul.mubr.bf16.gmra.mrb[0].mxu0 %v3213
        %v3412 = vpop.f32.mrb[0].mxu0
        %v3413 = vadd.f32 0.0, %v3412
        %v3414 = vpop.f32.mrb[0].mxu0
        %v3415 = vadd.f32 0.0, %v3414
        %v3416 = vpop.f32.mrb[0].mxu0
        %v3417 = vadd.f32 0.0, %v3416
        %v3418 = vpop.f32.mrb[0].mxu0
        %v3419 = vadd.f32 0.0, %v3418
        %3420 = vmatprep.mubr.bf16.mxu0 %v3246
        %3421 = vmatmul.mubr.bf16.gmra.mrb[0].mxu0 %v3214
        %v3422 = vpop.f32.mrb[0].mxu0
        %v3423 = vadd.f32 0.0, %v3422
        %v3424 = vpop.f32.mrb[0].mxu0
        %v3425 = vadd.f32 0.0, %v3424
        %v3426 = vpop.f32.mrb[0].mxu0
        %v3427 = vadd.f32 0.0, %v3426
        %v3428 = vpop.f32.mrb[0].mxu0
        %v3429 = vadd.f32 0.0, %v3428
        %3430 = vmatprep.mubr.bf16.mxu0 %v3247
        %3431 = vmatmul.mubr.bf16.gmra.mrb[0].mxu0 %v3215
        %v3432 = vpop.f32.mrb[0].mxu0
        %v3433 = vadd.f32 0.0, %v3432
        %v3434 = vpop.f32.mrb[0].mxu0
        %v3435 = vadd.f32 0.0, %v3434
        %v3436 = vpop.f32.mrb[0].mxu0
        %v3437 = vadd.f32 0.0, %v3436
        %v3438 = vpop.f32.mrb[0].mxu0
        %v3439 = vadd.f32 0.0, %v3438
        %3440 = vdwg.mxu0
        %v3441 = vmul.f32 %v3283, 1.442695
        %v3442 = vpow.pop %v3441
        %v3443 = vmul.f32 %v3285, 1.442695
        %v3444 = vpow.pop %v3443
        %v3445 = vmul.f32 %v3287, 1.442695
        %v3446 = vpow.pop %v3445
        %v3447 = vmul.f32 %v3289, 1.442695
        %v3448 = vpow.pop %v3447
        %v3449 = vmul.f32 %v3293, 1.442695
        %v3450 = vpow.pop %v3449
        %v3451 = vmul.f32 %v3295, 1.442695
        %v3452 = vpow.pop %v3451
        %v3453 = vmul.f32 %v3297, 1.442695
        %v3454 = vpow.pop %v3453
        %v3455 = vmul.f32 %v3299, 1.442695
        %v3456 = vpow.pop %v3455
        %v3457 = vmul.f32 %v3303, 1.442695
        %v3458 = vpow.pop %v3457
        %v3459 = vmul.f32 %v3305, 1.442695
        %v3460 = vpow.pop %v3459
        %v3461 = vmul.f32 %v3307, 1.442695
        %v3462 = vpow.pop %v3461
        %v3463 = vmul.f32 %v3309, 1.442695
        %v3464 = vpow.pop %v3463
        %v3465 = vmul.f32 %v3313, 1.442695
        %v3466 = vpow.pop %v3465
        %v3467 = vmul.f32 %v3315, 1.442695
        %v3468 = vpow.pop %v3467
        %v3469 = vmul.f32 %v3317, 1.442695
        %v3470 = vpow.pop %v3469
        %v3471 = vmul.f32 %v3319, 1.442695
        %v3472 = vpow.pop %v3471
        %v3473 = vmul.f32 %v3323, 1.442695
        %v3474 = vpow.pop %v3473
        %v3475 = vmul.f32 %v3325, 1.442695
        %v3476 = vpow.pop %v3475
        %v3477 = vmul.f32 %v3327, 1.442695
        %v3478 = vpow.pop %v3477
        %v3479 = vmul.f32 %v3329, 1.442695
        %v3480 = vpow.pop %v3479
        %v3481 = vmul.f32 %v3333, 1.442695
        %v3482 = vpow.pop %v3481
        %v3483 = vmul.f32 %v3335, 1.442695
        %v3484 = vpow.pop %v3483
        %v3485 = vmul.f32 %v3337, 1.442695
        %v3486 = vpow.pop %v3485
        %v3487 = vmul.f32 %v3339, 1.442695
        %v3488 = vpow.pop %v3487
        %v3489 = vmul.f32 %v3343, 1.442695
        %v3490 = vpow.pop %v3489
        %v3491 = vmul.f32 %v3345, 1.442695
        %v3492 = vpow.pop %v3491
        %v3493 = vmul.f32 %v3347, 1.442695
        %v3494 = vpow.pop %v3493
        %v3495 = vmul.f32 %v3349, 1.442695
        %v3496 = vpow.pop %v3495
        %v3497 = vmul.f32 %v3353, 1.442695
        %v3498 = vpow.pop %v3497
        %v3499 = vmul.f32 %v3355, 1.442695
        %v3500 = vpow.pop %v3499
        %v3501 = vmul.f32 %v3357, 1.442695
        %v3502 = vpow.pop %v3501
        %v3503 = vmul.f32 %v3359, 1.442695
        %v3504 = vpow.pop %v3503
        %v3505 = vmul.f32 %v3363, 1.442695
        %v3506 = vpow.pop %v3505
        %v3507 = vmul.f32 %v3365, 1.442695
        %v3508 = vpow.pop %v3507
        %v3509 = vmul.f32 %v3367, 1.442695
        %v3510 = vpow.pop %v3509
        %v3511 = vmul.f32 %v3369, 1.442695
        %v3512 = vpow.pop %v3511
        %v3513 = vmul.f32 %v3373, 1.442695
        %v3514 = vpow.pop %v3513
        %v3515 = vmul.f32 %v3375, 1.442695
        %v3516 = vpow.pop %v3515
        %v3517 = vmul.f32 %v3377, 1.442695
        %v3518 = vpow.pop %v3517
        %v3519 = vmul.f32 %v3379, 1.442695
        %v3520 = vpow.pop %v3519
        %v3521 = vmul.f32 %v3383, 1.442695
        %v3522 = vpow.pop %v3521
        %v3523 = vmul.f32 %v3385, 1.442695
        %v3524 = vpow.pop %v3523
        %v3525 = vmul.f32 %v3387, 1.442695
        %v3526 = vpow.pop %v3525
        %v3527 = vmul.f32 %v3389, 1.442695
        %v3528 = vpow.pop %v3527
        %v3529 = vmul.f32 %v3393, 1.442695
        %v3530 = vpow.pop %v3529
        %v3531 = vmul.f32 %v3395, 1.442695
        %v3532 = vpow.pop %v3531
        %v3533 = vmul.f32 %v3397, 1.442695
        %v3534 = vpow.pop %v3533
        %v3535 = vmul.f32 %v3399, 1.442695
        %v3536 = vpow.pop %v3535
        %v3537 = vmul.f32 %v3403, 1.442695
        %v3538 = vpow.pop %v3537
        %v3539 = vmul.f32 %v3405, 1.442695
        %v3540 = vpow.pop %v3539
        %v3541 = vmul.f32 %v3407, 1.442695
        %v3542 = vpow.pop %v3541
        %v3543 = vmul.f32 %v3409, 1.442695
        %v3544 = vpow.pop %v3543
        %v3545 = vmul.f32 %v3413, 1.442695
        %v3546 = vpow.pop %v3545
        %v3547 = vmul.f32 %v3415, 1.442695
        %v3548 = vpow.pop %v3547
        %v3549 = vmul.f32 %v3417, 1.442695
        %v3550 = vpow.pop %v3549
        %v3551 = vmul.f32 %v3419, 1.442695
        %v3552 = vpow.pop %v3551
        %v3553 = vmul.f32 %v3423, 1.442695
        %v3554 = vpow.pop %v3553
        %v3555 = vmul.f32 %v3425, 1.442695
        %v3556 = vpow.pop %v3555
        %v3557 = vmul.f32 %v3427, 1.442695
        %v3558 = vpow.pop %v3557
        %v3559 = vmul.f32 %v3429, 1.442695
        %v3560 = vpow.pop %v3559
        %v3561 = vmul.f32 %v3433, 1.442695
        %v3562 = vpow.pop %v3561
        %v3563 = vmul.f32 %v3435, 1.442695
        %v3564 = vpow.pop %v3563
        %v3565 = vmul.f32 %v3437, 1.442695
        %v3566 = vpow.pop %v3565
        %v3567 = vmul.f32 %v3439, 1.442695
        %v3568 = vpow.pop %v3567
        %v3569 = vadd.f32 %v3442, %v3444
        %3570 = vadd.xlane.f32.xlu0 %v3569
        %v3571 = vpop.xlane.xlu0 %3570
        %v3572 = vadd.f32 %v3446, %v3448
        %3573 = vadd.xlane.f32.xlu0 %v3572
        %v3574 = vpop.xlane.xlu0 %3573
        %v3575 = vadd.f32 %v3450, %v3452
        %3576 = vadd.xlane.f32.xlu0 %v3575
        %v3577 = vpop.xlane.xlu0 %3576
        %v3578 = vadd.f32 %v3454, %v3456
        %3579 = vadd.xlane.f32.xlu0 %v3578
        %v3580 = vpop.xlane.xlu0 %3579
        %v3581 = vadd.f32 %v3458, %v3460
        %3582 = vadd.xlane.f32.xlu0 %v3581
        %v3583 = vpop.xlane.xlu0 %3582
        %v3584 = vadd.f32 %v3462, %v3464
        %3585 = vadd.xlane.f32.xlu0 %v3584
        %v3586 = vpop.xlane.xlu0 %3585
        %v3587 = vadd.f32 %v3466, %v3468
        %3588 = vadd.xlane.f32.xlu0 %v3587
        %v3589 = vpop.xlane.xlu0 %3588
        %v3590 = vadd.f32 %v3470, %v3472
        %3591 = vadd.xlane.f32.xlu0 %v3590
        %v3592 = vpop.xlane.xlu0 %3591
        %v3593 = vadd.f32 %v3474, %v3476
        %3594 = vadd.xlane.f32.xlu0 %v3593
        %v3595 = vpop.xlane.xlu0 %3594
        %v3596 = vadd.f32 %v3478, %v3480
        %3597 = vadd.xlane.f32.xlu0 %v3596
        %v3598 = vpop.xlane.xlu0 %3597
        %v3599 = vadd.f32 %v3482, %v3484
        %3600 = vadd.xlane.f32.xlu0 %v3599
        %v3601 = vpop.xlane.xlu0 %3600
        %v3602 = vadd.f32 %v3486, %v3488
        %3603 = vadd.xlane.f32.xlu0 %v3602
        %v3604 = vpop.xlane.xlu0 %3603
        %v3605 = vadd.f32 %v3490, %v3492
        %3606 = vadd.xlane.f32.xlu0 %v3605
        %v3607 = vpop.xlane.xlu0 %3606
        %v3608 = vadd.f32 %v3494, %v3496
        %3609 = vadd.xlane.f32.xlu0 %v3608
        %v3610 = vpop.xlane.xlu0 %3609
        %v3611 = vadd.f32 %v3498, %v3500
        %3612 = vadd.xlane.f32.xlu0 %v3611
        %v3613 = vpop.xlane.xlu0 %3612
        %v3614 = vadd.f32 %v3502, %v3504
        %3615 = vadd.xlane.f32.xlu0 %v3614
        %v3616 = vpop.xlane.xlu0 %3615
        %v3617 = vadd.f32 %v3506, %v3508
        %3618 = vadd.xlane.f32.xlu0 %v3617
        %v3619 = vpop.xlane.xlu0 %3618
        %v3620 = vadd.f32 %v3510, %v3512
        %3621 = vadd.xlane.f32.xlu0 %v3620
        %v3622 = vpop.xlane.xlu0 %3621
        %v3623 = vadd.f32 %v3514, %v3516
        %3624 = vadd.xlane.f32.xlu0 %v3623
        %v3625 = vpop.xlane.xlu0 %3624
        %v3626 = vadd.f32 %v3518, %v3520
        %3627 = vadd.xlane.f32.xlu0 %v3626
        %v3628 = vpop.xlane.xlu0 %3627
        %v3629 = vadd.f32 %v3522, %v3524
        %3630 = vadd.xlane.f32.xlu0 %v3629
        %v3631 = vpop.xlane.xlu0 %3630
        %v3632 = vadd.f32 %v3526, %v3528
        %3633 = vadd.xlane.f32.xlu0 %v3632
        %v3634 = vpop.xlane.xlu0 %3633
        %v3635 = vadd.f32 %v3530, %v3532
        %3636 = vadd.xlane.f32.xlu0 %v3635
        %v3637 = vpop.xlane.xlu0 %3636
        %v3638 = vadd.f32 %v3534, %v3536
        %3639 = vadd.xlane.f32.xlu0 %v3638
        %v3640 = vpop.xlane.xlu0 %3639
        %v3641 = vadd.f32 %v3538, %v3540
        %3642 = vadd.xlane.f32.xlu0 %v3641
        %v3643 = vpop.xlane.xlu0 %3642
        %v3644 = vadd.f32 %v3542, %v3544
        %3645 = vadd.xlane.f32.xlu0 %v3644
        %v3646 = vpop.xlane.xlu0 %3645
        %v3647 = vadd.f32 %v3546, %v3548
        %3648 = vadd.xlane.f32.xlu0 %v3647
        %v3649 = vpop.xlane.xlu0 %3648
        %v3650 = vadd.f32 %v3550, %v3552
        %3651 = vadd.xlane.f32.xlu0 %v3650
        %v3652 = vpop.xlane.xlu0 %3651
        %v3653 = vadd.f32 %v3554, %v3556
        %3654 = vadd.xlane.f32.xlu0 %v3653
        %v3655 = vpop.xlane.xlu0 %3654
        %v3656 = vadd.f32 %v3558, %v3560
        %3657 = vadd.xlane.f32.xlu0 %v3656
        %v3658 = vpop.xlane.xlu0 %3657
        %v3659 = vadd.f32 %v3562, %v3564
        %3660 = vadd.xlane.f32.xlu0 %v3659
        %v3661 = vpop.xlane.xlu0 %3660
        %v3662 = vadd.f32 %v3566, %v3568
        %3663 = vadd.xlane.f32.xlu0 %v3662
        %v3664 = vpop.xlane.xlu0 %3663
        %v3665 = vrcp.pop %v3571
        %v3666 = vrcp.pop %v3574
        %v3667 = vrcp.pop %v3577
        %v3668 = vrcp.pop %v3580
        %v3669 = vrcp.pop %v3583
        %v3670 = vrcp.pop %v3586
        %v3671 = vrcp.pop %v3589
        %v3672 = vrcp.pop %v3592
        %v3673 = vrcp.pop %v3595
        %v3674 = vrcp.pop %v3598
        %v3675 = vrcp.pop %v3601
        %v3676 = vrcp.pop %v3604
        %v3677 = vrcp.pop %v3607
        %v3678 = vrcp.pop %v3610
        %v3679 = vrcp.pop %v3613
        %v3680 = vrcp.pop %v3616
        %v3681 = vrcp.pop %v3619
        %v3682 = vrcp.pop %v3622
        %v3683 = vrcp.pop %v3625
        %v3684 = vrcp.pop %v3628
        %v3685 = vrcp.pop %v3631
        %v3686 = vrcp.pop %v3634
        %v3687 = vrcp.pop %v3637
        %v3688 = vrcp.pop %v3640
        %v3689 = vrcp.pop %v3643
        %v3690 = vrcp.pop %v3646
        %v3691 = vrcp.pop %v3649
        %v3692 = vrcp.pop %v3652
        %v3693 = vrcp.pop %v3655
        %v3694 = vrcp.pop %v3658
        %v3695 = vrcp.pop %v3661
        %v3696 = vrcp.pop %v3664
        %v3697 = vmul.f32 %v3442, %v3665
        %v3698 = vmul.f32 %v3444, %v3665
        %v3699 = vmul.f32 %v3446, %v3666
        %v3700 = vmul.f32 %v3448, %v3666
        %v3701 = vmul.f32 %v3450, %v3667
        %v3702 = vmul.f32 %v3452, %v3667
        %v3703 = vmul.f32 %v3454, %v3668
        %v3704 = vmul.f32 %v3456, %v3668
        %v3705 = vmul.f32 %v3458, %v3669
        %v3706 = vmul.f32 %v3460, %v3669
        %v3707 = vmul.f32 %v3462, %v3670
        %v3708 = vmul.f32 %v3464, %v3670
        %v3709 = vmul.f32 %v3466, %v3671
        %v3710 = vmul.f32 %v3468, %v3671
        %v3711 = vmul.f32 %v3470, %v3672
        %v3712 = vmul.f32 %v3472, %v3672
        %v3713 = vmul.f32 %v3474, %v3673
        %v3714 = vmul.f32 %v3476, %v3673
        %v3715 = vmul.f32 %v3478, %v3674
        %v3716 = vmul.f32 %v3480, %v3674
        %v3717 = vmul.f32 %v3482, %v3675
        %v3718 = vmul.f32 %v3484, %v3675
        %v3719 = vmul.f32 %v3486, %v3676
        %v3720 = vmul.f32 %v3488, %v3676
        %v3721 = vmul.f32 %v3490, %v3677
        %v3722 = vmul.f32 %v3492, %v3677
        %v3723 = vmul.f32 %v3494, %v3678
        %v3724 = vmul.f32 %v3496, %v3678
        %v3725 = vmul.f32 %v3498, %v3679
        %v3726 = vmul.f32 %v3500, %v3679
        %v3727 = vmul.f32 %v3502, %v3680
        %v3728 = vmul.f32 %v3504, %v3680
        %v3729 = vmul.f32 %v3506, %v3681
        %v3730 = vmul.f32 %v3508, %v3681
        %v3731 = vmul.f32 %v3510, %v3682
        %v3732 = vmul.f32 %v3512, %v3682
        %v3733 = vmul.f32 %v3514, %v3683
        %v3734 = vmul.f32 %v3516, %v3683
        %v3735 = vmul.f32 %v3518, %v3684
        %v3736 = vmul.f32 %v3520, %v3684
        %v3737 = vmul.f32 %v3522, %v3685
        %v3738 = vmul.f32 %v3524, %v3685
        %v3739 = vmul.f32 %v3526, %v3686
        %v3740 = vmul.f32 %v3528, %v3686
        %v3741 = vmul.f32 %v3530, %v3687
        %v3742 = vmul.f32 %v3532, %v3687
        %v3743 = vmul.f32 %v3534, %v3688
        %v3744 = vmul.f32 %v3536, %v3688
        %v3745 = vmul.f32 %v3538, %v3689
        %v3746 = vmul.f32 %v3540, %v3689
        %v3747 = vmul.f32 %v3542, %v3690
        %v3748 = vmul.f32 %v3544, %v3690
        %v3749 = vmul.f32 %v3546, %v3691
        %v3750 = vmul.f32 %v3548, %v3691
        %v3751 = vmul.f32 %v3550, %v3692
        %v3752 = vmul.f32 %v3552, %v3692
        %v3753 = vmul.f32 %v3554, %v3693
        %v3754 = vmul.f32 %v3556, %v3693
        %v3755 = vmul.f32 %v3558, %v3694
        %v3756 = vmul.f32 %v3560, %v3694
        %v3757 = vmul.f32 %v3562, %v3695
        %v3758 = vmul.f32 %v3564, %v3695
        %v3759 = vmul.f32 %v3566, %v3696
        %v3760 = vmul.f32 %v3568, %v3696
        %v3761 = vpack.c.bf16 %v3699, %v3697
        %v3762 = vpack.c.bf16 %v3700, %v3698
        %v3763 = vpack.c.bf16 %v3703, %v3701
        %v3764 = vpack.c.bf16 %v3704, %v3702
        %v3765 = vpack.c.bf16 %v3707, %v3705
        %v3766 = vpack.c.bf16 %v3708, %v3706
        %v3767 = vpack.c.bf16 %v3711, %v3709
        %v3768 = vpack.c.bf16 %v3712, %v3710
        %v3769 = vpack.c.bf16 %v3715, %v3713
        %v3770 = vpack.c.bf16 %v3716, %v3714
        %v3771 = vpack.c.bf16 %v3719, %v3717
        %v3772 = vpack.c.bf16 %v3720, %v3718
        %v3773 = vpack.c.bf16 %v3723, %v3721
        %v3774 = vpack.c.bf16 %v3724, %v3722
        %v3775 = vpack.c.bf16 %v3727, %v3725
        %v3776 = vpack.c.bf16 %v3728, %v3726
        %v3777 = vpack.c.bf16 %v3731, %v3729
        %v3778 = vpack.c.bf16 %v3732, %v3730
        %v3779 = vpack.c.bf16 %v3735, %v3733
        %v3780 = vpack.c.bf16 %v3736, %v3734
        %v3781 = vpack.c.bf16 %v3739, %v3737
        %v3782 = vpack.c.bf16 %v3740, %v3738
        %v3783 = vpack.c.bf16 %v3743, %v3741
        %v3784 = vpack.c.bf16 %v3744, %v3742
        %v3785 = vpack.c.bf16 %v3747, %v3745
        %v3786 = vpack.c.bf16 %v3748, %v3746
        %v3787 = vpack.c.bf16 %v3751, %v3749
        %v3788 = vpack.c.bf16 %v3752, %v3750
        %v3789 = vpack.c.bf16 %v3755, %v3753
        %v3790 = vpack.c.bf16 %v3756, %v3754
        %v3791 = vpack.c.bf16 %v3759, %v3757
        %v3792 = vpack.c.bf16 %v3760, %v3758
        %3793 = vmatprep.subr.bf16.mxu0 %v3762
        %3794 = vmatpush1.bf16.msra.mxu0 %v3761
        %3795 = vmatprep.subr.bf16.mxu0 %v3764
        %3796 = vmatpush1.bf16.msra.mxu0 %v3763
        %3797 = vmatprep.subr.bf16.mxu0 %v3766
        %3798 = vmatpush1.bf16.msra.mxu0 %v3765
        %3799 = vmatprep.subr.bf16.mxu0 %v3768
        %3800 = vmatpush1.bf16.msra.mxu0 %v3767
        %3801 = vmatprep.subr.bf16.mxu0 %v3770
        %3802 = vmatpush1.bf16.msra.mxu0 %v3769
        %3803 = vmatprep.subr.bf16.mxu0 %v3772
        %3804 = vmatpush1.bf16.msra.mxu0 %v3771
        %3805 = vmatprep.subr.bf16.mxu0 %v3774
        %3806 = vmatpush1.bf16.msra.mxu0 %v3773
        %3807 = vmatprep.subr.bf16.mxu0 %v3776
        %3808 = vmatpush1.bf16.msra.mxu0 %v3775
        %3809 = vmatprep.subr.bf16.mxu0 %v3778
        %3810 = vmatpush1.bf16.msra.mxu0 %v3777
        %3811 = vmatprep.subr.bf16.mxu0 %v3780
        %3812 = vmatpush1.bf16.msra.mxu0 %v3779
        %3813 = vmatprep.subr.bf16.mxu0 %v3782
        %3814 = vmatpush1.bf16.msra.mxu0 %v3781
        %3815 = vmatprep.subr.bf16.mxu0 %v3784
        %3816 = vmatpush1.bf16.msra.mxu0 %v3783
        %3817 = vmatprep.subr.bf16.mxu0 %v3786
        %3818 = vmatpush1.bf16.msra.mxu0 %v3785
        %3819 = vmatprep.subr.bf16.mxu0 %v3788
        %3820 = vmatpush1.bf16.msra.mxu0 %v3787
        %3821 = vmatprep.subr.bf16.mxu0 %v3790
        %3822 = vmatpush1.bf16.msra.mxu0 %v3789
        %3823 = vmatprep.subr.bf16.mxu0 %v3792
        %3824 = vmatpush1.bf16.msra.mxu0 %v3791
        %3825 = vmatprep.mubr.bf16.mxu0 %v3169
        %3826 = vmatmul.mubr.bf16.gmra.mrb[0].mxu0 %v3168
        %v3827 = vpop.f32.mrb[0].mxu0
        %v3828 = vadd.f32 0.0, %v3827
        %v3829 = vpop.f32.mrb[0].mxu0
        %v3830 = vadd.f32 0.0, %v3829
        %v3831 = vpop.f32.mrb[0].mxu0
        %v3832 = vadd.f32 0.0, %v3831
        %v3833 = vpop.f32.mrb[0].mxu0
        %v3834 = vadd.f32 0.0, %v3833
        %3835 = vmatprep.mubr.bf16.mxu0 %v3171
        %3836 = vmatmul.mubr.bf16.gmra.mrb[0].mxu0 %v3170
        %v3837 = vpop.f32.mrb[0].mxu0
        %v3838 = vadd.f32 0.0, %v3837
        %v3839 = vpop.f32.mrb[0].mxu0
        %v3840 = vadd.f32 0.0, %v3839
        %v3841 = vpop.f32.mrb[0].mxu0
        %v3842 = vadd.f32 0.0, %v3841
        %v3843 = vpop.f32.mrb[0].mxu0
        %v3844 = vadd.f32 0.0, %v3843
        %3845 = vmatprep.mubr.bf16.mxu0 %v3173
        %3846 = vmatmul.mubr.bf16.gmra.mrb[0].mxu0 %v3172
        %v3847 = vpop.f32.mrb[0].mxu0
        %v3848 = vadd.f32 0.0, %v3847
        %v3849 = vpop.f32.mrb[0].mxu0
        %v3850 = vadd.f32 0.0, %v3849
        %v3851 = vpop.f32.mrb[0].mxu0
        %v3852 = vadd.f32 0.0, %v3851
        %v3853 = vpop.f32.mrb[0].mxu0
        %v3854 = vadd.f32 0.0, %v3853
        %3855 = vmatprep.mubr.bf16.mxu0 %v3175
        %3856 = vmatmul.mubr.bf16.gmra.mrb[0].mxu0 %v3174
        %v3857 = vpop.f32.mrb[0].mxu0
        %v3858 = vadd.f32 0.0, %v3857
        %v3859 = vpop.f32.mrb[0].mxu0
        %v3860 = vadd.f32 0.0, %v3859
        %v3861 = vpop.f32.mrb[0].mxu0
        %v3862 = vadd.f32 0.0, %v3861
        %v3863 = vpop.f32.mrb[0].mxu0
        %v3864 = vadd.f32 0.0, %v3863
        %3865 = vmatprep.mubr.bf16.mxu0 %v3177
        %3866 = vmatmul.mubr.bf16.gmra.mrb[0].mxu0 %v3176
        %v3867 = vpop.f32.mrb[0].mxu0
        %v3868 = vadd.f32 0.0, %v3867
        %v3869 = vpop.f32.mrb[0].mxu0
        %v3870 = vadd.f32 0.0, %v3869
        %v3871 = vpop.f32.mrb[0].mxu0
        %v3872 = vadd.f32 0.0, %v3871
        %v3873 = vpop.f32.mrb[0].mxu0
        %v3874 = vadd.f32 0.0, %v3873
        %3875 = vmatprep.mubr.bf16.mxu0 %v3179
        %3876 = vmatmul.mubr.bf16.gmra.mrb[0].mxu0 %v3178
        %v3877 = vpop.f32.mrb[0].mxu0
        %v3878 = vadd.f32 0.0, %v3877
        %v3879 = vpop.f32.mrb[0].mxu0
        %v3880 = vadd.f32 0.0, %v3879
        %v3881 = vpop.f32.mrb[0].mxu0
        %v3882 = vadd.f32 0.0, %v3881
        %v3883 = vpop.f32.mrb[0].mxu0
        %v3884 = vadd.f32 0.0, %v3883
        %3885 = vmatprep.mubr.bf16.mxu0 %v3181
        %3886 = vmatmul.mubr.bf16.gmra.mrb[0].mxu0 %v3180
        %v3887 = vpop.f32.mrb[0].mxu0
        %v3888 = vadd.f32 0.0, %v3887
        %v3889 = vpop.f32.mrb[0].mxu0
        %v3890 = vadd.f32 0.0, %v3889
        %v3891 = vpop.f32.mrb[0].mxu0
        %v3892 = vadd.f32 0.0, %v3891
        %v3893 = vpop.f32.mrb[0].mxu0
        %v3894 = vadd.f32 0.0, %v3893
        %3895 = vmatprep.mubr.bf16.mxu0 %v3183
        %3896 = vmatmul.mubr.bf16.gmra.mrb[0].mxu0 %v3182
        %v3897 = vpop.f32.mrb[0].mxu0
        %v3898 = vadd.f32 0.0, %v3897
        %v3899 = vpop.f32.mrb[0].mxu0
        %v3900 = vadd.f32 0.0, %v3899
        %v3901 = vpop.f32.mrb[0].mxu0
        %v3902 = vadd.f32 0.0, %v3901
        %v3903 = vpop.f32.mrb[0].mxu0
        %v3904 = vadd.f32 0.0, %v3903
        %3905 = vdwg.mxu0
        %v3906 = vpack.c.bf16 %v3832, %v3828
        %v3907 = vpack.c.bf16 %v3834, %v3830
        %v3908 = vpack.c.bf16 %v3842, %v3838
        %v3909 = vpack.c.bf16 %v3844, %v3840
        %v3910 = vpack.c.bf16 %v3852, %v3848
        %v3911 = vpack.c.bf16 %v3854, %v3850
        %v3912 = vpack.c.bf16 %v3862, %v3858
        %v3913 = vpack.c.bf16 %v3864, %v3860
        %v3914 = vpack.c.bf16 %v3872, %v3868
        %v3915 = vpack.c.bf16 %v3874, %v3870
        %v3916 = vpack.c.bf16 %v3882, %v3878
        %v3917 = vpack.c.bf16 %v3884, %v3880
        %v3918 = vpack.c.bf16 %v3892, %v3888
        %v3919 = vpack.c.bf16 %v3894, %v3890
        %v3920 = vpack.c.bf16 %v3902, %v3898
        %v3921 = vpack.c.bf16 %v3904, %v3900
        %v3922 = vmul.f32 %v1440, %v1440
        %v3923 = vmul.f32 %v1442, %v1442
        %v3924 = vmul.f32 %v1793, %v1793
        %v3925 = vmul.f32 %v1795, %v1795
        %v3926 = vmul.f32 %v1444, %v1444
        %v3927 = vmul.f32 %v1446, %v1446
        %v3928 = vmul.f32 %v1797, %v1797
        %v3929 = vmul.f32 %v1799, %v1799
        %v3930 = vmul.f32 %v1450, %v1450
        %v3931 = vmul.f32 %v1452, %v1452
        %v3932 = vmul.f32 %v1803, %v1803
        %v3933 = vmul.f32 %v1805, %v1805
        %v3934 = vmul.f32 %v1454, %v1454
        %v3935 = vmul.f32 %v1456, %v1456
        %v3936 = vmul.f32 %v1807, %v1807
        %v3937 = vmul.f32 %v1809, %v1809
        %v3938 = vmul.f32 %v1460, %v1460
        %v3939 = vmul.f32 %v1462, %v1462
        %v3940 = vmul.f32 %v1813, %v1813
        %v3941 = vmul.f32 %v1815, %v1815
        %v3942 = vmul.f32 %v1464, %v1464
        %v3943 = vmul.f32 %v1466, %v1466
        %v3944 = vmul.f32 %v1817, %v1817
        %v3945 = vmul.f32 %v1819, %v1819
        %v3946 = vmul.f32 %v1470, %v1470
        %v3947 = vmul.f32 %v1472, %v1472
        %v3948 = vmul.f32 %v1823, %v1823
        %v3949 = vmul.f32 %v1825, %v1825
        %v3950 = vmul.f32 %v1474, %v1474
        %v3951 = vmul.f32 %v1476, %v1476
        %v3952 = vmul.f32 %v1827, %v1827
        %v3953 = vmul.f32 %v1829, %v1829
        %v3954 = vmul.f32 %v1480, %v1480
        %v3955 = vmul.f32 %v1482, %v1482
        %v3956 = vmul.f32 %v1833, %v1833
        %v3957 = vmul.f32 %v1835, %v1835
        %v3958 = vmul.f32 %v1484, %v1484
        %v3959 = vmul.f32 %v1486, %v1486
        %v3960 = vmul.f32 %v1837, %v1837
        %v3961 = vmul.f32 %v1839, %v1839
        %v3962 = vmul.f32 %v1490, %v1490
        %v3963 = vmul.f32 %v1492, %v1492
        %v3964 = vmul.f32 %v1843, %v1843
        %v3965 = vmul.f32 %v1845, %v1845
        %v3966 = vmul.f32 %v1494, %v1494
        %v3967 = vmul.f32 %v1496, %v1496
        %v3968 = vmul.f32 %v1847, %v1847
        %v3969 = vmul.f32 %v1849, %v1849
        %v3970 = vmul.f32 %v1500, %v1500
        %v3971 = vmul.f32 %v1502, %v1502
        %v3972 = vmul.f32 %v1853, %v1853
        %v3973 = vmul.f32 %v1855, %v1855
        %v3974 = vmul.f32 %v1504, %v1504
        %v3975 = vmul.f32 %v1506, %v1506
        %v3976 = vmul.f32 %v1857, %v1857
        %v3977 = vmul.f32 %v1859, %v1859
        %v3978 = vmul.f32 %v1510, %v1510
        %v3979 = vmul.f32 %v1512, %v1512
        %v3980 = vmul.f32 %v1863, %v1863
        %v3981 = vmul.f32 %v1865, %v1865
        %v3982 = vmul.f32 %v1514, %v1514
        %v3983 = vmul.f32 %v1516, %v1516
        %v3984 = vmul.f32 %v1867, %v1867
        %v3985 = vmul.f32 %v1869, %v1869
        %v3986 = vmul.f32 %v1520, %v1520
        %v3987 = vmul.f32 %v1522, %v1522
        %v3988 = vmul.f32 %v1873, %v1873
        %v3989 = vmul.f32 %v1875, %v1875
        %v3990 = vmul.f32 %v1524, %v1524
        %v3991 = vmul.f32 %v1526, %v1526
        %v3992 = vmul.f32 %v1877, %v1877
        %v3993 = vmul.f32 %v1879, %v1879
        %v3994 = vmul.f32 %v1530, %v1530
        %v3995 = vmul.f32 %v1532, %v1532
        %v3996 = vmul.f32 %v1883, %v1883
        %v3997 = vmul.f32 %v1885, %v1885
        %v3998 = vmul.f32 %v1534, %v1534
        %v3999 = vmul.f32 %v1536, %v1536
        %v4000 = vmul.f32 %v1887, %v1887
        %v4001 = vmul.f32 %v1889, %v1889
        %v4002 = vmul.f32 %v1540, %v1540
        %v4003 = vmul.f32 %v1542, %v1542
        %v4004 = vmul.f32 %v1893, %v1893
        %v4005 = vmul.f32 %v1895, %v1895
        %v4006 = vmul.f32 %v1544, %v1544
        %v4007 = vmul.f32 %v1546, %v1546
        %v4008 = vmul.f32 %v1897, %v1897
        %v4009 = vmul.f32 %v1899, %v1899
        %v4010 = vmul.f32 %v1550, %v1550
        %v4011 = vmul.f32 %v1552, %v1552
        %v4012 = vmul.f32 %v1903, %v1903
        %v4013 = vmul.f32 %v1905, %v1905
        %v4014 = vmul.f32 %v1554, %v1554
        %v4015 = vmul.f32 %v1556, %v1556
        %v4016 = vmul.f32 %v1907, %v1907
        %v4017 = vmul.f32 %v1909, %v1909
        %v4018 = vmul.f32 %v1560, %v1560
        %v4019 = vmul.f32 %v1562, %v1562
        %v4020 = vmul.f32 %v1913, %v1913
        %v4021 = vmul.f32 %v1915, %v1915
        %v4022 = vmul.f32 %v1564, %v1564
        %v4023 = vmul.f32 %v1566, %v1566
        %v4024 = vmul.f32 %v1917, %v1917
        %v4025 = vmul.f32 %v1919, %v1919
        %v4026 = vmul.f32 %v1570, %v1570
        %v4027 = vmul.f32 %v1572, %v1572
        %v4028 = vmul.f32 %v1923, %v1923
        %v4029 = vmul.f32 %v1925, %v1925
        %v4030 = vmul.f32 %v1574, %v1574
        %v4031 = vmul.f32 %v1576, %v1576
        %v4032 = vmul.f32 %v1927, %v1927
        %v4033 = vmul.f32 %v1929, %v1929
        %v4034 = vmul.f32 %v1580, %v1580
        %v4035 = vmul.f32 %v1582, %v1582
        %v4036 = vmul.f32 %v1933, %v1933
        %v4037 = vmul.f32 %v1935, %v1935
        %v4038 = vmul.f32 %v1584, %v1584
        %v4039 = vmul.f32 %v1586, %v1586
        %v4040 = vmul.f32 %v1937, %v1937
        %v4041 = vmul.f32 %v1939, %v1939
        %v4042 = vmul.f32 %v1590, %v1590
        %v4043 = vmul.f32 %v1592, %v1592
        %v4044 = vmul.f32 %v1943, %v1943
        %v4045 = vmul.f32 %v1945, %v1945
        %v4046 = vmul.f32 %v1594, %v1594
        %v4047 = vmul.f32 %v1596, %v1596
        %v4048 = vmul.f32 %v1947, %v1947
        %v4049 = vmul.f32 %v1949, %v1949
        %v4050 = vadd.f32 %v3922, %v3926
        %v4051 = vadd.f32 %v4050, %v3930
        %v4052 = vadd.f32 %v4051, %v3934
        %v4053 = vadd.f32 %v4052, %v3938
        %v4054 = vadd.f32 %v4053, %v3942
        %v4055 = vadd.f32 %v4054, %v3946
        %v4056 = vadd.f32 %v4055, %v3950
        %v4057 = vadd.f32 %v4056, %v3954
        %v4058 = vadd.f32 %v4057, %v3958
        %v4059 = vadd.f32 %v4058, %v3962
        %v4060 = vadd.f32 %v4059, %v3966
        %v4061 = vadd.f32 %v4060, %v3970
        %v4062 = vadd.f32 %v4061, %v3974
        %v4063 = vadd.f32 %v4062, %v3978
        %v4064 = vadd.f32 %v4063, %v3982
        %v4065 = vadd.f32 %v4064, %v3986
        %v4066 = vadd.f32 %v4065, %v3990
        %v4067 = vadd.f32 %v4066, %v3994
        %v4068 = vadd.f32 %v4067, %v3998
        %v4069 = vadd.f32 %v4068, %v4002
        %v4070 = vadd.f32 %v4069, %v4006
        %v4071 = vadd.f32 %v4070, %v4010
        %v4072 = vadd.f32 %v4071, %v4014
        %v4073 = vadd.f32 %v4072, %v4018
        %v4074 = vadd.f32 %v4073, %v4022
        %v4075 = vadd.f32 %v4074, %v4026
        %v4076 = vadd.f32 %v4075, %v4030
        %v4077 = vadd.f32 %v4076, %v4034
        %v4078 = vadd.f32 %v4077, %v4038
        %v4079 = vadd.f32 %v4078, %v4042
        %v4080 = vadd.f32 %v4079, %v4046
        %v4081 = vrot.slane %v4080, 4
        %v4082 = vadd.f32 %v4080, %v4081
        %v4083 = vrot.slane %v4082, 2
        %v4084 = vadd.f32 %v4082, %v4083
        %v4085 = vrot.slane %v4084, 1
        %v4086 = vadd.f32 %v4084, %v4085
        %v4087 = vadd.f32 %v3923, %v3927
        %v4088 = vadd.f32 %v4087, %v3931
        %v4089 = vadd.f32 %v4088, %v3935
        %v4090 = vadd.f32 %v4089, %v3939
        %v4091 = vadd.f32 %v4090, %v3943
        %v4092 = vadd.f32 %v4091, %v3947
        %v4093 = vadd.f32 %v4092, %v3951
        %v4094 = vadd.f32 %v4093, %v3955
        %v4095 = vadd.f32 %v4094, %v3959
        %v4096 = vadd.f32 %v4095, %v3963
        %v4097 = vadd.f32 %v4096, %v3967
        %v4098 = vadd.f32 %v4097, %v3971
        %v4099 = vadd.f32 %v4098, %v3975
        %v4100 = vadd.f32 %v4099, %v3979
        %v4101 = vadd.f32 %v4100, %v3983
        %v4102 = vadd.f32 %v4101, %v3987
        %v4103 = vadd.f32 %v4102, %v3991
        %v4104 = vadd.f32 %v4103, %v3995
        %v4105 = vadd.f32 %v4104, %v3999
        %v4106 = vadd.f32 %v4105, %v4003
        %v4107 = vadd.f32 %v4106, %v4007
        %v4108 = vadd.f32 %v4107, %v4011
        %v4109 = vadd.f32 %v4108, %v4015
        %v4110 = vadd.f32 %v4109, %v4019
        %v4111 = vadd.f32 %v4110, %v4023
        %v4112 = vadd.f32 %v4111, %v4027
        %v4113 = vadd.f32 %v4112, %v4031
        %v4114 = vadd.f32 %v4113, %v4035
        %v4115 = vadd.f32 %v4114, %v4039
        %v4116 = vadd.f32 %v4115, %v4043
        %v4117 = vadd.f32 %v4116, %v4047
        %v4118 = vrot.slane %v4117, 4
        %v4119 = vadd.f32 %v4117, %v4118
        %v4120 = vrot.slane %v4119, 2
        %v4121 = vadd.f32 %v4119, %v4120
        %v4122 = vrot.slane %v4121, 1
        %v4123 = vadd.f32 %v4121, %v4122
        %v4124 = vadd.f32 %v3924, %v3928
        %v4125 = vadd.f32 %v4124, %v3932
        %v4126 = vadd.f32 %v4125, %v3936
        %v4127 = vadd.f32 %v4126, %v3940
        %v4128 = vadd.f32 %v4127, %v3944
        %v4129 = vadd.f32 %v4128, %v3948
        %v4130 = vadd.f32 %v4129, %v3952
        %v4131 = vadd.f32 %v4130, %v3956
        %v4132 = vadd.f32 %v4131, %v3960
        %v4133 = vadd.f32 %v4132, %v3964
        %v4134 = vadd.f32 %v4133, %v3968
        %v4135 = vadd.f32 %v4134, %v3972
        %v4136 = vadd.f32 %v4135, %v3976
        %v4137 = vadd.f32 %v4136, %v3980
        %v4138 = vadd.f32 %v4137, %v3984
        %v4139 = vadd.f32 %v4138, %v3988
        %v4140 = vadd.f32 %v4139, %v3992
        %v4141 = vadd.f32 %v4140, %v3996
        %v4142 = vadd.f32 %v4141, %v4000
        %v4143 = vadd.f32 %v4142, %v4004
        %v4144 = vadd.f32 %v4143, %v4008
        %v4145 = vadd.f32 %v4144, %v4012
        %v4146 = vadd.f32 %v4145, %v4016
        %v4147 = vadd.f32 %v4146, %v4020
        %v4148 = vadd.f32 %v4147, %v4024
        %v4149 = vadd.f32 %v4148, %v4028
        %v4150 = vadd.f32 %v4149, %v4032
        %v4151 = vadd.f32 %v4150, %v4036
        %v4152 = vadd.f32 %v4151, %v4040
        %v4153 = vadd.f32 %v4152, %v4044
        %v4154 = vadd.f32 %v4153, %v4048
        %v4155 = vrot.slane %v4154, 4
        %v4156 = vadd.f32 %v4154, %v4155
        %v4157 = vrot.slane %v4156, 2
        %v4158 = vadd.f32 %v4156, %v4157
        %v4159 = vrot.slane %v4158, 1
        %v4160 = vadd.f32 %v4158, %v4159
        %v4161 = vadd.f32 %v3925, %v3929
        %v4162 = vadd.f32 %v4161, %v3933
        %v4163 = vadd.f32 %v4162, %v3937
        %v4164 = vadd.f32 %v4163, %v3941
        %v4165 = vadd.f32 %v4164, %v3945
        %v4166 = vadd.f32 %v4165, %v3949
        %v4167 = vadd.f32 %v4166, %v3953
        %v4168 = vadd.f32 %v4167, %v3957
        %v4169 = vadd.f32 %v4168, %v3961
        %v4170 = vadd.f32 %v4169, %v3965
        %v4171 = vadd.f32 %v4170, %v3969
        %v4172 = vadd.f32 %v4171, %v3973
        %v4173 = vadd.f32 %v4172, %v3977
        %v4174 = vadd.f32 %v4173, %v3981
        %v4175 = vadd.f32 %v4174, %v3985
        %v4176 = vadd.f32 %v4175, %v3989
        %v4177 = vadd.f32 %v4176, %v3993
        %v4178 = vadd.f32 %v4177, %v3997
        %v4179 = vadd.f32 %v4178, %v4001
        %v4180 = vadd.f32 %v4179, %v4005
        %v4181 = vadd.f32 %v4180, %v4009
        %v4182 = vadd.f32 %v4181, %v4013
        %v4183 = vadd.f32 %v4182, %v4017
        %v4184 = vadd.f32 %v4183, %v4021
        %v4185 = vadd.f32 %v4184, %v4025
        %v4186 = vadd.f32 %v4185, %v4029
        %v4187 = vadd.f32 %v4186, %v4033
        %v4188 = vadd.f32 %v4187, %v4037
        %v4189 = vadd.f32 %v4188, %v4041
        %v4190 = vadd.f32 %v4189, %v4045
        %v4191 = vadd.f32 %v4190, %v4049
        %v4192 = vrot.slane %v4191, 4
        %v4193 = vadd.f32 %v4191, %v4192
        %v4194 = vrot.slane %v4193, 2
        %v4195 = vadd.f32 %v4193, %v4194
        %v4196 = vrot.slane %v4195, 1
        %v4197 = vadd.f32 %v4195, %v4196
        %v4198 = vmax.f32 %v4086, 1e-24
        %v4199 = vmax.f32 %v4123, 1e-24
        %v4200 = vmax.f32 %v4160, 1e-24
        %v4201 = vmax.f32 %v4197, 1e-24
        %v4202 = vrsqrt.pop %v4198
        %v4203 = vrsqrt.pop %v4199
        %v4204 = vrsqrt.pop %v4200
        %v4205 = vrsqrt.pop %v4201
        %v4206 = vmul.f32 %v4202, %v2588
        %v4207 = vmul.f32 %v4203, %v2588
        %v4208 = vmul.f32 %v1440, %v4206
        %v4209 = vmul.f32 %v1442, %v4207
        %v4210 = vmul.f32 %v1444, %v4206
        %v4211 = vmul.f32 %v1446, %v4207
        %v4212 = vmul.f32 %v1450, %v4206
        %v4213 = vmul.f32 %v1452, %v4207
        %v4214 = vmul.f32 %v1454, %v4206
        %v4215 = vmul.f32 %v1456, %v4207
        %v4216 = vmul.f32 %v1460, %v4206
        %v4217 = vmul.f32 %v1462, %v4207
        %v4218 = vmul.f32 %v1464, %v4206
        %v4219 = vmul.f32 %v1466, %v4207
        %v4220 = vmul.f32 %v1470, %v4206
        %v4221 = vmul.f32 %v1472, %v4207
        %v4222 = vmul.f32 %v1474, %v4206
        %v4223 = vmul.f32 %v1476, %v4207
        %v4224 = vmul.f32 %v1480, %v4206
        %v4225 = vmul.f32 %v1482, %v4207
        %v4226 = vmul.f32 %v1484, %v4206
        %v4227 = vmul.f32 %v1486, %v4207
        %v4228 = vmul.f32 %v1490, %v4206
        %v4229 = vmul.f32 %v1492, %v4207
        %v4230 = vmul.f32 %v1494, %v4206
        %v4231 = vmul.f32 %v1496, %v4207
        %v4232 = vmul.f32 %v1500, %v4206
        %v4233 = vmul.f32 %v1502, %v4207
        %v4234 = vmul.f32 %v1504, %v4206
        %v4235 = vmul.f32 %v1506, %v4207
        %v4236 = vmul.f32 %v1510, %v4206
        %v4237 = vmul.f32 %v1512, %v4207
        %v4238 = vmul.f32 %v1514, %v4206
        %v4239 = vmul.f32 %v1516, %v4207
        %v4240 = vmul.f32 %v1520, %v4206
        %v4241 = vmul.f32 %v1522, %v4207
        %v4242 = vmul.f32 %v1524, %v4206
        %v4243 = vmul.f32 %v1526, %v4207
        %v4244 = vmul.f32 %v1530, %v4206
        %v4245 = vmul.f32 %v1532, %v4207
        %v4246 = vmul.f32 %v1534, %v4206
        %v4247 = vmul.f32 %v1536, %v4207
        %v4248 = vmul.f32 %v1540, %v4206
        %v4249 = vmul.f32 %v1542, %v4207
        %v4250 = vmul.f32 %v1544, %v4206
        %v4251 = vmul.f32 %v1546, %v4207
        %v4252 = vmul.f32 %v1550, %v4206
        %v4253 = vmul.f32 %v1552, %v4207
        %v4254 = vmul.f32 %v1554, %v4206
        %v4255 = vmul.f32 %v1556, %v4207
        %v4256 = vmul.f32 %v1560, %v4206
        %v4257 = vmul.f32 %v1562, %v4207
        %v4258 = vmul.f32 %v1564, %v4206
        %v4259 = vmul.f32 %v1566, %v4207
        %v4260 = vmul.f32 %v1570, %v4206
        %v4261 = vmul.f32 %v1572, %v4207
        %v4262 = vmul.f32 %v1574, %v4206
        %v4263 = vmul.f32 %v1576, %v4207
        %v4264 = vmul.f32 %v1580, %v4206
        %v4265 = vmul.f32 %v1582, %v4207
        %v4266 = vmul.f32 %v1584, %v4206
        %v4267 = vmul.f32 %v1586, %v4207
        %v4268 = vmul.f32 %v1590, %v4206
        %v4269 = vmul.f32 %v1592, %v4207
        %v4270 = vmul.f32 %v1594, %v4206
        %v4271 = vmul.f32 %v1596, %v4207
        %v4272 = vpack.c.bf16 %v4210, %v4208
        %v4273 = vpack.c.bf16 %v4211, %v4209
        %v4274 = vpack.c.bf16 %v4214, %v4212
        %v4275 = vpack.c.bf16 %v4215, %v4213
        %v4276 = vpack.c.bf16 %v4218, %v4216
        %v4277 = vpack.c.bf16 %v4219, %v4217
        %v4278 = vpack.c.bf16 %v4222, %v4220
        %v4279 = vpack.c.bf16 %v4223, %v4221
        %v4280 = vpack.c.bf16 %v4226, %v4224
        %v4281 = vpack.c.bf16 %v4227, %v4225
        %v4282 = vpack.c.bf16 %v4230, %v4228
        %v4283 = vpack.c.bf16 %v4231, %v4229
        %v4284 = vpack.c.bf16 %v4234, %v4232
        %v4285 = vpack.c.bf16 %v4235, %v4233
        %v4286 = vpack.c.bf16 %v4238, %v4236
        %v4287 = vpack.c.bf16 %v4239, %v4237
        %v4288 = vpack.c.bf16 %v4242, %v4240
        %v4289 = vpack.c.bf16 %v4243, %v4241
        %v4290 = vpack.c.bf16 %v4246, %v4244
        %v4291 = vpack.c.bf16 %v4247, %v4245
        %v4292 = vpack.c.bf16 %v4250, %v4248
        %v4293 = vpack.c.bf16 %v4251, %v4249
        %v4294 = vpack.c.bf16 %v4254, %v4252
        %v4295 = vpack.c.bf16 %v4255, %v4253
        %v4296 = vpack.c.bf16 %v4258, %v4256
        %v4297 = vpack.c.bf16 %v4259, %v4257
        %v4298 = vpack.c.bf16 %v4262, %v4260
        %v4299 = vpack.c.bf16 %v4263, %v4261
        %v4300 = vpack.c.bf16 %v4266, %v4264
        %v4301 = vpack.c.bf16 %v4267, %v4265
        %v4302 = vpack.c.bf16 %v4270, %v4268
        %v4303 = vpack.c.bf16 %v4271, %v4269
        %v4304 = vmul.f32 %v1793, %v4204
        %v4305 = vmul.f32 %v1795, %v4205
        %v4306 = vmul.f32 %v1797, %v4204
        %v4307 = vmul.f32 %v1799, %v4205
        %v4308 = vmul.f32 %v1803, %v4204
        %v4309 = vmul.f32 %v1805, %v4205
        %v4310 = vmul.f32 %v1807, %v4204
        %v4311 = vmul.f32 %v1809, %v4205
        %v4312 = vmul.f32 %v1813, %v4204
        %v4313 = vmul.f32 %v1815, %v4205
        %v4314 = vmul.f32 %v1817, %v4204
        %v4315 = vmul.f32 %v1819, %v4205
        %v4316 = vmul.f32 %v1823, %v4204
        %v4317 = vmul.f32 %v1825, %v4205
        %v4318 = vmul.f32 %v1827, %v4204
        %v4319 = vmul.f32 %v1829, %v4205
        %v4320 = vmul.f32 %v1833, %v4204
        %v4321 = vmul.f32 %v1835, %v4205
        %v4322 = vmul.f32 %v1837, %v4204
        %v4323 = vmul.f32 %v1839, %v4205
        %v4324 = vmul.f32 %v1843, %v4204
        %v4325 = vmul.f32 %v1845, %v4205
        %v4326 = vmul.f32 %v1847, %v4204
        %v4327 = vmul.f32 %v1849, %v4205
        %v4328 = vmul.f32 %v1853, %v4204
        %v4329 = vmul.f32 %v1855, %v4205
        %v4330 = vmul.f32 %v1857, %v4204
        %v4331 = vmul.f32 %v1859, %v4205
        %v4332 = vmul.f32 %v1863, %v4204
        %v4333 = vmul.f32 %v1865, %v4205
        %v4334 = vmul.f32 %v1867, %v4204
        %v4335 = vmul.f32 %v1869, %v4205
        %v4336 = vmul.f32 %v1873, %v4204
        %v4337 = vmul.f32 %v1875, %v4205
        %v4338 = vmul.f32 %v1877, %v4204
        %v4339 = vmul.f32 %v1879, %v4205
        %v4340 = vmul.f32 %v1883, %v4204
        %v4341 = vmul.f32 %v1885, %v4205
        %v4342 = vmul.f32 %v1887, %v4204
        %v4343 = vmul.f32 %v1889, %v4205
        %v4344 = vmul.f32 %v1893, %v4204
        %v4345 = vmul.f32 %v1895, %v4205
        %v4346 = vmul.f32 %v1897, %v4204
        %v4347 = vmul.f32 %v1899, %v4205
        %v4348 = vmul.f32 %v1903, %v4204
        %v4349 = vmul.f32 %v1905, %v4205
        %v4350 = vmul.f32 %v1907, %v4204
        %v4351 = vmul.f32 %v1909, %v4205
        %v4352 = vmul.f32 %v1913, %v4204
        %v4353 = vmul.f32 %v1915, %v4205
        %v4354 = vmul.f32 %v1917, %v4204
        %v4355 = vmul.f32 %v1919, %v4205
        %v4356 = vmul.f32 %v1923, %v4204
        %v4357 = vmul.f32 %v1925, %v4205
        %v4358 = vmul.f32 %v1927, %v4204
        %v4359 = vmul.f32 %v1929, %v4205
        %v4360 = vmul.f32 %v1933, %v4204
        %v4361 = vmul.f32 %v1935, %v4205
        %v4362 = vmul.f32 %v1937, %v4204
        %v4363 = vmul.f32 %v1939, %v4205
        %v4364 = vmul.f32 %v1943, %v4204
        %v4365 = vmul.f32 %v1945, %v4205
        %v4366 = vmul.f32 %v1947, %v4204
        %v4367 = vmul.f32 %v1949, %v4205
        %v4368 = vpack.c.bf16 %v4306, %v4304
        %v4369 = vpack.c.bf16 %v4307, %v4305
        %v4370 = vpack.c.bf16 %v4310, %v4308
        %v4371 = vpack.c.bf16 %v4311, %v4309
        %v4372 = vpack.c.bf16 %v4314, %v4312
        %v4373 = vpack.c.bf16 %v4315, %v4313
        %v4374 = vpack.c.bf16 %v4318, %v4316
        %v4375 = vpack.c.bf16 %v4319, %v4317
        %v4376 = vpack.c.bf16 %v4322, %v4320
        %v4377 = vpack.c.bf16 %v4323, %v4321
        %v4378 = vpack.c.bf16 %v4326, %v4324
        %v4379 = vpack.c.bf16 %v4327, %v4325
        %v4380 = vpack.c.bf16 %v4330, %v4328
        %v4381 = vpack.c.bf16 %v4331, %v4329
        %v4382 = vpack.c.bf16 %v4334, %v4332
        %v4383 = vpack.c.bf16 %v4335, %v4333
        %v4384 = vpack.c.bf16 %v4338, %v4336
        %v4385 = vpack.c.bf16 %v4339, %v4337
        %v4386 = vpack.c.bf16 %v4342, %v4340
        %v4387 = vpack.c.bf16 %v4343, %v4341
        %v4388 = vpack.c.bf16 %v4346, %v4344
        %v4389 = vpack.c.bf16 %v4347, %v4345
        %v4390 = vpack.c.bf16 %v4350, %v4348
        %v4391 = vpack.c.bf16 %v4351, %v4349
        %v4392 = vpack.c.bf16 %v4354, %v4352
        %v4393 = vpack.c.bf16 %v4355, %v4353
        %v4394 = vpack.c.bf16 %v4358, %v4356
        %v4395 = vpack.c.bf16 %v4359, %v4357
        %v4396 = vpack.c.bf16 %v4362, %v4360
        %v4397 = vpack.c.bf16 %v4363, %v4361
        %v4398 = vpack.c.bf16 %v4366, %v4364
        %v4399 = vpack.c.bf16 %v4367, %v4365
        %v4400 = vpack.c.bf16 %v2150, %v2146
        %v4401 = vpack.c.bf16 %v2152, %v2148
        %v4402 = vpack.c.bf16 %v2160, %v2156
        %v4403 = vpack.c.bf16 %v2162, %v2158
        %v4404 = vpack.c.bf16 %v2170, %v2166
        %v4405 = vpack.c.bf16 %v2172, %v2168
        %v4406 = vpack.c.bf16 %v2180, %v2176
        %v4407 = vpack.c.bf16 %v2182, %v2178
        %v4408 = vpack.c.bf16 %v2190, %v2186
        %v4409 = vpack.c.bf16 %v2192, %v2188
        %v4410 = vpack.c.bf16 %v2200, %v2196
        %v4411 = vpack.c.bf16 %v2202, %v2198
        %v4412 = vpack.c.bf16 %v2210, %v2206
        %v4413 = vpack.c.bf16 %v2212, %v2208
        %v4414 = vpack.c.bf16 %v2220, %v2216
        %v4415 = vpack.c.bf16 %v2222, %v2218
        %v4416 = vpack.c.bf16 %v2230, %v2226
        %v4417 = vpack.c.bf16 %v2232, %v2228
        %v4418 = vpack.c.bf16 %v2240, %v2236
        %v4419 = vpack.c.bf16 %v2242, %v2238
        %v4420 = vpack.c.bf16 %v2250, %v2246
        %v4421 = vpack.c.bf16 %v2252, %v2248
        %v4422 = vpack.c.bf16 %v2260, %v2256
        %v4423 = vpack.c.bf16 %v2262, %v2258
        %v4424 = vpack.c.bf16 %v2270, %v2266
        %v4425 = vpack.c.bf16 %v2272, %v2268
        %v4426 = vpack.c.bf16 %v2280, %v2276
        %v4427 = vpack.c.bf16 %v2282, %v2278
        %v4428 = vpack.c.bf16 %v2290, %v2286
        %v4429 = vpack.c.bf16 %v2292, %v2288
        %v4430 = vpack.c.bf16 %v2300, %v2296
        %v4431 = vpack.c.bf16 %v2302, %v2298
        %4432 = vmatprep.subr.bf16.mxu0 %v4401
        %4433 = vmatpush1.bf16.msra.mxu0 %v4400
        %4434 = vmatprep.subr.bf16.mxu0 %v4403
        %4435 = vmatpush1.bf16.msra.mxu0 %v4402
        %4436 = vmatprep.subr.bf16.mxu0 %v4405
        %4437 = vmatpush1.bf16.msra.mxu0 %v4404
        %4438 = vmatprep.subr.bf16.mxu0 %v4407
        %4439 = vmatpush1.bf16.msra.mxu0 %v4406
        %4440 = vmatprep.subr.bf16.mxu0 %v4409
        %4441 = vmatpush1.bf16.msra.mxu0 %v4408
        %4442 = vmatprep.subr.bf16.mxu0 %v4411
        %4443 = vmatpush1.bf16.msra.mxu0 %v4410
        %4444 = vmatprep.subr.bf16.mxu0 %v4413
        %4445 = vmatpush1.bf16.msra.mxu0 %v4412
        %4446 = vmatprep.subr.bf16.mxu0 %v4415
        %4447 = vmatpush1.bf16.msra.mxu0 %v4414
        %4448 = vmatprep.subr.bf16.mxu0 %v4417
        %4449 = vmatpush1.bf16.msra.mxu0 %v4416
        %4450 = vmatprep.subr.bf16.mxu0 %v4419
        %4451 = vmatpush1.bf16.msra.mxu0 %v4418
        %4452 = vmatprep.subr.bf16.mxu0 %v4421
        %4453 = vmatpush1.bf16.msra.mxu0 %v4420
        %4454 = vmatprep.subr.bf16.mxu0 %v4423
        %4455 = vmatpush1.bf16.msra.mxu0 %v4422
        %4456 = vmatprep.subr.bf16.mxu0 %v4425
        %4457 = vmatpush1.bf16.msra.mxu0 %v4424
        %4458 = vmatprep.subr.bf16.mxu0 %v4427
        %4459 = vmatpush1.bf16.msra.mxu0 %v4426
        %4460 = vmatprep.subr.bf16.mxu0 %v4429
        %4461 = vmatpush1.bf16.msra.mxu0 %v4428
        %4462 = vmatprep.subr.bf16.mxu0 %v4431
        %4463 = vmatpush1.bf16.msra.mxu0 %v4430
        %4464 = vmatprep.mubr.bf16.mxu0 %v2880
        %4465 = vmatmul.mubr.bf16.gmra.mrb[0].mxu0 %v2879
        %v4466 = vpop.f32.mrb[0].mxu0
        %v4467 = vadd.f32 0.0, %v4466
        %v4468 = vpop.f32.mrb[0].mxu0
        %v4469 = vadd.f32 0.0, %v4468
        %v4470 = vpop.f32.mrb[0].mxu0
        %v4471 = vadd.f32 0.0, %v4470
        %v4472 = vpop.f32.mrb[0].mxu0
        %v4473 = vadd.f32 0.0, %v4472
        %4474 = vmatprep.mubr.bf16.mxu0 %v2882
        %4475 = vmatmul.mubr.bf16.gmra.mrb[0].mxu0 %v2881
        %v4476 = vpop.f32.mrb[0].mxu0
        %v4477 = vadd.f32 0.0, %v4476
        %v4478 = vpop.f32.mrb[0].mxu0
        %v4479 = vadd.f32 0.0, %v4478
        %v4480 = vpop.f32.mrb[0].mxu0
        %v4481 = vadd.f32 0.0, %v4480
        %v4482 = vpop.f32.mrb[0].mxu0
        %v4483 = vadd.f32 0.0, %v4482
        %4484 = vmatprep.mubr.bf16.mxu0 %v2884
        %4485 = vmatmul.mubr.bf16.gmra.mrb[0].mxu0 %v2883
        %v4486 = vpop.f32.mrb[0].mxu0
        %v4487 = vadd.f32 0.0, %v4486
        %v4488 = vpop.f32.mrb[0].mxu0
        %v4489 = vadd.f32 0.0, %v4488
        %v4490 = vpop.f32.mrb[0].mxu0
        %v4491 = vadd.f32 0.0, %v4490
        %v4492 = vpop.f32.mrb[0].mxu0
        %v4493 = vadd.f32 0.0, %v4492
        %4494 = vmatprep.mubr.bf16.mxu0 %v2886
        %4495 = vmatmul.mubr.bf16.gmra.mrb[0].mxu0 %v2885
        %v4496 = vpop.f32.mrb[0].mxu0
        %v4497 = vadd.f32 0.0, %v4496
        %v4498 = vpop.f32.mrb[0].mxu0
        %v4499 = vadd.f32 0.0, %v4498
        %v4500 = vpop.f32.mrb[0].mxu0
        %v4501 = vadd.f32 0.0, %v4500
        %v4502 = vpop.f32.mrb[0].mxu0
        %v4503 = vadd.f32 0.0, %v4502
        %4504 = vmatprep.mubr.bf16.mxu0 %v2888
        %4505 = vmatmul.mubr.bf16.gmra.mrb[0].mxu0 %v2887
        %v4506 = vpop.f32.mrb[0].mxu0
        %v4507 = vadd.f32 0.0, %v4506
        %v4508 = vpop.f32.mrb[0].mxu0
        %v4509 = vadd.f32 0.0, %v4508
        %v4510 = vpop.f32.mrb[0].mxu0
        %v4511 = vadd.f32 0.0, %v4510
        %v4512 = vpop.f32.mrb[0].mxu0
        %v4513 = vadd.f32 0.0, %v4512
        %4514 = vmatprep.mubr.bf16.mxu0 %v2890
        %4515 = vmatmul.mubr.bf16.gmra.mrb[0].mxu0 %v2889
        %v4516 = vpop.f32.mrb[0].mxu0
        %v4517 = vadd.f32 0.0, %v4516
        %v4518 = vpop.f32.mrb[0].mxu0
        %v4519 = vadd.f32 0.0, %v4518
        %v4520 = vpop.f32.mrb[0].mxu0
        %v4521 = vadd.f32 0.0, %v4520
        %v4522 = vpop.f32.mrb[0].mxu0
        %v4523 = vadd.f32 0.0, %v4522
        %4524 = vmatprep.mubr.bf16.mxu0 %v2892
        %4525 = vmatmul.mubr.bf16.gmra.mrb[0].mxu0 %v2891
        %v4526 = vpop.f32.mrb[0].mxu0
        %v4527 = vadd.f32 0.0, %v4526
        %v4528 = vpop.f32.mrb[0].mxu0
        %v4529 = vadd.f32 0.0, %v4528
        %v4530 = vpop.f32.mrb[0].mxu0
        %v4531 = vadd.f32 0.0, %v4530
        %v4532 = vpop.f32.mrb[0].mxu0
        %v4533 = vadd.f32 0.0, %v4532
        %4534 = vmatprep.mubr.bf16.mxu0 %v2894
        %4535 = vmatmul.mubr.bf16.gmra.mrb[0].mxu0 %v2893
        %v4536 = vpop.f32.mrb[0].mxu0
        %v4537 = vadd.f32 0.0, %v4536
        %v4538 = vpop.f32.mrb[0].mxu0
        %v4539 = vadd.f32 0.0, %v4538
        %v4540 = vpop.f32.mrb[0].mxu0
        %v4541 = vadd.f32 0.0, %v4540
        %v4542 = vpop.f32.mrb[0].mxu0
        %v4543 = vadd.f32 0.0, %v4542
        %4544 = vdwg.mxu0
        %v4545 = vmul.f32 %v4467, %v4467
        %v4546 = vmul.f32 %v4469, %v4469
        %v4547 = vmul.f32 %v4471, %v4471
        %v4548 = vmul.f32 %v4473, %v4473
        %v4549 = vmul.f32 %v4477, %v4477
        %v4550 = vmul.f32 %v4479, %v4479
        %v4551 = vmul.f32 %v4481, %v4481
        %v4552 = vmul.f32 %v4483, %v4483
        %v4553 = vmul.f32 %v4487, %v4487
        %v4554 = vmul.f32 %v4489, %v4489
        %v4555 = vmul.f32 %v4491, %v4491
        %v4556 = vmul.f32 %v4493, %v4493
        %v4557 = vmul.f32 %v4497, %v4497
        %v4558 = vmul.f32 %v4499, %v4499
        %v4559 = vmul.f32 %v4501, %v4501
        %v4560 = vmul.f32 %v4503, %v4503
        %v4561 = vmul.f32 %v4507, %v4507
        %v4562 = vmul.f32 %v4509, %v4509
        %v4563 = vmul.f32 %v4511, %v4511
        %v4564 = vmul.f32 %v4513, %v4513
        %v4565 = vmul.f32 %v4517, %v4517
        %v4566 = vmul.f32 %v4519, %v4519
        %v4567 = vmul.f32 %v4521, %v4521
        %v4568 = vmul.f32 %v4523, %v4523
        %v4569 = vmul.f32 %v4527, %v4527
        %v4570 = vmul.f32 %v4529, %v4529
        %v4571 = vmul.f32 %v4531, %v4531
        %v4572 = vmul.f32 %v4533, %v4533
        %v4573 = vmul.f32 %v4537, %v4537
        %v4574 = vmul.f32 %v4539, %v4539
        %v4575 = vmul.f32 %v4541, %v4541
        %v4576 = vmul.f32 %v4543, %v4543
        %v4577 = vadd.f32 %v4545, %v4546
        %4578 = vadd.xlane.f32.xlu0 %v4577
        %v4579 = vpop.xlane.xlu0 %4578
        %v4580 = vadd.f32 %v4547, %v4548
        %4581 = vadd.xlane.f32.xlu0 %v4580
        %v4582 = vpop.xlane.xlu0 %4581
        %v4583 = vadd.f32 %v4549, %v4550
        %4584 = vadd.xlane.f32.xlu0 %v4583
        %v4585 = vpop.xlane.xlu0 %4584
        %v4586 = vadd.f32 %v4551, %v4552
        %4587 = vadd.xlane.f32.xlu0 %v4586
        %v4588 = vpop.xlane.xlu0 %4587
        %v4589 = vadd.f32 %v4553, %v4554
        %4590 = vadd.xlane.f32.xlu0 %v4589
        %v4591 = vpop.xlane.xlu0 %4590
        %v4592 = vadd.f32 %v4555, %v4556
        %4593 = vadd.xlane.f32.xlu0 %v4592
        %v4594 = vpop.xlane.xlu0 %4593
        %v4595 = vadd.f32 %v4557, %v4558
        %4596 = vadd.xlane.f32.xlu0 %v4595
        %v4597 = vpop.xlane.xlu0 %4596
        %v4598 = vadd.f32 %v4559, %v4560
        %4599 = vadd.xlane.f32.xlu0 %v4598
        %v4600 = vpop.xlane.xlu0 %4599
        %v4601 = vadd.f32 %v4561, %v4562
        %4602 = vadd.xlane.f32.xlu0 %v4601
        %v4603 = vpop.xlane.xlu0 %4602
        %v4604 = vadd.f32 %v4563, %v4564
        %4605 = vadd.xlane.f32.xlu0 %v4604
        %v4606 = vpop.xlane.xlu0 %4605
        %v4607 = vadd.f32 %v4565, %v4566
        %4608 = vadd.xlane.f32.xlu0 %v4607
        %v4609 = vpop.xlane.xlu0 %4608
        %v4610 = vadd.f32 %v4567, %v4568
        %4611 = vadd.xlane.f32.xlu0 %v4610
        %v4612 = vpop.xlane.xlu0 %4611
        %v4613 = vadd.f32 %v4569, %v4570
        %4614 = vadd.xlane.f32.xlu0 %v4613
        %v4615 = vpop.xlane.xlu0 %4614
        %v4616 = vadd.f32 %v4571, %v4572
        %4617 = vadd.xlane.f32.xlu0 %v4616
        %v4618 = vpop.xlane.xlu0 %4617
        %v4619 = vadd.f32 %v4573, %v4574
        %4620 = vadd.xlane.f32.xlu0 %v4619
        %v4621 = vpop.xlane.xlu0 %4620
        %v4622 = vadd.f32 %v4575, %v4576
        %4623 = vadd.xlane.f32.xlu0 %v4622
        %v4624 = vpop.xlane.xlu0 %4623
        %v4625 = vmax.f32 %v4579, 1e-24
        %v4626 = vmax.f32 %v4582, 1e-24
        %v4627 = vmax.f32 %v4585, 1e-24
        %v4628 = vmax.f32 %v4588, 1e-24
        %v4629 = vmax.f32 %v4591, 1e-24
        %v4630 = vmax.f32 %v4594, 1e-24
        %v4631 = vmax.f32 %v4597, 1e-24
        %v4632 = vmax.f32 %v4600, 1e-24
        %v4633 = vmax.f32 %v4603, 1e-24
        %v4634 = vmax.f32 %v4606, 1e-24
        %v4635 = vmax.f32 %v4609, 1e-24
        %v4636 = vmax.f32 %v4612, 1e-24
        %v4637 = vmax.f32 %v4615, 1e-24
        %v4638 = vmax.f32 %v4618, 1e-24
        %v4639 = vmax.f32 %v4621, 1e-24
        %v4640 = vmax.f32 %v4624, 1e-24
        %v4641 = vrsqrt.pop %v4625
        %v4642 = vrsqrt.pop %v4626
        %v4643 = vrsqrt.pop %v4627
        %v4644 = vrsqrt.pop %v4628
        %v4645 = vrsqrt.pop %v4629
        %v4646 = vrsqrt.pop %v4630
        %v4647 = vrsqrt.pop %v4631
        %v4648 = vrsqrt.pop %v4632
        %v4649 = vrsqrt.pop %v4633
        %v4650 = vrsqrt.pop %v4634
        %v4651 = vrsqrt.pop %v4635
        %v4652 = vrsqrt.pop %v4636
        %v4653 = vrsqrt.pop %v4637
        %v4654 = vrsqrt.pop %v4638
        %v4655 = vrsqrt.pop %v4639
        %v4656 = vrsqrt.pop %v4640
        %v4657 = vmul.f32 %v4467, %v4641
        %v4658 = vmul.f32 %v4469, %v4641
        %v4659 = vmul.f32 %v4471, %v4642
        %v4660 = vmul.f32 %v4473, %v4642
        %v4661 = vmul.f32 %v4477, %v4643
        %v4662 = vmul.f32 %v4479, %v4643
        %v4663 = vmul.f32 %v4481, %v4644
        %v4664 = vmul.f32 %v4483, %v4644
        %v4665 = vmul.f32 %v4487, %v4645
        %v4666 = vmul.f32 %v4489, %v4645
        %v4667 = vmul.f32 %v4491, %v4646
        %v4668 = vmul.f32 %v4493, %v4646
        %v4669 = vmul.f32 %v4497, %v4647
        %v4670 = vmul.f32 %v4499, %v4647
        %v4671 = vmul.f32 %v4501, %v4648
        %v4672 = vmul.f32 %v4503, %v4648
        %v4673 = vmul.f32 %v4507, %v4649
        %v4674 = vmul.f32 %v4509, %v4649
        %v4675 = vmul.f32 %v4511, %v4650
        %v4676 = vmul.f32 %v4513, %v4650
        %v4677 = vmul.f32 %v4517, %v4651
        %v4678 = vmul.f32 %v4519, %v4651
        %v4679 = vmul.f32 %v4521, %v4652
        %v4680 = vmul.f32 %v4523, %v4652
        %v4681 = vmul.f32 %v4527, %v4653
        %v4682 = vmul.f32 %v4529, %v4653
        %v4683 = vmul.f32 %v4531, %v4654
        %v4684 = vmul.f32 %v4533, %v4654
        %v4685 = vmul.f32 %v4537, %v4655
        %v4686 = vmul.f32 %v4539, %v4655
        %v4687 = vmul.f32 %v4541, %v4656
        %v4688 = vmul.f32 %v4543, %v4656
        %v4689 = vpack.c.bf16 %v4659, %v4657
        %v4690 = vpack.c.bf16 %v4660, %v4658
        %v4691 = vpack.c.bf16 %v4663, %v4661
        %v4692 = vpack.c.bf16 %v4664, %v4662
        %v4693 = vpack.c.bf16 %v4667, %v4665
        %v4694 = vpack.c.bf16 %v4668, %v4666
        %v4695 = vpack.c.bf16 %v4671, %v4669
        %v4696 = vpack.c.bf16 %v4672, %v4670
        %v4697 = vpack.c.bf16 %v4675, %v4673
        %v4698 = vpack.c.bf16 %v4676, %v4674
        %v4699 = vpack.c.bf16 %v4679, %v4677
        %v4700 = vpack.c.bf16 %v4680, %v4678
        %v4701 = vpack.c.bf16 %v4683, %v4681
        %v4702 = vpack.c.bf16 %v4684, %v4682
        %v4703 = vpack.c.bf16 %v4687, %v4685
        %v4704 = vpack.c.bf16 %v4688, %v4686
        %4705 = vxpose.xlu0.c.b16.start [1/8] %v4368, 128
        %4706 = vxpose.xlu0.c.b16.cont [2/8] %v4370, 128
        %4707 = vxpose.xlu0.c.b16.cont [3/8] %v4372, 128
        %4708 = vxpose.xlu0.c.b16.cont [4/8] %v4374, 128
        %4709 = vxpose.xlu0.c.b16.cont [5/8] %v4376, 128
        %4710 = vxpose.xlu0.c.b16.cont [6/8] %v4378, 128
        %4711 = vxpose.xlu0.c.b16.cont [7/8] %v4380, 128
        %4712 = vxpose.xlu0.c.b16.end [8/8] %v4382, 128
        %v4713 = vpop.trf.xlu0
        %v4714 = vpop.trf.xlu0
        %v4715 = vpop.trf.xlu0
        %v4716 = vpop.trf.xlu0
        %v4717 = vpop.trf.xlu0
        %v4718 = vpop.trf.xlu0
        %v4719 = vpop.trf.xlu0
        %v4720 = vpop.trf.xlu0
        %4721 = vxpose.xlu0.c.b16.start [1/8] %v4369, 128
        %4722 = vxpose.xlu0.c.b16.cont [2/8] %v4371, 128
        %4723 = vxpose.xlu0.c.b16.cont [3/8] %v4373, 128
        %4724 = vxpose.xlu0.c.b16.cont [4/8] %v4375, 128
        %4725 = vxpose.xlu0.c.b16.cont [5/8] %v4377, 128
        %4726 = vxpose.xlu0.c.b16.cont [6/8] %v4379, 128
        %4727 = vxpose.xlu0.c.b16.cont [7/8] %v4381, 128
        %4728 = vxpose.xlu0.c.b16.end [8/8] %v4383, 128
        %v4729 = vpop.trf.xlu0
        %v4730 = vpop.trf.xlu0
        %v4731 = vpop.trf.xlu0
        %v4732 = vpop.trf.xlu0
        %v4733 = vpop.trf.xlu0
        %v4734 = vpop.trf.xlu0
        %v4735 = vpop.trf.xlu0
        %v4736 = vpop.trf.xlu0
        %4737 = vxpose.xlu0.c.b16.start [1/8] %v4384, 128
        %4738 = vxpose.xlu0.c.b16.cont [2/8] %v4386, 128
        %4739 = vxpose.xlu0.c.b16.cont [3/8] %v4388, 128
        %4740 = vxpose.xlu0.c.b16.cont [4/8] %v4390, 128
        %4741 = vxpose.xlu0.c.b16.cont [5/8] %v4392, 128
        %4742 = vxpose.xlu0.c.b16.cont [6/8] %v4394, 128
        %4743 = vxpose.xlu0.c.b16.cont [7/8] %v4396, 128
        %4744 = vxpose.xlu0.c.b16.end [8/8] %v4398, 128
        %v4745 = vpop.trf.xlu0
        %v4746 = vpop.trf.xlu0
        %v4747 = vpop.trf.xlu0
        %v4748 = vpop.trf.xlu0
        %v4749 = vpop.trf.xlu0
        %v4750 = vpop.trf.xlu0
        %v4751 = vpop.trf.xlu0
        %v4752 = vpop.trf.xlu0
        %4753 = vxpose.xlu0.c.b16.start [1/8] %v4385, 128
        %4754 = vxpose.xlu0.c.b16.cont [2/8] %v4387, 128
        %4755 = vxpose.xlu0.c.b16.cont [3/8] %v4389, 128
        %4756 = vxpose.xlu0.c.b16.cont [4/8] %v4391, 128
        %4757 = vxpose.xlu0.c.b16.cont [5/8] %v4393, 128
        %4758 = vxpose.xlu0.c.b16.cont [6/8] %v4395, 128
        %4759 = vxpose.xlu0.c.b16.cont [7/8] %v4397, 128
        %4760 = vxpose.xlu0.c.b16.end [8/8] %v4399, 128
        %v4761 = vpop.trf.xlu0
        %v4762 = vpop.trf.xlu0
        %v4763 = vpop.trf.xlu0
        %v4764 = vpop.trf.xlu0
        %v4765 = vpop.trf.xlu0
        %v4766 = vpop.trf.xlu0
        %v4767 = vpop.trf.xlu0
        %v4768 = vpop.trf.xlu0
        %4769 = vmatprep.subr.bf16.mxu0 %v4273
        %4770 = vmatpush1.bf16.msra.mxu0 %v4272
        %4771 = vmatprep.subr.bf16.mxu0 %v4275
        %4772 = vmatpush1.bf16.msra.mxu0 %v4274
        %4773 = vmatprep.subr.bf16.mxu0 %v4277
        %4774 = vmatpush1.bf16.msra.mxu0 %v4276
        %4775 = vmatprep.subr.bf16.mxu0 %v4279
        %4776 = vmatpush1.bf16.msra.mxu0 %v4278
        %4777 = vmatprep.subr.bf16.mxu0 %v4281
        %4778 = vmatpush1.bf16.msra.mxu0 %v4280
        %4779 = vmatprep.subr.bf16.mxu0 %v4283
        %4780 = vmatpush1.bf16.msra.mxu0 %v4282
        %4781 = vmatprep.subr.bf16.mxu0 %v4285
        %4782 = vmatpush1.bf16.msra.mxu0 %v4284
        %4783 = vmatprep.subr.bf16.mxu0 %v4287
        %4784 = vmatpush1.bf16.msra.mxu0 %v4286
        %4785 = vmatprep.subr.bf16.mxu0 %v4289
        %4786 = vmatpush1.bf16.msra.mxu0 %v4288
        %4787 = vmatprep.subr.bf16.mxu0 %v4291
        %4788 = vmatpush1.bf16.msra.mxu0 %v4290
        %4789 = vmatprep.subr.bf16.mxu0 %v4293
        %4790 = vmatpush1.bf16.msra.mxu0 %v4292
        %4791 = vmatprep.subr.bf16.mxu0 %v4295
        %4792 = vmatpush1.bf16.msra.mxu0 %v4294
        %4793 = vmatprep.subr.bf16.mxu0 %v4297
        %4794 = vmatpush1.bf16.msra.mxu0 %v4296
        %4795 = vmatprep.subr.bf16.mxu0 %v4299
        %4796 = vmatpush1.bf16.msra.mxu0 %v4298
        %4797 = vmatprep.subr.bf16.mxu0 %v4301
        %4798 = vmatpush1.bf16.msra.mxu0 %v4300
        %4799 = vmatprep.subr.bf16.mxu0 %v4303
        %4800 = vmatpush1.bf16.msra.mxu0 %v4302
        %4801 = vmatprep.mubr.bf16.mxu0 %v4745
        %4802 = vmatmul.mubr.bf16.gmra.mrb[0].mxu0 %v4713
        %v4803 = vpop.f32.mrb[0].mxu0
        %v4804 = vadd.f32 0.0, %v4803
        %v4805 = vpop.f32.mrb[0].mxu0
        %v4806 = vadd.f32 0.0, %v4805
        %v4807 = vpop.f32.mrb[0].mxu0
        %v4808 = vadd.f32 0.0, %v4807
        %v4809 = vpop.f32.mrb[0].mxu0
        %v4810 = vadd.f32 0.0, %v4809
        %4811 = vmatprep.mubr.bf16.mxu0 %v4746
        %4812 = vmatmul.mubr.bf16.gmra.mrb[0].mxu0 %v4714
        %v4813 = vpop.f32.mrb[0].mxu0
        %v4814 = vadd.f32 0.0, %v4813
        %v4815 = vpop.f32.mrb[0].mxu0
        %v4816 = vadd.f32 0.0, %v4815
        %v4817 = vpop.f32.mrb[0].mxu0
        %v4818 = vadd.f32 0.0, %v4817
        %v4819 = vpop.f32.mrb[0].mxu0
        %v4820 = vadd.f32 0.0, %v4819
        %4821 = vmatprep.mubr.bf16.mxu0 %v4747
        %4822 = vmatmul.mubr.bf16.gmra.mrb[0].mxu0 %v4715
        %v4823 = vpop.f32.mrb[0].mxu0
        %v4824 = vadd.f32 0.0, %v4823
        %v4825 = vpop.f32.mrb[0].mxu0
        %v4826 = vadd.f32 0.0, %v4825
        %v4827 = vpop.f32.mrb[0].mxu0
        %v4828 = vadd.f32 0.0, %v4827
        %v4829 = vpop.f32.mrb[0].mxu0
        %v4830 = vadd.f32 0.0, %v4829
        %4831 = vmatprep.mubr.bf16.mxu0 %v4748
        %4832 = vmatmul.mubr.bf16.gmra.mrb[0].mxu0 %v4716
        %v4833 = vpop.f32.mrb[0].mxu0
        %v4834 = vadd.f32 0.0, %v4833
        %v4835 = vpop.f32.mrb[0].mxu0
        %v4836 = vadd.f32 0.0, %v4835
        %v4837 = vpop.f32.mrb[0].mxu0
        %v4838 = vadd.f32 0.0, %v4837
        %v4839 = vpop.f32.mrb[0].mxu0
        %v4840 = vadd.f32 0.0, %v4839
        %4841 = vmatprep.mubr.bf16.mxu0 %v4749
        %4842 = vmatmul.mubr.bf16.gmra.mrb[0].mxu0 %v4717
        %v4843 = vpop.f32.mrb[0].mxu0
        %v4844 = vadd.f32 0.0, %v4843
        %v4845 = vpop.f32.mrb[0].mxu0
        %v4846 = vadd.f32 0.0, %v4845
        %v4847 = vpop.f32.mrb[0].mxu0
        %v4848 = vadd.f32 0.0, %v4847
        %v4849 = vpop.f32.mrb[0].mxu0
        %v4850 = vadd.f32 0.0, %v4849
        %4851 = vmatprep.mubr.bf16.mxu0 %v4750
        %4852 = vmatmul.mubr.bf16.gmra.mrb[0].mxu0 %v4718
        %v4853 = vpop.f32.mrb[0].mxu0
        %v4854 = vadd.f32 0.0, %v4853
        %v4855 = vpop.f32.mrb[0].mxu0
        %v4856 = vadd.f32 0.0, %v4855
        %v4857 = vpop.f32.mrb[0].mxu0
        %v4858 = vadd.f32 0.0, %v4857
        %v4859 = vpop.f32.mrb[0].mxu0
        %v4860 = vadd.f32 0.0, %v4859
        %4861 = vmatprep.mubr.bf16.mxu0 %v4751
        %4862 = vmatmul.mubr.bf16.gmra.mrb[0].mxu0 %v4719
        %v4863 = vpop.f32.mrb[0].mxu0
        %v4864 = vadd.f32 0.0, %v4863
        %v4865 = vpop.f32.mrb[0].mxu0
        %v4866 = vadd.f32 0.0, %v4865
        %v4867 = vpop.f32.mrb[0].mxu0
        %v4868 = vadd.f32 0.0, %v4867
        %v4869 = vpop.f32.mrb[0].mxu0
        %v4870 = vadd.f32 0.0, %v4869
        %4871 = vmatprep.mubr.bf16.mxu0 %v4752
        %4872 = vmatmul.mubr.bf16.gmra.mrb[0].mxu0 %v4720
        %v4873 = vpop.f32.mrb[0].mxu0
        %v4874 = vadd.f32 0.0, %v4873
        %v4875 = vpop.f32.mrb[0].mxu0
        %v4876 = vadd.f32 0.0, %v4875
        %v4877 = vpop.f32.mrb[0].mxu0
        %v4878 = vadd.f32 0.0, %v4877
        %v4879 = vpop.f32.mrb[0].mxu0
        %v4880 = vadd.f32 0.0, %v4879
        %4881 = vmatprep.mubr.bf16.mxu0 %v4761
        %4882 = vmatmul.mubr.bf16.gmra.mrb[0].mxu0 %v4729
        %v4883 = vpop.f32.mrb[0].mxu0
        %v4884 = vadd.f32 0.0, %v4883
        %v4885 = vpop.f32.mrb[0].mxu0
        %v4886 = vadd.f32 0.0, %v4885
        %v4887 = vpop.f32.mrb[0].mxu0
        %v4888 = vadd.f32 0.0, %v4887
        %v4889 = vpop.f32.mrb[0].mxu0
        %v4890 = vadd.f32 0.0, %v4889
        %4891 = vmatprep.mubr.bf16.mxu0 %v4762
        %4892 = vmatmul.mubr.bf16.gmra.mrb[0].mxu0 %v4730
        %v4893 = vpop.f32.mrb[0].mxu0
        %v4894 = vadd.f32 0.0, %v4893
        %v4895 = vpop.f32.mrb[0].mxu0
        %v4896 = vadd.f32 0.0, %v4895
        %v4897 = vpop.f32.mrb[0].mxu0
        %v4898 = vadd.f32 0.0, %v4897
        %v4899 = vpop.f32.mrb[0].mxu0
        %v4900 = vadd.f32 0.0, %v4899
        %4901 = vmatprep.mubr.bf16.mxu0 %v4763
        %4902 = vmatmul.mubr.bf16.gmra.mrb[0].mxu0 %v4731
        %v4903 = vpop.f32.mrb[0].mxu0
        %v4904 = vadd.f32 0.0, %v4903
        %v4905 = vpop.f32.mrb[0].mxu0
        %v4906 = vadd.f32 0.0, %v4905
        %v4907 = vpop.f32.mrb[0].mxu0
        %v4908 = vadd.f32 0.0, %v4907
        %v4909 = vpop.f32.mrb[0].mxu0
        %v4910 = vadd.f32 0.0, %v4909
        %4911 = vmatprep.mubr.bf16.mxu0 %v4764
        %4912 = vmatmul.mubr.bf16.gmra.mrb[0].mxu0 %v4732
        %v4913 = vpop.f32.mrb[0].mxu0
        %v4914 = vadd.f32 0.0, %v4913
        %v4915 = vpop.f32.mrb[0].mxu0
        %v4916 = vadd.f32 0.0, %v4915
        %v4917 = vpop.f32.mrb[0].mxu0
        %v4918 = vadd.f32 0.0, %v4917
        %v4919 = vpop.f32.mrb[0].mxu0
        %v4920 = vadd.f32 0.0, %v4919
        %4921 = vmatprep.mubr.bf16.mxu0 %v4765
        %4922 = vmatmul.mubr.bf16.gmra.mrb[0].mxu0 %v4733
        %v4923 = vpop.f32.mrb[0].mxu0
        %v4924 = vadd.f32 0.0, %v4923
        %v4925 = vpop.f32.mrb[0].mxu0
        %v4926 = vadd.f32 0.0, %v4925
        %v4927 = vpop.f32.mrb[0].mxu0
        %v4928 = vadd.f32 0.0, %v4927
        %v4929 = vpop.f32.mrb[0].mxu0
        %v4930 = vadd.f32 0.0, %v4929
        %4931 = vmatprep.mubr.bf16.mxu0 %v4766
        %4932 = vmatmul.mubr.bf16.gmra.mrb[0].mxu0 %v4734
        %v4933 = vpop.f32.mrb[0].mxu0
        %v4934 = vadd.f32 0.0, %v4933
        %v4935 = vpop.f32.mrb[0].mxu0
        %v4936 = vadd.f32 0.0, %v4935
        %v4937 = vpop.f32.mrb[0].mxu0
        %v4938 = vadd.f32 0.0, %v4937
        %v4939 = vpop.f32.mrb[0].mxu0
        %v4940 = vadd.f32 0.0, %v4939
        %4941 = vmatprep.mubr.bf16.mxu0 %v4767
        %4942 = vmatmul.mubr.bf16.gmra.mrb[0].mxu0 %v4735
        %v4943 = vpop.f32.mrb[0].mxu0
        %v4944 = vadd.f32 0.0, %v4943
        %v4945 = vpop.f32.mrb[0].mxu0
        %v4946 = vadd.f32 0.0, %v4945
        %v4947 = vpop.f32.mrb[0].mxu0
        %v4948 = vadd.f32 0.0, %v4947
        %v4949 = vpop.f32.mrb[0].mxu0
        %v4950 = vadd.f32 0.0, %v4949
        %4951 = vmatprep.mubr.bf16.mxu0 %v4768
        %4952 = vmatmul.mubr.bf16.gmra.mrb[0].mxu0 %v4736
        %v4953 = vpop.f32.mrb[0].mxu0
        %v4954 = vadd.f32 0.0, %v4953
        %v4955 = vpop.f32.mrb[0].mxu0
        %v4956 = vadd.f32 0.0, %v4955
        %v4957 = vpop.f32.mrb[0].mxu0
        %v4958 = vadd.f32 0.0, %v4957
        %v4959 = vpop.f32.mrb[0].mxu0
        %v4960 = vadd.f32 0.0, %v4959
        %4961 = vdwg.mxu0
        %v4962 = vmul.f32 %v4804, 1.442695
        %v4963 = vpow.pop %v4962
        %v4964 = vmul.f32 %v4806, 1.442695
        %v4965 = vpow.pop %v4964
        %v4966 = vmul.f32 %v4808, 1.442695
        %v4967 = vpow.pop %v4966
        %v4968 = vmul.f32 %v4810, 1.442695
        %v4969 = vpow.pop %v4968
        %v4970 = vmul.f32 %v4814, 1.442695
        %v4971 = vpow.pop %v4970
        %v4972 = vmul.f32 %v4816, 1.442695
        %v4973 = vpow.pop %v4972
        %v4974 = vmul.f32 %v4818, 1.442695
        %v4975 = vpow.pop %v4974
        %v4976 = vmul.f32 %v4820, 1.442695
        %v4977 = vpow.pop %v4976
        %v4978 = vmul.f32 %v4824, 1.442695
        %v4979 = vpow.pop %v4978
        %v4980 = vmul.f32 %v4826, 1.442695
        %v4981 = vpow.pop %v4980
        %v4982 = vmul.f32 %v4828, 1.442695
        %v4983 = vpow.pop %v4982
        %v4984 = vmul.f32 %v4830, 1.442695
        %v4985 = vpow.pop %v4984
        %v4986 = vmul.f32 %v4834, 1.442695
        %v4987 = vpow.pop %v4986
        %v4988 = vmul.f32 %v4836, 1.442695
        %v4989 = vpow.pop %v4988
        %v4990 = vmul.f32 %v4838, 1.442695
        %v4991 = vpow.pop %v4990
        %v4992 = vmul.f32 %v4840, 1.442695
        %v4993 = vpow.pop %v4992
        %v4994 = vmul.f32 %v4844, 1.442695
        %v4995 = vpow.pop %v4994
        %v4996 = vmul.f32 %v4846, 1.442695
        %v4997 = vpow.pop %v4996
        %v4998 = vmul.f32 %v4848, 1.442695
        %v4999 = vpow.pop %v4998
        %v5000 = vmul.f32 %v4850, 1.442695
        %v5001 = vpow.pop %v5000
        %v5002 = vmul.f32 %v4854, 1.442695
        %v5003 = vpow.pop %v5002
        %v5004 = vmul.f32 %v4856, 1.442695
        %v5005 = vpow.pop %v5004
        %v5006 = vmul.f32 %v4858, 1.442695
        %v5007 = vpow.pop %v5006
        %v5008 = vmul.f32 %v4860, 1.442695
        %v5009 = vpow.pop %v5008
        %v5010 = vmul.f32 %v4864, 1.442695
        %v5011 = vpow.pop %v5010
        %v5012 = vmul.f32 %v4866, 1.442695
        %v5013 = vpow.pop %v5012
        %v5014 = vmul.f32 %v4868, 1.442695
        %v5015 = vpow.pop %v5014
        %v5016 = vmul.f32 %v4870, 1.442695
        %v5017 = vpow.pop %v5016
        %v5018 = vmul.f32 %v4874, 1.442695
        %v5019 = vpow.pop %v5018
        %v5020 = vmul.f32 %v4876, 1.442695
        %v5021 = vpow.pop %v5020
        %v5022 = vmul.f32 %v4878, 1.442695
        %v5023 = vpow.pop %v5022
        %v5024 = vmul.f32 %v4880, 1.442695
        %v5025 = vpow.pop %v5024
        %v5026 = vmul.f32 %v4884, 1.442695
        %v5027 = vpow.pop %v5026
        %v5028 = vmul.f32 %v4886, 1.442695
        %v5029 = vpow.pop %v5028
        %v5030 = vmul.f32 %v4888, 1.442695
        %v5031 = vpow.pop %v5030
        %v5032 = vmul.f32 %v4890, 1.442695
        %v5033 = vpow.pop %v5032
        %v5034 = vmul.f32 %v4894, 1.442695
        %v5035 = vpow.pop %v5034
        %v5036 = vmul.f32 %v4896, 1.442695
        %v5037 = vpow.pop %v5036
        %v5038 = vmul.f32 %v4898, 1.442695
        %v5039 = vpow.pop %v5038
        %v5040 = vmul.f32 %v4900, 1.442695
        %v5041 = vpow.pop %v5040
        %v5042 = vmul.f32 %v4904, 1.442695
        %v5043 = vpow.pop %v5042
        %v5044 = vmul.f32 %v4906, 1.442695
        %v5045 = vpow.pop %v5044
        %v5046 = vmul.f32 %v4908, 1.442695
        %v5047 = vpow.pop %v5046
        %v5048 = vmul.f32 %v4910, 1.442695
        %v5049 = vpow.pop %v5048
        %v5050 = vmul.f32 %v4914, 1.442695
        %v5051 = vpow.pop %v5050
        %v5052 = vmul.f32 %v4916, 1.442695
        %v5053 = vpow.pop %v5052
        %v5054 = vmul.f32 %v4918, 1.442695
        %v5055 = vpow.pop %v5054
        %v5056 = vmul.f32 %v4920, 1.442695
        %v5057 = vpow.pop %v5056
        %v5058 = vmul.f32 %v4924, 1.442695
        %v5059 = vpow.pop %v5058
        %v5060 = vmul.f32 %v4926, 1.442695
        %v5061 = vpow.pop %v5060
        %v5062 = vmul.f32 %v4928, 1.442695
        %v5063 = vpow.pop %v5062
        %v5064 = vmul.f32 %v4930, 1.442695
        %v5065 = vpow.pop %v5064
        %v5066 = vmul.f32 %v4934, 1.442695
        %v5067 = vpow.pop %v5066
        %v5068 = vmul.f32 %v4936, 1.442695
        %v5069 = vpow.pop %v5068
        %v5070 = vmul.f32 %v4938, 1.442695
        %v5071 = vpow.pop %v5070
        %v5072 = vmul.f32 %v4940, 1.442695
        %v5073 = vpow.pop %v5072
        %v5074 = vmul.f32 %v4944, 1.442695
        %v5075 = vpow.pop %v5074
        %v5076 = vmul.f32 %v4946, 1.442695
        %v5077 = vpow.pop %v5076
        %v5078 = vmul.f32 %v4948, 1.442695
        %v5079 = vpow.pop %v5078
        %v5080 = vmul.f32 %v4950, 1.442695
        %v5081 = vpow.pop %v5080
        %v5082 = vmul.f32 %v4954, 1.442695
        %v5083 = vpow.pop %v5082
        %v5084 = vmul.f32 %v4956, 1.442695
        %v5085 = vpow.pop %v5084
        %v5086 = vmul.f32 %v4958, 1.442695
        %v5087 = vpow.pop %v5086
        %v5088 = vmul.f32 %v4960, 1.442695
        %v5089 = vpow.pop %v5088
        %v5090 = vadd.f32 %v4963, %v4965
        %5091 = vadd.xlane.f32.xlu0 %v5090
        %v5092 = vpop.xlane.xlu0 %5091
        %v5093 = vadd.f32 %v4967, %v4969
        %5094 = vadd.xlane.f32.xlu0 %v5093
        %v5095 = vpop.xlane.xlu0 %5094
        %v5096 = vadd.f32 %v4971, %v4973
        %5097 = vadd.xlane.f32.xlu0 %v5096
        %v5098 = vpop.xlane.xlu0 %5097
        %v5099 = vadd.f32 %v4975, %v4977
        %5100 = vadd.xlane.f32.xlu0 %v5099
        %v5101 = vpop.xlane.xlu0 %5100
        %v5102 = vadd.f32 %v4979, %v4981
        %5103 = vadd.xlane.f32.xlu0 %v5102
        %v5104 = vpop.xlane.xlu0 %5103
        %v5105 = vadd.f32 %v4983, %v4985
        %5106 = vadd.xlane.f32.xlu0 %v5105
        %v5107 = vpop.xlane.xlu0 %5106
        %v5108 = vadd.f32 %v4987, %v4989
        %5109 = vadd.xlane.f32.xlu0 %v5108
        %v5110 = vpop.xlane.xlu0 %5109
        %v5111 = vadd.f32 %v4991, %v4993
        %5112 = vadd.xlane.f32.xlu0 %v5111
        %v5113 = vpop.xlane.xlu0 %5112
        %v5114 = vadd.f32 %v4995, %v4997
        %5115 = vadd.xlane.f32.xlu0 %v5114
        %v5116 = vpop.xlane.xlu0 %5115
        %v5117 = vadd.f32 %v4999, %v5001
        %5118 = vadd.xlane.f32.xlu0 %v5117
        %v5119 = vpop.xlane.xlu0 %5118
        %v5120 = vadd.f32 %v5003, %v5005
        %5121 = vadd.xlane.f32.xlu0 %v5120
        %v5122 = vpop.xlane.xlu0 %5121
        %v5123 = vadd.f32 %v5007, %v5009
        %5124 = vadd.xlane.f32.xlu0 %v5123
        %v5125 = vpop.xlane.xlu0 %5124
        %v5126 = vadd.f32 %v5011, %v5013
        %5127 = vadd.xlane.f32.xlu0 %v5126
        %v5128 = vpop.xlane.xlu0 %5127
        %v5129 = vadd.f32 %v5015, %v5017
        %5130 = vadd.xlane.f32.xlu0 %v5129
        %v5131 = vpop.xlane.xlu0 %5130
        %v5132 = vadd.f32 %v5019, %v5021
        %5133 = vadd.xlane.f32.xlu0 %v5132
        %v5134 = vpop.xlane.xlu0 %5133
        %v5135 = vadd.f32 %v5023, %v5025
        %5136 = vadd.xlane.f32.xlu0 %v5135
        %v5137 = vpop.xlane.xlu0 %5136
        %v5138 = vadd.f32 %v5027, %v5029
        %5139 = vadd.xlane.f32.xlu0 %v5138
        %v5140 = vpop.xlane.xlu0 %5139
        %v5141 = vadd.f32 %v5031, %v5033
        %5142 = vadd.xlane.f32.xlu0 %v5141
        %v5143 = vpop.xlane.xlu0 %5142
        %v5144 = vadd.f32 %v5035, %v5037
        %5145 = vadd.xlane.f32.xlu0 %v5144
        %v5146 = vpop.xlane.xlu0 %5145
        %v5147 = vadd.f32 %v5039, %v5041
        %5148 = vadd.xlane.f32.xlu0 %v5147
        %v5149 = vpop.xlane.xlu0 %5148
        %v5150 = vadd.f32 %v5043, %v5045
        %5151 = vadd.xlane.f32.xlu0 %v5150
        %v5152 = vpop.xlane.xlu0 %5151
        %v5153 = vadd.f32 %v5047, %v5049
        %5154 = vadd.xlane.f32.xlu0 %v5153
        %v5155 = vpop.xlane.xlu0 %5154
        %v5156 = vadd.f32 %v5051, %v5053
        %5157 = vadd.xlane.f32.xlu0 %v5156
        %v5158 = vpop.xlane.xlu0 %5157
        %v5159 = vadd.f32 %v5055, %v5057
        %5160 = vadd.xlane.f32.xlu0 %v5159
        %v5161 = vpop.xlane.xlu0 %5160
        %v5162 = vadd.f32 %v5059, %v5061
        %5163 = vadd.xlane.f32.xlu0 %v5162
        %v5164 = vpop.xlane.xlu0 %5163
        %v5165 = vadd.f32 %v5063, %v5065
        %5166 = vadd.xlane.f32.xlu0 %v5165
        %v5167 = vpop.xlane.xlu0 %5166
        %v5168 = vadd.f32 %v5067, %v5069
        %5169 = vadd.xlane.f32.xlu0 %v5168
        %v5170 = vpop.xlane.xlu0 %5169
        %v5171 = vadd.f32 %v5071, %v5073
        %5172 = vadd.xlane.f32.xlu0 %v5171
        %v5173 = vpop.xlane.xlu0 %5172
        %v5174 = vadd.f32 %v5075, %v5077
        %5175 = vadd.xlane.f32.xlu0 %v5174
        %v5176 = vpop.xlane.xlu0 %5175
        %v5177 = vadd.f32 %v5079, %v5081
        %5178 = vadd.xlane.f32.xlu0 %v5177
        %v5179 = vpop.xlane.xlu0 %5178
        %v5180 = vadd.f32 %v5083, %v5085
        %5181 = vadd.xlane.f32.xlu0 %v5180
        %v5182 = vpop.xlane.xlu0 %5181
        %v5183 = vadd.f32 %v5087, %v5089
        %5184 = vadd.xlane.f32.xlu0 %v5183
        %v5185 = vpop.xlane.xlu0 %5184
        %v5186 = vrcp.pop %v5092
        %v5187 = vrcp.pop %v5095
        %v5188 = vrcp.pop %v5098
        %v5189 = vrcp.pop %v5101
        %v5190 = vrcp.pop %v5104
        %v5191 = vrcp.pop %v5107
        %v5192 = vrcp.pop %v5110
        %v5193 = vrcp.pop %v5113
        %v5194 = vrcp.pop %v5116
        %v5195 = vrcp.pop %v5119
        %v5196 = vrcp.pop %v5122
        %v5197 = vrcp.pop %v5125
        %v5198 = vrcp.pop %v5128
        %v5199 = vrcp.pop %v5131
        %v5200 = vrcp.pop %v5134
        %v5201 = vrcp.pop %v5137
        %v5202 = vrcp.pop %v5140
        %v5203 = vrcp.pop %v5143
        %v5204 = vrcp.pop %v5146
        %v5205 = vrcp.pop %v5149
        %v5206 = vrcp.pop %v5152
        %v5207 = vrcp.pop %v5155
        %v5208 = vrcp.pop %v5158
        %v5209 = vrcp.pop %v5161
        %v5210 = vrcp.pop %v5164
        %v5211 = vrcp.pop %v5167
        %v5212 = vrcp.pop %v5170
        %v5213 = vrcp.pop %v5173
        %v5214 = vrcp.pop %v5176
        %v5215 = vrcp.pop %v5179
        %v5216 = vrcp.pop %v5182
        %v5217 = vrcp.pop %v5185
        %v5218 = vmul.f32 %v4963, %v5186
        %v5219 = vmul.f32 %v4965, %v5186
        %v5220 = vmul.f32 %v4967, %v5187
        %v5221 = vmul.f32 %v4969, %v5187
        %v5222 = vmul.f32 %v4971, %v5188
        %v5223 = vmul.f32 %v4973, %v5188
        %v5224 = vmul.f32 %v4975, %v5189
        %v5225 = vmul.f32 %v4977, %v5189
        %v5226 = vmul.f32 %v4979, %v5190
        %v5227 = vmul.f32 %v4981, %v5190
        %v5228 = vmul.f32 %v4983, %v5191
        %v5229 = vmul.f32 %v4985, %v5191
        %v5230 = vmul.f32 %v4987, %v5192
        %v5231 = vmul.f32 %v4989, %v5192
        %v5232 = vmul.f32 %v4991, %v5193
        %v5233 = vmul.f32 %v4993, %v5193
        %v5234 = vmul.f32 %v4995, %v5194
        %v5235 = vmul.f32 %v4997, %v5194
        %v5236 = vmul.f32 %v4999, %v5195
        %v5237 = vmul.f32 %v5001, %v5195
        %v5238 = vmul.f32 %v5003, %v5196
        %v5239 = vmul.f32 %v5005, %v5196
        %v5240 = vmul.f32 %v5007, %v5197
        %v5241 = vmul.f32 %v5009, %v5197
        %v5242 = vmul.f32 %v5011, %v5198
        %v5243 = vmul.f32 %v5013, %v5198
        %v5244 = vmul.f32 %v5015, %v5199
        %v5245 = vmul.f32 %v5017, %v5199
        %v5246 = vmul.f32 %v5019, %v5200
        %v5247 = vmul.f32 %v5021, %v5200
        %v5248 = vmul.f32 %v5023, %v5201
        %v5249 = vmul.f32 %v5025, %v5201
        %v5250 = vmul.f32 %v5027, %v5202
        %v5251 = vmul.f32 %v5029, %v5202
        %v5252 = vmul.f32 %v5031, %v5203
        %v5253 = vmul.f32 %v5033, %v5203
        %v5254 = vmul.f32 %v5035, %v5204
        %v5255 = vmul.f32 %v5037, %v5204
        %v5256 = vmul.f32 %v5039, %v5205
        %v5257 = vmul.f32 %v5041, %v5205
        %v5258 = vmul.f32 %v5043, %v5206
        %v5259 = vmul.f32 %v5045, %v5206
        %v5260 = vmul.f32 %v5047, %v5207
        %v5261 = vmul.f32 %v5049, %v5207
        %v5262 = vmul.f32 %v5051, %v5208
        %v5263 = vmul.f32 %v5053, %v5208
        %v5264 = vmul.f32 %v5055, %v5209
        %v5265 = vmul.f32 %v5057, %v5209
        %v5266 = vmul.f32 %v5059, %v5210
        %v5267 = vmul.f32 %v5061, %v5210
        %v5268 = vmul.f32 %v5063, %v5211
        %v5269 = vmul.f32 %v5065, %v5211
        %v5270 = vmul.f32 %v5067, %v5212
        %v5271 = vmul.f32 %v5069, %v5212
        %v5272 = vmul.f32 %v5071, %v5213
        %v5273 = vmul.f32 %v5073, %v5213
        %v5274 = vmul.f32 %v5075, %v5214
        %v5275 = vmul.f32 %v5077, %v5214
        %v5276 = vmul.f32 %v5079, %v5215
        %v5277 = vmul.f32 %v5081, %v5215
        %v5278 = vmul.f32 %v5083, %v5216
        %v5279 = vmul.f32 %v5085, %v5216
        %v5280 = vmul.f32 %v5087, %v5217
        %v5281 = vmul.f32 %v5089, %v5217
        %v5282 = vpack.c.bf16 %v5220, %v5218
        %v5283 = vpack.c.bf16 %v5221, %v5219
        %v5284 = vpack.c.bf16 %v5224, %v5222
        %v5285 = vpack.c.bf16 %v5225, %v5223
        %v5286 = vpack.c.bf16 %v5228, %v5226
        %v5287 = vpack.c.bf16 %v5229, %v5227
        %v5288 = vpack.c.bf16 %v5232, %v5230
        %v5289 = vpack.c.bf16 %v5233, %v5231
        %v5290 = vpack.c.bf16 %v5236, %v5234
        %v5291 = vpack.c.bf16 %v5237, %v5235
        %v5292 = vpack.c.bf16 %v5240, %v5238
        %v5293 = vpack.c.bf16 %v5241, %v5239
        %v5294 = vpack.c.bf16 %v5244, %v5242
        %v5295 = vpack.c.bf16 %v5245, %v5243
        %v5296 = vpack.c.bf16 %v5248, %v5246
        %v5297 = vpack.c.bf16 %v5249, %v5247
        %v5298 = vpack.c.bf16 %v5252, %v5250
        %v5299 = vpack.c.bf16 %v5253, %v5251
        %v5300 = vpack.c.bf16 %v5256, %v5254
        %v5301 = vpack.c.bf16 %v5257, %v5255
        %v5302 = vpack.c.bf16 %v5260, %v5258
        %v5303 = vpack.c.bf16 %v5261, %v5259
        %v5304 = vpack.c.bf16 %v5264, %v5262
        %v5305 = vpack.c.bf16 %v5265, %v5263
        %v5306 = vpack.c.bf16 %v5268, %v5266
        %v5307 = vpack.c.bf16 %v5269, %v5267
        %v5308 = vpack.c.bf16 %v5272, %v5270
        %v5309 = vpack.c.bf16 %v5273, %v5271
        %v5310 = vpack.c.bf16 %v5276, %v5274
        %v5311 = vpack.c.bf16 %v5277, %v5275
        %v5312 = vpack.c.bf16 %v5280, %v5278
        %v5313 = vpack.c.bf16 %v5281, %v5279
        %5314 = vmatprep.subr.bf16.mxu0 %v5283
        %5315 = vmatpush1.bf16.msra.mxu0 %v5282
        %5316 = vmatprep.subr.bf16.mxu0 %v5285
        %5317 = vmatpush1.bf16.msra.mxu0 %v5284
        %5318 = vmatprep.subr.bf16.mxu0 %v5287
        %5319 = vmatpush1.bf16.msra.mxu0 %v5286
        %5320 = vmatprep.subr.bf16.mxu0 %v5289
        %5321 = vmatpush1.bf16.msra.mxu0 %v5288
        %5322 = vmatprep.subr.bf16.mxu0 %v5291
        %5323 = vmatpush1.bf16.msra.mxu0 %v5290
        %5324 = vmatprep.subr.bf16.mxu0 %v5293
        %5325 = vmatpush1.bf16.msra.mxu0 %v5292
        %5326 = vmatprep.subr.bf16.mxu0 %v5295
        %5327 = vmatpush1.bf16.msra.mxu0 %v5294
        %5328 = vmatprep.subr.bf16.mxu0 %v5297
        %5329 = vmatpush1.bf16.msra.mxu0 %v5296
        %5330 = vmatprep.subr.bf16.mxu0 %v5299
        %5331 = vmatpush1.bf16.msra.mxu0 %v5298
        %5332 = vmatprep.subr.bf16.mxu0 %v5301
        %5333 = vmatpush1.bf16.msra.mxu0 %v5300
        %5334 = vmatprep.subr.bf16.mxu0 %v5303
        %5335 = vmatpush1.bf16.msra.mxu0 %v5302
        %5336 = vmatprep.subr.bf16.mxu0 %v5305
        %5337 = vmatpush1.bf16.msra.mxu0 %v5304
        %5338 = vmatprep.subr.bf16.mxu0 %v5307
        %5339 = vmatpush1.bf16.msra.mxu0 %v5306
        %5340 = vmatprep.subr.bf16.mxu0 %v5309
        %5341 = vmatpush1.bf16.msra.mxu0 %v5308
        %5342 = vmatprep.subr.bf16.mxu0 %v5311
        %5343 = vmatpush1.bf16.msra.mxu0 %v5310
        %5344 = vmatprep.subr.bf16.mxu0 %v5313
        %5345 = vmatpush1.bf16.msra.mxu0 %v5312
        %5346 = vmatprep.mubr.bf16.mxu0 %v4690
        %5347 = vmatmul.mubr.bf16.gmra.mrb[0].mxu0 %v4689
        %v5348 = vpop.f32.mrb[0].mxu0
        %v5349 = vadd.f32 0.0, %v5348
        %v5350 = vpop.f32.mrb[0].mxu0
        %v5351 = vadd.f32 0.0, %v5350
        %v5352 = vpop.f32.mrb[0].mxu0
        %v5353 = vadd.f32 0.0, %v5352
        %v5354 = vpop.f32.mrb[0].mxu0
        %v5355 = vadd.f32 0.0, %v5354
        %5356 = vmatprep.mubr.bf16.mxu0 %v4692
        %5357 = vmatmul.mubr.bf16.gmra.mrb[0].mxu0 %v4691
        %v5358 = vpop.f32.mrb[0].mxu0
        %v5359 = vadd.f32 0.0, %v5358
        %v5360 = vpop.f32.mrb[0].mxu0
        %v5361 = vadd.f32 0.0, %v5360
        %v5362 = vpop.f32.mrb[0].mxu0
        %v5363 = vadd.f32 0.0, %v5362
        %v5364 = vpop.f32.mrb[0].mxu0
        %v5365 = vadd.f32 0.0, %v5364
        %5366 = vmatprep.mubr.bf16.mxu0 %v4694
        %5367 = vmatmul.mubr.bf16.gmra.mrb[0].mxu0 %v4693
        %v5368 = vpop.f32.mrb[0].mxu0
        %v5369 = vadd.f32 0.0, %v5368
        %v5370 = vpop.f32.mrb[0].mxu0
        %v5371 = vadd.f32 0.0, %v5370
        %v5372 = vpop.f32.mrb[0].mxu0
        %v5373 = vadd.f32 0.0, %v5372
        %v5374 = vpop.f32.mrb[0].mxu0
        %v5375 = vadd.f32 0.0, %v5374
        %5376 = vmatprep.mubr.bf16.mxu0 %v4696
        %5377 = vmatmul.mubr.bf16.gmra.mrb[0].mxu0 %v4695
        %v5378 = vpop.f32.mrb[0].mxu0
        %v5379 = vadd.f32 0.0, %v5378
        %v5380 = vpop.f32.mrb[0].mxu0
        %v5381 = vadd.f32 0.0, %v5380
        %v5382 = vpop.f32.mrb[0].mxu0
        %v5383 = vadd.f32 0.0, %v5382
        %v5384 = vpop.f32.mrb[0].mxu0
        %v5385 = vadd.f32 0.0, %v5384
        %5386 = vmatprep.mubr.bf16.mxu0 %v4698
        %5387 = vmatmul.mubr.bf16.gmra.mrb[0].mxu0 %v4697
        %v5388 = vpop.f32.mrb[0].mxu0
        %v5389 = vadd.f32 0.0, %v5388
        %v5390 = vpop.f32.mrb[0].mxu0
        %v5391 = vadd.f32 0.0, %v5390
        %v5392 = vpop.f32.mrb[0].mxu0
        %v5393 = vadd.f32 0.0, %v5392
        %v5394 = vpop.f32.mrb[0].mxu0
        %v5395 = vadd.f32 0.0, %v5394
        %5396 = vmatprep.mubr.bf16.mxu0 %v4700
        %5397 = vmatmul.mubr.bf16.gmra.mrb[0].mxu0 %v4699
        %v5398 = vpop.f32.mrb[0].mxu0
        %v5399 = vadd.f32 0.0, %v5398
        %v5400 = vpop.f32.mrb[0].mxu0
        %v5401 = vadd.f32 0.0, %v5400
        %v5402 = vpop.f32.mrb[0].mxu0
        %v5403 = vadd.f32 0.0, %v5402
        %v5404 = vpop.f32.mrb[0].mxu0
        %v5405 = vadd.f32 0.0, %v5404
        %5406 = vmatprep.mubr.bf16.mxu0 %v4702
        %5407 = vmatmul.mubr.bf16.gmra.mrb[0].mxu0 %v4701
        %v5408 = vpop.f32.mrb[0].mxu0
        %v5409 = vadd.f32 0.0, %v5408
        %v5410 = vpop.f32.mrb[0].mxu0
        %v5411 = vadd.f32 0.0, %v5410
        %v5412 = vpop.f32.mrb[0].mxu0
        %v5413 = vadd.f32 0.0, %v5412
        %v5414 = vpop.f32.mrb[0].mxu0
        %v5415 = vadd.f32 0.0, %v5414
        %5416 = vmatprep.mubr.bf16.mxu0 %v4704
        %5417 = vmatmul.mubr.bf16.gmra.mrb[0].mxu0 %v4703
        %v5418 = vpop.f32.mrb[0].mxu0
        %v5419 = vadd.f32 0.0, %v5418
        %v5420 = vpop.f32.mrb[0].mxu0
        %v5421 = vadd.f32 0.0, %v5420
        %v5422 = vpop.f32.mrb[0].mxu0
        %v5423 = vadd.f32 0.0, %v5422
        %v5424 = vpop.f32.mrb[0].mxu0
        %v5425 = vadd.f32 0.0, %v5424
        %5426 = vdwg.mxu0
        %v5427 = vpack.c.bf16 %v5353, %v5349
        %v5428 = vpack.c.bf16 %v5355, %v5351
        %v5429 = vpack.c.bf16 %v5363, %v5359
        %v5430 = vpack.c.bf16 %v5365, %v5361
        %v5431 = vpack.c.bf16 %v5373, %v5369
        %v5432 = vpack.c.bf16 %v5375, %v5371
        %v5433 = vpack.c.bf16 %v5383, %v5379
        %v5434 = vpack.c.bf16 %v5385, %v5381
        %v5435 = vpack.c.bf16 %v5393, %v5389
        %v5436 = vpack.c.bf16 %v5395, %v5391
        %v5437 = vpack.c.bf16 %v5403, %v5399
        %v5438 = vpack.c.bf16 %v5405, %v5401
        %v5439 = vpack.c.bf16 %v5413, %v5409
        %v5440 = vpack.c.bf16 %v5415, %v5411
        %v5441 = vpack.c.bf16 %v5423, %v5419
        %v5442 = vpack.c.bf16 %v5425, %v5421
        %v5443 = vld [vmem:[%s4] sm:$0xff]
        %v5444 = vld [vmem:[%s4 + $0x8] sm:$0xff]
        %v5445 = vld [vmem:[%s4 + $0x10] sm:$0xff]
        %v5446 = vld [vmem:[%s4 + $0x18] sm:$0xff]
        %v5447 = vld [vmem:[%s4 + $0x20] sm:$0xff]
        %v5448 = vld [vmem:[%s4 + $0x28] sm:$0xff]
        %v5449 = vld [vmem:[%s4 + $0x30] sm:$0xff]
        %v5450 = vld [vmem:[%s4 + $0x38] sm:$0xff]
        %v5451 = vld [vmem:[%s4 + $0x40] sm:$0xff]
        %v5452 = vld [vmem:[%s4 + $0x48] sm:$0xff]
        %v5453 = vld [vmem:[%s4 + $0x50] sm:$0xff]
        %v5454 = vld [vmem:[%s4 + $0x58] sm:$0xff]
        %v5455 = vld [vmem:[%s4 + $0x60] sm:$0xff]
        %v5456 = vld [vmem:[%s4 + $0x68] sm:$0xff]
        %v5457 = vld [vmem:[%s4 + $0x70] sm:$0xff]
        %v5458 = vld [vmem:[%s4 + $0x78] sm:$0xff]
        %v5459 = vld [vmem:[%s4 + $0x80] sm:$0xff]
        %v5460 = vld [vmem:[%s4 + $0x88] sm:$0xff]
        %v5461 = vld [vmem:[%s4 + $0x90] sm:$0xff]
        %v5462 = vld [vmem:[%s4 + $0x98] sm:$0xff]
        %v5463 = vld [vmem:[%s4 + $0xa0] sm:$0xff]
        %v5464 = vld [vmem:[%s4 + $0xa8] sm:$0xff]
        %v5465 = vld [vmem:[%s4 + $0xb0] sm:$0xff]
        %v5466 = vld [vmem:[%s4 + $0xb8] sm:$0xff]
        %v5467 = vld [vmem:[%s4 + $0xc0] sm:$0xff]
        %v5468 = vld [vmem:[%s4 + $0xc8] sm:$0xff]
        %v5469 = vld [vmem:[%s4 + $0xd0] sm:$0xff]
        %v5470 = vld [vmem:[%s4 + $0xd8] sm:$0xff]
        %v5471 = vld [vmem:[%s4 + $0xe0] sm:$0xff]
        %v5472 = vld [vmem:[%s4 + $0xe8] sm:$0xff]
        %v5473 = vld [vmem:[%s4 + $0xf0] sm:$0xff]
        %v5474 = vld [vmem:[%s4 + $0xf8] sm:$0xff]
        %v5507 = vunpack.c.l.b16 %v5443
        %v5508 = vunpack.c.h.b16 %v5443
        %v5509 = vunpack.c.l.b16 %v5444
        %v5510 = vunpack.c.h.b16 %v5444
        %v5511 = vunpack.c.l.b16 %v5445
        %v5512 = vunpack.c.h.b16 %v5445
        %v5513 = vunpack.c.l.b16 %v5446
        %v5514 = vunpack.c.h.b16 %v5446
        %v5515 = vunpack.c.l.b16 %v5447
        %v5516 = vunpack.c.h.b16 %v5447
        %v5517 = vunpack.c.l.b16 %v5448
        %v5518 = vunpack.c.h.b16 %v5448
        %v5519 = vunpack.c.l.b16 %v5449
        %v5520 = vunpack.c.h.b16 %v5449
        %v5521 = vunpack.c.l.b16 %v5450
        %v5522 = vunpack.c.h.b16 %v5450
        %v5523 = vunpack.c.l.b16 %v5451
        %v5524 = vunpack.c.h.b16 %v5451
        %v5525 = vunpack.c.l.b16 %v5452
        %v5526 = vunpack.c.h.b16 %v5452
        %v5527 = vunpack.c.l.b16 %v5453
        %v5528 = vunpack.c.h.b16 %v5453
        %v5529 = vunpack.c.l.b16 %v5454
        %v5530 = vunpack.c.h.b16 %v5454
        %v5531 = vunpack.c.l.b16 %v5455
        %v5532 = vunpack.c.h.b16 %v5455
        %v5533 = vunpack.c.l.b16 %v5456
        %v5534 = vunpack.c.h.b16 %v5456
        %v5535 = vunpack.c.l.b16 %v5457
        %v5536 = vunpack.c.h.b16 %v5457
        %v5537 = vunpack.c.l.b16 %v5458
        %v5538 = vunpack.c.h.b16 %v5458
        %v5539 = vunpack.c.l.b16 %v5459
        %v5540 = vunpack.c.h.b16 %v5459
        %v5541 = vunpack.c.l.b16 %v5460
        %v5542 = vunpack.c.h.b16 %v5460
        %v5543 = vunpack.c.l.b16 %v5461
        %v5544 = vunpack.c.h.b16 %v5461
        %v5545 = vunpack.c.l.b16 %v5462
        %v5546 = vunpack.c.h.b16 %v5462
        %v5547 = vunpack.c.l.b16 %v5463
        %v5548 = vunpack.c.h.b16 %v5463
        %v5549 = vunpack.c.l.b16 %v5464
        %v5550 = vunpack.c.h.b16 %v5464
        %v5551 = vunpack.c.l.b16 %v5465
        %v5552 = vunpack.c.h.b16 %v5465
        %v5553 = vunpack.c.l.b16 %v5466
        %v5554 = vunpack.c.h.b16 %v5466
        %v5555 = vunpack.c.l.b16 %v5467
        %v5556 = vunpack.c.h.b16 %v5467
        %v5557 = vunpack.c.l.b16 %v5468
        %v5558 = vunpack.c.h.b16 %v5468
        %v5559 = vunpack.c.l.b16 %v5469
        %v5560 = vunpack.c.h.b16 %v5469
        %v5561 = vunpack.c.l.b16 %v5470
        %v5562 = vunpack.c.h.b16 %v5470
        %v5563 = vunpack.c.l.b16 %v5471
        %v5564 = vunpack.c.h.b16 %v5471
        %v5565 = vunpack.c.l.b16 %v5472
        %v5566 = vunpack.c.h.b16 %v5472
        %v5567 = vunpack.c.l.b16 %v5473
        %v5568 = vunpack.c.h.b16 %v5473
        %v5569 = vunpack.c.l.b16 %v5474
        %v5570 = vunpack.c.h.b16 %v5474
        %v5571 = vpack.c.b16 %v5509, %v5507
        %v5572 = vpack.c.b16 %v5510, %v5508
        %v5573 = vpack.c.b16 %v5513, %v5511
        %v5574 = vpack.c.b16 %v5514, %v5512
        %v5575 = vpack.c.b16 %v5517, %v5515
        %v5576 = vpack.c.b16 %v5518, %v5516
        %v5577 = vpack.c.b16 %v5521, %v5519
        %v5578 = vpack.c.b16 %v5522, %v5520
        %v5579 = vpack.c.b16 %v5525, %v5523
        %v5580 = vpack.c.b16 %v5526, %v5524
        %v5581 = vpack.c.b16 %v5529, %v5527
        %v5582 = vpack.c.b16 %v5530, %v5528
        %v5583 = vpack.c.b16 %v5533, %v5531
        %v5584 = vpack.c.b16 %v5534, %v5532
        %v5585 = vpack.c.b16 %v5537, %v5535
        %v5586 = vpack.c.b16 %v5538, %v5536
        %v5587 = vpack.c.b16 %v5541, %v5539
        %v5588 = vpack.c.b16 %v5542, %v5540
        %v5589 = vpack.c.b16 %v5545, %v5543
        %v5590 = vpack.c.b16 %v5546, %v5544
        %v5591 = vpack.c.b16 %v5549, %v5547
        %v5592 = vpack.c.b16 %v5550, %v5548
        %v5593 = vpack.c.b16 %v5553, %v5551
        %v5594 = vpack.c.b16 %v5554, %v5552
        %v5595 = vpack.c.b16 %v5557, %v5555
        %v5596 = vpack.c.b16 %v5558, %v5556
        %v5597 = vpack.c.b16 %v5561, %v5559
        %v5598 = vpack.c.b16 %v5562, %v5560
        %v5599 = vpack.c.b16 %v5565, %v5563
        %v5600 = vpack.c.b16 %v5566, %v5564
        %v5601 = vpack.c.b16 %v5569, %v5567
        %v5602 = vpack.c.b16 %v5570, %v5568
        %5635 = vmatprep.subr.bf16.mxu0 %v5572
        %5636 = vmatpush1.bf16.msra.mxu0 %v5571
        %5637 = vmatprep.subr.bf16.mxu0 %v5574
        %5638 = vmatpush1.bf16.msra.mxu0 %v5573
        %5639 = vmatprep.subr.bf16.mxu0 %v5576
        %5640 = vmatpush1.bf16.msra.mxu0 %v5575
        %5641 = vmatprep.subr.bf16.mxu0 %v5578
        %5642 = vmatpush1.bf16.msra.mxu0 %v5577
        %5643 = vmatprep.subr.bf16.mxu0 %v5580
        %5644 = vmatpush1.bf16.msra.mxu0 %v5579
        %5645 = vmatprep.subr.bf16.mxu0 %v5582
        %5646 = vmatpush1.bf16.msra.mxu0 %v5581
        %5647 = vmatprep.subr.bf16.mxu0 %v5584
        %5648 = vmatpush1.bf16.msra.mxu0 %v5583
        %5649 = vmatprep.subr.bf16.mxu0 %v5586
        %5650 = vmatpush1.bf16.msra.mxu0 %v5585
        %5651 = vmatprep.subr.bf16.mxu0 %v5588
        %5652 = vmatpush1.bf16.msra.mxu0 %v5587
        %5653 = vmatprep.subr.bf16.mxu0 %v5590
        %5654 = vmatpush1.bf16.msra.mxu0 %v5589
        %5655 = vmatprep.subr.bf16.mxu0 %v5592
        %5656 = vmatpush1.bf16.msra.mxu0 %v5591
        %5657 = vmatprep.subr.bf16.mxu0 %v5594
        %5658 = vmatpush1.bf16.msra.mxu0 %v5593
        %5659 = vmatprep.subr.bf16.mxu0 %v5596
        %5660 = vmatpush1.bf16.msra.mxu0 %v5595
        %5661 = vmatprep.subr.bf16.mxu0 %v5598
        %5662 = vmatpush1.bf16.msra.mxu0 %v5597
        %5663 = vmatprep.subr.bf16.mxu0 %v5600
        %5664 = vmatpush1.bf16.msra.mxu0 %v5599
        %5665 = vmatprep.subr.bf16.mxu0 %v5602
        %5666 = vmatpush1.bf16.msra.mxu0 %v5601
        %5667 = vmatprep.mubr.bf16.mxu0 %v3169
        %5668 = vmatmul.mubr.bf16.gmra.mrb[0].mxu0 %v3168
        %v5669 = vpop.f32.mrb[0].mxu0
        %v5670 = vadd.f32 0.0, %v5669
        %v5671 = vpop.f32.mrb[0].mxu0
        %v5672 = vadd.f32 0.0, %v5671
        %v5673 = vpop.f32.mrb[0].mxu0
        %v5674 = vadd.f32 0.0, %v5673
        %v5675 = vpop.f32.mrb[0].mxu0
        %v5676 = vadd.f32 0.0, %v5675
        %5677 = vmatprep.mubr.bf16.mxu0 %v3171
        %5678 = vmatmul.mubr.bf16.gmra.mrb[0].mxu0 %v3170
        %v5679 = vpop.f32.mrb[0].mxu0
        %v5680 = vadd.f32 0.0, %v5679
        %v5681 = vpop.f32.mrb[0].mxu0
        %v5682 = vadd.f32 0.0, %v5681
        %v5683 = vpop.f32.mrb[0].mxu0
        %v5684 = vadd.f32 0.0, %v5683
        %v5685 = vpop.f32.mrb[0].mxu0
        %v5686 = vadd.f32 0.0, %v5685
        %5687 = vmatprep.mubr.bf16.mxu0 %v3173
        %5688 = vmatmul.mubr.bf16.gmra.mrb[0].mxu0 %v3172
        %v5689 = vpop.f32.mrb[0].mxu0
        %v5690 = vadd.f32 0.0, %v5689
        %v5691 = vpop.f32.mrb[0].mxu0
        %v5692 = vadd.f32 0.0, %v5691
        %v5693 = vpop.f32.mrb[0].mxu0
        %v5694 = vadd.f32 0.0, %v5693
        %v5695 = vpop.f32.mrb[0].mxu0
        %v5696 = vadd.f32 0.0, %v5695
        %5697 = vmatprep.mubr.bf16.mxu0 %v3175
        %5698 = vmatmul.mubr.bf16.gmra.mrb[0].mxu0 %v3174
        %v5699 = vpop.f32.mrb[0].mxu0
        %v5700 = vadd.f32 0.0, %v5699
        %v5701 = vpop.f32.mrb[0].mxu0
        %v5702 = vadd.f32 0.0, %v5701
        %v5703 = vpop.f32.mrb[0].mxu0
        %v5704 = vadd.f32 0.0, %v5703
        %v5705 = vpop.f32.mrb[0].mxu0
        %v5706 = vadd.f32 0.0, %v5705
        %5707 = vmatprep.mubr.bf16.mxu0 %v3177
        %5708 = vmatmul.mubr.bf16.gmra.mrb[0].mxu0 %v3176
        %v5709 = vpop.f32.mrb[0].mxu0
        %v5710 = vadd.f32 0.0, %v5709
        %v5711 = vpop.f32.mrb[0].mxu0
        %v5712 = vadd.f32 0.0, %v5711
        %v5713 = vpop.f32.mrb[0].mxu0
        %v5714 = vadd.f32 0.0, %v5713
        %v5715 = vpop.f32.mrb[0].mxu0
        %v5716 = vadd.f32 0.0, %v5715
        %5717 = vmatprep.mubr.bf16.mxu0 %v3179
        %5718 = vmatmul.mubr.bf16.gmra.mrb[0].mxu0 %v3178
        %v5719 = vpop.f32.mrb[0].mxu0
        %v5720 = vadd.f32 0.0, %v5719
        %v5721 = vpop.f32.mrb[0].mxu0
        %v5722 = vadd.f32 0.0, %v5721
        %v5723 = vpop.f32.mrb[0].mxu0
        %v5724 = vadd.f32 0.0, %v5723
        %v5725 = vpop.f32.mrb[0].mxu0
        %v5726 = vadd.f32 0.0, %v5725
        %5727 = vmatprep.mubr.bf16.mxu0 %v3181
        %5728 = vmatmul.mubr.bf16.gmra.mrb[0].mxu0 %v3180
        %v5729 = vpop.f32.mrb[0].mxu0
        %v5730 = vadd.f32 0.0, %v5729
        %v5731 = vpop.f32.mrb[0].mxu0
        %v5732 = vadd.f32 0.0, %v5731
        %v5733 = vpop.f32.mrb[0].mxu0
        %v5734 = vadd.f32 0.0, %v5733
        %v5735 = vpop.f32.mrb[0].mxu0
        %v5736 = vadd.f32 0.0, %v5735
        %5737 = vmatprep.mubr.bf16.mxu0 %v3183
        %5738 = vmatmul.mubr.bf16.gmra.mrb[0].mxu0 %v3182
        %v5739 = vpop.f32.mrb[0].mxu0
        %v5740 = vadd.f32 0.0, %v5739
        %v5741 = vpop.f32.mrb[0].mxu0
        %v5742 = vadd.f32 0.0, %v5741
        %v5743 = vpop.f32.mrb[0].mxu0
        %v5744 = vadd.f32 0.0, %v5743
        %v5745 = vpop.f32.mrb[0].mxu0
        %v5746 = vadd.f32 0.0, %v5745
        %5747 = vmatprep.mubr.bf16.mxu0 %v4690
        %5748 = vmatmul.mubr.bf16.gmra.mrb[0].mxu0 %v4689
        %v5749 = vpop.f32.mrb[0].mxu0
        %v5750 = vadd.f32 0.0, %v5749
        %v5751 = vpop.f32.mrb[0].mxu0
        %v5752 = vadd.f32 0.0, %v5751
        %v5753 = vpop.f32.mrb[0].mxu0
        %v5754 = vadd.f32 0.0, %v5753
        %v5755 = vpop.f32.mrb[0].mxu0
        %v5756 = vadd.f32 0.0, %v5755
        %5757 = vmatprep.mubr.bf16.mxu0 %v4692
        %5758 = vmatmul.mubr.bf16.gmra.mrb[0].mxu0 %v4691
        %v5759 = vpop.f32.mrb[0].mxu0
        %v5760 = vadd.f32 0.0, %v5759
        %v5761 = vpop.f32.mrb[0].mxu0
        %v5762 = vadd.f32 0.0, %v5761
        %v5763 = vpop.f32.mrb[0].mxu0
        %v5764 = vadd.f32 0.0, %v5763
        %v5765 = vpop.f32.mrb[0].mxu0
        %v5766 = vadd.f32 0.0, %v5765
        %5767 = vmatprep.mubr.bf16.mxu0 %v4694
        %5768 = vmatmul.mubr.bf16.gmra.mrb[0].mxu0 %v4693
        %v5769 = vpop.f32.mrb[0].mxu0
        %v5770 = vadd.f32 0.0, %v5769
        %v5771 = vpop.f32.mrb[0].mxu0
        %v5772 = vadd.f32 0.0, %v5771
        %v5773 = vpop.f32.mrb[0].mxu0
        %v5774 = vadd.f32 0.0, %v5773
        %v5775 = vpop.f32.mrb[0].mxu0
        %v5776 = vadd.f32 0.0, %v5775
        %5777 = vmatprep.mubr.bf16.mxu0 %v4696
        %5778 = vmatmul.mubr.bf16.gmra.mrb[0].mxu0 %v4695
        %v5779 = vpop.f32.mrb[0].mxu0
        %v5780 = vadd.f32 0.0, %v5779
        %v5781 = vpop.f32.mrb[0].mxu0
        %v5782 = vadd.f32 0.0, %v5781
        %v5783 = vpop.f32.mrb[0].mxu0
        %v5784 = vadd.f32 0.0, %v5783
        %v5785 = vpop.f32.mrb[0].mxu0
        %v5786 = vadd.f32 0.0, %v5785
        %5787 = vmatprep.mubr.bf16.mxu0 %v4698
        %5788 = vmatmul.mubr.bf16.gmra.mrb[0].mxu0 %v4697
        %v5789 = vpop.f32.mrb[0].mxu0
        %v5790 = vadd.f32 0.0, %v5789
        %v5791 = vpop.f32.mrb[0].mxu0
        %v5792 = vadd.f32 0.0, %v5791
        %v5793 = vpop.f32.mrb[0].mxu0
        %v5794 = vadd.f32 0.0, %v5793
        %v5795 = vpop.f32.mrb[0].mxu0
        %v5796 = vadd.f32 0.0, %v5795
        %5797 = vmatprep.mubr.bf16.mxu0 %v4700
        %5798 = vmatmul.mubr.bf16.gmra.mrb[0].mxu0 %v4699
        %v5799 = vpop.f32.mrb[0].mxu0
        %v5800 = vadd.f32 0.0, %v5799
        %v5801 = vpop.f32.mrb[0].mxu0
        %v5802 = vadd.f32 0.0, %v5801
        %v5803 = vpop.f32.mrb[0].mxu0
        %v5804 = vadd.f32 0.0, %v5803
        %v5805 = vpop.f32.mrb[0].mxu0
        %v5806 = vadd.f32 0.0, %v5805
        %5807 = vmatprep.mubr.bf16.mxu0 %v4702
        %5808 = vmatmul.mubr.bf16.gmra.mrb[0].mxu0 %v4701
        %v5809 = vpop.f32.mrb[0].mxu0
        %v5810 = vadd.f32 0.0, %v5809
        %v5811 = vpop.f32.mrb[0].mxu0
        %v5812 = vadd.f32 0.0, %v5811
        %v5813 = vpop.f32.mrb[0].mxu0
        %v5814 = vadd.f32 0.0, %v5813
        %v5815 = vpop.f32.mrb[0].mxu0
        %v5816 = vadd.f32 0.0, %v5815
        %5817 = vmatprep.mubr.bf16.mxu0 %v4704
        %5818 = vmatmul.mubr.bf16.gmra.mrb[0].mxu0 %v4703
        %v5819 = vpop.f32.mrb[0].mxu0
        %v5820 = vadd.f32 0.0, %v5819
        %v5821 = vpop.f32.mrb[0].mxu0
        %v5822 = vadd.f32 0.0, %v5821
        %v5823 = vpop.f32.mrb[0].mxu0
        %v5824 = vadd.f32 0.0, %v5823
        %v5825 = vpop.f32.mrb[0].mxu0
        %v5826 = vadd.f32 0.0, %v5825
        %5827 = vdwg.mxu0
        %v5828 = vmul.f32 %v5670, 0.5
        %v5829 = vmul.f32 %v5672, 0.5
        %v5830 = vmul.f32 %v5674, 0.5
        %v5831 = vmul.f32 %v5676, 0.5
        %v5832 = vmul.f32 %v5680, 0.5
        %v5833 = vmul.f32 %v5682, 0.5
        %v5834 = vmul.f32 %v5684, 0.5
        %v5835 = vmul.f32 %v5686, 0.5
        %v5836 = vmul.f32 %v5690, 0.5
        %v5837 = vmul.f32 %v5692, 0.5
        %v5838 = vmul.f32 %v5694, 0.5
        %v5839 = vmul.f32 %v5696, 0.5
        %v5840 = vmul.f32 %v5700, 0.5
        %v5841 = vmul.f32 %v5702, 0.5
        %v5842 = vmul.f32 %v5704, 0.5
        %v5843 = vmul.f32 %v5706, 0.5
        %v5844 = vmul.f32 %v5710, 0.5
        %v5845 = vmul.f32 %v5712, 0.5
        %v5846 = vmul.f32 %v5714, 0.5
        %v5847 = vmul.f32 %v5716, 0.5
        %v5848 = vmul.f32 %v5720, 0.5
        %v5849 = vmul.f32 %v5722, 0.5
        %v5850 = vmul.f32 %v5724, 0.5
        %v5851 = vmul.f32 %v5726, 0.5
        %v5852 = vmul.f32 %v5730, 0.5
        %v5853 = vmul.f32 %v5732, 0.5
        %v5854 = vmul.f32 %v5734, 0.5
        %v5855 = vmul.f32 %v5736, 0.5
        %v5856 = vmul.f32 %v5740, 0.5
        %v5857 = vmul.f32 %v5742, 0.5
        %v5858 = vmul.f32 %v5744, 0.5
        %v5859 = vmul.f32 %v5746, 0.5
        %v5860 = vmul.f32 %v5750, 0.5
        %v5861 = vmul.f32 %v5752, 0.5
        %v5862 = vmul.f32 %v5754, 0.5
        %v5863 = vmul.f32 %v5756, 0.5
        %v5864 = vmul.f32 %v5760, 0.5
        %v5865 = vmul.f32 %v5762, 0.5
        %v5866 = vmul.f32 %v5764, 0.5
        %v5867 = vmul.f32 %v5766, 0.5
        %v5868 = vmul.f32 %v5770, 0.5
        %v5869 = vmul.f32 %v5772, 0.5
        %v5870 = vmul.f32 %v5774, 0.5
        %v5871 = vmul.f32 %v5776, 0.5
        %v5872 = vmul.f32 %v5780, 0.5
        %v5873 = vmul.f32 %v5782, 0.5
        %v5874 = vmul.f32 %v5784, 0.5
        %v5875 = vmul.f32 %v5786, 0.5
        %v5876 = vmul.f32 %v5790, 0.5
        %v5877 = vmul.f32 %v5792, 0.5
        %v5878 = vmul.f32 %v5794, 0.5
        %v5879 = vmul.f32 %v5796, 0.5
        %v5880 = vmul.f32 %v5800, 0.5
        %v5881 = vmul.f32 %v5802, 0.5
        %v5882 = vmul.f32 %v5804, 0.5
        %v5883 = vmul.f32 %v5806, 0.5
        %v5884 = vmul.f32 %v5810, 0.5
        %v5885 = vmul.f32 %v5812, 0.5
        %v5886 = vmul.f32 %v5814, 0.5
        %v5887 = vmul.f32 %v5816, 0.5
        %v5888 = vmul.f32 %v5820, 0.5
        %v5889 = vmul.f32 %v5822, 0.5
        %v5890 = vmul.f32 %v5824, 0.5
        %v5891 = vmul.f32 %v5826, 0.5
        %v5892 = vmul.f32 %v5670, 0.70710677
        %v5893 = vmul.f32 %v5672, 0.70710677
        %v5894 = vmul.f32 %v5674, 0.70710677
        %v5895 = vmul.f32 %v5676, 0.70710677
        %v5896 = vmul.f32 %v5680, 0.70710677
        %v5897 = vmul.f32 %v5682, 0.70710677
        %v5898 = vmul.f32 %v5684, 0.70710677
        %v5899 = vmul.f32 %v5686, 0.70710677
        %v5900 = vmul.f32 %v5690, 0.70710677
        %v5901 = vmul.f32 %v5692, 0.70710677
        %v5902 = vmul.f32 %v5694, 0.70710677
        %v5903 = vmul.f32 %v5696, 0.70710677
        %v5904 = vmul.f32 %v5700, 0.70710677
        %v5905 = vmul.f32 %v5702, 0.70710677
        %v5906 = vmul.f32 %v5704, 0.70710677
        %v5907 = vmul.f32 %v5706, 0.70710677
        %v5908 = vmul.f32 %v5710, 0.70710677
        %v5909 = vmul.f32 %v5712, 0.70710677
        %v5910 = vmul.f32 %v5714, 0.70710677
        %v5911 = vmul.f32 %v5716, 0.70710677
        %v5912 = vmul.f32 %v5720, 0.70710677
        %v5913 = vmul.f32 %v5722, 0.70710677
        %v5914 = vmul.f32 %v5724, 0.70710677
        %v5915 = vmul.f32 %v5726, 0.70710677
        %v5916 = vmul.f32 %v5730, 0.70710677
        %v5917 = vmul.f32 %v5732, 0.70710677
        %v5918 = vmul.f32 %v5734, 0.70710677
        %v5919 = vmul.f32 %v5736, 0.70710677
        %v5920 = vmul.f32 %v5740, 0.70710677
        %v5921 = vmul.f32 %v5742, 0.70710677
        %v5922 = vmul.f32 %v5744, 0.70710677
        %v5923 = vmul.f32 %v5746, 0.70710677
        %v5924 = vmul.f32 %v5750, 0.70710677
        %v5925 = vmul.f32 %v5752, 0.70710677
        %v5926 = vmul.f32 %v5754, 0.70710677
        %v5927 = vmul.f32 %v5756, 0.70710677
        %v5928 = vmul.f32 %v5760, 0.70710677
        %v5929 = vmul.f32 %v5762, 0.70710677
        %v5930 = vmul.f32 %v5764, 0.70710677
        %v5931 = vmul.f32 %v5766, 0.70710677
        %v5932 = vmul.f32 %v5770, 0.70710677
        %v5933 = vmul.f32 %v5772, 0.70710677
        %v5934 = vmul.f32 %v5774, 0.70710677
        %v5935 = vmul.f32 %v5776, 0.70710677
        %v5936 = vmul.f32 %v5780, 0.70710677
        %v5937 = vmul.f32 %v5782, 0.70710677
        %v5938 = vmul.f32 %v5784, 0.70710677
        %v5939 = vmul.f32 %v5786, 0.70710677
        %v5940 = vmul.f32 %v5790, 0.70710677
        %v5941 = vmul.f32 %v5792, 0.70710677
        %v5942 = vmul.f32 %v5794, 0.70710677
        %v5943 = vmul.f32 %v5796, 0.70710677
        %v5944 = vmul.f32 %v5800, 0.70710677
        %v5945 = vmul.f32 %v5802, 0.70710677
        %v5946 = vmul.f32 %v5804, 0.70710677
        %v5947 = vmul.f32 %v5806, 0.70710677
        %v5948 = vmul.f32 %v5810, 0.70710677
        %v5949 = vmul.f32 %v5812, 0.70710677
        %v5950 = vmul.f32 %v5814, 0.70710677
        %v5951 = vmul.f32 %v5816, 0.70710677
        %v5952 = vmul.f32 %v5820, 0.70710677
        %v5953 = vmul.f32 %v5822, 0.70710677
        %v5954 = vmul.f32 %v5824, 0.70710677
        %v5955 = vmul.f32 %v5826, 0.70710677
        %v5956 = verf.f32.pop %v5892
        %v5957 = verf.f32.pop %v5893
        %v5958 = verf.f32.pop %v5894
        %v5959 = verf.f32.pop %v5895
        %v5960 = verf.f32.pop %v5896
        %v5961 = verf.f32.pop %v5897
        %v5962 = verf.f32.pop %v5898
        %v5963 = verf.f32.pop %v5899
        %v5964 = verf.f32.pop %v5900
        %v5965 = verf.f32.pop %v5901
        %v5966 = verf.f32.pop %v5902
        %v5967 = verf.f32.pop %v5903
        %v5968 = verf.f32.pop %v5904
        %v5969 = verf.f32.pop %v5905
        %v5970 = verf.f32.pop %v5906
        %v5971 = verf.f32.pop %v5907
        %v5972 = verf.f32.pop %v5908
        %v5973 = verf.f32.pop %v5909
        %v5974 = verf.f32.pop %v5910
        %v5975 = verf.f32.pop %v5911
        %v5976 = verf.f32.pop %v5912
        %v5977 = verf.f32.pop %v5913
        %v5978 = verf.f32.pop %v5914
        %v5979 = verf.f32.pop %v5915
        %v5980 = verf.f32.pop %v5916
        %v5981 = verf.f32.pop %v5917
        %v5982 = verf.f32.pop %v5918
        %v5983 = verf.f32.pop %v5919
        %v5984 = verf.f32.pop %v5920
        %v5985 = verf.f32.pop %v5921
        %v5986 = verf.f32.pop %v5922
        %v5987 = verf.f32.pop %v5923
        %v5988 = verf.f32.pop %v5924
        %v5989 = verf.f32.pop %v5925
        %v5990 = verf.f32.pop %v5926
        %v5991 = verf.f32.pop %v5927
        %v5992 = verf.f32.pop %v5928
        %v5993 = verf.f32.pop %v5929
        %v5994 = verf.f32.pop %v5930
        %v5995 = verf.f32.pop %v5931
        %v5996 = verf.f32.pop %v5932
        %v5997 = verf.f32.pop %v5933
        %v5998 = verf.f32.pop %v5934
        %v5999 = verf.f32.pop %v5935
        %v6000 = verf.f32.pop %v5936
        %v6001 = verf.f32.pop %v5937
        %v6002 = verf.f32.pop %v5938
        %v6003 = verf.f32.pop %v5939
        %v6004 = verf.f32.pop %v5940
        %v6005 = verf.f32.pop %v5941
        %v6006 = verf.f32.pop %v5942
        %v6007 = verf.f32.pop %v5943
        %v6008 = verf.f32.pop %v5944
        %v6009 = verf.f32.pop %v5945
        %v6010 = verf.f32.pop %v5946
        %v6011 = verf.f32.pop %v5947
        %v6012 = verf.f32.pop %v5948
        %v6013 = verf.f32.pop %v5949
        %v6014 = verf.f32.pop %v5950
        %v6015 = verf.f32.pop %v5951
        %v6016 = verf.f32.pop %v5952
        %v6017 = verf.f32.pop %v5953
        %v6018 = verf.f32.pop %v5954
        %v6019 = verf.f32.pop %v5955
        %v6020 = vadd.f32 %v5956, 1.0
        %v6021 = vadd.f32 %v5957, 1.0
        %v6022 = vadd.f32 %v5958, 1.0
        %v6023 = vadd.f32 %v5959, 1.0
        %v6024 = vadd.f32 %v5960, 1.0
        %v6025 = vadd.f32 %v5961, 1.0
        %v6026 = vadd.f32 %v5962, 1.0
        %v6027 = vadd.f32 %v5963, 1.0
        %v6028 = vadd.f32 %v5964, 1.0
        %v6029 = vadd.f32 %v5965, 1.0
        %v6030 = vadd.f32 %v5966, 1.0
        %v6031 = vadd.f32 %v5967, 1.0
        %v6032 = vadd.f32 %v5968, 1.0
        %v6033 = vadd.f32 %v5969, 1.0
        %v6034 = vadd.f32 %v5970, 1.0
        %v6035 = vadd.f32 %v5971, 1.0
        %v6036 = vadd.f32 %v5972, 1.0
        %v6037 = vadd.f32 %v5973, 1.0
        %v6038 = vadd.f32 %v5974, 1.0
        %v6039 = vadd.f32 %v5975, 1.0
        %v6040 = vadd.f32 %v5976, 1.0
        %v6041 = vadd.f32 %v5977, 1.0
        %v6042 = vadd.f32 %v5978, 1.0
        %v6043 = vadd.f32 %v5979, 1.0
        %v6044 = vadd.f32 %v5980, 1.0
        %v6045 = vadd.f32 %v5981, 1.0
        %v6046 = vadd.f32 %v5982, 1.0
        %v6047 = vadd.f32 %v5983, 1.0
        %v6048 = vadd.f32 %v5984, 1.0
        %v6049 = vadd.f32 %v5985, 1.0
        %v6050 = vadd.f32 %v5986, 1.0
        %v6051 = vadd.f32 %v5987, 1.0
        %v6052 = vadd.f32 %v5988, 1.0
        %v6053 = vadd.f32 %v5989, 1.0
        %v6054 = vadd.f32 %v5990, 1.0
        %v6055 = vadd.f32 %v5991, 1.0
        %v6056 = vadd.f32 %v5992, 1.0
        %v6057 = vadd.f32 %v5993, 1.0
        %v6058 = vadd.f32 %v5994, 1.0
        %v6059 = vadd.f32 %v5995, 1.0
        %v6060 = vadd.f32 %v5996, 1.0
        %v6061 = vadd.f32 %v5997, 1.0
        %v6062 = vadd.f32 %v5998, 1.0
        %v6063 = vadd.f32 %v5999, 1.0
        %v6064 = vadd.f32 %v6000, 1.0
        %v6065 = vadd.f32 %v6001, 1.0
        %v6066 = vadd.f32 %v6002, 1.0
        %v6067 = vadd.f32 %v6003, 1.0
        %v6068 = vadd.f32 %v6004, 1.0
        %v6069 = vadd.f32 %v6005, 1.0
        %v6070 = vadd.f32 %v6006, 1.0
        %v6071 = vadd.f32 %v6007, 1.0
        %v6072 = vadd.f32 %v6008, 1.0
        %v6073 = vadd.f32 %v6009, 1.0
        %v6074 = vadd.f32 %v6010, 1.0
        %v6075 = vadd.f32 %v6011, 1.0
        %v6076 = vadd.f32 %v6012, 1.0
        %v6077 = vadd.f32 %v6013, 1.0
        %v6078 = vadd.f32 %v6014, 1.0
        %v6079 = vadd.f32 %v6015, 1.0
        %v6080 = vadd.f32 %v6016, 1.0
        %v6081 = vadd.f32 %v6017, 1.0
        %v6082 = vadd.f32 %v6018, 1.0
        %v6083 = vadd.f32 %v6019, 1.0
        %v6084 = vmul.f32 %v5828, %v6020
        %v6085 = vmul.f32 %v5829, %v6021
        %v6086 = vmul.f32 %v5830, %v6022
        %v6087 = vmul.f32 %v5831, %v6023
        %v6088 = vmul.f32 %v5832, %v6024
        %v6089 = vmul.f32 %v5833, %v6025
        %v6090 = vmul.f32 %v5834, %v6026
        %v6091 = vmul.f32 %v5835, %v6027
        %v6092 = vmul.f32 %v5836, %v6028
        %v6093 = vmul.f32 %v5837, %v6029
        %v6094 = vmul.f32 %v5838, %v6030
        %v6095 = vmul.f32 %v5839, %v6031
        %v6096 = vmul.f32 %v5840, %v6032
        %v6097 = vmul.f32 %v5841, %v6033
        %v6098 = vmul.f32 %v5842, %v6034
        %v6099 = vmul.f32 %v5843, %v6035
        %v6100 = vmul.f32 %v5844, %v6036
        %v6101 = vmul.f32 %v5845, %v6037
        %v6102 = vmul.f32 %v5846, %v6038
        %v6103 = vmul.f32 %v5847, %v6039
        %v6104 = vmul.f32 %v5848, %v6040
        %v6105 = vmul.f32 %v5849, %v6041
        %v6106 = vmul.f32 %v5850, %v6042
        %v6107 = vmul.f32 %v5851, %v6043
        %v6108 = vmul.f32 %v5852, %v6044
        %v6109 = vmul.f32 %v5853, %v6045
        %v6110 = vmul.f32 %v5854, %v6046
        %v6111 = vmul.f32 %v5855, %v6047
        %v6112 = vmul.f32 %v5856, %v6048
        %v6113 = vmul.f32 %v5857, %v6049
        %v6114 = vmul.f32 %v5858, %v6050
        %v6115 = vmul.f32 %v5859, %v6051
        %v6116 = vmul.f32 %v5860, %v6052
        %v6117 = vmul.f32 %v5861, %v6053
        %v6118 = vmul.f32 %v5862, %v6054
        %v6119 = vmul.f32 %v5863, %v6055
        %v6120 = vmul.f32 %v5864, %v6056
        %v6121 = vmul.f32 %v5865, %v6057
        %v6122 = vmul.f32 %v5866, %v6058
        %v6123 = vmul.f32 %v5867, %v6059
        %v6124 = vmul.f32 %v5868, %v6060
        %v6125 = vmul.f32 %v5869, %v6061
        %v6126 = vmul.f32 %v5870, %v6062
        %v6127 = vmul.f32 %v5871, %v6063
        %v6128 = vmul.f32 %v5872, %v6064
        %v6129 = vmul.f32 %v5873, %v6065
        %v6130 = vmul.f32 %v5874, %v6066
        %v6131 = vmul.f32 %v5875, %v6067
        %v6132 = vmul.f32 %v5876, %v6068
        %v6133 = vmul.f32 %v5877, %v6069
        %v6134 = vmul.f32 %v5878, %v6070
        %v6135 = vmul.f32 %v5879, %v6071
        %v6136 = vmul.f32 %v5880, %v6072
        %v6137 = vmul.f32 %v5881, %v6073
        %v6138 = vmul.f32 %v5882, %v6074
        %v6139 = vmul.f32 %v5883, %v6075
        %v6140 = vmul.f32 %v5884, %v6076
        %v6141 = vmul.f32 %v5885, %v6077
        %v6142 = vmul.f32 %v5886, %v6078
        %v6143 = vmul.f32 %v5887, %v6079
        %v6144 = vmul.f32 %v5888, %v6080
        %v6145 = vmul.f32 %v5889, %v6081
        %v6146 = vmul.f32 %v5890, %v6082
        %v6147 = vmul.f32 %v5891, %v6083
        %v6148 = vpack.c.bf16 %v6086, %v6084
        %v6149 = vpack.c.bf16 %v6087, %v6085
        %v6150 = vpack.c.bf16 %v6090, %v6088
        %v6151 = vpack.c.bf16 %v6091, %v6089
        %v6152 = vpack.c.bf16 %v6094, %v6092
        %v6153 = vpack.c.bf16 %v6095, %v6093
        %v6154 = vpack.c.bf16 %v6098, %v6096
        %v6155 = vpack.c.bf16 %v6099, %v6097
        %v6156 = vpack.c.bf16 %v6102, %v6100
        %v6157 = vpack.c.bf16 %v6103, %v6101
        %v6158 = vpack.c.bf16 %v6106, %v6104
        %v6159 = vpack.c.bf16 %v6107, %v6105
        %v6160 = vpack.c.bf16 %v6110, %v6108
        %v6161 = vpack.c.bf16 %v6111, %v6109
        %v6162 = vpack.c.bf16 %v6114, %v6112
        %v6163 = vpack.c.bf16 %v6115, %v6113
        %v6164 = vpack.c.bf16 %v6118, %v6116
        %v6165 = vpack.c.bf16 %v6119, %v6117
        %v6166 = vpack.c.bf16 %v6122, %v6120
        %v6167 = vpack.c.bf16 %v6123, %v6121
        %v6168 = vpack.c.bf16 %v6126, %v6124
        %v6169 = vpack.c.bf16 %v6127, %v6125
        %v6170 = vpack.c.bf16 %v6130, %v6128
        %v6171 = vpack.c.bf16 %v6131, %v6129
        %v6172 = vpack.c.bf16 %v6134, %v6132
        %v6173 = vpack.c.bf16 %v6135, %v6133
        %v6174 = vpack.c.bf16 %v6138, %v6136
        %v6175 = vpack.c.bf16 %v6139, %v6137
        %v6176 = vpack.c.bf16 %v6142, %v6140
        %v6177 = vpack.c.bf16 %v6143, %v6141
        %v6178 = vpack.c.bf16 %v6146, %v6144
        %v6179 = vpack.c.bf16 %v6147, %v6145
        %v6180 = vld [vmem:[%s5] sm:$0xff]
        %v6181 = vld [vmem:[%s5 + $0x8] sm:$0xff]
        %v6182 = vld [vmem:[%s5 + $0x10] sm:$0xff]
        %v6183 = vld [vmem:[%s5 + $0x18] sm:$0xff]
        %v6184 = vld [vmem:[%s5 + $0x20] sm:$0xff]
        %v6185 = vld [vmem:[%s5 + $0x28] sm:$0xff]
        %v6186 = vld [vmem:[%s5 + $0x30] sm:$0xff]
        %v6187 = vld [vmem:[%s5 + $0x38] sm:$0xff]
        %v6188 = vld [vmem:[%s5 + $0x40] sm:$0xff]
        %v6189 = vld [vmem:[%s5 + $0x48] sm:$0xff]
        %v6190 = vld [vmem:[%s5 + $0x50] sm:$0xff]
        %v6191 = vld [vmem:[%s5 + $0x58] sm:$0xff]
        %v6192 = vld [vmem:[%s5 + $0x60] sm:$0xff]
        %v6193 = vld [vmem:[%s5 + $0x68] sm:$0xff]
        %v6194 = vld [vmem:[%s5 + $0x70] sm:$0xff]
        %v6195 = vld [vmem:[%s5 + $0x78] sm:$0xff]
        %v6196 = vld [vmem:[%s5 + $0x80] sm:$0xff]
        %v6197 = vld [vmem:[%s5 + $0x88] sm:$0xff]
        %v6198 = vld [vmem:[%s5 + $0x90] sm:$0xff]
        %v6199 = vld [vmem:[%s5 + $0x98] sm:$0xff]
        %v6200 = vld [vmem:[%s5 + $0xa0] sm:$0xff]
        %v6201 = vld [vmem:[%s5 + $0xa8] sm:$0xff]
        %v6202 = vld [vmem:[%s5 + $0xb0] sm:$0xff]
        %v6203 = vld [vmem:[%s5 + $0xb8] sm:$0xff]
        %v6204 = vld [vmem:[%s5 + $0xc0] sm:$0xff]
        %v6205 = vld [vmem:[%s5 + $0xc8] sm:$0xff]
        %v6206 = vld [vmem:[%s5 + $0xd0] sm:$0xff]
        %v6207 = vld [vmem:[%s5 + $0xd8] sm:$0xff]
        %v6208 = vld [vmem:[%s5 + $0xe0] sm:$0xff]
        %v6209 = vld [vmem:[%s5 + $0xe8] sm:$0xff]
        %v6210 = vld [vmem:[%s5 + $0xf0] sm:$0xff]
        %v6211 = vld [vmem:[%s5 + $0xf8] sm:$0xff]
        %v6212 = vld [vmem:[%s5 + $0x100] sm:$0xff]
        %v6213 = vld [vmem:[%s5 + $0x108] sm:$0xff]
        %v6214 = vld [vmem:[%s5 + $0x110] sm:$0xff]
        %v6215 = vld [vmem:[%s5 + $0x118] sm:$0xff]
        %v6216 = vld [vmem:[%s5 + $0x120] sm:$0xff]
        %v6217 = vld [vmem:[%s5 + $0x128] sm:$0xff]
        %v6218 = vld [vmem:[%s5 + $0x130] sm:$0xff]
        %v6219 = vld [vmem:[%s5 + $0x138] sm:$0xff]
        %v6220 = vld [vmem:[%s5 + $0x140] sm:$0xff]
        %v6221 = vld [vmem:[%s5 + $0x148] sm:$0xff]
        %v6222 = vld [vmem:[%s5 + $0x150] sm:$0xff]
        %v6223 = vld [vmem:[%s5 + $0x158] sm:$0xff]
        %v6224 = vld [vmem:[%s5 + $0x160] sm:$0xff]
        %v6225 = vld [vmem:[%s5 + $0x168] sm:$0xff]
        %v6226 = vld [vmem:[%s5 + $0x170] sm:$0xff]
        %v6227 = vld [vmem:[%s5 + $0x178] sm:$0xff]
        %v6228 = vld [vmem:[%s5 + $0x180] sm:$0xff]
        %v6229 = vld [vmem:[%s5 + $0x188] sm:$0xff]
        %v6230 = vld [vmem:[%s5 + $0x190] sm:$0xff]
        %v6231 = vld [vmem:[%s5 + $0x198] sm:$0xff]
        %v6232 = vld [vmem:[%s5 + $0x1a0] sm:$0xff]
        %v6233 = vld [vmem:[%s5 + $0x1a8] sm:$0xff]
        %v6234 = vld [vmem:[%s5 + $0x1b0] sm:$0xff]
        %v6235 = vld [vmem:[%s5 + $0x1b8] sm:$0xff]
        %v6236 = vld [vmem:[%s5 + $0x1c0] sm:$0xff]
        %v6237 = vld [vmem:[%s5 + $0x1c8] sm:$0xff]
        %v6238 = vld [vmem:[%s5 + $0x1d0] sm:$0xff]
        %v6239 = vld [vmem:[%s5 + $0x1d8] sm:$0xff]
        %v6240 = vld [vmem:[%s5 + $0x1e0] sm:$0xff]
        %v6241 = vld [vmem:[%s5 + $0x1e8] sm:$0xff]
        %v6242 = vld [vmem:[%s5 + $0x1f0] sm:$0xff]
        %v6243 = vld [vmem:[%s5 + $0x1f8] sm:$0xff]
        %v6244 = vld [vmem:[%s6] sm:$0x3]
        %v6246 = vlaneseq
        %v6247 = vshrl.u32 %v6246, 7
        %v6248 = vsub.s32 0, %v6247
        %v6249 = vrot.slane %v6244, %v6248
        %v6250 = vlaneseq
        %v6251 = vshrl.u32 %v6250, 7
        %v6252 = vsub.s32 1, %v6251
        %v6253 = vrot.slane %v6244, %v6252
        %v6320 = vunpack.c.l.b16 %v6180
        %v6321 = vunpack.c.h.b16 %v6180
        %v6322 = vunpack.c.l.b16 %v6181
        %v6323 = vunpack.c.h.b16 %v6181
        %v6324 = vunpack.c.l.b16 %v6182
        %v6325 = vunpack.c.h.b16 %v6182
        %v6326 = vunpack.c.l.b16 %v6183
        %v6327 = vunpack.c.h.b16 %v6183
        %v6328 = vunpack.c.l.b16 %v6184
        %v6329 = vunpack.c.h.b16 %v6184
        %v6330 = vunpack.c.l.b16 %v6185
        %v6331 = vunpack.c.h.b16 %v6185
        %v6332 = vunpack.c.l.b16 %v6186
        %v6333 = vunpack.c.h.b16 %v6186
        %v6334 = vunpack.c.l.b16 %v6187
        %v6335 = vunpack.c.h.b16 %v6187
        %v6336 = vunpack.c.l.b16 %v6188
        %v6337 = vunpack.c.h.b16 %v6188
        %v6338 = vunpack.c.l.b16 %v6189
        %v6339 = vunpack.c.h.b16 %v6189
        %v6340 = vunpack.c.l.b16 %v6190
        %v6341 = vunpack.c.h.b16 %v6190
        %v6342 = vunpack.c.l.b16 %v6191
        %v6343 = vunpack.c.h.b16 %v6191
        %v6344 = vunpack.c.l.b16 %v6192
        %v6345 = vunpack.c.h.b16 %v6192
        %v6346 = vunpack.c.l.b16 %v6193
        %v6347 = vunpack.c.h.b16 %v6193
        %v6348 = vunpack.c.l.b16 %v6194
        %v6349 = vunpack.c.h.b16 %v6194
        %v6350 = vunpack.c.l.b16 %v6195
        %v6351 = vunpack.c.h.b16 %v6195
        %v6352 = vunpack.c.l.b16 %v6196
        %v6353 = vunpack.c.h.b16 %v6196
        %v6354 = vunpack.c.l.b16 %v6197
        %v6355 = vunpack.c.h.b16 %v6197
        %v6356 = vunpack.c.l.b16 %v6198
        %v6357 = vunpack.c.h.b16 %v6198
        %v6358 = vunpack.c.l.b16 %v6199
        %v6359 = vunpack.c.h.b16 %v6199
        %v6360 = vunpack.c.l.b16 %v6200
        %v6361 = vunpack.c.h.b16 %v6200
        %v6362 = vunpack.c.l.b16 %v6201
        %v6363 = vunpack.c.h.b16 %v6201
        %v6364 = vunpack.c.l.b16 %v6202
        %v6365 = vunpack.c.h.b16 %v6202
        %v6366 = vunpack.c.l.b16 %v6203
        %v6367 = vunpack.c.h.b16 %v6203
        %v6368 = vunpack.c.l.b16 %v6204
        %v6369 = vunpack.c.h.b16 %v6204
        %v6370 = vunpack.c.l.b16 %v6205
        %v6371 = vunpack.c.h.b16 %v6205
        %v6372 = vunpack.c.l.b16 %v6206
        %v6373 = vunpack.c.h.b16 %v6206
        %v6374 = vunpack.c.l.b16 %v6207
        %v6375 = vunpack.c.h.b16 %v6207
        %v6376 = vunpack.c.l.b16 %v6208
        %v6377 = vunpack.c.h.b16 %v6208
        %v6378 = vunpack.c.l.b16 %v6209
        %v6379 = vunpack.c.h.b16 %v6209
        %v6380 = vunpack.c.l.b16 %v6210
        %v6381 = vunpack.c.h.b16 %v6210
        %v6382 = vunpack.c.l.b16 %v6211
        %v6383 = vunpack.c.h.b16 %v6211
        %v6384 = vunpack.c.l.b16 %v6212
        %v6385 = vunpack.c.h.b16 %v6212
        %v6386 = vunpack.c.l.b16 %v6213
        %v6387 = vunpack.c.h.b16 %v6213
        %v6388 = vunpack.c.l.b16 %v6214
        %v6389 = vunpack.c.h.b16 %v6214
        %v6390 = vunpack.c.l.b16 %v6215
        %v6391 = vunpack.c.h.b16 %v6215
        %v6392 = vunpack.c.l.b16 %v6216
        %v6393 = vunpack.c.h.b16 %v6216
        %v6394 = vunpack.c.l.b16 %v6217
        %v6395 = vunpack.c.h.b16 %v6217
        %v6396 = vunpack.c.l.b16 %v6218
        %v6397 = vunpack.c.h.b16 %v6218
        %v6398 = vunpack.c.l.b16 %v6219
        %v6399 = vunpack.c.h.b16 %v6219
        %v6400 = vunpack.c.l.b16 %v6220
        %v6401 = vunpack.c.h.b16 %v6220
        %v6402 = vunpack.c.l.b16 %v6221
        %v6403 = vunpack.c.h.b16 %v6221
        %v6404 = vunpack.c.l.b16 %v6222
        %v6405 = vunpack.c.h.b16 %v6222
        %v6406 = vunpack.c.l.b16 %v6223
        %v6407 = vunpack.c.h.b16 %v6223
        %v6408 = vunpack.c.l.b16 %v6224
        %v6409 = vunpack.c.h.b16 %v6224
        %v6410 = vunpack.c.l.b16 %v6225
        %v6411 = vunpack.c.h.b16 %v6225
        %v6412 = vunpack.c.l.b16 %v6226
        %v6413 = vunpack.c.h.b16 %v6226
        %v6414 = vunpack.c.l.b16 %v6227
        %v6415 = vunpack.c.h.b16 %v6227
        %v6416 = vunpack.c.l.b16 %v6228
        %v6417 = vunpack.c.h.b16 %v6228
        %v6418 = vunpack.c.l.b16 %v6229
        %v6419 = vunpack.c.h.b16 %v6229
        %v6420 = vunpack.c.l.b16 %v6230
        %v6421 = vunpack.c.h.b16 %v6230
        %v6422 = vunpack.c.l.b16 %v6231
        %v6423 = vunpack.c.h.b16 %v6231
        %v6424 = vunpack.c.l.b16 %v6232
        %v6425 = vunpack.c.h.b16 %v6232
        %v6426 = vunpack.c.l.b16 %v6233
        %v6427 = vunpack.c.h.b16 %v6233
        %v6428 = vunpack.c.l.b16 %v6234
        %v6429 = vunpack.c.h.b16 %v6234
        %v6430 = vunpack.c.l.b16 %v6235
        %v6431 = vunpack.c.h.b16 %v6235
        %v6432 = vunpack.c.l.b16 %v6236
        %v6433 = vunpack.c.h.b16 %v6236
        %v6434 = vunpack.c.l.b16 %v6237
        %v6435 = vunpack.c.h.b16 %v6237
        %v6436 = vunpack.c.l.b16 %v6238
        %v6437 = vunpack.c.h.b16 %v6238
        %v6438 = vunpack.c.l.b16 %v6239
        %v6439 = vunpack.c.h.b16 %v6239
        %v6440 = vunpack.c.l.b16 %v6240
        %v6441 = vunpack.c.h.b16 %v6240
        %v6442 = vunpack.c.l.b16 %v6241
        %v6443 = vunpack.c.h.b16 %v6241
        %v6444 = vunpack.c.l.b16 %v6242
        %v6445 = vunpack.c.h.b16 %v6242
        %v6446 = vunpack.c.l.b16 %v6243
        %v6447 = vunpack.c.h.b16 %v6243
        %v6448 = vpack.c.b16 %v6322, %v6320
        %v6449 = vpack.c.b16 %v6323, %v6321
        %v6450 = vpack.c.b16 %v6326, %v6324
        %v6451 = vpack.c.b16 %v6327, %v6325
        %v6452 = vpack.c.b16 %v6330, %v6328
        %v6453 = vpack.c.b16 %v6331, %v6329
        %v6454 = vpack.c.b16 %v6334, %v6332
        %v6455 = vpack.c.b16 %v6335, %v6333
        %v6456 = vpack.c.b16 %v6338, %v6336
        %v6457 = vpack.c.b16 %v6339, %v6337
        %v6458 = vpack.c.b16 %v6342, %v6340
        %v6459 = vpack.c.b16 %v6343, %v6341
        %v6460 = vpack.c.b16 %v6346, %v6344
        %v6461 = vpack.c.b16 %v6347, %v6345
        %v6462 = vpack.c.b16 %v6350, %v6348
        %v6463 = vpack.c.b16 %v6351, %v6349
        %v6464 = vpack.c.b16 %v6354, %v6352
        %v6465 = vpack.c.b16 %v6355, %v6353
        %v6466 = vpack.c.b16 %v6358, %v6356
        %v6467 = vpack.c.b16 %v6359, %v6357
        %v6468 = vpack.c.b16 %v6362, %v6360
        %v6469 = vpack.c.b16 %v6363, %v6361
        %v6470 = vpack.c.b16 %v6366, %v6364
        %v6471 = vpack.c.b16 %v6367, %v6365
        %v6472 = vpack.c.b16 %v6370, %v6368
        %v6473 = vpack.c.b16 %v6371, %v6369
        %v6474 = vpack.c.b16 %v6374, %v6372
        %v6475 = vpack.c.b16 %v6375, %v6373
        %v6476 = vpack.c.b16 %v6378, %v6376
        %v6477 = vpack.c.b16 %v6379, %v6377
        %v6478 = vpack.c.b16 %v6382, %v6380
        %v6479 = vpack.c.b16 %v6383, %v6381
        %v6480 = vpack.c.b16 %v6386, %v6384
        %v6481 = vpack.c.b16 %v6387, %v6385
        %v6482 = vpack.c.b16 %v6390, %v6388
        %v6483 = vpack.c.b16 %v6391, %v6389
        %v6484 = vpack.c.b16 %v6394, %v6392
        %v6485 = vpack.c.b16 %v6395, %v6393
        %v6486 = vpack.c.b16 %v6398, %v6396
        %v6487 = vpack.c.b16 %v6399, %v6397
        %v6488 = vpack.c.b16 %v6402, %v6400
        %v6489 = vpack.c.b16 %v6403, %v6401
        %v6490 = vpack.c.b16 %v6406, %v6404
        %v6491 = vpack.c.b16 %v6407, %v6405
        %v6492 = vpack.c.b16 %v6410, %v6408
        %v6493 = vpack.c.b16 %v6411, %v6409
        %v6494 = vpack.c.b16 %v6414, %v6412
        %v6495 = vpack.c.b16 %v6415, %v6413
        %v6496 = vpack.c.b16 %v6418, %v6416
        %v6497 = vpack.c.b16 %v6419, %v6417
        %v6498 = vpack.c.b16 %v6422, %v6420
        %v6499 = vpack.c.b16 %v6423, %v6421
        %v6500 = vpack.c.b16 %v6426, %v6424
        %v6501 = vpack.c.b16 %v6427, %v6425
        %v6502 = vpack.c.b16 %v6430, %v6428
        %v6503 = vpack.c.b16 %v6431, %v6429
        %v6504 = vpack.c.b16 %v6434, %v6432
        %v6505 = vpack.c.b16 %v6435, %v6433
        %v6506 = vpack.c.b16 %v6438, %v6436
        %v6507 = vpack.c.b16 %v6439, %v6437
        %v6508 = vpack.c.b16 %v6442, %v6440
        %v6509 = vpack.c.b16 %v6443, %v6441
        %v6510 = vpack.c.b16 %v6446, %v6444
        %v6511 = vpack.c.b16 %v6447, %v6445
        %6576 = vmatprep.subr.bf16.mxu0 %v6449
        %6577 = vmatpush1.bf16.msra.mxu0 %v6448
        %6578 = vmatprep.subr.bf16.mxu0 %v6451
        %6579 = vmatpush1.bf16.msra.mxu0 %v6450
        %6580 = vmatprep.subr.bf16.mxu0 %v6453
        %6581 = vmatpush1.bf16.msra.mxu0 %v6452
        %6582 = vmatprep.subr.bf16.mxu0 %v6455
        %6583 = vmatpush1.bf16.msra.mxu0 %v6454
        %6584 = vmatprep.subr.bf16.mxu0 %v6457
        %6585 = vmatpush1.bf16.msra.mxu0 %v6456
        %6586 = vmatprep.subr.bf16.mxu0 %v6459
        %6587 = vmatpush1.bf16.msra.mxu0 %v6458
        %6588 = vmatprep.subr.bf16.mxu0 %v6461
        %6589 = vmatpush1.bf16.msra.mxu0 %v6460
        %6590 = vmatprep.subr.bf16.mxu0 %v6463
        %6591 = vmatpush1.bf16.msra.mxu0 %v6462
        %6592 = vmatprep.subr.bf16.mxu0 %v6465
        %6593 = vmatpush1.bf16.msra.mxu0 %v6464
        %6594 = vmatprep.subr.bf16.mxu0 %v6467
        %6595 = vmatpush1.bf16.msra.mxu0 %v6466
        %6596 = vmatprep.subr.bf16.mxu0 %v6469
        %6597 = vmatpush1.bf16.msra.mxu0 %v6468
        %6598 = vmatprep.subr.bf16.mxu0 %v6471
        %6599 = vmatpush1.bf16.msra.mxu0 %v6470
        %6600 = vmatprep.subr.bf16.mxu0 %v6473
        %6601 = vmatpush1.bf16.msra.mxu0 %v6472
        %6602 = vmatprep.subr.bf16.mxu0 %v6475
        %6603 = vmatpush1.bf16.msra.mxu0 %v6474
        %6604 = vmatprep.subr.bf16.mxu0 %v6477
        %6605 = vmatpush1.bf16.msra.mxu0 %v6476
        %6606 = vmatprep.subr.bf16.mxu0 %v6479
        %6607 = vmatpush1.bf16.msra.mxu0 %v6478
        %6608 = vmatprep.mubr.bf16.mxu0 %v3907
        %6609 = vmatmul.mubr.bf16.gmra.mrb[0].mxu0 %v3906
        %v6610 = vpop.f32.mrb[0].mxu0
        %v6611 = vadd.f32 %v6249, %v6610
        %v6612 = vpop.f32.mrb[0].mxu0
        %v6613 = vadd.f32 %v6253, %v6612
        %v6614 = vpop.f32.mrb[0].mxu0
        %v6615 = vadd.f32 %v6249, %v6614
        %v6616 = vpop.f32.mrb[0].mxu0
        %v6617 = vadd.f32 %v6253, %v6616
        %6618 = vmatprep.mubr.bf16.mxu0 %v3909
        %6619 = vmatmul.mubr.bf16.gmra.mrb[0].mxu0 %v3908
        %v6620 = vpop.f32.mrb[0].mxu0
        %v6621 = vadd.f32 %v6249, %v6620
        %v6622 = vpop.f32.mrb[0].mxu0
        %v6623 = vadd.f32 %v6253, %v6622
        %v6624 = vpop.f32.mrb[0].mxu0
        %v6625 = vadd.f32 %v6249, %v6624
        %v6626 = vpop.f32.mrb[0].mxu0
        %v6627 = vadd.f32 %v6253, %v6626
        %6628 = vmatprep.mubr.bf16.mxu0 %v3911
        %6629 = vmatmul.mubr.bf16.gmra.mrb[0].mxu0 %v3910
        %v6630 = vpop.f32.mrb[0].mxu0
        %v6631 = vadd.f32 %v6249, %v6630
        %v6632 = vpop.f32.mrb[0].mxu0
        %v6633 = vadd.f32 %v6253, %v6632
        %v6634 = vpop.f32.mrb[0].mxu0
        %v6635 = vadd.f32 %v6249, %v6634
        %v6636 = vpop.f32.mrb[0].mxu0
        %v6637 = vadd.f32 %v6253, %v6636
        %6638 = vmatprep.mubr.bf16.mxu0 %v3913
        %6639 = vmatmul.mubr.bf16.gmra.mrb[0].mxu0 %v3912
        %v6640 = vpop.f32.mrb[0].mxu0
        %v6641 = vadd.f32 %v6249, %v6640
        %v6642 = vpop.f32.mrb[0].mxu0
        %v6643 = vadd.f32 %v6253, %v6642
        %v6644 = vpop.f32.mrb[0].mxu0
        %v6645 = vadd.f32 %v6249, %v6644
        %v6646 = vpop.f32.mrb[0].mxu0
        %v6647 = vadd.f32 %v6253, %v6646
        %6648 = vmatprep.mubr.bf16.mxu0 %v3915
        %6649 = vmatmul.mubr.bf16.gmra.mrb[0].mxu0 %v3914
        %v6650 = vpop.f32.mrb[0].mxu0
        %v6651 = vadd.f32 %v6249, %v6650
        %v6652 = vpop.f32.mrb[0].mxu0
        %v6653 = vadd.f32 %v6253, %v6652
        %v6654 = vpop.f32.mrb[0].mxu0
        %v6655 = vadd.f32 %v6249, %v6654
        %v6656 = vpop.f32.mrb[0].mxu0
        %v6657 = vadd.f32 %v6253, %v6656
        %6658 = vmatprep.mubr.bf16.mxu0 %v3917
        %6659 = vmatmul.mubr.bf16.gmra.mrb[0].mxu0 %v3916
        %v6660 = vpop.f32.mrb[0].mxu0
        %v6661 = vadd.f32 %v6249, %v6660
        %v6662 = vpop.f32.mrb[0].mxu0
        %v6663 = vadd.f32 %v6253, %v6662
        %v6664 = vpop.f32.mrb[0].mxu0
        %v6665 = vadd.f32 %v6249, %v6664
        %v6666 = vpop.f32.mrb[0].mxu0
        %v6667 = vadd.f32 %v6253, %v6666
        %6668 = vmatprep.mubr.bf16.mxu0 %v3919
        %6669 = vmatmul.mubr.bf16.gmra.mrb[0].mxu0 %v3918
        %v6670 = vpop.f32.mrb[0].mxu0
        %v6671 = vadd.f32 %v6249, %v6670
        %v6672 = vpop.f32.mrb[0].mxu0
        %v6673 = vadd.f32 %v6253, %v6672
        %v6674 = vpop.f32.mrb[0].mxu0
        %v6675 = vadd.f32 %v6249, %v6674
        %v6676 = vpop.f32.mrb[0].mxu0
        %v6677 = vadd.f32 %v6253, %v6676
        %6678 = vmatprep.mubr.bf16.mxu0 %v3921
        %6679 = vmatmul.mubr.bf16.gmra.mrb[0].mxu0 %v3920
        %v6680 = vpop.f32.mrb[0].mxu0
        %v6681 = vadd.f32 %v6249, %v6680
        %v6682 = vpop.f32.mrb[0].mxu0
        %v6683 = vadd.f32 %v6253, %v6682
        %v6684 = vpop.f32.mrb[0].mxu0
        %v6685 = vadd.f32 %v6249, %v6684
        %v6686 = vpop.f32.mrb[0].mxu0
        %v6687 = vadd.f32 %v6253, %v6686
        %6688 = vmatprep.mubr.bf16.mxu0 %v5428
        %6689 = vmatmul.mubr.bf16.gmra.mrb[0].mxu0 %v5427
        %v6690 = vpop.f32.mrb[0].mxu0
        %v6691 = vadd.f32 %v6249, %v6690
        %v6692 = vpop.f32.mrb[0].mxu0
        %v6693 = vadd.f32 %v6253, %v6692
        %v6694 = vpop.f32.mrb[0].mxu0
        %v6695 = vadd.f32 %v6249, %v6694
        %v6696 = vpop.f32.mrb[0].mxu0
        %v6697 = vadd.f32 %v6253, %v6696
        %6698 = vmatprep.mubr.bf16.mxu0 %v5430
        %6699 = vmatmul.mubr.bf16.gmra.mrb[0].mxu0 %v5429
        %v6700 = vpop.f32.mrb[0].mxu0
        %v6701 = vadd.f32 %v6249, %v6700
        %v6702 = vpop.f32.mrb[0].mxu0
        %v6703 = vadd.f32 %v6253, %v6702
        %v6704 = vpop.f32.mrb[0].mxu0
        %v6705 = vadd.f32 %v6249, %v6704
        %v6706 = vpop.f32.mrb[0].mxu0
        %v6707 = vadd.f32 %v6253, %v6706
        %6708 = vmatprep.mubr.bf16.mxu0 %v5432
        %6709 = vmatmul.mubr.bf16.gmra.mrb[0].mxu0 %v5431
        %v6710 = vpop.f32.mrb[0].mxu0
        %v6711 = vadd.f32 %v6249, %v6710
        %v6712 = vpop.f32.mrb[0].mxu0
        %v6713 = vadd.f32 %v6253, %v6712
        %v6714 = vpop.f32.mrb[0].mxu0
        %v6715 = vadd.f32 %v6249, %v6714
        %v6716 = vpop.f32.mrb[0].mxu0
        %v6717 = vadd.f32 %v6253, %v6716
        %6718 = vmatprep.mubr.bf16.mxu0 %v5434
        %6719 = vmatmul.mubr.bf16.gmra.mrb[0].mxu0 %v5433
        %v6720 = vpop.f32.mrb[0].mxu0
        %v6721 = vadd.f32 %v6249, %v6720
        %v6722 = vpop.f32.mrb[0].mxu0
        %v6723 = vadd.f32 %v6253, %v6722
        %v6724 = vpop.f32.mrb[0].mxu0
        %v6725 = vadd.f32 %v6249, %v6724
        %v6726 = vpop.f32.mrb[0].mxu0
        %v6727 = vadd.f32 %v6253, %v6726
        %6728 = vmatprep.mubr.bf16.mxu0 %v5436
        %6729 = vmatmul.mubr.bf16.gmra.mrb[0].mxu0 %v5435
        %v6730 = vpop.f32.mrb[0].mxu0
        %v6731 = vadd.f32 %v6249, %v6730
        %v6732 = vpop.f32.mrb[0].mxu0
        %v6733 = vadd.f32 %v6253, %v6732
        %v6734 = vpop.f32.mrb[0].mxu0
        %v6735 = vadd.f32 %v6249, %v6734
        %v6736 = vpop.f32.mrb[0].mxu0
        %v6737 = vadd.f32 %v6253, %v6736
        %6738 = vmatprep.mubr.bf16.mxu0 %v5438
        %6739 = vmatmul.mubr.bf16.gmra.mrb[0].mxu0 %v5437
        %v6740 = vpop.f32.mrb[0].mxu0
        %v6741 = vadd.f32 %v6249, %v6740
        %v6742 = vpop.f32.mrb[0].mxu0
        %v6743 = vadd.f32 %v6253, %v6742
        %v6744 = vpop.f32.mrb[0].mxu0
        %v6745 = vadd.f32 %v6249, %v6744
        %v6746 = vpop.f32.mrb[0].mxu0
        %v6747 = vadd.f32 %v6253, %v6746
        %6748 = vmatprep.mubr.bf16.mxu0 %v5440
        %6749 = vmatmul.mubr.bf16.gmra.mrb[0].mxu0 %v5439
        %v6750 = vpop.f32.mrb[0].mxu0
        %v6751 = vadd.f32 %v6249, %v6750
        %v6752 = vpop.f32.mrb[0].mxu0
        %v6753 = vadd.f32 %v6253, %v6752
        %v6754 = vpop.f32.mrb[0].mxu0
        %v6755 = vadd.f32 %v6249, %v6754
        %v6756 = vpop.f32.mrb[0].mxu0
        %v6757 = vadd.f32 %v6253, %v6756
        %6758 = vmatprep.mubr.bf16.mxu0 %v5442
        %6759 = vmatmul.mubr.bf16.gmra.mrb[0].mxu0 %v5441
        %v6760 = vpop.f32.mrb[0].mxu0
        %v6761 = vadd.f32 %v6249, %v6760
        %v6762 = vpop.f32.mrb[0].mxu0
        %v6763 = vadd.f32 %v6253, %v6762
        %v6764 = vpop.f32.mrb[0].mxu0
        %v6765 = vadd.f32 %v6249, %v6764
        %v6766 = vpop.f32.mrb[0].mxu0
        %v6767 = vadd.f32 %v6253, %v6766
        %6768 = vdwg.mxu0
        %6769 = vmatprep.subr.bf16.mxu0 %v6481
        %6770 = vmatpush1.bf16.msra.mxu0 %v6480
        %6771 = vmatprep.subr.bf16.mxu0 %v6483
        %6772 = vmatpush1.bf16.msra.mxu0 %v6482
        %6773 = vmatprep.subr.bf16.mxu0 %v6485
        %6774 = vmatpush1.bf16.msra.mxu0 %v6484
        %6775 = vmatprep.subr.bf16.mxu0 %v6487
        %6776 = vmatpush1.bf16.msra.mxu0 %v6486
        %6777 = vmatprep.subr.bf16.mxu0 %v6489
        %6778 = vmatpush1.bf16.msra.mxu0 %v6488
        %6779 = vmatprep.subr.bf16.mxu0 %v6491
        %6780 = vmatpush1.bf16.msra.mxu0 %v6490
        %6781 = vmatprep.subr.bf16.mxu0 %v6493
        %6782 = vmatpush1.bf16.msra.mxu0 %v6492
        %6783 = vmatprep.subr.bf16.mxu0 %v6495
        %6784 = vmatpush1.bf16.msra.mxu0 %v6494
        %6785 = vmatprep.subr.bf16.mxu0 %v6497
        %6786 = vmatpush1.bf16.msra.mxu0 %v6496
        %6787 = vmatprep.subr.bf16.mxu0 %v6499
        %6788 = vmatpush1.bf16.msra.mxu0 %v6498
        %6789 = vmatprep.subr.bf16.mxu0 %v6501
        %6790 = vmatpush1.bf16.msra.mxu0 %v6500
        %6791 = vmatprep.subr.bf16.mxu0 %v6503
        %6792 = vmatpush1.bf16.msra.mxu0 %v6502
        %6793 = vmatprep.subr.bf16.mxu0 %v6505
        %6794 = vmatpush1.bf16.msra.mxu0 %v6504
        %6795 = vmatprep.subr.bf16.mxu0 %v6507
        %6796 = vmatpush1.bf16.msra.mxu0 %v6506
        %6797 = vmatprep.subr.bf16.mxu0 %v6509
        %6798 = vmatpush1.bf16.msra.mxu0 %v6508
        %6799 = vmatprep.subr.bf16.mxu0 %v6511
        %6800 = vmatpush1.bf16.msra.mxu0 %v6510
        %6801 = vmatprep.mubr.bf16.mxu0 %v6149
        %6802 = vmatmul.mubr.bf16.gmra.mrb[0].mxu0 %v6148
        %v6803 = vpop.f32.mrb[0].mxu0
        %v6804 = vadd.f32 %v6611, %v6803
        %v6805 = vpop.f32.mrb[0].mxu0
        %v6806 = vadd.f32 %v6613, %v6805
        %v6807 = vpop.f32.mrb[0].mxu0
        %v6808 = vadd.f32 %v6615, %v6807
        %v6809 = vpop.f32.mrb[0].mxu0
        %v6810 = vadd.f32 %v6617, %v6809
        %6811 = vmatprep.mubr.bf16.mxu0 %v6151
        %6812 = vmatmul.mubr.bf16.gmra.mrb[0].mxu0 %v6150
        %v6813 = vpop.f32.mrb[0].mxu0
        %v6814 = vadd.f32 %v6621, %v6813
        %v6815 = vpop.f32.mrb[0].mxu0
        %v6816 = vadd.f32 %v6623, %v6815
        %v6817 = vpop.f32.mrb[0].mxu0
        %v6818 = vadd.f32 %v6625, %v6817
        %v6819 = vpop.f32.mrb[0].mxu0
        %v6820 = vadd.f32 %v6627, %v6819
        %6821 = vmatprep.mubr.bf16.mxu0 %v6153
        %6822 = vmatmul.mubr.bf16.gmra.mrb[0].mxu0 %v6152
        %v6823 = vpop.f32.mrb[0].mxu0
        %v6824 = vadd.f32 %v6631, %v6823
        %v6825 = vpop.f32.mrb[0].mxu0
        %v6826 = vadd.f32 %v6633, %v6825
        %v6827 = vpop.f32.mrb[0].mxu0
        %v6828 = vadd.f32 %v6635, %v6827
        %v6829 = vpop.f32.mrb[0].mxu0
        %v6830 = vadd.f32 %v6637, %v6829
        %6831 = vmatprep.mubr.bf16.mxu0 %v6155
        %6832 = vmatmul.mubr.bf16.gmra.mrb[0].mxu0 %v6154
        %v6833 = vpop.f32.mrb[0].mxu0
        %v6834 = vadd.f32 %v6641, %v6833
        %v6835 = vpop.f32.mrb[0].mxu0
        %v6836 = vadd.f32 %v6643, %v6835
        %v6837 = vpop.f32.mrb[0].mxu0
        %v6838 = vadd.f32 %v6645, %v6837
        %v6839 = vpop.f32.mrb[0].mxu0
        %v6840 = vadd.f32 %v6647, %v6839
        %6841 = vmatprep.mubr.bf16.mxu0 %v6157
        %6842 = vmatmul.mubr.bf16.gmra.mrb[0].mxu0 %v6156
        %v6843 = vpop.f32.mrb[0].mxu0
        %v6844 = vadd.f32 %v6651, %v6843
        %v6845 = vpop.f32.mrb[0].mxu0
        %v6846 = vadd.f32 %v6653, %v6845
        %v6847 = vpop.f32.mrb[0].mxu0
        %v6848 = vadd.f32 %v6655, %v6847
        %v6849 = vpop.f32.mrb[0].mxu0
        %v6850 = vadd.f32 %v6657, %v6849
        %6851 = vmatprep.mubr.bf16.mxu0 %v6159
        %6852 = vmatmul.mubr.bf16.gmra.mrb[0].mxu0 %v6158
        %v6853 = vpop.f32.mrb[0].mxu0
        %v6854 = vadd.f32 %v6661, %v6853
        %v6855 = vpop.f32.mrb[0].mxu0
        %v6856 = vadd.f32 %v6663, %v6855
        %v6857 = vpop.f32.mrb[0].mxu0
        %v6858 = vadd.f32 %v6665, %v6857
        %v6859 = vpop.f32.mrb[0].mxu0
        %v6860 = vadd.f32 %v6667, %v6859
        %6861 = vmatprep.mubr.bf16.mxu0 %v6161
        %6862 = vmatmul.mubr.bf16.gmra.mrb[0].mxu0 %v6160
        %v6863 = vpop.f32.mrb[0].mxu0
        %v6864 = vadd.f32 %v6671, %v6863
        %v6865 = vpop.f32.mrb[0].mxu0
        %v6866 = vadd.f32 %v6673, %v6865
        %v6867 = vpop.f32.mrb[0].mxu0
        %v6868 = vadd.f32 %v6675, %v6867
        %v6869 = vpop.f32.mrb[0].mxu0
        %v6870 = vadd.f32 %v6677, %v6869
        %6871 = vmatprep.mubr.bf16.mxu0 %v6163
        %6872 = vmatmul.mubr.bf16.gmra.mrb[0].mxu0 %v6162
        %v6873 = vpop.f32.mrb[0].mxu0
        %v6874 = vadd.f32 %v6681, %v6873
        %v6875 = vpop.f32.mrb[0].mxu0
        %v6876 = vadd.f32 %v6683, %v6875
        %v6877 = vpop.f32.mrb[0].mxu0
        %v6878 = vadd.f32 %v6685, %v6877
        %v6879 = vpop.f32.mrb[0].mxu0
        %v6880 = vadd.f32 %v6687, %v6879
        %6881 = vmatprep.mubr.bf16.mxu0 %v6165
        %6882 = vmatmul.mubr.bf16.gmra.mrb[0].mxu0 %v6164
        %v6883 = vpop.f32.mrb[0].mxu0
        %v6884 = vadd.f32 %v6691, %v6883
        %v6885 = vpop.f32.mrb[0].mxu0
        %v6886 = vadd.f32 %v6693, %v6885
        %v6887 = vpop.f32.mrb[0].mxu0
        %v6888 = vadd.f32 %v6695, %v6887
        %v6889 = vpop.f32.mrb[0].mxu0
        %v6890 = vadd.f32 %v6697, %v6889
        %6891 = vmatprep.mubr.bf16.mxu0 %v6167
        %6892 = vmatmul.mubr.bf16.gmra.mrb[0].mxu0 %v6166
        %v6893 = vpop.f32.mrb[0].mxu0
        %v6894 = vadd.f32 %v6701, %v6893
        %v6895 = vpop.f32.mrb[0].mxu0
        %v6896 = vadd.f32 %v6703, %v6895
        %v6897 = vpop.f32.mrb[0].mxu0
        %v6898 = vadd.f32 %v6705, %v6897
        %v6899 = vpop.f32.mrb[0].mxu0
        %v6900 = vadd.f32 %v6707, %v6899
        %6901 = vmatprep.mubr.bf16.mxu0 %v6169
        %6902 = vmatmul.mubr.bf16.gmra.mrb[0].mxu0 %v6168
        %v6903 = vpop.f32.mrb[0].mxu0
        %v6904 = vadd.f32 %v6711, %v6903
        %v6905 = vpop.f32.mrb[0].mxu0
        %v6906 = vadd.f32 %v6713, %v6905
        %v6907 = vpop.f32.mrb[0].mxu0
        %v6908 = vadd.f32 %v6715, %v6907
        %v6909 = vpop.f32.mrb[0].mxu0
        %v6910 = vadd.f32 %v6717, %v6909
        %6911 = vmatprep.mubr.bf16.mxu0 %v6171
        %6912 = vmatmul.mubr.bf16.gmra.mrb[0].mxu0 %v6170
        %v6913 = vpop.f32.mrb[0].mxu0
        %v6914 = vadd.f32 %v6721, %v6913
        %v6915 = vpop.f32.mrb[0].mxu0
        %v6916 = vadd.f32 %v6723, %v6915
        %v6917 = vpop.f32.mrb[0].mxu0
        %v6918 = vadd.f32 %v6725, %v6917
        %v6919 = vpop.f32.mrb[0].mxu0
        %v6920 = vadd.f32 %v6727, %v6919
        %6921 = vmatprep.mubr.bf16.mxu0 %v6173
        %6922 = vmatmul.mubr.bf16.gmra.mrb[0].mxu0 %v6172
        %v6923 = vpop.f32.mrb[0].mxu0
        %v6924 = vadd.f32 %v6731, %v6923
        %v6925 = vpop.f32.mrb[0].mxu0
        %v6926 = vadd.f32 %v6733, %v6925
        %v6927 = vpop.f32.mrb[0].mxu0
        %v6928 = vadd.f32 %v6735, %v6927
        %v6929 = vpop.f32.mrb[0].mxu0
        %v6930 = vadd.f32 %v6737, %v6929
        %6931 = vmatprep.mubr.bf16.mxu0 %v6175
        %6932 = vmatmul.mubr.bf16.gmra.mrb[0].mxu0 %v6174
        %v6933 = vpop.f32.mrb[0].mxu0
        %v6934 = vadd.f32 %v6741, %v6933
        %v6935 = vpop.f32.mrb[0].mxu0
        %v6936 = vadd.f32 %v6743, %v6935
        %v6937 = vpop.f32.mrb[0].mxu0
        %v6938 = vadd.f32 %v6745, %v6937
        %v6939 = vpop.f32.mrb[0].mxu0
        %v6940 = vadd.f32 %v6747, %v6939
        %6941 = vmatprep.mubr.bf16.mxu0 %v6177
        %6942 = vmatmul.mubr.bf16.gmra.mrb[0].mxu0 %v6176
        %v6943 = vpop.f32.mrb[0].mxu0
        %v6944 = vadd.f32 %v6751, %v6943
        %v6945 = vpop.f32.mrb[0].mxu0
        %v6946 = vadd.f32 %v6753, %v6945
        %v6947 = vpop.f32.mrb[0].mxu0
        %v6948 = vadd.f32 %v6755, %v6947
        %v6949 = vpop.f32.mrb[0].mxu0
        %v6950 = vadd.f32 %v6757, %v6949
        %6951 = vmatprep.mubr.bf16.mxu0 %v6179
        %6952 = vmatmul.mubr.bf16.gmra.mrb[0].mxu0 %v6178
        %v6953 = vpop.f32.mrb[0].mxu0
        %v6954 = vadd.f32 %v6761, %v6953
        %v6955 = vpop.f32.mrb[0].mxu0
        %v6956 = vadd.f32 %v6763, %v6955
        %v6957 = vpop.f32.mrb[0].mxu0
        %v6958 = vadd.f32 %v6765, %v6957
        %v6959 = vpop.f32.mrb[0].mxu0
        %v6960 = vadd.f32 %v6767, %v6959
        %6961 = vdwg.mxu0
        %6962 = vst [vmem:[%s275] sm:$0xff] %v6804
        %6963 = vst [vmem:[%s275 + $0x8] sm:$0xff] %v6806
        %6964 = vst [vmem:[%s275 + $0x10] sm:$0xff] %v6808
        %6965 = vst [vmem:[%s275 + $0x18] sm:$0xff] %v6810
        %6966 = vst [vmem:[%s275 + $0x20] sm:$0xff] %v6814
        %6967 = vst [vmem:[%s275 + $0x28] sm:$0xff] %v6816
        %6968 = vst [vmem:[%s275 + $0x30] sm:$0xff] %v6818
        %6969 = vst [vmem:[%s275 + $0x38] sm:$0xff] %v6820
        %6970 = vst [vmem:[%s275 + $0x40] sm:$0xff] %v6824
        %6971 = vst [vmem:[%s275 + $0x48] sm:$0xff] %v6826
        %6972 = vst [vmem:[%s275 + $0x50] sm:$0xff] %v6828
        %6973 = vst [vmem:[%s275 + $0x58] sm:$0xff] %v6830
        %6974 = vst [vmem:[%s275 + $0x60] sm:$0xff] %v6834
        %6975 = vst [vmem:[%s275 + $0x68] sm:$0xff] %v6836
        %6976 = vst [vmem:[%s275 + $0x70] sm:$0xff] %v6838
        %6977 = vst [vmem:[%s275 + $0x78] sm:$0xff] %v6840
        %6978 = vst [vmem:[%s275 + $0x80] sm:$0xff] %v6844
        %6979 = vst [vmem:[%s275 + $0x88] sm:$0xff] %v6846
        %6980 = vst [vmem:[%s275 + $0x90] sm:$0xff] %v6848
        %6981 = vst [vmem:[%s275 + $0x98] sm:$0xff] %v6850
        %6982 = vst [vmem:[%s275 + $0xa0] sm:$0xff] %v6854
        %6983 = vst [vmem:[%s275 + $0xa8] sm:$0xff] %v6856
        %6984 = vst [vmem:[%s275 + $0xb0] sm:$0xff] %v6858
        %6985 = vst [vmem:[%s275 + $0xb8] sm:$0xff] %v6860
        %6986 = vst [vmem:[%s275 + $0xc0] sm:$0xff] %v6864
        %6987 = vst [vmem:[%s275 + $0xc8] sm:$0xff] %v6866
        %6988 = vst [vmem:[%s275 + $0xd0] sm:$0xff] %v6868
        %6989 = vst [vmem:[%s275 + $0xd8] sm:$0xff] %v6870
        %6990 = vst [vmem:[%s275 + $0xe0] sm:$0xff] %v6874
        %6991 = vst [vmem:[%s275 + $0xe8] sm:$0xff] %v6876
        %6992 = vst [vmem:[%s275 + $0xf0] sm:$0xff] %v6878
        %6993 = vst [vmem:[%s275 + $0xf8] sm:$0xff] %v6880
        %6994 = vst [vmem:[%s275 + $0x100] sm:$0xff] %v6884
        %6995 = vst [vmem:[%s275 + $0x108] sm:$0xff] %v6886
        %6996 = vst [vmem:[%s275 + $0x110] sm:$0xff] %v6888
        %6997 = vst [vmem:[%s275 + $0x118] sm:$0xff] %v6890
        %6998 = vst [vmem:[%s275 + $0x120] sm:$0xff] %v6894
        %6999 = vst [vmem:[%s275 + $0x128] sm:$0xff] %v6896
        %7000 = vst [vmem:[%s275 + $0x130] sm:$0xff] %v6898
        %7001 = vst [vmem:[%s275 + $0x138] sm:$0xff] %v6900
        %7002 = vst [vmem:[%s275 + $0x140] sm:$0xff] %v6904
        %7003 = vst [vmem:[%s275 + $0x148] sm:$0xff] %v6906
        %7004 = vst [vmem:[%s275 + $0x150] sm:$0xff] %v6908
        %7005 = vst [vmem:[%s275 + $0x158] sm:$0xff] %v6910
        %7006 = vst [vmem:[%s275 + $0x160] sm:$0xff] %v6914
        %7007 = vst [vmem:[%s275 + $0x168] sm:$0xff] %v6916
        %7008 = vst [vmem:[%s275 + $0x170] sm:$0xff] %v6918
        %7009 = vst [vmem:[%s275 + $0x178] sm:$0xff] %v6920
        %7010 = vst [vmem:[%s275 + $0x180] sm:$0xff] %v6924
        %7011 = vst [vmem:[%s275 + $0x188] sm:$0xff] %v6926
        %7012 = vst [vmem:[%s275 + $0x190] sm:$0xff] %v6928
        %7013 = vst [vmem:[%s275 + $0x198] sm:$0xff] %v6930
        %7014 = vst [vmem:[%s275 + $0x1a0] sm:$0xff] %v6934
        %7015 = vst [vmem:[%s275 + $0x1a8] sm:$0xff] %v6936
        %7016 = vst [vmem:[%s275 + $0x1b0] sm:$0xff] %v6938
        %7017 = vst [vmem:[%s275 + $0x1b8] sm:$0xff] %v6940
        %7018 = vst [vmem:[%s275 + $0x1c0] sm:$0xff] %v6944
        %7019 = vst [vmem:[%s275 + $0x1c8] sm:$0xff] %v6946
        %7020 = vst [vmem:[%s275 + $0x1d0] sm:$0xff] %v6948
        %7021 = vst [vmem:[%s275 + $0x1d8] sm:$0xff] %v6950
        %7022 = vst [vmem:[%s275 + $0x1e0] sm:$0xff] %v6954
        %7023 = vst [vmem:[%s275 + $0x1e8] sm:$0xff] %v6956
        %7024 = vst [vmem:[%s275 + $0x1f0] sm:$0xff] %v6958
        %7025 = vst [vmem:[%s275 + $0x1f8] sm:$0xff] %v6960
        %s7026 = sand.u32 %s182, 1
        %s7027 = scalar_lea.sflag [#allocation4], %s7026
        %s7028 = sand.u32 %s182, 1
        %s7029 = smul.addr %s7028, 512
        %s7030 = scalar_lea.vmem [#allocation3], %s7029
        // Predicated region
        $region49: #{custom_attn.1} parent=47 // pred_check
          %p7031 = pneg %p192
        $region50: #{custom_attn.1} parent=47 // pred_check_branch
          %7033 = sbr.rel (%p7031) target = $region52
        $region51: #{custom_attn.1} parent=47 // pred_region
          %s7034 = smul.u32 32, %s22
          %s7036 = ssub.s32 8192, 8192
          %7037 = vsyncadd %s7027, %s7036
          %s7038 = smul.addr %s7034, 2
          %s7039 = smul.addr %s7038, 128
          %s7040 = scalar_lea.hbm %s7, %s7039
          %s7041 = sshll.u32 %s7030, 4
          %s7042 = int_to_ptr.vmem [resolvable:$true] %s7041
          %7047 = dma.vmem_to_hbm [thread:$0]  %s7042, 8192, %s7040, %s7027, 256, 256, 16
        $region52: #{custom_attn.1} parent=47 // pred_fallthru
          _
      $region48: #{custom_attn.1} parent=5 // pred_fallthru
        _
      %p7048 = scmp.le.s32.totalorder 2, %s17
      // Predicated region
      $region53: #{custom_attn.1} parent=5 // pred_check
        %p7049 = pneg %p7048
      $region54: #{custom_attn.1} parent=5 // pred_check_branch
        %7051 = sbr.rel (%p7049) target = $region56
      $region55: #{custom_attn.1} parent=5 // pred_region
        %s7052 = ssub.s32 %s17, 2
        // Predicated region
        $region57: #{custom_attn.1} parent=55 // pred_check
          %p7053 = pneg %p198
        $region58: #{custom_attn.1} parent=55 // pred_check_branch
          %7055 = sbr.rel (%p7053) target = $region60
        $region59: #{custom_attn.1} parent=55 // pred_region
          %s7056 = sand.u32 %s183, 1
          %s7057 = scalar_lea.sflag [#allocation4], %s7056
          %s7058 = sand.u32 %s183, 1
          %s7059 = smul.addr %s7058, 512
          %s7060 = scalar_lea.vmem [#allocation3], %s7059
          %7061 = dma.done %s7057, 8192
        $region60: #{custom_attn.1} parent=55 // pred_fallthru
          _
      $region56: #{custom_attn.1} parent=5 // pred_fallthru
        _
    $region6: #{custom_attn.1} parent=1 // loop_footer
      %s21 = sadd.s32 1, %s17
    $region7: #{custom_attn.1} parent=1 // loop_footer_branch
      %16 = sbr.rel target = $region3
    $region8: #{custom_attn.1} parent=1 // loop_exit
      _
    %7062 = vsyncpa [#allocation4], 1
    %s7063 = scalar_lea.sflag [#allocation4], 1
    %7064 = vsyncpa %s7063, 1

</llo_original>
